<compile_context>
chip_gen: v6e
topology: v6e:2x2x1
jax: 0.10.0
libtpu: 0.0.40
codegen_flags: <defaults>
</compile_context>

<pallas_src>
import jax
import jax.numpy as jnp
import numpy as np
from jax.experimental import pallas as pl
from jax.experimental.pallas import tpu as pltpu

EPS = 1e-5


def _multiconv_kernel(x_ref, w1_ref, w2_ref, w3_ref,
                      t1_ref, t2_ref, t3_ref, prelu_ref,
                      o_ref, pad_ref):
    """One grid step = one block of B images, processed as a single M batch."""
    B, HW, K1 = x_ref.shape
    _, Hp, Wp, C = pad_ref.shape
    H, W = Hp - 2, Wp - 2
    BHW = B * HW

    a1 = prelu_ref[0]
    a2 = prelu_ref[1]
    t1 = t1_ref[...]
    t2 = t2_ref[...]
    t3 = t3_ref[...]

    # Zero only the border strips of the bf16 padded scratch; the HxW interior
    # is fully overwritten below.  Done every grid step so it stays correct if
    # the (parallel) batch axis is sharded across TensorCores.
    pad_ref[:, 0:1, :, :] = jnp.zeros((B, 1, Wp, C), jnp.bfloat16)
    pad_ref[:, H + 1:H + 2, :, :] = jnp.zeros((B, 1, Wp, C), jnp.bfloat16)
    pad_ref[:, :, 0:1, :] = jnp.zeros((B, Hp, 1, C), jnp.bfloat16)
    pad_ref[:, :, W + 1:W + 2, :] = jnp.zeros((B, Hp, 1, C), jnp.bfloat16)

    # ---- stage 1: 3x3 conv (host-side im2col) as one MXU matmul ------------
    patches = x_ref[...].reshape(BHW, K1)                       # bf16
    y1 = jnp.dot(patches, w1_ref[...],
                 preferred_element_type=jnp.float32) + t1
    y1 = jnp.where(y1 > 0, y1, a1 * y1)                         # PReLU

    # bf16 re-padded intermediate for the second 3x3 conv
    pad_ref[:, 1:H + 1, 1:W + 1, :] = (
        y1.reshape(B, H, W, C).astype(jnp.bfloat16))
    yp = pad_ref[...]                                           # (B,Hp,Wp,C)

    # ---- stage 2: 3x3 conv, batched over images (one matmul per tap) -------
    acc = jnp.zeros((BHW, C), jnp.float32)
    for dx in range(3):
        # One sublane-offset slice per dx; the dy slice is a free leading-dim
        # slice, and the reshape merges leading dims only (W % 8 == 0).
        xs = yp[:, :, dx:dx + W, :]                             # (B,Hp,W,C)
        for dy in range(3):
            patch = xs[:, dy:dy + H].reshape(BHW, C)            # (BHW,C) bf16
            acc = acc + jnp.dot(patch, w2_ref[dy * 3 + dx],
                                preferred_element_type=jnp.float32)
    y2 = acc + t2
    y2 = jnp.where(y2 > 0, y2, a2 * y2)                         # PReLU

    # ---- stage 3: conv1x1 (f32) + shift + Softmax2d over channels ----------
    z = jnp.dot(y2, w3_ref[...], preferred_element_type=jnp.float32) + t3
    z = z - jnp.max(z, axis=-1, keepdims=True)
    e = jnp.exp(z)
    p = e * pl.reciprocal(jnp.sum(e, axis=-1, keepdims=True), approx=True)

    o_ref[...] = p.reshape(B, HW, C)


def multiconv_forward(x_nchw, kparams, *, block_b=None):
    (w1, w2, w3, t1, t2, t3, prelu) = kparams
    N, Cin, H, W = x_nchw.shape
    C = w2.shape[-1]
    Hp, Wp = H + 2, W + 2
    K1 = 9 * Cin

    if block_b is None:   # largest divisor of N that is <= 8 images / step
        block_b = next(b for b in range(min(N, 8), 0, -1) if N % b == 0)
    assert N % block_b == 0

    # NCHW -> NHWC, zero-pad, host-side im2col (tap-major, cin within tap),
    # bf16.  Tiny slab (~9x a few KB); matches the (9*Cin, C) weight layout.
    x = jnp.transpose(x_nchw, (0, 2, 3, 1))
    xp = jnp.pad(x, ((0, 0), (1, 1), (1, 1), (0, 0)))
    cols = [xp[:, dy:dy + H, dx:dx + W, :]
            for dy in range(3) for dx in range(3)]
    xcol = jnp.concatenate(cols, axis=-1).reshape(N, H * W, K1)
    xcol = xcol.astype(jnp.bfloat16)

    grid_spec = pltpu.PrefetchScalarGridSpec(
        num_scalar_prefetch=0,
        grid=(N // block_b,),
        in_specs=[
            pl.BlockSpec((block_b, H * W, K1), lambda n: (n, 0, 0)),
            pl.BlockSpec((K1, C), lambda n: (0, 0)),
            pl.BlockSpec((9, C, C), lambda n: (0, 0, 0)),
            pl.BlockSpec((C, C), lambda n: (0, 0)),
            pl.BlockSpec((1, C), lambda n: (0, 0)),
            pl.BlockSpec((1, C), lambda n: (0, 0)),
            pl.BlockSpec((1, C), lambda n: (0, 0)),
            pl.BlockSpec(memory_space=pltpu.MemorySpace.SMEM),
        ],
        out_specs=pl.BlockSpec((block_b, H * W, C), lambda n: (n, 0, 0)),
        scratch_shapes=[pltpu.VMEM((block_b, Hp, Wp, C), jnp.bfloat16)],
    )

    out = pl.pallas_call(
        _multiconv_kernel,
        out_shape=jax.ShapeDtypeStruct((N, H * W, C), jnp.float32),
        grid_spec=grid_spec,
        compiler_params=pltpu.CompilerParams(
            dimension_semantics=("parallel",)),
    )(xcol, w1, w2, w3, t1, t2, t3, prelu)

    out = out.reshape(N, H, W, C)
    return jnp.transpose(out, (0, 3, 1, 2))                 # NHWC -> NCHW


# -------------------- parameter setup (deterministic, in-script) ------------
def init_raw_params(key, in_ch, out_ch):
    ks = jax.random.split(key, 18)

    def bn(kg, kb, km, kv):
        g = 1.0 + 0.1 * jax.random.normal(kg, (out_ch,), jnp.float32)
        be = 0.1 * jax.random.normal(kb, (out_ch,), jnp.float32)
        m = 0.1 * jax.random.normal(km, (out_ch,), jnp.float32)
        v = jnp.abs(jax.random.normal(kv, (out_ch,), jnp.float32)) + 0.5
        return (g, be, m, v)

    raw = dict(
        w1=0.1 * jax.random.normal(ks[0], (out_ch, in_ch, 3, 3), jnp.float32),
        b1=0.1 * jax.random.normal(ks[1], (out_ch,), jnp.float32),
        bn1=bn(ks[2], ks[3], ks[4], ks[5]),
        a1=jnp.float32(0.25),
        w2=0.1 * jax.random.normal(ks[6], (out_ch, out_ch, 3, 3), jnp.float32),
        b2=0.1 * jax.random.normal(ks[7], (out_ch,), jnp.float32),
        bn2=bn(ks[8], ks[9], ks[10], ks[11]),
        a2=jnp.float32(0.25),
        w3=0.1 * jax.random.normal(ks[12], (out_ch, out_ch, 1, 1), jnp.float32),
        b3=0.1 * jax.random.normal(ks[13], (out_ch,), jnp.float32),
        bn3=bn(ks[14], ks[15], ks[16], ks[17]),
    )
    return raw


def fold_params(raw):
    """Fold conv bias + BN into (scaled weights, per-channel shift)."""
    def fold(w, b, bnp):
        g, be, m, v = bnp
        scale = g / jnp.sqrt(v + EPS)                         # (O,)
        shift = scale * (b - m) + be                          # (O,)
        wf = w * scale[:, None, None, None]                   # OIHW, per-O scale
        return wf, shift.reshape(1, -1)

    w1f, t1 = fold(raw["w1"], raw["b1"], raw["bn1"])
    w2f, t2 = fold(raw["w2"], raw["b2"], raw["bn2"])
    w3f, t3 = fold(raw["w3"], raw["b3"], raw["bn3"])

    # Stage 1: (O, I, 3, 3) -> (9*I, O) im2col weight; row = (dy*3+dx)*I + i.
    O1, I1 = w1f.shape[0], w1f.shape[1]
    w1k = jnp.transpose(w1f, (2, 3, 1, 0)).reshape(9 * I1, O1)
    w1k = w1k.astype(jnp.bfloat16)

    # Stage 2: (O, I, 3, 3) -> (9, I, O) tap table, tap index t = dy*3 + dx.
    O2, I2 = w2f.shape[0], w2f.shape[1]
    w2k = jnp.transpose(w2f, (2, 3, 1, 0)).reshape(9, I2, O2)
    w2k = w2k.astype(jnp.bfloat16)

    w3k = jnp.transpose(w3f[:, :, 0, 0], (1, 0))              # (I, O), f32
    prelu = jnp.array([raw["a1"], raw["a2"]], jnp.float32)
    return (w1k, w2k, w3k, t1, t2, t3, prelu)


# -------------------- numpy reference (float64) -----------------------------
def ref_forward_numpy(x_nchw, raw):
    x = np.asarray(x_nchw, np.float64)

    def conv(x, w, b, pad):
        N, Ci, H, W = x.shape
        w = np.asarray(w, np.float64)
        O, _, kh, kw = w.shape
        xp = np.pad(x, ((0, 0), (0, 0), (pad, pad), (pad, pad)))
        out = np.zeros((N, O, H, W), np.float64)
        for dy in range(kh):
            for dx in range(kw):
                out += np.einsum("nchw,oc->nohw",
                                 xp[:, :, dy:dy + H, dx:dx + W],
                                 w[:, :, dy, dx])
        return out + np.asarray(b, np.float64)[None, :, None, None]

    def bn(x, p):
        g, be, m, v = (np.asarray(t, np.float64) for t in p)
        return ((x - m[None, :, None, None])
                / np.sqrt(v[None, :, None, None] + EPS)
                * g[None, :, None, None] + be[None, :, None, None])

    def prelu(x, a):
        return np.where(x > 0, x, float(a) * x)

    h = prelu(bn(conv(x, raw["w1"], raw["b1"], 1), raw["bn1"]), raw["a1"])
    h = prelu(bn(conv(h, raw["w2"], raw["b2"], 1), raw["bn2"]), raw["a2"])
    h = bn(conv(h, raw["w3"], raw["b3"], 0), raw["bn3"])
    h = h - h.max(axis=1, keepdims=True)                      # Softmax2d: dim=1
    e = np.exp(h)
    return e / e.sum(axis=1, keepdims=True)


if __name__ == "__main__":
    N, in_ch, out_ch, H, W = 2, 4, 64, 16, 16     # BatchNorm2d(64) => out_ch=64
    key = jax.random.PRNGKey(0)
    kx, kp = jax.random.split(key)
    x = jax.random.normal(kx, (N, in_ch, H, W), jnp.float32)

    raw = init_raw_params(kp, in_ch, out_ch)
    kparams = fold_params(raw)

    out = multiconv_forward(x, kparams)
    out = jax.block_until_ready(out)

    ref = ref_forward_numpy(np.asarray(x), raw)
    assert out.shape == (N, out_ch, H, W)
    # Tolerances sized for bf16 MXU operands with f32 accumulation.
    np.testing.assert_allclose(np.asarray(out), ref, rtol=5e-2, atol=2e-3)
    print("KERNEL_OK")
</pallas_src>

<mosaic_0001>
module attributes {stable_mosaic.version = 11 : i64} {
  func.func @_multiconv_kernel(%arg0: i32, %arg1: memref<2x256x36xbf16, #tpu.memory_space<vmem>>, %arg2: memref<36x64xbf16, #tpu.memory_space<vmem>>, %arg3: memref<9x64x64xbf16, #tpu.memory_space<vmem>>, %arg4: memref<64x64xf32, #tpu.memory_space<vmem>>, %arg5: memref<1x64xf32, #tpu.memory_space<vmem>>, %arg6: memref<1x64xf32, #tpu.memory_space<vmem>>, %arg7: memref<1x64xf32, #tpu.memory_space<vmem>>, %arg8: memref<2xf32, #tpu.memory_space<smem>>, %arg9: memref<2x256x64xf32, #tpu.memory_space<vmem>>, %arg10: memref<2x18x18x64xbf16, #tpu.memory_space<vmem>>) attributes {dimension_semantics = [#tpu.dimension_semantics<parallel>], iteration_bounds = array<i64: 1>, scalar_prefetch = 0 : i64, scratch_operands = 1 : i64, tpu.core_type = #tpu.core_type<tc>, window_params = [{transform_indices = @transform_0, window_bounds = array<i64: 2, 256, 36>}, {pipeline_mode = #tpu.pipeline_mode<synchronous>, transform_indices = @transform_1, window_bounds = array<i64: 36, 64>}, {pipeline_mode = #tpu.pipeline_mode<synchronous>, transform_indices = @transform_2, window_bounds = array<i64: 9, 64, 64>}, {pipeline_mode = #tpu.pipeline_mode<synchronous>, transform_indices = @transform_3, window_bounds = array<i64: 64, 64>}, {pipeline_mode = #tpu.pipeline_mode<synchronous>, transform_indices = @transform_4, window_bounds = array<i64: 1, 64>}, {pipeline_mode = #tpu.pipeline_mode<synchronous>, transform_indices = @transform_5, window_bounds = array<i64: 1, 64>}, {pipeline_mode = #tpu.pipeline_mode<synchronous>, transform_indices = @transform_6, window_bounds = array<i64: 1, 64>}, {transform_indices = @transform_7, window_bounds = array<i64: 2>}, {transform_indices = @transform_8, window_bounds = array<i64: 2, 256, 64>}]} {
    %c0 = arith.constant 0 : index
    %0 = memref.load %arg8[%c0] : memref<2xf32, #tpu.memory_space<smem>>
    %c1 = arith.constant 1 : index
    %1 = memref.load %arg8[%c1] : memref<2xf32, #tpu.memory_space<smem>>
    %c0_0 = arith.constant 0 : index
    %c0_1 = arith.constant 0 : index
    %2 = vector.load %arg5[%c0_0, %c0_1] : memref<1x64xf32, #tpu.memory_space<vmem>>, vector<1x64xf32>
    %c0_2 = arith.constant 0 : index
    %c0_3 = arith.constant 0 : index
    %3 = vector.load %arg6[%c0_2, %c0_3] : memref<1x64xf32, #tpu.memory_space<vmem>>, vector<1x64xf32>
    %c0_4 = arith.constant 0 : index
    %c0_5 = arith.constant 0 : index
    %4 = vector.load %arg7[%c0_4, %c0_5] : memref<1x64xf32, #tpu.memory_space<vmem>>, vector<1x64xf32>
    %cst = arith.constant 0.000000e+00 : bf16
    %5 = vector.broadcast %cst : bf16 to vector<2x1x18x64xbf16>
    %c0_6 = arith.constant 0 : index
    %c0_7 = arith.constant 0 : index
    %c0_8 = arith.constant 0 : index
    %c0_9 = arith.constant 0 : index
    %6 = vector.load %arg10[%c0_6, %c0_7, %c0_8, %c0_9] : memref<2x18x18x64xbf16, #tpu.memory_space<vmem>>, vector<2x1x18x64xbf16>
    tpu.vector_store %arg10[%c0_6, %c0_7, %c0_8, %c0_9], %5 {strides = array<i32>} : memref<2x18x18x64xbf16, #tpu.memory_space<vmem>>, vector<2x1x18x64xbf16>,
    %cst_10 = arith.constant 0.000000e+00 : bf16
    %7 = vector.broadcast %cst_10 : bf16 to vector<2x1x18x64xbf16>
    %c0_11 = arith.constant 0 : index
    %c17 = arith.constant 17 : index
    %c0_12 = arith.constant 0 : index
    %c0_13 = arith.constant 0 : index
    %8 = vector.load %arg10[%c0_11, %c17, %c0_12, %c0_13] : memref<2x18x18x64xbf16, #tpu.memory_space<vmem>>, vector<2x1x18x64xbf16>
    tpu.vector_store %arg10[%c0_11, %c17, %c0_12, %c0_13], %7 {strides = array<i32>} : memref<2x18x18x64xbf16, #tpu.memory_space<vmem>>, vector<2x1x18x64xbf16>,
    %cst_14 = arith.constant 0.000000e+00 : bf16
    %9 = vector.broadcast %cst_14 : bf16 to vector<2x18x1x64xbf16>
    %c0_15 = arith.constant 0 : index
    %c0_16 = arith.constant 0 : index
    %c0_17 = arith.constant 0 : index
    %c0_18 = arith.constant 0 : index
    %10 = vector.load %arg10[%c0_15, %c0_16, %c0_17, %c0_18] : memref<2x18x18x64xbf16, #tpu.memory_space<vmem>>, vector<2x18x1x64xbf16>
    tpu.vector_store %arg10[%c0_15, %c0_16, %c0_17, %c0_18], %9 {strides = array<i32>} : memref<2x18x18x64xbf16, #tpu.memory_space<vmem>>, vector<2x18x1x64xbf16>,
    %cst_19 = arith.constant 0.000000e+00 : bf16
    %11 = vector.broadcast %cst_19 : bf16 to vector<2x18x1x64xbf16>
    %c0_20 = arith.constant 0 : index
    %c0_21 = arith.constant 0 : index
    %c17_22 = arith.constant 17 : index
    %c0_23 = arith.constant 0 : index
    %12 = vector.load %arg10[%c0_20, %c0_21, %c17_22, %c0_23] : memref<2x18x18x64xbf16, #tpu.memory_space<vmem>>, vector<2x18x1x64xbf16>
    tpu.vector_store %arg10[%c0_20, %c0_21, %c17_22, %c0_23], %11 {strides = array<i32>} : memref<2x18x18x64xbf16, #tpu.memory_space<vmem>>, vector<2x18x1x64xbf16>,
    %c0_24 = arith.constant 0 : index
    %c0_25 = arith.constant 0 : index
    %c0_26 = arith.constant 0 : index
    %13 = vector.load %arg1[%c0_24, %c0_25, %c0_26] : memref<2x256x36xbf16, #tpu.memory_space<vmem>>, vector<2x256x36xbf16>
    %14 = vector.shape_cast %13 : vector<2x256x36xbf16> to vector<512x36xbf16>
    %c0_27 = arith.constant 0 : index
    %c0_28 = arith.constant 0 : index
    %15 = vector.load %arg2[%c0_27, %c0_28] : memref<36x64xbf16, #tpu.memory_space<vmem>>, vector<36x64xbf16>
    %cst_29 = arith.constant dense<0.000000e+00> : vector<512x64xf32>
    %16 = tpu.matmul %14, %15, %cst_29 {dimension_numbers = #tpu.dot_dimension_numbers<[1], [0], [0], [1], [0, 0, 1, 1], [], []>} : vector<512x36xbf16>, vector<36x64xbf16>, vector<512x64xf32> -> vector<512x64xf32>
    %17 = vector.broadcast %2 : vector<1x64xf32> to vector<512x64xf32>
    %18 = arith.addf %16, %17 : vector<512x64xf32>
    %cst_30 = arith.constant 0.000000e+00 : f32
    %19 = vector.broadcast %cst_30 : f32 to vector<512x64xf32>
    %20 = arith.cmpf ogt, %18, %19 : vector<512x64xf32>
    %21 = vector.broadcast %0 : f32 to vector<512x64xf32>
    %22 = arith.mulf %21, %18 : vector<512x64xf32>
    %23 = arith.select %20, %18, %22 : vector<512x64xi1>, vector<512x64xf32>
    %24 = vector.shape_cast %23 : vector<512x64xf32> to vector<2x16x16x64xf32>
    %25 = arith.truncf %24 : vector<2x16x16x64xf32> to vector<2x16x16x64xbf16>
    %c0_31 = arith.constant 0 : index
    %c1_32 = arith.constant 1 : index
    %c1_33 = arith.constant 1 : index
    %c0_34 = arith.constant 0 : index
    %26 = vector.load %arg10[%c0_31, %c1_32, %c1_33, %c0_34] : memref<2x18x18x64xbf16, #tpu.memory_space<vmem>>, vector<2x16x16x64xbf16>
    tpu.vector_store %arg10[%c0_31, %c1_32, %c1_33, %c0_34], %25 {strides = array<i32>} : memref<2x18x18x64xbf16, #tpu.memory_space<vmem>>, vector<2x16x16x64xbf16>,
    %c0_35 = arith.constant 0 : index
    %c0_36 = arith.constant 0 : index
    %c0_37 = arith.constant 0 : index
    %c0_38 = arith.constant 0 : index
    %27 = vector.load %arg10[%c0_35, %c0_36, %c0_37, %c0_38] : memref<2x18x18x64xbf16, #tpu.memory_space<vmem>>, vector<2x18x18x64xbf16>
    %cst_39 = arith.constant 0.000000e+00 : f32
    %28 = vector.broadcast %cst_39 : f32 to vector<512x64xf32>
    %29 = vector.extract_strided_slice %27 {offsets = [0, 0, 0, 0], sizes = [2, 18, 16, 64], strides = [1, 1, 1, 1]} : vector<2x18x18x64xbf16> to vector<2x18x16x64xbf16>
    %30 = vector.extract_strided_slice %29 {offsets = [0, 0, 0, 0], sizes = [2, 16, 16, 64], strides = [1, 1, 1, 1]} : vector<2x18x16x64xbf16> to vector<2x16x16x64xbf16>
    %31 = vector.shape_cast %30 : vector<2x16x16x64xbf16> to vector<512x64xbf16>
    %c0_40 = arith.constant 0 : index
    %c0_41 = arith.constant 0 : index
    %c0_42 = arith.constant 0 : index
    %32 = vector.load %arg3[%c0_40, %c0_41, %c0_42] : memref<9x64x64xbf16, #tpu.memory_space<vmem>>, vector<1x64x64xbf16>
    %33 = vector.shape_cast %32 : vector<1x64x64xbf16> to vector<64x64xbf16>
    %cst_43 = arith.constant dense<0.000000e+00> : vector<512x64xf32>
    %34 = tpu.matmul %31, %33, %cst_43 {dimension_numbers = #tpu.dot_dimension_numbers<[1], [0], [0], [1], [0, 0, 1, 1], [], []>} : vector<512x64xbf16>, vector<64x64xbf16>, vector<512x64xf32> -> vector<512x64xf32>
    %35 = arith.addf %28, %34 : vector<512x64xf32>
    %36 = vector.extract_strided_slice %29 {offsets = [0, 1, 0, 0], sizes = [2, 16, 16, 64], strides = [1, 1, 1, 1]} : vector<2x18x16x64xbf16> to vector<2x16x16x64xbf16>
    %37 = vector.shape_cast %36 : vector<2x16x16x64xbf16> to vector<512x64xbf16>
    %c3 = arith.constant 3 : index
    %c0_44 = arith.constant 0 : index
    %c0_45 = arith.constant 0 : index
    %38 = vector.load %arg3[%c3, %c0_44, %c0_45] : memref<9x64x64xbf16, #tpu.memory_space<vmem>>, vector<1x64x64xbf16>
    %39 = vector.shape_cast %38 : vector<1x64x64xbf16> to vector<64x64xbf16>
    %cst_46 = arith.constant dense<0.000000e+00> : vector<512x64xf32>
    %40 = tpu.matmul %37, %39, %cst_46 {dimension_numbers = #tpu.dot_dimension_numbers<[1], [0], [0], [1], [0, 0, 1, 1], [], []>} : vector<512x64xbf16>, vector<64x64xbf16>, vector<512x64xf32> -> vector<512x64xf32>
    %41 = arith.addf %35, %40 : vector<512x64xf32>
    %42 = vector.extract_strided_slice %29 {offsets = [0, 2, 0, 0], sizes = [2, 16, 16, 64], strides = [1, 1, 1, 1]} : vector<2x18x16x64xbf16> to vector<2x16x16x64xbf16>
    %43 = vector.shape_cast %42 : vector<2x16x16x64xbf16> to vector<512x64xbf16>
    %c6 = arith.constant 6 : index
    %c0_47 = arith.constant 0 : index
    %c0_48 = arith.constant 0 : index
    %44 = vector.load %arg3[%c6, %c0_47, %c0_48] : memref<9x64x64xbf16, #tpu.memory_space<vmem>>, vector<1x64x64xbf16>
    %45 = vector.shape_cast %44 : vector<1x64x64xbf16> to vector<64x64xbf16>
    %cst_49 = arith.constant dense<0.000000e+00> : vector<512x64xf32>
    %46 = tpu.matmul %43, %45, %cst_49 {dimension_numbers = #tpu.dot_dimension_numbers<[1], [0], [0], [1], [0, 0, 1, 1], [], []>} : vector<512x64xbf16>, vector<64x64xbf16>, vector<512x64xf32> -> vector<512x64xf32>
    %47 = arith.addf %41, %46 : vector<512x64xf32>
    %48 = vector.extract_strided_slice %27 {offsets = [0, 0, 1, 0], sizes = [2, 18, 16, 64], strides = [1, 1, 1, 1]} : vector<2x18x18x64xbf16> to vector<2x18x16x64xbf16>
    %49 = vector.extract_strided_slice %48 {offsets = [0, 0, 0, 0], sizes = [2, 16, 16, 64], strides = [1, 1, 1, 1]} : vector<2x18x16x64xbf16> to vector<2x16x16x64xbf16>
    %50 = vector.shape_cast %49 : vector<2x16x16x64xbf16> to vector<512x64xbf16>
    %c1_50 = arith.constant 1 : index
    %c0_51 = arith.constant 0 : index
    %c0_52 = arith.constant 0 : index
    %51 = vector.load %arg3[%c1_50, %c0_51, %c0_52] : memref<9x64x64xbf16, #tpu.memory_space<vmem>>, vector<1x64x64xbf16>
    %52 = vector.shape_cast %51 : vector<1x64x64xbf16> to vector<64x64xbf16>
    %cst_53 = arith.constant dense<0.000000e+00> : vector<512x64xf32>
    %53 = tpu.matmul %50, %52, %cst_53 {dimension_numbers = #tpu.dot_dimension_numbers<[1], [0], [0], [1], [0, 0, 1, 1], [], []>} : vector<512x64xbf16>, vector<64x64xbf16>, vector<512x64xf32> -> vector<512x64xf32>
    %54 = arith.addf %47, %53 : vector<512x64xf32>
    %55 = vector.extract_strided_slice %48 {offsets = [0, 1, 0, 0], sizes = [2, 16, 16, 64], strides = [1, 1, 1, 1]} : vector<2x18x16x64xbf16> to vector<2x16x16x64xbf16>
    %56 = vector.shape_cast %55 : vector<2x16x16x64xbf16> to vector<512x64xbf16>
    %c4 = arith.constant 4 : index
    %c0_54 = arith.constant 0 : index
    %c0_55 = arith.constant 0 : index
    %57 = vector.load %arg3[%c4, %c0_54, %c0_55] : memref<9x64x64xbf16, #tpu.memory_space<vmem>>, vector<1x64x64xbf16>
    %58 = vector.shape_cast %57 : vector<1x64x64xbf16> to vector<64x64xbf16>
    %cst_56 = arith.constant dense<0.000000e+00> : vector<512x64xf32>
    %59 = tpu.matmul %56, %58, %cst_56 {dimension_numbers = #tpu.dot_dimension_numbers<[1], [0], [0], [1], [0, 0, 1, 1], [], []>} : vector<512x64xbf16>, vector<64x64xbf16>, vector<512x64xf32> -> vector<512x64xf32>
    %60 = arith.addf %54, %59 : vector<512x64xf32>
    %61 = vector.extract_strided_slice %48 {offsets = [0, 2, 0, 0], sizes = [2, 16, 16, 64], strides = [1, 1, 1, 1]} : vector<2x18x16x64xbf16> to vector<2x16x16x64xbf16>
    %62 = vector.shape_cast %61 : vector<2x16x16x64xbf16> to vector<512x64xbf16>
    %c7 = arith.constant 7 : index
    %c0_57 = arith.constant 0 : index
    %c0_58 = arith.constant 0 : index
    %63 = vector.load %arg3[%c7, %c0_57, %c0_58] : memref<9x64x64xbf16, #tpu.memory_space<vmem>>, vector<1x64x64xbf16>
    %64 = vector.shape_cast %63 : vector<1x64x64xbf16> to vector<64x64xbf16>
    %cst_59 = arith.constant dense<0.000000e+00> : vector<512x64xf32>
    %65 = tpu.matmul %62, %64, %cst_59 {dimension_numbers = #tpu.dot_dimension_numbers<[1], [0], [0], [1], [0, 0, 1, 1], [], []>} : vector<512x64xbf16>, vector<64x64xbf16>, vector<512x64xf32> -> vector<512x64xf32>
    %66 = arith.addf %60, %65 : vector<512x64xf32>
    %67 = vector.extract_strided_slice %27 {offsets = [0, 0, 2, 0], sizes = [2, 18, 16, 64], strides = [1, 1, 1, 1]} : vector<2x18x18x64xbf16> to vector<2x18x16x64xbf16>
    %68 = vector.extract_strided_slice %67 {offsets = [0, 0, 0, 0], sizes = [2, 16, 16, 64], strides = [1, 1, 1, 1]} : vector<2x18x16x64xbf16> to vector<2x16x16x64xbf16>
    %69 = vector.shape_cast %68 : vector<2x16x16x64xbf16> to vector<512x64xbf16>
    %c2 = arith.constant 2 : index
    %c0_60 = arith.constant 0 : index
    %c0_61 = arith.constant 0 : index
    %70 = vector.load %arg3[%c2, %c0_60, %c0_61] : memref<9x64x64xbf16, #tpu.memory_space<vmem>>, vector<1x64x64xbf16>
    %71 = vector.shape_cast %70 : vector<1x64x64xbf16> to vector<64x64xbf16>
    %cst_62 = arith.constant dense<0.000000e+00> : vector<512x64xf32>
    %72 = tpu.matmul %69, %71, %cst_62 {dimension_numbers = #tpu.dot_dimension_numbers<[1], [0], [0], [1], [0, 0, 1, 1], [], []>} : vector<512x64xbf16>, vector<64x64xbf16>, vector<512x64xf32> -> vector<512x64xf32>
    %73 = arith.addf %66, %72 : vector<512x64xf32>
    %74 = vector.extract_strided_slice %67 {offsets = [0, 1, 0, 0], sizes = [2, 16, 16, 64], strides = [1, 1, 1, 1]} : vector<2x18x16x64xbf16> to vector<2x16x16x64xbf16>
    %75 = vector.shape_cast %74 : vector<2x16x16x64xbf16> to vector<512x64xbf16>
    %c5 = arith.constant 5 : index
    %c0_63 = arith.constant 0 : index
    %c0_64 = arith.constant 0 : index
    %76 = vector.load %arg3[%c5, %c0_63, %c0_64] : memref<9x64x64xbf16, #tpu.memory_space<vmem>>, vector<1x64x64xbf16>
    %77 = vector.shape_cast %76 : vector<1x64x64xbf16> to vector<64x64xbf16>
    %cst_65 = arith.constant dense<0.000000e+00> : vector<512x64xf32>
    %78 = tpu.matmul %75, %77, %cst_65 {dimension_numbers = #tpu.dot_dimension_numbers<[1], [0], [0], [1], [0, 0, 1, 1], [], []>} : vector<512x64xbf16>, vector<64x64xbf16>, vector<512x64xf32> -> vector<512x64xf32>
    %79 = arith.addf %73, %78 : vector<512x64xf32>
    %80 = vector.extract_strided_slice %67 {offsets = [0, 2, 0, 0], sizes = [2, 16, 16, 64], strides = [1, 1, 1, 1]} : vector<2x18x16x64xbf16> to vector<2x16x16x64xbf16>
    %81 = vector.shape_cast %80 : vector<2x16x16x64xbf16> to vector<512x64xbf16>
    %c8 = arith.constant 8 : index
    %c0_66 = arith.constant 0 : index
    %c0_67 = arith.constant 0 : index
    %82 = vector.load %arg3[%c8, %c0_66, %c0_67] : memref<9x64x64xbf16, #tpu.memory_space<vmem>>, vector<1x64x64xbf16>
    %83 = vector.shape_cast %82 : vector<1x64x64xbf16> to vector<64x64xbf16>
    %cst_68 = arith.constant dense<0.000000e+00> : vector<512x64xf32>
    %84 = tpu.matmul %81, %83, %cst_68 {dimension_numbers = #tpu.dot_dimension_numbers<[1], [0], [0], [1], [0, 0, 1, 1], [], []>} : vector<512x64xbf16>, vector<64x64xbf16>, vector<512x64xf32> -> vector<512x64xf32>
    %85 = arith.addf %79, %84 : vector<512x64xf32>
    %86 = vector.broadcast %3 : vector<1x64xf32> to vector<512x64xf32>
    %87 = arith.addf %85, %86 : vector<512x64xf32>
    %cst_69 = arith.constant 0.000000e+00 : f32
    %88 = vector.broadcast %cst_69 : f32 to vector<512x64xf32>
    %89 = arith.cmpf ogt, %87, %88 : vector<512x64xf32>
    %90 = vector.broadcast %1 : f32 to vector<512x64xf32>
    %91 = arith.mulf %90, %87 : vector<512x64xf32>
    %92 = arith.select %89, %87, %91 : vector<512x64xi1>, vector<512x64xf32>
    %c0_70 = arith.constant 0 : index
    %c0_71 = arith.constant 0 : index
    %93 = vector.load %arg4[%c0_70, %c0_71] : memref<64x64xf32, #tpu.memory_space<vmem>>, vector<64x64xf32>
    %cst_72 = arith.constant dense<0.000000e+00> : vector<512x64xf32>
    %94 = tpu.matmul %92, %93, %cst_72 {dimension_numbers = #tpu.dot_dimension_numbers<[1], [0], [0], [1], [0, 0, 1, 1], [], []>} : vector<512x64xf32>, vector<64x64xf32>, vector<512x64xf32> -> vector<512x64xf32>
    %95 = vector.broadcast %4 : vector<1x64xf32> to vector<512x64xf32>
    %96 = arith.addf %94, %95 : vector<512x64xf32>
    %cst_73 = arith.constant dense<0xFF800000> : vector<512xf32>
    %97 = vector.multi_reduction <maximumf>, %96, %cst_73 [1] : vector<512x64xf32> to vector<512xf32>
    %98 = vector.shape_cast %97 : vector<512xf32> to vector<512x1xf32>
    %99 = vector.broadcast %98 : vector<512x1xf32> to vector<512x64xf32>
    %100 = arith.subf %96, %99 : vector<512x64xf32>
    %101 = math.exp %100 : vector<512x64xf32>
    %cst_74 = arith.constant dense<0.000000e+00> : vector<512xf32>
    %102 = vector.multi_reduction <add>, %101, %cst_74 [1] : vector<512x64xf32> to vector<512xf32>
    %103 = vector.shape_cast %102 : vector<512xf32> to vector<512x1xf32>
    %104 = tpu.reciprocal %103 {approx = true} : vector<512x1xf32> -> vector<512x1xf32>
    %105 = vector.broadcast %104 : vector<512x1xf32> to vector<512x64xf32>
    %106 = arith.mulf %101, %105 : vector<512x64xf32>
    %107 = vector.shape_cast %106 : vector<512x64xf32> to vector<2x256x64xf32>
    %c0_75 = arith.constant 0 : index
    %c0_76 = arith.constant 0 : index
    %c0_77 = arith.constant 0 : index
    %108 = vector.load %arg9[%c0_75, %c0_76, %c0_77] : memref<2x256x64xf32, #tpu.memory_space<vmem>>, vector<2x256x64xf32>
    tpu.vector_store %arg9[%c0_75, %c0_76, %c0_77], %107 {strides = array<i32>} : memref<2x256x64xf32, #tpu.memory_space<vmem>>, vector<2x256x64xf32>,
    return
  }
  func.func @transform_0(%arg0: i32) -> (i32, i32, i32) {
    %c0_i32 = arith.constant 0 : i32
    %c0_i32_0 = arith.constant 0 : i32
    %c0_i32_1 = arith.constant 0 : i32
    return %arg0, %c0_i32, %c0_i32_0 : i32, i32, i32
  }
  func.func @transform_1(%arg0: i32) -> (i32, i32) {
    %c0_i32 = arith.constant 0 : i32
    %c0_i32_0 = arith.constant 0 : i32
    %c0_i32_1 = arith.constant 0 : i32
    return %c0_i32, %c0_i32_0 : i32, i32
  }
  func.func @transform_2(%arg0: i32) -> (i32, i32, i32) {
    %c0_i32 = arith.constant 0 : i32
    %c0_i32_0 = arith.constant 0 : i32
    %c0_i32_1 = arith.constant 0 : i32
    %c0_i32_2 = arith.constant 0 : i32
    return %c0_i32, %c0_i32_0, %c0_i32_1 : i32, i32, i32
  }
  func.func @transform_3(%arg0: i32) -> (i32, i32) {
    %c0_i32 = arith.constant 0 : i32
    %c0_i32_0 = arith.constant 0 : i32
    %c0_i32_1 = arith.constant 0 : i32
    return %c0_i32, %c0_i32_0 : i32, i32
  }
  func.func @transform_4(%arg0: i32) -> (i32, i32) {
    %c0_i32 = arith.constant 0 : i32
    %c0_i32_0 = arith.constant 0 : i32
    %c0_i32_1 = arith.constant 0 : i32
    return %c0_i32, %c0_i32_0 : i32, i32
  }
  func.func @transform_5(%arg0: i32) -> (i32, i32) {
    %c0_i32 = arith.constant 0 : i32
    %c0_i32_0 = arith.constant 0 : i32
    %c0_i32_1 = arith.constant 0 : i32
    return %c0_i32, %c0_i32_0 : i32, i32
  }
  func.func @transform_6(%arg0: i32) -> (i32, i32) {
    %c0_i32 = arith.constant 0 : i32
    %c0_i32_0 = arith.constant 0 : i32
    %c0_i32_1 = arith.constant 0 : i32
    return %c0_i32, %c0_i32_0 : i32, i32
  }
  func.func @transform_7(%arg0: i32) -> i32 {
    %c0_i32 = arith.constant 0 : i32
    %c0_i32_0 = arith.constant 0 : i32
    return %c0_i32 : i32
  }
  func.func @transform_8(%arg0: i32) -> (i32, i32, i32) {
    %c0_i32 = arith.constant 0 : i32
    %c0_i32_0 = arith.constant 0 : i32
    %c0_i32_1 = arith.constant 0 : i32
    return %arg0, %c0_i32, %c0_i32_0 : i32, i32, i32
  }
}

</mosaic_0001>

<llo_original>
// kernel: tpu_custom_call.1
$region0: #{tpu_custom_call.1}
  #allocation0 [shape = 'u32[]', space=smem, size = 0x4, offset = 0x4, fixed_abs, tag = 'smem constant byte address 0x4 - core index']
  #allocation1 [shape = 'u32[144,128]{1,0:T(1,128)}', space=vmem, size = 0x12000, scoped, tag = 'internal scratch']
  #allocation2 [shape = 'bf16[2,18,18,64]{3,2,1,0:T(8,128)(2,1)}', space=vmem, size = 0x36000, scoped, tag = 'scratch operand']
  %s0 = inlined_call_operand.vmem [shape: bf16[2,256,36], index: 0, kind: input, shape index: {}]
  %s1 = inlined_call_operand.vmem [shape: bf16[36,64], index: 1, kind: input, shape index: {}]
  %s2 = inlined_call_operand.vmem [shape: bf16[9,64,64], index: 2, kind: input, shape index: {}]
  %s3 = inlined_call_operand.hbm [shape: f32[64,64], index: 3, kind: input, shape index: {}]
  %s4 = inlined_call_operand.vmem [shape: f32[1,64], index: 4, kind: input, shape index: {}]
  %s5 = inlined_call_operand.vmem [shape: f32[1,64], index: 5, kind: input, shape index: {}]
  %s6 = inlined_call_operand.vmem [shape: f32[1,64], index: 6, kind: input, shape index: {}]
  %s7 = inlined_call_operand.vmem [shape: f32[2], index: 7, kind: input, shape index: {}]
  %s8 = inlined_call_operand.vmem [shape: f32[2,256,64], index: 8, kind: output, shape index: {}]
  %s9 = sld [smem:[#allocation0]]
  $region50: #{tpu_custom_call.1} parent=0
    _
  %s11 = ssub.s32 1, %s9
  %s12 = scalar_select 0, %s11, %s9
  $region1: #{tpu_custom_call.1} parent=0
    #allocation3 [shape = 'u8[32768]{0}', space=vmem, size = 0x8000, scoped, tag = 'input window, operand 3, single buffered']
    #allocation4 [shape = 's32[1]{0}', space=sflag, size = 0x4, scoped, tag = 'scoped memory for tpu_custom_call.1']
    #allocation5 [shape = 's32[1]{0}', space=sflag, size = 0x4, scoped, tag = 'scoped memory for tpu_custom_call.1']
    #allocation6 [shape = 'u8[512]{0}', space=smem, size = 0x200, scoped, tag = 'input window, operand 7, single buffered']
    %13 = vsyncpa [#allocation4], 0
    %14 = vsyncpa [#allocation5], 0
    // Predicated region
    $region2: #{tpu_custom_call.1} parent=1 // pred_check
      _
    $region3: #{tpu_custom_call.1} parent=1 // pred_check_branch
      %16 = sbr.rel (0) target = $region5
    $region4: #{tpu_custom_call.1} parent=1 // pred_region
      _
    $region5: #{tpu_custom_call.1} parent=1 // pred_fallthru
      _
    // Predicated region
    $region6: #{tpu_custom_call.1} parent=1 // pred_check
      _
    $region7: #{tpu_custom_call.1} parent=1 // pred_check_branch
      %18 = sbr.rel (0) target = $region9
    $region8: #{tpu_custom_call.1} parent=1 // pred_region
      _
    $region9: #{tpu_custom_call.1} parent=1 // pred_fallthru
      _
    // Predicated region
    $region10: #{tpu_custom_call.1} parent=1 // pred_check
      _
    $region11: #{tpu_custom_call.1} parent=1 // pred_check_branch
      %20 = sbr.rel (0) target = $region13
    $region12: #{tpu_custom_call.1} parent=1 // pred_region
      _
    $region13: #{tpu_custom_call.1} parent=1 // pred_fallthru
      _
    // Predicated region
    $region14: #{tpu_custom_call.1} parent=1 // pred_check
      _
    $region15: #{tpu_custom_call.1} parent=1 // pred_check_branch
      %22 = sbr.rel (0) target = $region17
    $region16: #{tpu_custom_call.1} parent=1 // pred_region
      %s24 = ssub.s32 1024, 1024
      %25 = vsyncadd [#allocation4], %s24
      %s26 = sshll.u32 [#allocation3], 4
      %s27 = int_to_ptr.vmem [resolvable:$true] %s26
      %32 = dma.hbm_to_vmem [thread:$0]  %s3, 1024, %s27, [#allocation4], 128, 128, 8
    $region17: #{tpu_custom_call.1} parent=1 // pred_fallthru
      _
    // Predicated region
    $region18: #{tpu_custom_call.1} parent=1 // pred_check
      _
    $region19: #{tpu_custom_call.1} parent=1 // pred_check_branch
      %34 = sbr.rel (0) target = $region21
    $region20: #{tpu_custom_call.1} parent=1 // pred_region
      _
    $region21: #{tpu_custom_call.1} parent=1 // pred_fallthru
      _
    // Predicated region
    $region22: #{tpu_custom_call.1} parent=1 // pred_check
      _
    $region23: #{tpu_custom_call.1} parent=1 // pred_check_branch
      %36 = sbr.rel (0) target = $region25
    $region24: #{tpu_custom_call.1} parent=1 // pred_region
      _
    $region25: #{tpu_custom_call.1} parent=1 // pred_fallthru
      _
    // Predicated region
    $region26: #{tpu_custom_call.1} parent=1 // pred_check
      _
    $region27: #{tpu_custom_call.1} parent=1 // pred_check_branch
      %38 = sbr.rel (0) target = $region29
    $region28: #{tpu_custom_call.1} parent=1 // pred_region
      _
    $region29: #{tpu_custom_call.1} parent=1 // pred_fallthru
      _
    // Predicated region
    $region30: #{tpu_custom_call.1} parent=1 // pred_check
      _
    $region31: #{tpu_custom_call.1} parent=1 // pred_check_branch
      %40 = sbr.rel (0) target = $region33
    $region32: #{tpu_custom_call.1} parent=1 // pred_region
      %s42 = ssub.s32 16, 16
      %43 = vsyncadd [#allocation5], %s42
      %s45 = sshll.u32 %s7, 4
      %s46 = int_to_ptr.vmem [resolvable:$true] %s45
      %48 = dma.vmem_to_smem %s46, 16, [#allocation6], [#allocation5]
    $region33: #{tpu_custom_call.1} parent=1 // pred_fallthru
      _
    // Predicated region
    $region34: #{tpu_custom_call.1} parent=1 // pred_check
      _
    $region35: #{tpu_custom_call.1} parent=1 // pred_check_branch
      %50 = sbr.rel (0) target = $region37
    $region36: #{tpu_custom_call.1} parent=1 // pred_region
      %51 = dma.done [#allocation4], 1024
    $region37: #{tpu_custom_call.1} parent=1 // pred_fallthru
      _
    // Predicated region
    $region38: #{tpu_custom_call.1} parent=1 // pred_check
      _
    $region39: #{tpu_custom_call.1} parent=1 // pred_check_branch
      %53 = sbr.rel (0) target = $region41
    $region40: #{tpu_custom_call.1} parent=1 // pred_region
      %54 = dma.done [#allocation5], 16
    $region41: #{tpu_custom_call.1} parent=1 // pred_fallthru
      _
    %55 = sfence
    %s57 = sld [smem:[#allocation6]]
    %s58 = sld [smem:[#allocation6 + $0x1]]
    %v59 = vld [vmem:[%s4] sm:$0x1]
    %v60 = vld [vmem:[%s5] sm:$0x1]
    %v61 = vld [vmem:[%s6] sm:$0x1]
    %vm62 = vcmask 519168
    %63 = vst.msk [vmem:[#allocation2] sm:$0xf] %vm62, 0
    %64 = vst.msk [vmem:[#allocation2 + $0x4] sm:$0xf] %vm62, 0
    %vm65 = vcmask 516096
    %66 = vst.msk [vmem:[#allocation2 + $0x8] sm:$0x1] %vm65, 0
    %67 = vst.msk [vmem:[#allocation2 + $0xd8] sm:$0xf] %vm62, 0
    %68 = vst.msk [vmem:[#allocation2 + $0xdc] sm:$0xf] %vm62, 0
    %69 = vst.msk [vmem:[#allocation2 + $0xe0] sm:$0x1] %vm65, 0
    %s70 = scalar_lea.vmem [#allocation2], 204
    %71 = vst.msk [vmem:[%s70] sm:$0xf] %vm62, 0
    %72 = vst.msk [vmem:[%s70 + $0x4] sm:$0xf] %vm62, 0
    %73 = vst.msk [vmem:[%s70 + $0x8] sm:$0x1] %vm65, 0
    %74 = vst.msk [vmem:[%s70 + $0xd8] sm:$0xf] %vm62, 0
    %75 = vst.msk [vmem:[%s70 + $0xdc] sm:$0xf] %vm62, 0
    %76 = vst.msk [vmem:[%s70 + $0xe0] sm:$0x1] %vm65, 0
    %vm77 = vcmask 516096
    %vm78 = vsmask.f32 256
    %vm79 = vmand %vm77, %vm78
    %v80 = vld [vmem:[#allocation2] sm:$0x1]
    %v81 = vsel %vm79, 0, %v80
    %82 = vst [vmem:[#allocation2] sm:$0x1] %v81
    %v83 = vld [vmem:[#allocation2 + $0xc] sm:$0x1]
    %v84 = vsel %vm79, 0, %v83
    %85 = vst [vmem:[#allocation2 + $0xc] sm:$0x1] %v84
    %v86 = vld [vmem:[#allocation2 + $0x18] sm:$0x1]
    %v87 = vsel %vm79, 0, %v86
    %88 = vst [vmem:[#allocation2 + $0x18] sm:$0x1] %v87
    %v89 = vld [vmem:[#allocation2 + $0x24] sm:$0x1]
    %v90 = vsel %vm79, 0, %v89
    %91 = vst [vmem:[#allocation2 + $0x24] sm:$0x1] %v90
    %v92 = vld [vmem:[#allocation2 + $0x30] sm:$0x1]
    %v93 = vsel %vm79, 0, %v92
    %94 = vst [vmem:[#allocation2 + $0x30] sm:$0x1] %v93
    %v95 = vld [vmem:[#allocation2 + $0x3c] sm:$0x1]
    %v96 = vsel %vm79, 0, %v95
    %97 = vst [vmem:[#allocation2 + $0x3c] sm:$0x1] %v96
    %v98 = vld [vmem:[#allocation2 + $0x48] sm:$0x1]
    %v99 = vsel %vm79, 0, %v98
    %100 = vst [vmem:[#allocation2 + $0x48] sm:$0x1] %v99
    %v101 = vld [vmem:[#allocation2 + $0x54] sm:$0x1]
    %v102 = vsel %vm79, 0, %v101
    %103 = vst [vmem:[#allocation2 + $0x54] sm:$0x1] %v102
    %v104 = vld [vmem:[#allocation2 + $0x60] sm:$0x1]
    %v105 = vsel %vm79, 0, %v104
    %106 = vst [vmem:[#allocation2 + $0x60] sm:$0x1] %v105
    %v107 = vld [vmem:[#allocation2 + $0x6c] sm:$0x1]
    %v108 = vsel %vm79, 0, %v107
    %109 = vst [vmem:[#allocation2 + $0x6c] sm:$0x1] %v108
    %v110 = vld [vmem:[#allocation2 + $0x78] sm:$0x1]
    %v111 = vsel %vm79, 0, %v110
    %112 = vst [vmem:[#allocation2 + $0x78] sm:$0x1] %v111
    %v113 = vld [vmem:[#allocation2 + $0x84] sm:$0x1]
    %v114 = vsel %vm79, 0, %v113
    %115 = vst [vmem:[#allocation2 + $0x84] sm:$0x1] %v114
    %v116 = vld [vmem:[#allocation2 + $0x90] sm:$0x1]
    %v117 = vsel %vm79, 0, %v116
    %118 = vst [vmem:[#allocation2 + $0x90] sm:$0x1] %v117
    %v119 = vld [vmem:[#allocation2 + $0x9c] sm:$0x1]
    %v120 = vsel %vm79, 0, %v119
    %121 = vst [vmem:[#allocation2 + $0x9c] sm:$0x1] %v120
    %v122 = vld [vmem:[#allocation2 + $0xa8] sm:$0x1]
    %v123 = vsel %vm79, 0, %v122
    %124 = vst [vmem:[#allocation2 + $0xa8] sm:$0x1] %v123
    %v125 = vld [vmem:[#allocation2 + $0xb4] sm:$0x1]
    %v126 = vsel %vm79, 0, %v125
    %127 = vst [vmem:[#allocation2 + $0xb4] sm:$0x1] %v126
    %v128 = vld [vmem:[#allocation2 + $0xc0] sm:$0x1]
    %v129 = vsel %vm79, 0, %v128
    %130 = vst [vmem:[#allocation2 + $0xc0] sm:$0x1] %v129
    %v131 = vld [vmem:[#allocation2 + $0xcc] sm:$0x1]
    %v132 = vsel %vm79, 0, %v131
    %133 = vst [vmem:[#allocation2 + $0xcc] sm:$0x1] %v132
    %v134 = vld [vmem:[#allocation2 + $0xd8] sm:$0x1]
    %v135 = vsel %vm79, 0, %v134
    %136 = vst [vmem:[#allocation2 + $0xd8] sm:$0x1] %v135
    %v137 = vld [vmem:[#allocation2 + $0xe4] sm:$0x1]
    %v138 = vsel %vm79, 0, %v137
    %139 = vst [vmem:[#allocation2 + $0xe4] sm:$0x1] %v138
    %v140 = vld [vmem:[#allocation2 + $0xf0] sm:$0x1]
    %v141 = vsel %vm79, 0, %v140
    %142 = vst [vmem:[#allocation2 + $0xf0] sm:$0x1] %v141
    %v143 = vld [vmem:[#allocation2 + $0xfc] sm:$0x1]
    %v144 = vsel %vm79, 0, %v143
    %145 = vst [vmem:[#allocation2 + $0xfc] sm:$0x1] %v144
    %v146 = vld [vmem:[#allocation2 + $0x108] sm:$0x1]
    %v147 = vsel %vm79, 0, %v146
    %148 = vst [vmem:[#allocation2 + $0x108] sm:$0x1] %v147
    %v149 = vld [vmem:[#allocation2 + $0x114] sm:$0x1]
    %v150 = vsel %vm79, 0, %v149
    %151 = vst [vmem:[#allocation2 + $0x114] sm:$0x1] %v150
    %v152 = vld [vmem:[#allocation2 + $0x120] sm:$0x1]
    %v153 = vsel %vm79, 0, %v152
    %154 = vst [vmem:[#allocation2 + $0x120] sm:$0x1] %v153
    %v155 = vld [vmem:[#allocation2 + $0x12c] sm:$0x1]
    %v156 = vsel %vm79, 0, %v155
    %157 = vst [vmem:[#allocation2 + $0x12c] sm:$0x1] %v156
    %v158 = vld [vmem:[#allocation2 + $0x138] sm:$0x1]
    %v159 = vsel %vm79, 0, %v158
    %160 = vst [vmem:[#allocation2 + $0x138] sm:$0x1] %v159
    %v161 = vld [vmem:[#allocation2 + $0x144] sm:$0x1]
    %v162 = vsel %vm79, 0, %v161
    %163 = vst [vmem:[#allocation2 + $0x144] sm:$0x1] %v162
    %v164 = vld [vmem:[#allocation2 + $0x150] sm:$0x1]
    %v165 = vsel %vm79, 0, %v164
    %166 = vst [vmem:[#allocation2 + $0x150] sm:$0x1] %v165
    %v167 = vld [vmem:[#allocation2 + $0x15c] sm:$0x1]
    %v168 = vsel %vm79, 0, %v167
    %169 = vst [vmem:[#allocation2 + $0x15c] sm:$0x1] %v168
    %v170 = vld [vmem:[#allocation2 + $0x168] sm:$0x1]
    %v171 = vsel %vm79, 0, %v170
    %172 = vst [vmem:[#allocation2 + $0x168] sm:$0x1] %v171
    %v173 = vld [vmem:[#allocation2 + $0x174] sm:$0x1]
    %v174 = vsel %vm79, 0, %v173
    %175 = vst [vmem:[#allocation2 + $0x174] sm:$0x1] %v174
    %v176 = vld [vmem:[#allocation2 + $0x180] sm:$0x1]
    %v177 = vsel %vm79, 0, %v176
    %178 = vst [vmem:[#allocation2 + $0x180] sm:$0x1] %v177
    %v179 = vld [vmem:[#allocation2 + $0x18c] sm:$0x1]
    %v180 = vsel %vm79, 0, %v179
    %181 = vst [vmem:[#allocation2 + $0x18c] sm:$0x1] %v180
    %v182 = vld [vmem:[#allocation2 + $0x198] sm:$0x1]
    %v183 = vsel %vm79, 0, %v182
    %184 = vst [vmem:[#allocation2 + $0x198] sm:$0x1] %v183
    %v185 = vld [vmem:[#allocation2 + $0x1a4] sm:$0x1]
    %v186 = vsel %vm79, 0, %v185
    %187 = vst [vmem:[#allocation2 + $0x1a4] sm:$0x1] %v186
    %vm188 = vsmask.f32 7938
    %vm189 = vmand %vm77, %vm188
    %v190 = vld [vmem:[#allocation2 + $0x8] sm:$0x1]
    %v191 = vsel %vm189, 0, %v190
    %192 = vst [vmem:[#allocation2 + $0x8] sm:$0x1] %v191
    %v193 = vld [vmem:[#allocation2 + $0x14] sm:$0x1]
    %v194 = vsel %vm189, 0, %v193
    %195 = vst [vmem:[#allocation2 + $0x14] sm:$0x1] %v194
    %v196 = vld [vmem:[#allocation2 + $0x20] sm:$0x1]
    %v197 = vsel %vm189, 0, %v196
    %198 = vst [vmem:[#allocation2 + $0x20] sm:$0x1] %v197
    %v199 = vld [vmem:[#allocation2 + $0x2c] sm:$0x1]
    %v200 = vsel %vm189, 0, %v199
    %201 = vst [vmem:[#allocation2 + $0x2c] sm:$0x1] %v200
    %v202 = vld [vmem:[#allocation2 + $0x38] sm:$0x1]
    %v203 = vsel %vm189, 0, %v202
    %204 = vst [vmem:[#allocation2 + $0x38] sm:$0x1] %v203
    %v205 = vld [vmem:[#allocation2 + $0x44] sm:$0x1]
    %v206 = vsel %vm189, 0, %v205
    %207 = vst [vmem:[#allocation2 + $0x44] sm:$0x1] %v206
    %v208 = vld [vmem:[#allocation2 + $0x50] sm:$0x1]
    %v209 = vsel %vm189, 0, %v208
    %210 = vst [vmem:[#allocation2 + $0x50] sm:$0x1] %v209
    %v211 = vld [vmem:[#allocation2 + $0x5c] sm:$0x1]
    %v212 = vsel %vm189, 0, %v211
    %213 = vst [vmem:[#allocation2 + $0x5c] sm:$0x1] %v212
    %v214 = vld [vmem:[#allocation2 + $0x68] sm:$0x1]
    %v215 = vsel %vm189, 0, %v214
    %216 = vst [vmem:[#allocation2 + $0x68] sm:$0x1] %v215
    %v217 = vld [vmem:[#allocation2 + $0x74] sm:$0x1]
    %v218 = vsel %vm189, 0, %v217
    %219 = vst [vmem:[#allocation2 + $0x74] sm:$0x1] %v218
    %v220 = vld [vmem:[#allocation2 + $0x80] sm:$0x1]
    %v221 = vsel %vm189, 0, %v220
    %222 = vst [vmem:[#allocation2 + $0x80] sm:$0x1] %v221
    %v223 = vld [vmem:[#allocation2 + $0x8c] sm:$0x1]
    %v224 = vsel %vm189, 0, %v223
    %225 = vst [vmem:[#allocation2 + $0x8c] sm:$0x1] %v224
    %v226 = vld [vmem:[#allocation2 + $0x98] sm:$0x1]
    %v227 = vsel %vm189, 0, %v226
    %228 = vst [vmem:[#allocation2 + $0x98] sm:$0x1] %v227
    %v229 = vld [vmem:[#allocation2 + $0xa4] sm:$0x1]
    %v230 = vsel %vm189, 0, %v229
    %231 = vst [vmem:[#allocation2 + $0xa4] sm:$0x1] %v230
    %v232 = vld [vmem:[#allocation2 + $0xb0] sm:$0x1]
    %v233 = vsel %vm189, 0, %v232
    %234 = vst [vmem:[#allocation2 + $0xb0] sm:$0x1] %v233
    %v235 = vld [vmem:[#allocation2 + $0xbc] sm:$0x1]
    %v236 = vsel %vm189, 0, %v235
    %237 = vst [vmem:[#allocation2 + $0xbc] sm:$0x1] %v236
    %v238 = vld [vmem:[#allocation2 + $0xc8] sm:$0x1]
    %v239 = vsel %vm189, 0, %v238
    %240 = vst [vmem:[#allocation2 + $0xc8] sm:$0x1] %v239
    %v241 = vld [vmem:[#allocation2 + $0xd4] sm:$0x1]
    %v242 = vsel %vm189, 0, %v241
    %243 = vst [vmem:[#allocation2 + $0xd4] sm:$0x1] %v242
    %v244 = vld [vmem:[#allocation2 + $0xe0] sm:$0x1]
    %v245 = vsel %vm189, 0, %v244
    %246 = vst [vmem:[#allocation2 + $0xe0] sm:$0x1] %v245
    %v247 = vld [vmem:[#allocation2 + $0xec] sm:$0x1]
    %v248 = vsel %vm189, 0, %v247
    %249 = vst [vmem:[#allocation2 + $0xec] sm:$0x1] %v248
    %v250 = vld [vmem:[#allocation2 + $0xf8] sm:$0x1]
    %v251 = vsel %vm189, 0, %v250
    %252 = vst [vmem:[#allocation2 + $0xf8] sm:$0x1] %v251
    %v253 = vld [vmem:[#allocation2 + $0x104] sm:$0x1]
    %v254 = vsel %vm189, 0, %v253
    %255 = vst [vmem:[#allocation2 + $0x104] sm:$0x1] %v254
    %v256 = vld [vmem:[#allocation2 + $0x110] sm:$0x1]
    %v257 = vsel %vm189, 0, %v256
    %258 = vst [vmem:[#allocation2 + $0x110] sm:$0x1] %v257
    %v259 = vld [vmem:[#allocation2 + $0x11c] sm:$0x1]
    %v260 = vsel %vm189, 0, %v259
    %261 = vst [vmem:[#allocation2 + $0x11c] sm:$0x1] %v260
    %v262 = vld [vmem:[#allocation2 + $0x128] sm:$0x1]
    %v263 = vsel %vm189, 0, %v262
    %264 = vst [vmem:[#allocation2 + $0x128] sm:$0x1] %v263
    %v265 = vld [vmem:[#allocation2 + $0x134] sm:$0x1]
    %v266 = vsel %vm189, 0, %v265
    %267 = vst [vmem:[#allocation2 + $0x134] sm:$0x1] %v266
    %v268 = vld [vmem:[#allocation2 + $0x140] sm:$0x1]
    %v269 = vsel %vm189, 0, %v268
    %270 = vst [vmem:[#allocation2 + $0x140] sm:$0x1] %v269
    %v271 = vld [vmem:[#allocation2 + $0x14c] sm:$0x1]
    %v272 = vsel %vm189, 0, %v271
    %273 = vst [vmem:[#allocation2 + $0x14c] sm:$0x1] %v272
    %v274 = vld [vmem:[#allocation2 + $0x158] sm:$0x1]
    %v275 = vsel %vm189, 0, %v274
    %276 = vst [vmem:[#allocation2 + $0x158] sm:$0x1] %v275
    %v277 = vld [vmem:[#allocation2 + $0x164] sm:$0x1]
    %v278 = vsel %vm189, 0, %v277
    %279 = vst [vmem:[#allocation2 + $0x164] sm:$0x1] %v278
    %v280 = vld [vmem:[#allocation2 + $0x170] sm:$0x1]
    %v281 = vsel %vm189, 0, %v280
    %282 = vst [vmem:[#allocation2 + $0x170] sm:$0x1] %v281
    %v283 = vld [vmem:[#allocation2 + $0x17c] sm:$0x1]
    %v284 = vsel %vm189, 0, %v283
    %285 = vst [vmem:[#allocation2 + $0x17c] sm:$0x1] %v284
    %v286 = vld [vmem:[#allocation2 + $0x188] sm:$0x1]
    %v287 = vsel %vm189, 0, %v286
    %288 = vst [vmem:[#allocation2 + $0x188] sm:$0x1] %v287
    %v289 = vld [vmem:[#allocation2 + $0x194] sm:$0x1]
    %v290 = vsel %vm189, 0, %v289
    %291 = vst [vmem:[#allocation2 + $0x194] sm:$0x1] %v290
    %v292 = vld [vmem:[#allocation2 + $0x1a0] sm:$0x1]
    %v293 = vsel %vm189, 0, %v292
    %294 = vst [vmem:[#allocation2 + $0x1a0] sm:$0x1] %v293
    %v295 = vld [vmem:[#allocation2 + $0x1ac] sm:$0x1]
    %v296 = vsel %vm189, 0, %v295
    %297 = vst [vmem:[#allocation2 + $0x1ac] sm:$0x1] %v296
    %v298 = vld [vmem:[%s0] sm:$0xf]
    %v299 = vld [vmem:[%s0 + $0x4] sm:$0xf]
    %v300 = vld [vmem:[%s0 + $0x8] sm:$0xf]
    %v301 = vld [vmem:[%s0 + $0xc] sm:$0xf]
    %v302 = vld [vmem:[%s0 + $0x10] sm:$0xf]
    %v303 = vld [vmem:[%s0 + $0x14] sm:$0xf]
    %v304 = vld [vmem:[%s0 + $0x18] sm:$0xf]
    %v305 = vld [vmem:[%s0 + $0x1c] sm:$0xf]
    %v306 = vld [vmem:[%s0 + $0x20] sm:$0xf]
    %v307 = vld [vmem:[%s0 + $0x24] sm:$0xf]
    %v308 = vld [vmem:[%s0 + $0x28] sm:$0xf]
    %v309 = vld [vmem:[%s0 + $0x2c] sm:$0xf]
    %v310 = vld [vmem:[%s0 + $0x30] sm:$0xf]
    %v311 = vld [vmem:[%s0 + $0x34] sm:$0xf]
    %v312 = vld [vmem:[%s0 + $0x38] sm:$0xf]
    %v313 = vld [vmem:[%s0 + $0x3c] sm:$0xf]
    %v314 = vld [vmem:[%s0 + $0x40] sm:$0xf]
    %v315 = vld [vmem:[%s0 + $0x44] sm:$0xf]
    %v316 = vld [vmem:[%s0 + $0x48] sm:$0xf]
    %v317 = vld [vmem:[%s0 + $0x4c] sm:$0xf]
    %v318 = vld [vmem:[%s0 + $0x50] sm:$0xf]
    %v319 = vld [vmem:[%s0 + $0x54] sm:$0xf]
    %v320 = vld [vmem:[%s0 + $0x58] sm:$0xf]
    %v321 = vld [vmem:[%s0 + $0x5c] sm:$0xf]
    %v322 = vld [vmem:[%s0 + $0x60] sm:$0xf]
    %v323 = vld [vmem:[%s0 + $0x64] sm:$0xf]
    %v324 = vld [vmem:[%s0 + $0x68] sm:$0xf]
    %v325 = vld [vmem:[%s0 + $0x6c] sm:$0xf]
    %v326 = vld [vmem:[%s0 + $0x70] sm:$0xf]
    %v327 = vld [vmem:[%s0 + $0x74] sm:$0xf]
    %v328 = vld [vmem:[%s0 + $0x78] sm:$0xf]
    %v329 = vld [vmem:[%s0 + $0x7c] sm:$0xf]
    %v330 = vld [vmem:[%s0 + $0x80] sm:$0xf]
    %v331 = vld [vmem:[%s0 + $0x84] sm:$0xf]
    %v332 = vld [vmem:[%s0 + $0x88] sm:$0xf]
    %v333 = vld [vmem:[%s0 + $0x8c] sm:$0xf]
    %v334 = vld [vmem:[%s0 + $0x90] sm:$0xf]
    %v335 = vld [vmem:[%s0 + $0x94] sm:$0xf]
    %v336 = vld [vmem:[%s0 + $0x98] sm:$0xf]
    %v337 = vld [vmem:[%s0 + $0x9c] sm:$0xf]
    %v338 = vld [vmem:[%s0 + $0xa0] sm:$0xf]
    %v339 = vld [vmem:[%s0 + $0xa4] sm:$0xf]
    %v340 = vld [vmem:[%s0 + $0xa8] sm:$0xf]
    %v341 = vld [vmem:[%s0 + $0xac] sm:$0xf]
    %v342 = vld [vmem:[%s0 + $0xb0] sm:$0xf]
    %v343 = vld [vmem:[%s0 + $0xb4] sm:$0xf]
    %v344 = vld [vmem:[%s0 + $0xb8] sm:$0xf]
    %v345 = vld [vmem:[%s0 + $0xbc] sm:$0xf]
    %v346 = vld [vmem:[%s0 + $0xc0] sm:$0xf]
    %v347 = vld [vmem:[%s0 + $0xc4] sm:$0xf]
    %v348 = vld [vmem:[%s0 + $0xc8] sm:$0xf]
    %v349 = vld [vmem:[%s0 + $0xcc] sm:$0xf]
    %v350 = vld [vmem:[%s0 + $0xd0] sm:$0xf]
    %v351 = vld [vmem:[%s0 + $0xd4] sm:$0xf]
    %v352 = vld [vmem:[%s0 + $0xd8] sm:$0xf]
    %v353 = vld [vmem:[%s0 + $0xdc] sm:$0xf]
    %v354 = vld [vmem:[%s0 + $0xe0] sm:$0xf]
    %v355 = vld [vmem:[%s0 + $0xe4] sm:$0xf]
    %v356 = vld [vmem:[%s0 + $0xe8] sm:$0xf]
    %v357 = vld [vmem:[%s0 + $0xec] sm:$0xf]
    %v358 = vld [vmem:[%s0 + $0xf0] sm:$0xf]
    %v359 = vld [vmem:[%s0 + $0xf4] sm:$0xf]
    %v360 = vld [vmem:[%s0 + $0xf8] sm:$0xf]
    %v361 = vld [vmem:[%s0 + $0xfc] sm:$0xf]
    %v362 = vld [vmem:[%s1] sm:$0xf]
    %v363 = vld [vmem:[%s1 + $0x4] sm:$0xf]
    %v364 = vld [vmem:[%s1 + $0x8] sm:$0xf]
    %v365 = vld [vmem:[%s1 + $0xc] sm:$0xf]
    %v366 = vld [vmem:[%s1 + $0x10] sm:$0x3]
    %v368 = vlaneseq
    %v369 = vshrl.u32 %v368, 7
    %v370 = vsub.s32 0, %v369
    %v371 = vrot.slane %v59, %v370
    %v437 = vunpack.c.l.b16 %v298
    %v438 = vunpack.c.l.b16 %v299
    %v439 = vunpack.c.l.b16 %v300
    %v440 = vunpack.c.l.b16 %v301
    %v441 = vunpack.c.l.b16 %v302
    %v442 = vunpack.c.l.b16 %v303
    %v443 = vunpack.c.l.b16 %v304
    %v444 = vunpack.c.l.b16 %v305
    %v445 = vunpack.c.l.b16 %v306
    %v446 = vunpack.c.l.b16 %v307
    %v447 = vunpack.c.l.b16 %v308
    %v448 = vunpack.c.l.b16 %v309
    %v449 = vunpack.c.l.b16 %v310
    %v450 = vunpack.c.l.b16 %v311
    %v451 = vunpack.c.l.b16 %v312
    %v452 = vunpack.c.l.b16 %v313
    %v453 = vunpack.c.l.b16 %v314
    %v454 = vunpack.c.l.b16 %v315
    %v455 = vunpack.c.l.b16 %v316
    %v456 = vunpack.c.l.b16 %v317
    %v457 = vunpack.c.l.b16 %v318
    %v458 = vunpack.c.l.b16 %v319
    %v459 = vunpack.c.l.b16 %v320
    %v460 = vunpack.c.l.b16 %v321
    %v461 = vunpack.c.l.b16 %v322
    %v462 = vunpack.c.l.b16 %v323
    %v463 = vunpack.c.l.b16 %v324
    %v464 = vunpack.c.l.b16 %v325
    %v465 = vunpack.c.l.b16 %v326
    %v466 = vunpack.c.l.b16 %v327
    %v467 = vunpack.c.l.b16 %v328
    %v468 = vunpack.c.l.b16 %v329
    %v469 = vunpack.c.l.b16 %v330
    %v470 = vunpack.c.l.b16 %v331
    %v471 = vunpack.c.l.b16 %v332
    %v472 = vunpack.c.l.b16 %v333
    %v473 = vunpack.c.l.b16 %v334
    %v474 = vunpack.c.l.b16 %v335
    %v475 = vunpack.c.l.b16 %v336
    %v476 = vunpack.c.l.b16 %v337
    %v477 = vunpack.c.l.b16 %v338
    %v478 = vunpack.c.l.b16 %v339
    %v479 = vunpack.c.l.b16 %v340
    %v480 = vunpack.c.l.b16 %v341
    %v481 = vunpack.c.l.b16 %v342
    %v482 = vunpack.c.l.b16 %v343
    %v483 = vunpack.c.l.b16 %v344
    %v484 = vunpack.c.l.b16 %v345
    %v485 = vunpack.c.l.b16 %v346
    %v486 = vunpack.c.l.b16 %v347
    %v487 = vunpack.c.l.b16 %v348
    %v488 = vunpack.c.l.b16 %v349
    %v489 = vunpack.c.l.b16 %v350
    %v490 = vunpack.c.l.b16 %v351
    %v491 = vunpack.c.l.b16 %v352
    %v492 = vunpack.c.l.b16 %v353
    %v493 = vunpack.c.l.b16 %v354
    %v494 = vunpack.c.l.b16 %v355
    %v495 = vunpack.c.l.b16 %v356
    %v496 = vunpack.c.l.b16 %v357
    %v497 = vunpack.c.l.b16 %v358
    %v498 = vunpack.c.l.b16 %v359
    %v499 = vunpack.c.l.b16 %v360
    %v500 = vunpack.c.l.b16 %v361
    %v501 = vpack.c.b16 %v438, %v437
    %v502 = vpack.c.b16 %v440, %v439
    %v503 = vpack.c.b16 %v442, %v441
    %v504 = vpack.c.b16 %v444, %v443
    %v505 = vpack.c.b16 %v446, %v445
    %v506 = vpack.c.b16 %v448, %v447
    %v507 = vpack.c.b16 %v450, %v449
    %v508 = vpack.c.b16 %v452, %v451
    %v509 = vpack.c.b16 %v454, %v453
    %v510 = vpack.c.b16 %v456, %v455
    %v511 = vpack.c.b16 %v458, %v457
    %v512 = vpack.c.b16 %v460, %v459
    %v513 = vpack.c.b16 %v462, %v461
    %v514 = vpack.c.b16 %v464, %v463
    %v515 = vpack.c.b16 %v466, %v465
    %v516 = vpack.c.b16 %v468, %v467
    %v517 = vpack.c.b16 %v470, %v469
    %v518 = vpack.c.b16 %v472, %v471
    %v519 = vpack.c.b16 %v474, %v473
    %v520 = vpack.c.b16 %v476, %v475
    %v521 = vpack.c.b16 %v478, %v477
    %v522 = vpack.c.b16 %v480, %v479
    %v523 = vpack.c.b16 %v482, %v481
    %v524 = vpack.c.b16 %v484, %v483
    %v525 = vpack.c.b16 %v486, %v485
    %v526 = vpack.c.b16 %v488, %v487
    %v527 = vpack.c.b16 %v490, %v489
    %v528 = vpack.c.b16 %v492, %v491
    %v529 = vpack.c.b16 %v494, %v493
    %v530 = vpack.c.b16 %v496, %v495
    %v531 = vpack.c.b16 %v498, %v497
    %v532 = vpack.c.b16 %v500, %v499
    %v538 = vunpack.c.l.b16 %v362
    %v539 = vunpack.c.l.b16 %v363
    %v540 = vunpack.c.l.b16 %v364
    %v541 = vunpack.c.l.b16 %v365
    %v542 = vunpack.c.l.b16 %v366
    %v543 = vpack.c.b16 %v539, %v538
    %v544 = vpack.c.b16 %v541, %v540
    %v545 = vpack.c.b16 %v542, %v542
    %vm548 = vcmask 293888
    %v550 = vsel %vm548, %v501, 0
    %v553 = vsel %vm548, %v502, 0
    %v556 = vsel %vm548, %v503, 0
    %v559 = vsel %vm548, %v504, 0
    %v562 = vsel %vm548, %v505, 0
    %v565 = vsel %vm548, %v506, 0
    %v568 = vsel %vm548, %v507, 0
    %v571 = vsel %vm548, %v508, 0
    %v574 = vsel %vm548, %v509, 0
    %v577 = vsel %vm548, %v510, 0
    %v580 = vsel %vm548, %v511, 0
    %v583 = vsel %vm548, %v512, 0
    %v586 = vsel %vm548, %v513, 0
    %v589 = vsel %vm548, %v514, 0
    %v592 = vsel %vm548, %v515, 0
    %v595 = vsel %vm548, %v516, 0
    %v598 = vsel %vm548, %v517, 0
    %v601 = vsel %vm548, %v518, 0
    %v604 = vsel %vm548, %v519, 0
    %v607 = vsel %vm548, %v520, 0
    %v610 = vsel %vm548, %v521, 0
    %v613 = vsel %vm548, %v522, 0
    %v616 = vsel %vm548, %v523, 0
    %v619 = vsel %vm548, %v524, 0
    %v622 = vsel %vm548, %v525, 0
    %v625 = vsel %vm548, %v526, 0
    %v628 = vsel %vm548, %v527, 0
    %v631 = vsel %vm548, %v528, 0
    %v634 = vsel %vm548, %v529, 0
    %v637 = vsel %vm548, %v530, 0
    %v640 = vsel %vm548, %v531, 0
    %v643 = vsel %vm548, %v532, 0
    %vm645 = vcmask 1041408
    %v647 = vsel %vm645, %v545, 0
    %649 = vmatprep.subr.bf16.mxu0 0
    %650 = vmatpush1.bf16.msra.mxu0 0
    %651 = vmatprep.subr.bf16.mxu0 0
    %652 = vmatpush1.bf16.msra.mxu0 0
    %653 = vmatprep.subr.bf16.mxu0 0
    %654 = vmatpush1.bf16.msra.mxu0 0
    %655 = vmatprep.subr.bf16.mxu0 0
    %656 = vmatpush1.bf16.msra.mxu0 0
    %657 = vmatprep.subr.bf16.mxu0 0
    %658 = vmatpush1.bf16.msra.mxu0 0
    %659 = vmatprep.subr.bf16.mxu0 0
    %660 = vmatpush1.bf16.msra.mxu0 %v647
    %661 = vmatprep.subr.bf16.mxu0 0
    %662 = vmatpush1.bf16.msra.mxu0 %v544
    %663 = vmatprep.subr.bf16.mxu0 0
    %664 = vmatpush1.bf16.msra.mxu0 %v543
    %665 = vmatprep.subr.bf16.mxu0 0
    %666 = vmatpush2.bf16.msra.mxu0 0
    %667 = vmatprep.subr.bf16.mxu0 0
    %668 = vmatpush2.bf16.msra.mxu0 0
    %669 = vmatprep.subr.bf16.mxu0 0
    %670 = vmatpush2.bf16.msra.mxu0 0
    %671 = vmatprep.subr.bf16.mxu0 0
    %672 = vmatpush2.bf16.msra.mxu0 0
    %673 = vmatprep.subr.bf16.mxu0 0
    %674 = vmatpush2.bf16.msra.mxu0 0
    %675 = vmatprep.subr.bf16.mxu0 0
    %676 = vmatpush2.bf16.msra.mxu0 0
    %677 = vmatprep.subr.bf16.mxu0 0
    %678 = vmatpush2.bf16.msra.mxu0 0
    %679 = vmatprep.subr.bf16.mxu0 0
    %680 = vmatpush2.bf16.msra.mxu0 0
    %681 = vmatprep.mubr.bf16.mxu0 0
    %682 = vmatmul.mubr.bf16.gmra.mxu0 %v550
    %v683 = vpop.f32.mrf.mxu0
    %v684 = vadd.f32 %v371, %v683
    %v685 = vpop.f32.mrf.mxu0
    %v686 = vpop.f32.mrf.mxu0
    %v687 = vadd.f32 %v371, %v686
    %v688 = vpop.f32.mrf.mxu0
    %689 = vmatprep.mubr.bf16.mxu0 0
    %690 = vmatmul.mubr.bf16.gmra.mxu0 %v553
    %v691 = vpop.f32.mrf.mxu0
    %v692 = vadd.f32 %v371, %v691
    %v693 = vpop.f32.mrf.mxu0
    %v694 = vpop.f32.mrf.mxu0
    %v695 = vadd.f32 %v371, %v694
    %v696 = vpop.f32.mrf.mxu0
    %697 = vmatprep.mubr.bf16.mxu0 0
    %698 = vmatmul.mubr.bf16.gmra.mxu0 %v556
    %v699 = vpop.f32.mrf.mxu0
    %v700 = vadd.f32 %v371, %v699
    %v701 = vpop.f32.mrf.mxu0
    %v702 = vpop.f32.mrf.mxu0
    %v703 = vadd.f32 %v371, %v702
    %v704 = vpop.f32.mrf.mxu0
    %705 = vmatprep.mubr.bf16.mxu0 0
    %706 = vmatmul.mubr.bf16.gmra.mxu0 %v559
    %v707 = vpop.f32.mrf.mxu0
    %v708 = vadd.f32 %v371, %v707
    %v709 = vpop.f32.mrf.mxu0
    %v710 = vpop.f32.mrf.mxu0
    %v711 = vadd.f32 %v371, %v710
    %v712 = vpop.f32.mrf.mxu0
    %713 = vmatprep.mubr.bf16.mxu0 0
    %714 = vmatmul.mubr.bf16.gmra.mxu0 %v562
    %v715 = vpop.f32.mrf.mxu0
    %v716 = vadd.f32 %v371, %v715
    %v717 = vpop.f32.mrf.mxu0
    %v718 = vpop.f32.mrf.mxu0
    %v719 = vadd.f32 %v371, %v718
    %v720 = vpop.f32.mrf.mxu0
    %721 = vmatprep.mubr.bf16.mxu0 0
    %722 = vmatmul.mubr.bf16.gmra.mxu0 %v565
    %v723 = vpop.f32.mrf.mxu0
    %v724 = vadd.f32 %v371, %v723
    %v725 = vpop.f32.mrf.mxu0
    %v726 = vpop.f32.mrf.mxu0
    %v727 = vadd.f32 %v371, %v726
    %v728 = vpop.f32.mrf.mxu0
    %729 = vmatprep.mubr.bf16.mxu0 0
    %730 = vmatmul.mubr.bf16.gmra.mxu0 %v568
    %v731 = vpop.f32.mrf.mxu0
    %v732 = vadd.f32 %v371, %v731
    %v733 = vpop.f32.mrf.mxu0
    %v734 = vpop.f32.mrf.mxu0
    %v735 = vadd.f32 %v371, %v734
    %v736 = vpop.f32.mrf.mxu0
    %737 = vmatprep.mubr.bf16.mxu0 0
    %738 = vmatmul.mubr.bf16.gmra.mxu0 %v571
    %v739 = vpop.f32.mrf.mxu0
    %v740 = vadd.f32 %v371, %v739
    %v741 = vpop.f32.mrf.mxu0
    %v742 = vpop.f32.mrf.mxu0
    %v743 = vadd.f32 %v371, %v742
    %v744 = vpop.f32.mrf.mxu0
    %745 = vmatprep.mubr.bf16.mxu0 0
    %746 = vmatmul.mubr.bf16.gmra.mxu0 %v574
    %v747 = vpop.f32.mrf.mxu0
    %v748 = vadd.f32 %v371, %v747
    %v749 = vpop.f32.mrf.mxu0
    %v750 = vpop.f32.mrf.mxu0
    %v751 = vadd.f32 %v371, %v750
    %v752 = vpop.f32.mrf.mxu0
    %753 = vmatprep.mubr.bf16.mxu0 0
    %754 = vmatmul.mubr.bf16.gmra.mxu0 %v577
    %v755 = vpop.f32.mrf.mxu0
    %v756 = vadd.f32 %v371, %v755
    %v757 = vpop.f32.mrf.mxu0
    %v758 = vpop.f32.mrf.mxu0
    %v759 = vadd.f32 %v371, %v758
    %v760 = vpop.f32.mrf.mxu0
    %761 = vmatprep.mubr.bf16.mxu0 0
    %762 = vmatmul.mubr.bf16.gmra.mxu0 %v580
    %v763 = vpop.f32.mrf.mxu0
    %v764 = vadd.f32 %v371, %v763
    %v765 = vpop.f32.mrf.mxu0
    %v766 = vpop.f32.mrf.mxu0
    %v767 = vadd.f32 %v371, %v766
    %v768 = vpop.f32.mrf.mxu0
    %769 = vmatprep.mubr.bf16.mxu0 0
    %770 = vmatmul.mubr.bf16.gmra.mxu0 %v583
    %v771 = vpop.f32.mrf.mxu0
    %v772 = vadd.f32 %v371, %v771
    %v773 = vpop.f32.mrf.mxu0
    %v774 = vpop.f32.mrf.mxu0
    %v775 = vadd.f32 %v371, %v774
    %v776 = vpop.f32.mrf.mxu0
    %777 = vmatprep.mubr.bf16.mxu0 0
    %778 = vmatmul.mubr.bf16.gmra.mxu0 %v586
    %v779 = vpop.f32.mrf.mxu0
    %v780 = vadd.f32 %v371, %v779
    %v781 = vpop.f32.mrf.mxu0
    %v782 = vpop.f32.mrf.mxu0
    %v783 = vadd.f32 %v371, %v782
    %v784 = vpop.f32.mrf.mxu0
    %785 = vmatprep.mubr.bf16.mxu0 0
    %786 = vmatmul.mubr.bf16.gmra.mxu0 %v589
    %v787 = vpop.f32.mrf.mxu0
    %v788 = vadd.f32 %v371, %v787
    %v789 = vpop.f32.mrf.mxu0
    %v790 = vpop.f32.mrf.mxu0
    %v791 = vadd.f32 %v371, %v790
    %v792 = vpop.f32.mrf.mxu0
    %793 = vmatprep.mubr.bf16.mxu0 0
    %794 = vmatmul.mubr.bf16.gmra.mxu0 %v592
    %v795 = vpop.f32.mrf.mxu0
    %v796 = vadd.f32 %v371, %v795
    %v797 = vpop.f32.mrf.mxu0
    %v798 = vpop.f32.mrf.mxu0
    %v799 = vadd.f32 %v371, %v798
    %v800 = vpop.f32.mrf.mxu0
    %801 = vmatprep.mubr.bf16.mxu0 0
    %802 = vmatmul.mubr.bf16.gmra.mxu0 %v595
    %v803 = vpop.f32.mrf.mxu0
    %v804 = vadd.f32 %v371, %v803
    %v805 = vpop.f32.mrf.mxu0
    %v806 = vpop.f32.mrf.mxu0
    %v807 = vadd.f32 %v371, %v806
    %v808 = vpop.f32.mrf.mxu0
    %809 = vmatprep.mubr.bf16.mxu0 0
    %810 = vmatmul.mubr.bf16.gmra.mxu0 %v598
    %v811 = vpop.f32.mrf.mxu0
    %v812 = vadd.f32 %v371, %v811
    %v813 = vpop.f32.mrf.mxu0
    %v814 = vpop.f32.mrf.mxu0
    %v815 = vadd.f32 %v371, %v814
    %v816 = vpop.f32.mrf.mxu0
    %817 = vmatprep.mubr.bf16.mxu0 0
    %818 = vmatmul.mubr.bf16.gmra.mxu0 %v601
    %v819 = vpop.f32.mrf.mxu0
    %v820 = vadd.f32 %v371, %v819
    %v821 = vpop.f32.mrf.mxu0
    %v822 = vpop.f32.mrf.mxu0
    %v823 = vadd.f32 %v371, %v822
    %v824 = vpop.f32.mrf.mxu0
    %825 = vmatprep.mubr.bf16.mxu0 0
    %826 = vmatmul.mubr.bf16.gmra.mxu0 %v604
    %v827 = vpop.f32.mrf.mxu0
    %v828 = vadd.f32 %v371, %v827
    %v829 = vpop.f32.mrf.mxu0
    %v830 = vpop.f32.mrf.mxu0
    %v831 = vadd.f32 %v371, %v830
    %v832 = vpop.f32.mrf.mxu0
    %833 = vmatprep.mubr.bf16.mxu0 0
    %834 = vmatmul.mubr.bf16.gmra.mxu0 %v607
    %v835 = vpop.f32.mrf.mxu0
    %v836 = vadd.f32 %v371, %v835
    %v837 = vpop.f32.mrf.mxu0
    %v838 = vpop.f32.mrf.mxu0
    %v839 = vadd.f32 %v371, %v838
    %v840 = vpop.f32.mrf.mxu0
    %841 = vmatprep.mubr.bf16.mxu0 0
    %842 = vmatmul.mubr.bf16.gmra.mxu0 %v610
    %v843 = vpop.f32.mrf.mxu0
    %v844 = vadd.f32 %v371, %v843
    %v845 = vpop.f32.mrf.mxu0
    %v846 = vpop.f32.mrf.mxu0
    %v847 = vadd.f32 %v371, %v846
    %v848 = vpop.f32.mrf.mxu0
    %849 = vmatprep.mubr.bf16.mxu0 0
    %850 = vmatmul.mubr.bf16.gmra.mxu0 %v613
    %v851 = vpop.f32.mrf.mxu0
    %v852 = vadd.f32 %v371, %v851
    %v853 = vpop.f32.mrf.mxu0
    %v854 = vpop.f32.mrf.mxu0
    %v855 = vadd.f32 %v371, %v854
    %v856 = vpop.f32.mrf.mxu0
    %857 = vmatprep.mubr.bf16.mxu0 0
    %858 = vmatmul.mubr.bf16.gmra.mxu0 %v616
    %v859 = vpop.f32.mrf.mxu0
    %v860 = vadd.f32 %v371, %v859
    %v861 = vpop.f32.mrf.mxu0
    %v862 = vpop.f32.mrf.mxu0
    %v863 = vadd.f32 %v371, %v862
    %v864 = vpop.f32.mrf.mxu0
    %865 = vmatprep.mubr.bf16.mxu0 0
    %866 = vmatmul.mubr.bf16.gmra.mxu0 %v619
    %v867 = vpop.f32.mrf.mxu0
    %v868 = vadd.f32 %v371, %v867
    %v869 = vpop.f32.mrf.mxu0
    %v870 = vpop.f32.mrf.mxu0
    %v871 = vadd.f32 %v371, %v870
    %v872 = vpop.f32.mrf.mxu0
    %873 = vmatprep.mubr.bf16.mxu0 0
    %874 = vmatmul.mubr.bf16.gmra.mxu0 %v622
    %v875 = vpop.f32.mrf.mxu0
    %v876 = vadd.f32 %v371, %v875
    %v877 = vpop.f32.mrf.mxu0
    %v878 = vpop.f32.mrf.mxu0
    %v879 = vadd.f32 %v371, %v878
    %v880 = vpop.f32.mrf.mxu0
    %881 = vmatprep.mubr.bf16.mxu0 0
    %882 = vmatmul.mubr.bf16.gmra.mxu0 %v625
    %v883 = vpop.f32.mrf.mxu0
    %v884 = vadd.f32 %v371, %v883
    %v885 = vpop.f32.mrf.mxu0
    %v886 = vpop.f32.mrf.mxu0
    %v887 = vadd.f32 %v371, %v886
    %v888 = vpop.f32.mrf.mxu0
    %889 = vmatprep.mubr.bf16.mxu0 0
    %890 = vmatmul.mubr.bf16.gmra.mxu0 %v628
    %v891 = vpop.f32.mrf.mxu0
    %v892 = vadd.f32 %v371, %v891
    %v893 = vpop.f32.mrf.mxu0
    %v894 = vpop.f32.mrf.mxu0
    %v895 = vadd.f32 %v371, %v894
    %v896 = vpop.f32.mrf.mxu0
    %897 = vmatprep.mubr.bf16.mxu0 0
    %898 = vmatmul.mubr.bf16.gmra.mxu0 %v631
    %v899 = vpop.f32.mrf.mxu0
    %v900 = vadd.f32 %v371, %v899
    %v901 = vpop.f32.mrf.mxu0
    %v902 = vpop.f32.mrf.mxu0
    %v903 = vadd.f32 %v371, %v902
    %v904 = vpop.f32.mrf.mxu0
    %905 = vmatprep.mubr.bf16.mxu0 0
    %906 = vmatmul.mubr.bf16.gmra.mxu0 %v634
    %v907 = vpop.f32.mrf.mxu0
    %v908 = vadd.f32 %v371, %v907
    %v909 = vpop.f32.mrf.mxu0
    %v910 = vpop.f32.mrf.mxu0
    %v911 = vadd.f32 %v371, %v910
    %v912 = vpop.f32.mrf.mxu0
    %913 = vmatprep.mubr.bf16.mxu0 0
    %914 = vmatmul.mubr.bf16.gmra.mxu0 %v637
    %v915 = vpop.f32.mrf.mxu0
    %v916 = vadd.f32 %v371, %v915
    %v917 = vpop.f32.mrf.mxu0
    %v918 = vpop.f32.mrf.mxu0
    %v919 = vadd.f32 %v371, %v918
    %v920 = vpop.f32.mrf.mxu0
    %921 = vmatprep.mubr.bf16.mxu0 0
    %922 = vmatmul.mubr.bf16.gmra.mxu0 %v640
    %v923 = vpop.f32.mrf.mxu0
    %v924 = vadd.f32 %v371, %v923
    %v925 = vpop.f32.mrf.mxu0
    %v926 = vpop.f32.mrf.mxu0
    %v927 = vadd.f32 %v371, %v926
    %v928 = vpop.f32.mrf.mxu0
    %929 = vmatprep.mubr.bf16.mxu0 0
    %930 = vmatmul.mubr.bf16.gmra.mxu0 %v643
    %v931 = vpop.f32.mrf.mxu0
    %v932 = vadd.f32 %v371, %v931
    %v933 = vpop.f32.mrf.mxu0
    %v934 = vpop.f32.mrf.mxu0
    %v935 = vadd.f32 %v371, %v934
    %v936 = vpop.f32.mrf.mxu0
    %937 = vdwg.mxu0
    %vm938 = vcmp.gt.f32.partialorder %v684, 0.0
    %vm939 = vcmp.gt.f32.partialorder %v687, 0.0
    %vm940 = vcmp.gt.f32.partialorder %v692, 0.0
    %vm941 = vcmp.gt.f32.partialorder %v695, 0.0
    %vm942 = vcmp.gt.f32.partialorder %v700, 0.0
    %vm943 = vcmp.gt.f32.partialorder %v703, 0.0
    %vm944 = vcmp.gt.f32.partialorder %v708, 0.0
    %vm945 = vcmp.gt.f32.partialorder %v711, 0.0
    %vm946 = vcmp.gt.f32.partialorder %v716, 0.0
    %vm947 = vcmp.gt.f32.partialorder %v719, 0.0
    %vm948 = vcmp.gt.f32.partialorder %v724, 0.0
    %vm949 = vcmp.gt.f32.partialorder %v727, 0.0
    %vm950 = vcmp.gt.f32.partialorder %v732, 0.0
    %vm951 = vcmp.gt.f32.partialorder %v735, 0.0
    %vm952 = vcmp.gt.f32.partialorder %v740, 0.0
    %vm953 = vcmp.gt.f32.partialorder %v743, 0.0
    %vm954 = vcmp.gt.f32.partialorder %v748, 0.0
    %vm955 = vcmp.gt.f32.partialorder %v751, 0.0
    %vm956 = vcmp.gt.f32.partialorder %v756, 0.0
    %vm957 = vcmp.gt.f32.partialorder %v759, 0.0
    %vm958 = vcmp.gt.f32.partialorder %v764, 0.0
    %vm959 = vcmp.gt.f32.partialorder %v767, 0.0
    %vm960 = vcmp.gt.f32.partialorder %v772, 0.0
    %vm961 = vcmp.gt.f32.partialorder %v775, 0.0
    %vm962 = vcmp.gt.f32.partialorder %v780, 0.0
    %vm963 = vcmp.gt.f32.partialorder %v783, 0.0
    %vm964 = vcmp.gt.f32.partialorder %v788, 0.0
    %vm965 = vcmp.gt.f32.partialorder %v791, 0.0
    %vm966 = vcmp.gt.f32.partialorder %v796, 0.0
    %vm967 = vcmp.gt.f32.partialorder %v799, 0.0
    %vm968 = vcmp.gt.f32.partialorder %v804, 0.0
    %vm969 = vcmp.gt.f32.partialorder %v807, 0.0
    %vm970 = vcmp.gt.f32.partialorder %v812, 0.0
    %vm971 = vcmp.gt.f32.partialorder %v815, 0.0
    %vm972 = vcmp.gt.f32.partialorder %v820, 0.0
    %vm973 = vcmp.gt.f32.partialorder %v823, 0.0
    %vm974 = vcmp.gt.f32.partialorder %v828, 0.0
    %vm975 = vcmp.gt.f32.partialorder %v831, 0.0
    %vm976 = vcmp.gt.f32.partialorder %v836, 0.0
    %vm977 = vcmp.gt.f32.partialorder %v839, 0.0
    %vm978 = vcmp.gt.f32.partialorder %v844, 0.0
    %vm979 = vcmp.gt.f32.partialorder %v847, 0.0
    %vm980 = vcmp.gt.f32.partialorder %v852, 0.0
    %vm981 = vcmp.gt.f32.partialorder %v855, 0.0
    %vm982 = vcmp.gt.f32.partialorder %v860, 0.0
    %vm983 = vcmp.gt.f32.partialorder %v863, 0.0
    %vm984 = vcmp.gt.f32.partialorder %v868, 0.0
    %vm985 = vcmp.gt.f32.partialorder %v871, 0.0
    %vm986 = vcmp.gt.f32.partialorder %v876, 0.0
    %vm987 = vcmp.gt.f32.partialorder %v879, 0.0
    %vm988 = vcmp.gt.f32.partialorder %v884, 0.0
    %vm989 = vcmp.gt.f32.partialorder %v887, 0.0
    %vm990 = vcmp.gt.f32.partialorder %v892, 0.0
    %vm991 = vcmp.gt.f32.partialorder %v895, 0.0
    %vm992 = vcmp.gt.f32.partialorder %v900, 0.0
    %vm993 = vcmp.gt.f32.partialorder %v903, 0.0
    %vm994 = vcmp.gt.f32.partialorder %v908, 0.0
    %vm995 = vcmp.gt.f32.partialorder %v911, 0.0
    %vm996 = vcmp.gt.f32.partialorder %v916, 0.0
    %vm997 = vcmp.gt.f32.partialorder %v919, 0.0
    %vm998 = vcmp.gt.f32.partialorder %v924, 0.0
    %vm999 = vcmp.gt.f32.partialorder %v927, 0.0
    %vm1000 = vcmp.gt.f32.partialorder %v932, 0.0
    %vm1001 = vcmp.gt.f32.partialorder %v935, 0.0
    %v1002 = vstv %s57
    %v1003 = vmul.f32 %v1002, %v684
    %v1004 = vmul.f32 %v1002, %v687
    %v1005 = vmul.f32 %v1002, %v692
    %v1006 = vmul.f32 %v1002, %v695
    %v1007 = vmul.f32 %v1002, %v700
    %v1008 = vmul.f32 %v1002, %v703
    %v1009 = vmul.f32 %v1002, %v708
    %v1010 = vmul.f32 %v1002, %v711
    %v1011 = vmul.f32 %v1002, %v716
    %v1012 = vmul.f32 %v1002, %v719
    %v1013 = vmul.f32 %v1002, %v724
    %v1014 = vmul.f32 %v1002, %v727
    %v1015 = vmul.f32 %v1002, %v732
    %v1016 = vmul.f32 %v1002, %v735
    %v1017 = vmul.f32 %v1002, %v740
    %v1018 = vmul.f32 %v1002, %v743
    %v1019 = vmul.f32 %v1002, %v748
    %v1020 = vmul.f32 %v1002, %v751
    %v1021 = vmul.f32 %v1002, %v756
    %v1022 = vmul.f32 %v1002, %v759
    %v1023 = vmul.f32 %v1002, %v764
    %v1024 = vmul.f32 %v1002, %v767
    %v1025 = vmul.f32 %v1002, %v772
    %v1026 = vmul.f32 %v1002, %v775
    %v1027 = vmul.f32 %v1002, %v780
    %v1028 = vmul.f32 %v1002, %v783
    %v1029 = vmul.f32 %v1002, %v788
    %v1030 = vmul.f32 %v1002, %v791
    %v1031 = vmul.f32 %v1002, %v796
    %v1032 = vmul.f32 %v1002, %v799
    %v1033 = vmul.f32 %v1002, %v804
    %v1034 = vmul.f32 %v1002, %v807
    %v1035 = vmul.f32 %v1002, %v812
    %v1036 = vmul.f32 %v1002, %v815
    %v1037 = vmul.f32 %v1002, %v820
    %v1038 = vmul.f32 %v1002, %v823
    %v1039 = vmul.f32 %v1002, %v828
    %v1040 = vmul.f32 %v1002, %v831
    %v1041 = vmul.f32 %v1002, %v836
    %v1042 = vmul.f32 %v1002, %v839
    %v1043 = vmul.f32 %v1002, %v844
    %v1044 = vmul.f32 %v1002, %v847
    %v1045 = vmul.f32 %v1002, %v852
    %v1046 = vmul.f32 %v1002, %v855
    %v1047 = vmul.f32 %v1002, %v860
    %v1048 = vmul.f32 %v1002, %v863
    %v1049 = vmul.f32 %v1002, %v868
    %v1050 = vmul.f32 %v1002, %v871
    %v1051 = vmul.f32 %v1002, %v876
    %v1052 = vmul.f32 %v1002, %v879
    %v1053 = vmul.f32 %v1002, %v884
    %v1054 = vmul.f32 %v1002, %v887
    %v1055 = vmul.f32 %v1002, %v892
    %v1056 = vmul.f32 %v1002, %v895
    %v1057 = vmul.f32 %v1002, %v900
    %v1058 = vmul.f32 %v1002, %v903
    %v1059 = vmul.f32 %v1002, %v908
    %v1060 = vmul.f32 %v1002, %v911
    %v1061 = vmul.f32 %v1002, %v916
    %v1062 = vmul.f32 %v1002, %v919
    %v1063 = vmul.f32 %v1002, %v924
    %v1064 = vmul.f32 %v1002, %v927
    %v1065 = vmul.f32 %v1002, %v932
    %v1066 = vmul.f32 %v1002, %v935
    %v1067 = vsel %vm938, %v684, %v1003
    %v1068 = vsel %vm939, %v687, %v1004
    %v1069 = vsel %vm940, %v692, %v1005
    %v1070 = vsel %vm941, %v695, %v1006
    %v1071 = vsel %vm942, %v700, %v1007
    %v1072 = vsel %vm943, %v703, %v1008
    %v1073 = vsel %vm944, %v708, %v1009
    %v1074 = vsel %vm945, %v711, %v1010
    %v1075 = vsel %vm946, %v716, %v1011
    %v1076 = vsel %vm947, %v719, %v1012
    %v1077 = vsel %vm948, %v724, %v1013
    %v1078 = vsel %vm949, %v727, %v1014
    %v1079 = vsel %vm950, %v732, %v1015
    %v1080 = vsel %vm951, %v735, %v1016
    %v1081 = vsel %vm952, %v740, %v1017
    %v1082 = vsel %vm953, %v743, %v1018
    %v1083 = vsel %vm954, %v748, %v1019
    %v1084 = vsel %vm955, %v751, %v1020
    %v1085 = vsel %vm956, %v756, %v1021
    %v1086 = vsel %vm957, %v759, %v1022
    %v1087 = vsel %vm958, %v764, %v1023
    %v1088 = vsel %vm959, %v767, %v1024
    %v1089 = vsel %vm960, %v772, %v1025
    %v1090 = vsel %vm961, %v775, %v1026
    %v1091 = vsel %vm962, %v780, %v1027
    %v1092 = vsel %vm963, %v783, %v1028
    %v1093 = vsel %vm964, %v788, %v1029
    %v1094 = vsel %vm965, %v791, %v1030
    %v1095 = vsel %vm966, %v796, %v1031
    %v1096 = vsel %vm967, %v799, %v1032
    %v1097 = vsel %vm968, %v804, %v1033
    %v1098 = vsel %vm969, %v807, %v1034
    %v1099 = vsel %vm970, %v812, %v1035
    %v1100 = vsel %vm971, %v815, %v1036
    %v1101 = vsel %vm972, %v820, %v1037
    %v1102 = vsel %vm973, %v823, %v1038
    %v1103 = vsel %vm974, %v828, %v1039
    %v1104 = vsel %vm975, %v831, %v1040
    %v1105 = vsel %vm976, %v836, %v1041
    %v1106 = vsel %vm977, %v839, %v1042
    %v1107 = vsel %vm978, %v844, %v1043
    %v1108 = vsel %vm979, %v847, %v1044
    %v1109 = vsel %vm980, %v852, %v1045
    %v1110 = vsel %vm981, %v855, %v1046
    %v1111 = vsel %vm982, %v860, %v1047
    %v1112 = vsel %vm983, %v863, %v1048
    %v1113 = vsel %vm984, %v868, %v1049
    %v1114 = vsel %vm985, %v871, %v1050
    %v1115 = vsel %vm986, %v876, %v1051
    %v1116 = vsel %vm987, %v879, %v1052
    %v1117 = vsel %vm988, %v884, %v1053
    %v1118 = vsel %vm989, %v887, %v1054
    %v1119 = vsel %vm990, %v892, %v1055
    %v1120 = vsel %vm991, %v895, %v1056
    %v1121 = vsel %vm992, %v900, %v1057
    %v1122 = vsel %vm993, %v903, %v1058
    %v1123 = vsel %vm994, %v908, %v1059
    %v1124 = vsel %vm995, %v911, %v1060
    %v1125 = vsel %vm996, %v916, %v1061
    %v1126 = vsel %vm997, %v919, %v1062
    %v1127 = vsel %vm998, %v924, %v1063
    %v1128 = vsel %vm999, %v927, %v1064
    %v1129 = vsel %vm1000, %v932, %v1065
    %v1130 = vsel %vm1001, %v935, %v1066
    %v1131 = vpack.c.bf16 %v1068, %v1067
    %v1132 = vpack.c.bf16 %v1070, %v1069
    %v1133 = vpack.c.bf16 %v1072, %v1071
    %v1134 = vpack.c.bf16 %v1074, %v1073
    %v1135 = vpack.c.bf16 %v1076, %v1075
    %v1136 = vpack.c.bf16 %v1078, %v1077
    %v1137 = vpack.c.bf16 %v1080, %v1079
    %v1138 = vpack.c.bf16 %v1082, %v1081
    %v1139 = vpack.c.bf16 %v1084, %v1083
    %v1140 = vpack.c.bf16 %v1086, %v1085
    %v1141 = vpack.c.bf16 %v1088, %v1087
    %v1142 = vpack.c.bf16 %v1090, %v1089
    %v1143 = vpack.c.bf16 %v1092, %v1091
    %v1144 = vpack.c.bf16 %v1094, %v1093
    %v1145 = vpack.c.bf16 %v1096, %v1095
    %v1146 = vpack.c.bf16 %v1098, %v1097
    %v1147 = vpack.c.bf16 %v1100, %v1099
    %v1148 = vpack.c.bf16 %v1102, %v1101
    %v1149 = vpack.c.bf16 %v1104, %v1103
    %v1150 = vpack.c.bf16 %v1106, %v1105
    %v1151 = vpack.c.bf16 %v1108, %v1107
    %v1152 = vpack.c.bf16 %v1110, %v1109
    %v1153 = vpack.c.bf16 %v1112, %v1111
    %v1154 = vpack.c.bf16 %v1114, %v1113
    %v1155 = vpack.c.bf16 %v1116, %v1115
    %v1156 = vpack.c.bf16 %v1118, %v1117
    %v1157 = vpack.c.bf16 %v1120, %v1119
    %v1158 = vpack.c.bf16 %v1122, %v1121
    %v1159 = vpack.c.bf16 %v1124, %v1123
    %v1160 = vpack.c.bf16 %v1126, %v1125
    %v1161 = vpack.c.bf16 %v1128, %v1127
    %v1162 = vpack.c.bf16 %v1130, %v1129
    %v1195 = vunpack.c.l.b16 %v1131
    %v1196 = vunpack.c.h.b16 %v1131
    %v1197 = vunpack.c.l.b16 %v1132
    %v1198 = vunpack.c.h.b16 %v1132
    %v1199 = vunpack.c.l.b16 %v1133
    %v1200 = vunpack.c.h.b16 %v1133
    %v1201 = vunpack.c.l.b16 %v1134
    %v1202 = vunpack.c.h.b16 %v1134
    %v1203 = vunpack.c.l.b16 %v1135
    %v1204 = vunpack.c.h.b16 %v1135
    %v1205 = vunpack.c.l.b16 %v1136
    %v1206 = vunpack.c.h.b16 %v1136
    %v1207 = vunpack.c.l.b16 %v1137
    %v1208 = vunpack.c.h.b16 %v1137
    %v1209 = vunpack.c.l.b16 %v1138
    %v1210 = vunpack.c.h.b16 %v1138
    %v1211 = vunpack.c.l.b16 %v1139
    %v1212 = vunpack.c.h.b16 %v1139
    %v1213 = vunpack.c.l.b16 %v1140
    %v1214 = vunpack.c.h.b16 %v1140
    %v1215 = vunpack.c.l.b16 %v1141
    %v1216 = vunpack.c.h.b16 %v1141
    %v1217 = vunpack.c.l.b16 %v1142
    %v1218 = vunpack.c.h.b16 %v1142
    %v1219 = vunpack.c.l.b16 %v1143
    %v1220 = vunpack.c.h.b16 %v1143
    %v1221 = vunpack.c.l.b16 %v1144
    %v1222 = vunpack.c.h.b16 %v1144
    %v1223 = vunpack.c.l.b16 %v1145
    %v1224 = vunpack.c.h.b16 %v1145
    %v1225 = vunpack.c.l.b16 %v1146
    %v1226 = vunpack.c.h.b16 %v1146
    %v1227 = vunpack.c.l.b16 %v1147
    %v1228 = vunpack.c.h.b16 %v1147
    %v1229 = vunpack.c.l.b16 %v1148
    %v1230 = vunpack.c.h.b16 %v1148
    %v1231 = vunpack.c.l.b16 %v1149
    %v1232 = vunpack.c.h.b16 %v1149
    %v1233 = vunpack.c.l.b16 %v1150
    %v1234 = vunpack.c.h.b16 %v1150
    %v1235 = vunpack.c.l.b16 %v1151
    %v1236 = vunpack.c.h.b16 %v1151
    %v1237 = vunpack.c.l.b16 %v1152
    %v1238 = vunpack.c.h.b16 %v1152
    %v1239 = vunpack.c.l.b16 %v1153
    %v1240 = vunpack.c.h.b16 %v1153
    %v1241 = vunpack.c.l.b16 %v1154
    %v1242 = vunpack.c.h.b16 %v1154
    %v1243 = vunpack.c.l.b16 %v1155
    %v1244 = vunpack.c.h.b16 %v1155
    %v1245 = vunpack.c.l.b16 %v1156
    %v1246 = vunpack.c.h.b16 %v1156
    %v1247 = vunpack.c.l.b16 %v1157
    %v1248 = vunpack.c.h.b16 %v1157
    %v1249 = vunpack.c.l.b16 %v1158
    %v1250 = vunpack.c.h.b16 %v1158
    %v1251 = vunpack.c.l.b16 %v1159
    %v1252 = vunpack.c.h.b16 %v1159
    %v1253 = vunpack.c.l.b16 %v1160
    %v1254 = vunpack.c.h.b16 %v1160
    %v1255 = vunpack.c.l.b16 %v1161
    %v1256 = vunpack.c.h.b16 %v1161
    %v1257 = vunpack.c.l.b16 %v1162
    %v1258 = vunpack.c.h.b16 %v1162
    %v1259 = vpack.c.b16 %v1195, %v1195
    %v1260 = vpack.c.b16 %v1196, %v1196
    %v1261 = vpack.c.b16 %v1197, %v1197
    %v1262 = vpack.c.b16 %v1198, %v1198
    %v1263 = vpack.c.b16 %v1199, %v1199
    %v1264 = vpack.c.b16 %v1200, %v1200
    %v1265 = vpack.c.b16 %v1201, %v1201
    %v1266 = vpack.c.b16 %v1202, %v1202
    %v1267 = vpack.c.b16 %v1203, %v1203
    %v1268 = vpack.c.b16 %v1204, %v1204
    %v1269 = vpack.c.b16 %v1205, %v1205
    %v1270 = vpack.c.b16 %v1206, %v1206
    %v1271 = vpack.c.b16 %v1207, %v1207
    %v1272 = vpack.c.b16 %v1208, %v1208
    %v1273 = vpack.c.b16 %v1209, %v1209
    %v1274 = vpack.c.b16 %v1210, %v1210
    %v1275 = vpack.c.b16 %v1211, %v1211
    %v1276 = vpack.c.b16 %v1212, %v1212
    %v1277 = vpack.c.b16 %v1213, %v1213
    %v1278 = vpack.c.b16 %v1214, %v1214
    %v1279 = vpack.c.b16 %v1215, %v1215
    %v1280 = vpack.c.b16 %v1216, %v1216
    %v1281 = vpack.c.b16 %v1217, %v1217
    %v1282 = vpack.c.b16 %v1218, %v1218
    %v1283 = vpack.c.b16 %v1219, %v1219
    %v1284 = vpack.c.b16 %v1220, %v1220
    %v1285 = vpack.c.b16 %v1221, %v1221
    %v1286 = vpack.c.b16 %v1222, %v1222
    %v1287 = vpack.c.b16 %v1223, %v1223
    %v1288 = vpack.c.b16 %v1224, %v1224
    %v1289 = vpack.c.b16 %v1225, %v1225
    %v1290 = vpack.c.b16 %v1226, %v1226
    %v1291 = vpack.c.b16 %v1227, %v1227
    %v1292 = vpack.c.b16 %v1228, %v1228
    %v1293 = vpack.c.b16 %v1229, %v1229
    %v1294 = vpack.c.b16 %v1230, %v1230
    %v1295 = vpack.c.b16 %v1231, %v1231
    %v1296 = vpack.c.b16 %v1232, %v1232
    %v1297 = vpack.c.b16 %v1233, %v1233
    %v1298 = vpack.c.b16 %v1234, %v1234
    %v1299 = vpack.c.b16 %v1235, %v1235
    %v1300 = vpack.c.b16 %v1236, %v1236
    %v1301 = vpack.c.b16 %v1237, %v1237
    %v1302 = vpack.c.b16 %v1238, %v1238
    %v1303 = vpack.c.b16 %v1239, %v1239
    %v1304 = vpack.c.b16 %v1240, %v1240
    %v1305 = vpack.c.b16 %v1241, %v1241
    %v1306 = vpack.c.b16 %v1242, %v1242
    %v1307 = vpack.c.b16 %v1243, %v1243
    %v1308 = vpack.c.b16 %v1244, %v1244
    %v1309 = vpack.c.b16 %v1245, %v1245
    %v1310 = vpack.c.b16 %v1246, %v1246
    %v1311 = vpack.c.b16 %v1247, %v1247
    %v1312 = vpack.c.b16 %v1248, %v1248
    %v1313 = vpack.c.b16 %v1249, %v1249
    %v1314 = vpack.c.b16 %v1250, %v1250
    %v1315 = vpack.c.b16 %v1251, %v1251
    %v1316 = vpack.c.b16 %v1252, %v1252
    %v1317 = vpack.c.b16 %v1253, %v1253
    %v1318 = vpack.c.b16 %v1254, %v1254
    %v1319 = vpack.c.b16 %v1255, %v1255
    %v1320 = vpack.c.b16 %v1256, %v1256
    %v1321 = vpack.c.b16 %v1257, %v1257
    %v1322 = vpack.c.b16 %v1258, %v1258
    %vm1323 = vsmask.f32 4368
    %vm1324 = vmor %vm78, %vm1323
    %v1326 = vshrl.u32 %v1259, 16
    %v1328 = vrot.slane %v1326, 7
    %v1329 = vshll.u32 %v1259, 16
    %v1331 = vor.u32 %v1328, %v1329
    %v1332 = vrot.slane %v1328, 4
    %v1334 = vshrl.u32 %v1260, 16
    %v1336 = vrot.slane %v1334, 7
    %v1337 = vshll.u32 %v1260, 16
    %v1339 = vor.u32 %v1336, %v1337
    %v1340 = vsel %vm1324, %v1332, %v1339
    %v1341 = vrot.slane %v1336, 4
    %v1343 = vshrl.u32 %v1261, 16
    %v1345 = vrot.slane %v1343, 7
    %v1346 = vshll.u32 %v1261, 16
    %v1348 = vor.u32 %v1345, %v1346
    %v1349 = vrot.slane %v1345, 4
    %v1351 = vshrl.u32 %v1262, 16
    %v1353 = vrot.slane %v1351, 7
    %v1354 = vshll.u32 %v1262, 16
    %v1356 = vor.u32 %v1353, %v1354
    %v1357 = vsel %vm1324, %v1349, %v1356
    %v1358 = vrot.slane %v1353, 4
    %v1360 = vshrl.u32 %v1263, 16
    %v1362 = vrot.slane %v1360, 7
    %v1363 = vshll.u32 %v1263, 16
    %v1365 = vor.u32 %v1362, %v1363
    %v1366 = vrot.slane %v1362, 4
    %v1368 = vshrl.u32 %v1264, 16
    %v1370 = vrot.slane %v1368, 7
    %v1371 = vshll.u32 %v1264, 16
    %v1373 = vor.u32 %v1370, %v1371
    %v1374 = vsel %vm1324, %v1366, %v1373
    %v1375 = vrot.slane %v1370, 4
    %v1377 = vshrl.u32 %v1265, 16
    %v1379 = vrot.slane %v1377, 7
    %v1380 = vshll.u32 %v1265, 16
    %v1382 = vor.u32 %v1379, %v1380
    %v1383 = vrot.slane %v1379, 4
    %v1385 = vshrl.u32 %v1266, 16
    %v1387 = vrot.slane %v1385, 7
    %v1388 = vshll.u32 %v1266, 16
    %v1390 = vor.u32 %v1387, %v1388
    %v1391 = vsel %vm1324, %v1383, %v1390
    %v1392 = vrot.slane %v1387, 4
    %v1394 = vshrl.u32 %v1267, 16
    %v1396 = vrot.slane %v1394, 7
    %v1397 = vshll.u32 %v1267, 16
    %v1399 = vor.u32 %v1396, %v1397
    %v1400 = vrot.slane %v1396, 4
    %v1402 = vshrl.u32 %v1268, 16
    %v1404 = vrot.slane %v1402, 7
    %v1405 = vshll.u32 %v1268, 16
    %v1407 = vor.u32 %v1404, %v1405
    %v1408 = vsel %vm1324, %v1400, %v1407
    %v1409 = vrot.slane %v1404, 4
    %v1411 = vshrl.u32 %v1269, 16
    %v1413 = vrot.slane %v1411, 7
    %v1414 = vshll.u32 %v1269, 16
    %v1416 = vor.u32 %v1413, %v1414
    %v1417 = vrot.slane %v1413, 4
    %v1419 = vshrl.u32 %v1270, 16
    %v1421 = vrot.slane %v1419, 7
    %v1422 = vshll.u32 %v1270, 16
    %v1424 = vor.u32 %v1421, %v1422
    %v1425 = vsel %vm1324, %v1417, %v1424
    %v1426 = vrot.slane %v1421, 4
    %v1428 = vshrl.u32 %v1271, 16
    %v1430 = vrot.slane %v1428, 7
    %v1431 = vshll.u32 %v1271, 16
    %v1433 = vor.u32 %v1430, %v1431
    %v1434 = vrot.slane %v1430, 4
    %v1436 = vshrl.u32 %v1272, 16
    %v1438 = vrot.slane %v1436, 7
    %v1439 = vshll.u32 %v1272, 16
    %v1441 = vor.u32 %v1438, %v1439
    %v1442 = vsel %vm1324, %v1434, %v1441
    %v1443 = vrot.slane %v1438, 4
    %v1445 = vshrl.u32 %v1273, 16
    %v1447 = vrot.slane %v1445, 7
    %v1448 = vshll.u32 %v1273, 16
    %v1450 = vor.u32 %v1447, %v1448
    %v1451 = vrot.slane %v1447, 4
    %v1453 = vshrl.u32 %v1274, 16
    %v1455 = vrot.slane %v1453, 7
    %v1456 = vshll.u32 %v1274, 16
    %v1458 = vor.u32 %v1455, %v1456
    %v1459 = vsel %vm1324, %v1451, %v1458
    %v1460 = vrot.slane %v1455, 4
    %v1462 = vshrl.u32 %v1275, 16
    %v1464 = vrot.slane %v1462, 7
    %v1465 = vshll.u32 %v1275, 16
    %v1467 = vor.u32 %v1464, %v1465
    %v1468 = vrot.slane %v1464, 4
    %v1470 = vshrl.u32 %v1276, 16
    %v1472 = vrot.slane %v1470, 7
    %v1473 = vshll.u32 %v1276, 16
    %v1475 = vor.u32 %v1472, %v1473
    %v1476 = vsel %vm1324, %v1468, %v1475
    %v1477 = vrot.slane %v1472, 4
    %v1479 = vshrl.u32 %v1277, 16
    %v1481 = vrot.slane %v1479, 7
    %v1482 = vshll.u32 %v1277, 16
    %v1484 = vor.u32 %v1481, %v1482
    %v1485 = vrot.slane %v1481, 4
    %v1487 = vshrl.u32 %v1278, 16
    %v1489 = vrot.slane %v1487, 7
    %v1490 = vshll.u32 %v1278, 16
    %v1492 = vor.u32 %v1489, %v1490
    %v1493 = vsel %vm1324, %v1485, %v1492
    %v1494 = vrot.slane %v1489, 4
    %v1496 = vshrl.u32 %v1279, 16
    %v1498 = vrot.slane %v1496, 7
    %v1499 = vshll.u32 %v1279, 16
    %v1501 = vor.u32 %v1498, %v1499
    %v1502 = vrot.slane %v1498, 4
    %v1504 = vshrl.u32 %v1280, 16
    %v1506 = vrot.slane %v1504, 7
    %v1507 = vshll.u32 %v1280, 16
    %v1509 = vor.u32 %v1506, %v1507
    %v1510 = vsel %vm1324, %v1502, %v1509
    %v1511 = vrot.slane %v1506, 4
    %v1513 = vshrl.u32 %v1281, 16
    %v1515 = vrot.slane %v1513, 7
    %v1516 = vshll.u32 %v1281, 16
    %v1518 = vor.u32 %v1515, %v1516
    %v1519 = vrot.slane %v1515, 4
    %v1521 = vshrl.u32 %v1282, 16
    %v1523 = vrot.slane %v1521, 7
    %v1524 = vshll.u32 %v1282, 16
    %v1526 = vor.u32 %v1523, %v1524
    %v1527 = vsel %vm1324, %v1519, %v1526
    %v1528 = vrot.slane %v1523, 4
    %v1530 = vshrl.u32 %v1283, 16
    %v1532 = vrot.slane %v1530, 7
    %v1533 = vshll.u32 %v1283, 16
    %v1535 = vor.u32 %v1532, %v1533
    %v1536 = vrot.slane %v1532, 4
    %v1538 = vshrl.u32 %v1284, 16
    %v1540 = vrot.slane %v1538, 7
    %v1541 = vshll.u32 %v1284, 16
    %v1543 = vor.u32 %v1540, %v1541
    %v1544 = vsel %vm1324, %v1536, %v1543
    %v1545 = vrot.slane %v1540, 4
    %v1547 = vshrl.u32 %v1285, 16
    %v1549 = vrot.slane %v1547, 7
    %v1550 = vshll.u32 %v1285, 16
    %v1552 = vor.u32 %v1549, %v1550
    %v1553 = vrot.slane %v1549, 4
    %v1555 = vshrl.u32 %v1286, 16
    %v1557 = vrot.slane %v1555, 7
    %v1558 = vshll.u32 %v1286, 16
    %v1560 = vor.u32 %v1557, %v1558
    %v1561 = vsel %vm1324, %v1553, %v1560
    %v1562 = vrot.slane %v1557, 4
    %v1564 = vshrl.u32 %v1287, 16
    %v1566 = vrot.slane %v1564, 7
    %v1567 = vshll.u32 %v1287, 16
    %v1569 = vor.u32 %v1566, %v1567
    %v1570 = vrot.slane %v1566, 4
    %v1572 = vshrl.u32 %v1288, 16
    %v1574 = vrot.slane %v1572, 7
    %v1575 = vshll.u32 %v1288, 16
    %v1577 = vor.u32 %v1574, %v1575
    %v1578 = vsel %vm1324, %v1570, %v1577
    %v1579 = vrot.slane %v1574, 4
    %v1581 = vshrl.u32 %v1289, 16
    %v1583 = vrot.slane %v1581, 7
    %v1584 = vshll.u32 %v1289, 16
    %v1586 = vor.u32 %v1583, %v1584
    %v1587 = vrot.slane %v1583, 4
    %v1589 = vshrl.u32 %v1290, 16
    %v1591 = vrot.slane %v1589, 7
    %v1592 = vshll.u32 %v1290, 16
    %v1594 = vor.u32 %v1591, %v1592
    %v1595 = vsel %vm1324, %v1587, %v1594
    %v1596 = vrot.slane %v1591, 4
    %v1598 = vshrl.u32 %v1291, 16
    %v1600 = vrot.slane %v1598, 7
    %v1601 = vshll.u32 %v1291, 16
    %v1603 = vor.u32 %v1600, %v1601
    %v1604 = vrot.slane %v1600, 4
    %v1606 = vshrl.u32 %v1292, 16
    %v1608 = vrot.slane %v1606, 7
    %v1609 = vshll.u32 %v1292, 16
    %v1611 = vor.u32 %v1608, %v1609
    %v1612 = vsel %vm1324, %v1604, %v1611
    %v1613 = vrot.slane %v1608, 4
    %v1615 = vshrl.u32 %v1293, 16
    %v1617 = vrot.slane %v1615, 7
    %v1618 = vshll.u32 %v1293, 16
    %v1620 = vor.u32 %v1617, %v1618
    %v1621 = vrot.slane %v1617, 4
    %v1623 = vshrl.u32 %v1294, 16
    %v1625 = vrot.slane %v1623, 7
    %v1626 = vshll.u32 %v1294, 16
    %v1628 = vor.u32 %v1625, %v1626
    %v1629 = vsel %vm1324, %v1621, %v1628
    %v1630 = vrot.slane %v1625, 4
    %v1632 = vshrl.u32 %v1295, 16
    %v1634 = vrot.slane %v1632, 7
    %v1635 = vshll.u32 %v1295, 16
    %v1637 = vor.u32 %v1634, %v1635
    %v1638 = vrot.slane %v1634, 4
    %v1640 = vshrl.u32 %v1296, 16
    %v1642 = vrot.slane %v1640, 7
    %v1643 = vshll.u32 %v1296, 16
    %v1645 = vor.u32 %v1642, %v1643
    %v1646 = vsel %vm1324, %v1638, %v1645
    %v1647 = vrot.slane %v1642, 4
    %v1649 = vshrl.u32 %v1297, 16
    %v1651 = vrot.slane %v1649, 7
    %v1652 = vshll.u32 %v1297, 16
    %v1654 = vor.u32 %v1651, %v1652
    %v1655 = vrot.slane %v1651, 4
    %v1657 = vshrl.u32 %v1298, 16
    %v1659 = vrot.slane %v1657, 7
    %v1660 = vshll.u32 %v1298, 16
    %v1662 = vor.u32 %v1659, %v1660
    %v1663 = vsel %vm1324, %v1655, %v1662
    %v1664 = vrot.slane %v1659, 4
    %v1666 = vshrl.u32 %v1299, 16
    %v1668 = vrot.slane %v1666, 7
    %v1669 = vshll.u32 %v1299, 16
    %v1671 = vor.u32 %v1668, %v1669
    %v1672 = vrot.slane %v1668, 4
    %v1674 = vshrl.u32 %v1300, 16
    %v1676 = vrot.slane %v1674, 7
    %v1677 = vshll.u32 %v1300, 16
    %v1679 = vor.u32 %v1676, %v1677
    %v1680 = vsel %vm1324, %v1672, %v1679
    %v1681 = vrot.slane %v1676, 4
    %v1683 = vshrl.u32 %v1301, 16
    %v1685 = vrot.slane %v1683, 7
    %v1686 = vshll.u32 %v1301, 16
    %v1688 = vor.u32 %v1685, %v1686
    %v1689 = vrot.slane %v1685, 4
    %v1691 = vshrl.u32 %v1302, 16
    %v1693 = vrot.slane %v1691, 7
    %v1694 = vshll.u32 %v1302, 16
    %v1696 = vor.u32 %v1693, %v1694
    %v1697 = vsel %vm1324, %v1689, %v1696
    %v1698 = vrot.slane %v1693, 4
    %v1700 = vshrl.u32 %v1303, 16
    %v1702 = vrot.slane %v1700, 7
    %v1703 = vshll.u32 %v1303, 16
    %v1705 = vor.u32 %v1702, %v1703
    %v1706 = vrot.slane %v1702, 4
    %v1708 = vshrl.u32 %v1304, 16
    %v1710 = vrot.slane %v1708, 7
    %v1711 = vshll.u32 %v1304, 16
    %v1713 = vor.u32 %v1710, %v1711
    %v1714 = vsel %vm1324, %v1706, %v1713
    %v1715 = vrot.slane %v1710, 4
    %v1717 = vshrl.u32 %v1305, 16
    %v1719 = vrot.slane %v1717, 7
    %v1720 = vshll.u32 %v1305, 16
    %v1722 = vor.u32 %v1719, %v1720
    %v1723 = vrot.slane %v1719, 4
    %v1725 = vshrl.u32 %v1306, 16
    %v1727 = vrot.slane %v1725, 7
    %v1728 = vshll.u32 %v1306, 16
    %v1730 = vor.u32 %v1727, %v1728
    %v1731 = vsel %vm1324, %v1723, %v1730
    %v1732 = vrot.slane %v1727, 4
    %v1734 = vshrl.u32 %v1307, 16
    %v1736 = vrot.slane %v1734, 7
    %v1737 = vshll.u32 %v1307, 16
    %v1739 = vor.u32 %v1736, %v1737
    %v1740 = vrot.slane %v1736, 4
    %v1742 = vshrl.u32 %v1308, 16
    %v1744 = vrot.slane %v1742, 7
    %v1745 = vshll.u32 %v1308, 16
    %v1747 = vor.u32 %v1744, %v1745
    %v1748 = vsel %vm1324, %v1740, %v1747
    %v1749 = vrot.slane %v1744, 4
    %v1751 = vshrl.u32 %v1309, 16
    %v1753 = vrot.slane %v1751, 7
    %v1754 = vshll.u32 %v1309, 16
    %v1756 = vor.u32 %v1753, %v1754
    %v1757 = vrot.slane %v1753, 4
    %v1759 = vshrl.u32 %v1310, 16
    %v1761 = vrot.slane %v1759, 7
    %v1762 = vshll.u32 %v1310, 16
    %v1764 = vor.u32 %v1761, %v1762
    %v1765 = vsel %vm1324, %v1757, %v1764
    %v1766 = vrot.slane %v1761, 4
    %v1768 = vshrl.u32 %v1311, 16
    %v1770 = vrot.slane %v1768, 7
    %v1771 = vshll.u32 %v1311, 16
    %v1773 = vor.u32 %v1770, %v1771
    %v1774 = vrot.slane %v1770, 4
    %v1776 = vshrl.u32 %v1312, 16
    %v1778 = vrot.slane %v1776, 7
    %v1779 = vshll.u32 %v1312, 16
    %v1781 = vor.u32 %v1778, %v1779
    %v1782 = vsel %vm1324, %v1774, %v1781
    %v1783 = vrot.slane %v1778, 4
    %v1785 = vshrl.u32 %v1313, 16
    %v1787 = vrot.slane %v1785, 7
    %v1788 = vshll.u32 %v1313, 16
    %v1790 = vor.u32 %v1787, %v1788
    %v1791 = vrot.slane %v1787, 4
    %v1793 = vshrl.u32 %v1314, 16
    %v1795 = vrot.slane %v1793, 7
    %v1796 = vshll.u32 %v1314, 16
    %v1798 = vor.u32 %v1795, %v1796
    %v1799 = vsel %vm1324, %v1791, %v1798
    %v1800 = vrot.slane %v1795, 4
    %v1802 = vshrl.u32 %v1315, 16
    %v1804 = vrot.slane %v1802, 7
    %v1805 = vshll.u32 %v1315, 16
    %v1807 = vor.u32 %v1804, %v1805
    %v1808 = vrot.slane %v1804, 4
    %v1810 = vshrl.u32 %v1316, 16
    %v1812 = vrot.slane %v1810, 7
    %v1813 = vshll.u32 %v1316, 16
    %v1815 = vor.u32 %v1812, %v1813
    %v1816 = vsel %vm1324, %v1808, %v1815
    %v1817 = vrot.slane %v1812, 4
    %v1819 = vshrl.u32 %v1317, 16
    %v1821 = vrot.slane %v1819, 7
    %v1822 = vshll.u32 %v1317, 16
    %v1824 = vor.u32 %v1821, %v1822
    %v1825 = vrot.slane %v1821, 4
    %v1827 = vshrl.u32 %v1318, 16
    %v1829 = vrot.slane %v1827, 7
    %v1830 = vshll.u32 %v1318, 16
    %v1832 = vor.u32 %v1829, %v1830
    %v1833 = vsel %vm1324, %v1825, %v1832
    %v1834 = vrot.slane %v1829, 4
    %v1836 = vshrl.u32 %v1319, 16
    %v1838 = vrot.slane %v1836, 7
    %v1839 = vshll.u32 %v1319, 16
    %v1841 = vor.u32 %v1838, %v1839
    %v1842 = vrot.slane %v1838, 4
    %v1844 = vshrl.u32 %v1320, 16
    %v1846 = vrot.slane %v1844, 7
    %v1847 = vshll.u32 %v1320, 16
    %v1849 = vor.u32 %v1846, %v1847
    %v1850 = vsel %vm1324, %v1842, %v1849
    %v1851 = vrot.slane %v1846, 4
    %v1853 = vshrl.u32 %v1321, 16
    %v1855 = vrot.slane %v1853, 7
    %v1856 = vshll.u32 %v1321, 16
    %v1858 = vor.u32 %v1855, %v1856
    %v1859 = vrot.slane %v1855, 4
    %v1861 = vshrl.u32 %v1322, 16
    %v1863 = vrot.slane %v1861, 7
    %v1864 = vshll.u32 %v1322, 16
    %v1866 = vor.u32 %v1863, %v1864
    %v1867 = vsel %vm1324, %v1859, %v1866
    %v1868 = vrot.slane %v1863, 4
    %s1965 = scalar_lea.vmem [#allocation2], 12
    %vm1966 = vcmask 519168
    %vm1967 = vmand %vm1966, %vm188
    %v1968 = vld [vmem:[%s1965] sm:$0xf]
    %v1969 = vsel %vm1967, %v1331, %v1968
    %1970 = vst [vmem:[%s1965] sm:$0xf] %v1969
    %1971 = vst.msk [vmem:[%s1965 + $0x4] sm:$0xf] %vm62, %v1340
    %v1972 = vld [vmem:[%s1965 + $0x8] sm:$0x1]
    %v1973 = vsel %vm79, %v1341, %v1972
    %1974 = vst [vmem:[%s1965 + $0x8] sm:$0x1] %v1973
    %v1975 = vld [vmem:[%s1965 + $0xc] sm:$0xf]
    %v1976 = vsel %vm1967, %v1348, %v1975
    %1977 = vst [vmem:[%s1965 + $0xc] sm:$0xf] %v1976
    %1978 = vst.msk [vmem:[%s1965 + $0x10] sm:$0xf] %vm62, %v1357
    %v1979 = vld [vmem:[%s1965 + $0x14] sm:$0x1]
    %v1980 = vsel %vm79, %v1358, %v1979
    %1981 = vst [vmem:[%s1965 + $0x14] sm:$0x1] %v1980
    %v1982 = vld [vmem:[%s1965 + $0x18] sm:$0xf]
    %v1983 = vsel %vm1967, %v1365, %v1982
    %1984 = vst [vmem:[%s1965 + $0x18] sm:$0xf] %v1983
    %1985 = vst.msk [vmem:[%s1965 + $0x1c] sm:$0xf] %vm62, %v1374
    %v1986 = vld [vmem:[%s1965 + $0x20] sm:$0x1]
    %v1987 = vsel %vm79, %v1375, %v1986
    %1988 = vst [vmem:[%s1965 + $0x20] sm:$0x1] %v1987
    %v1989 = vld [vmem:[%s1965 + $0x24] sm:$0xf]
    %v1990 = vsel %vm1967, %v1382, %v1989
    %1991 = vst [vmem:[%s1965 + $0x24] sm:$0xf] %v1990
    %1992 = vst.msk [vmem:[%s1965 + $0x28] sm:$0xf] %vm62, %v1391
    %v1993 = vld [vmem:[%s1965 + $0x2c] sm:$0x1]
    %v1994 = vsel %vm79, %v1392, %v1993
    %1995 = vst [vmem:[%s1965 + $0x2c] sm:$0x1] %v1994
    %v1996 = vld [vmem:[%s1965 + $0x30] sm:$0xf]
    %v1997 = vsel %vm1967, %v1399, %v1996
    %1998 = vst [vmem:[%s1965 + $0x30] sm:$0xf] %v1997
    %1999 = vst.msk [vmem:[%s1965 + $0x34] sm:$0xf] %vm62, %v1408
    %v2000 = vld [vmem:[%s1965 + $0x38] sm:$0x1]
    %v2001 = vsel %vm79, %v1409, %v2000
    %2002 = vst [vmem:[%s1965 + $0x38] sm:$0x1] %v2001
    %v2003 = vld [vmem:[%s1965 + $0x3c] sm:$0xf]
    %v2004 = vsel %vm1967, %v1416, %v2003
    %2005 = vst [vmem:[%s1965 + $0x3c] sm:$0xf] %v2004
    %2006 = vst.msk [vmem:[%s1965 + $0x40] sm:$0xf] %vm62, %v1425
    %v2007 = vld [vmem:[%s1965 + $0x44] sm:$0x1]
    %v2008 = vsel %vm79, %v1426, %v2007
    %2009 = vst [vmem:[%s1965 + $0x44] sm:$0x1] %v2008
    %v2010 = vld [vmem:[%s1965 + $0x48] sm:$0xf]
    %v2011 = vsel %vm1967, %v1433, %v2010
    %2012 = vst [vmem:[%s1965 + $0x48] sm:$0xf] %v2011
    %2013 = vst.msk [vmem:[%s1965 + $0x4c] sm:$0xf] %vm62, %v1442
    %v2014 = vld [vmem:[%s1965 + $0x50] sm:$0x1]
    %v2015 = vsel %vm79, %v1443, %v2014
    %2016 = vst [vmem:[%s1965 + $0x50] sm:$0x1] %v2015
    %v2017 = vld [vmem:[%s1965 + $0x54] sm:$0xf]
    %v2018 = vsel %vm1967, %v1450, %v2017
    %2019 = vst [vmem:[%s1965 + $0x54] sm:$0xf] %v2018
    %2020 = vst.msk [vmem:[%s1965 + $0x58] sm:$0xf] %vm62, %v1459
    %v2021 = vld [vmem:[%s1965 + $0x5c] sm:$0x1]
    %v2022 = vsel %vm79, %v1460, %v2021
    %2023 = vst [vmem:[%s1965 + $0x5c] sm:$0x1] %v2022
    %v2024 = vld [vmem:[%s1965 + $0x60] sm:$0xf]
    %v2025 = vsel %vm1967, %v1467, %v2024
    %2026 = vst [vmem:[%s1965 + $0x60] sm:$0xf] %v2025
    %2027 = vst.msk [vmem:[%s1965 + $0x64] sm:$0xf] %vm62, %v1476
    %v2028 = vld [vmem:[%s1965 + $0x68] sm:$0x1]
    %v2029 = vsel %vm79, %v1477, %v2028
    %2030 = vst [vmem:[%s1965 + $0x68] sm:$0x1] %v2029
    %v2031 = vld [vmem:[%s1965 + $0x6c] sm:$0xf]
    %v2032 = vsel %vm1967, %v1484, %v2031
    %2033 = vst [vmem:[%s1965 + $0x6c] sm:$0xf] %v2032
    %2034 = vst.msk [vmem:[%s1965 + $0x70] sm:$0xf] %vm62, %v1493
    %v2035 = vld [vmem:[%s1965 + $0x74] sm:$0x1]
    %v2036 = vsel %vm79, %v1494, %v2035
    %2037 = vst [vmem:[%s1965 + $0x74] sm:$0x1] %v2036
    %v2038 = vld [vmem:[%s1965 + $0x78] sm:$0xf]
    %v2039 = vsel %vm1967, %v1501, %v2038
    %2040 = vst [vmem:[%s1965 + $0x78] sm:$0xf] %v2039
    %2041 = vst.msk [vmem:[%s1965 + $0x7c] sm:$0xf] %vm62, %v1510
    %v2042 = vld [vmem:[%s1965 + $0x80] sm:$0x1]
    %v2043 = vsel %vm79, %v1511, %v2042
    %2044 = vst [vmem:[%s1965 + $0x80] sm:$0x1] %v2043
    %v2045 = vld [vmem:[%s1965 + $0x84] sm:$0xf]
    %v2046 = vsel %vm1967, %v1518, %v2045
    %2047 = vst [vmem:[%s1965 + $0x84] sm:$0xf] %v2046
    %2048 = vst.msk [vmem:[%s1965 + $0x88] sm:$0xf] %vm62, %v1527
    %v2049 = vld [vmem:[%s1965 + $0x8c] sm:$0x1]
    %v2050 = vsel %vm79, %v1528, %v2049
    %2051 = vst [vmem:[%s1965 + $0x8c] sm:$0x1] %v2050
    %v2052 = vld [vmem:[%s1965 + $0x90] sm:$0xf]
    %v2053 = vsel %vm1967, %v1535, %v2052
    %2054 = vst [vmem:[%s1965 + $0x90] sm:$0xf] %v2053
    %2055 = vst.msk [vmem:[%s1965 + $0x94] sm:$0xf] %vm62, %v1544
    %v2056 = vld [vmem:[%s1965 + $0x98] sm:$0x1]
    %v2057 = vsel %vm79, %v1545, %v2056
    %2058 = vst [vmem:[%s1965 + $0x98] sm:$0x1] %v2057
    %v2059 = vld [vmem:[%s1965 + $0x9c] sm:$0xf]
    %v2060 = vsel %vm1967, %v1552, %v2059
    %2061 = vst [vmem:[%s1965 + $0x9c] sm:$0xf] %v2060
    %2062 = vst.msk [vmem:[%s1965 + $0xa0] sm:$0xf] %vm62, %v1561
    %v2063 = vld [vmem:[%s1965 + $0xa4] sm:$0x1]
    %v2064 = vsel %vm79, %v1562, %v2063
    %2065 = vst [vmem:[%s1965 + $0xa4] sm:$0x1] %v2064
    %v2066 = vld [vmem:[%s1965 + $0xa8] sm:$0xf]
    %v2067 = vsel %vm1967, %v1569, %v2066
    %2068 = vst [vmem:[%s1965 + $0xa8] sm:$0xf] %v2067
    %2069 = vst.msk [vmem:[%s1965 + $0xac] sm:$0xf] %vm62, %v1578
    %v2070 = vld [vmem:[%s1965 + $0xb0] sm:$0x1]
    %v2071 = vsel %vm79, %v1579, %v2070
    %2072 = vst [vmem:[%s1965 + $0xb0] sm:$0x1] %v2071
    %v2073 = vld [vmem:[%s1965 + $0xb4] sm:$0xf]
    %v2074 = vsel %vm1967, %v1586, %v2073
    %2075 = vst [vmem:[%s1965 + $0xb4] sm:$0xf] %v2074
    %2076 = vst.msk [vmem:[%s1965 + $0xb8] sm:$0xf] %vm62, %v1595
    %v2077 = vld [vmem:[%s1965 + $0xbc] sm:$0x1]
    %v2078 = vsel %vm79, %v1596, %v2077
    %2079 = vst [vmem:[%s1965 + $0xbc] sm:$0x1] %v2078
    %v2080 = vld [vmem:[%s1965 + $0xd8] sm:$0xf]
    %v2081 = vsel %vm1967, %v1603, %v2080
    %2082 = vst [vmem:[%s1965 + $0xd8] sm:$0xf] %v2081
    %2083 = vst.msk [vmem:[%s1965 + $0xdc] sm:$0xf] %vm62, %v1612
    %v2084 = vld [vmem:[%s1965 + $0xe0] sm:$0x1]
    %v2085 = vsel %vm79, %v1613, %v2084
    %2086 = vst [vmem:[%s1965 + $0xe0] sm:$0x1] %v2085
    %v2087 = vld [vmem:[%s1965 + $0xe4] sm:$0xf]
    %v2088 = vsel %vm1967, %v1620, %v2087
    %2089 = vst [vmem:[%s1965 + $0xe4] sm:$0xf] %v2088
    %2090 = vst.msk [vmem:[%s1965 + $0xe8] sm:$0xf] %vm62, %v1629
    %v2091 = vld [vmem:[%s1965 + $0xec] sm:$0x1]
    %v2092 = vsel %vm79, %v1630, %v2091
    %2093 = vst [vmem:[%s1965 + $0xec] sm:$0x1] %v2092
    %v2094 = vld [vmem:[%s1965 + $0xf0] sm:$0xf]
    %v2095 = vsel %vm1967, %v1637, %v2094
    %2096 = vst [vmem:[%s1965 + $0xf0] sm:$0xf] %v2095
    %2097 = vst.msk [vmem:[%s1965 + $0xf4] sm:$0xf] %vm62, %v1646
    %v2098 = vld [vmem:[%s1965 + $0xf8] sm:$0x1]
    %v2099 = vsel %vm79, %v1647, %v2098
    %2100 = vst [vmem:[%s1965 + $0xf8] sm:$0x1] %v2099
    %v2101 = vld [vmem:[%s1965 + $0xfc] sm:$0xf]
    %v2102 = vsel %vm1967, %v1654, %v2101
    %2103 = vst [vmem:[%s1965 + $0xfc] sm:$0xf] %v2102
    %2104 = vst.msk [vmem:[%s1965 + $0x100] sm:$0xf] %vm62, %v1663
    %v2105 = vld [vmem:[%s1965 + $0x104] sm:$0x1]
    %v2106 = vsel %vm79, %v1664, %v2105
    %2107 = vst [vmem:[%s1965 + $0x104] sm:$0x1] %v2106
    %v2108 = vld [vmem:[%s1965 + $0x108] sm:$0xf]
    %v2109 = vsel %vm1967, %v1671, %v2108
    %2110 = vst [vmem:[%s1965 + $0x108] sm:$0xf] %v2109
    %2111 = vst.msk [vmem:[%s1965 + $0x10c] sm:$0xf] %vm62, %v1680
    %v2112 = vld [vmem:[%s1965 + $0x110] sm:$0x1]
    %v2113 = vsel %vm79, %v1681, %v2112
    %2114 = vst [vmem:[%s1965 + $0x110] sm:$0x1] %v2113
    %v2115 = vld [vmem:[%s1965 + $0x114] sm:$0xf]
    %v2116 = vsel %vm1967, %v1688, %v2115
    %2117 = vst [vmem:[%s1965 + $0x114] sm:$0xf] %v2116
    %2118 = vst.msk [vmem:[%s1965 + $0x118] sm:$0xf] %vm62, %v1697
    %v2119 = vld [vmem:[%s1965 + $0x11c] sm:$0x1]
    %v2120 = vsel %vm79, %v1698, %v2119
    %2121 = vst [vmem:[%s1965 + $0x11c] sm:$0x1] %v2120
    %v2122 = vld [vmem:[%s1965 + $0x120] sm:$0xf]
    %v2123 = vsel %vm1967, %v1705, %v2122
    %2124 = vst [vmem:[%s1965 + $0x120] sm:$0xf] %v2123
    %2125 = vst.msk [vmem:[%s1965 + $0x124] sm:$0xf] %vm62, %v1714
    %v2126 = vld [vmem:[%s1965 + $0x128] sm:$0x1]
    %v2127 = vsel %vm79, %v1715, %v2126
    %2128 = vst [vmem:[%s1965 + $0x128] sm:$0x1] %v2127
    %v2129 = vld [vmem:[%s1965 + $0x12c] sm:$0xf]
    %v2130 = vsel %vm1967, %v1722, %v2129
    %2131 = vst [vmem:[%s1965 + $0x12c] sm:$0xf] %v2130
    %2132 = vst.msk [vmem:[%s1965 + $0x130] sm:$0xf] %vm62, %v1731
    %v2133 = vld [vmem:[%s1965 + $0x134] sm:$0x1]
    %v2134 = vsel %vm79, %v1732, %v2133
    %2135 = vst [vmem:[%s1965 + $0x134] sm:$0x1] %v2134
    %v2136 = vld [vmem:[%s1965 + $0x138] sm:$0xf]
    %v2137 = vsel %vm1967, %v1739, %v2136
    %2138 = vst [vmem:[%s1965 + $0x138] sm:$0xf] %v2137
    %2139 = vst.msk [vmem:[%s1965 + $0x13c] sm:$0xf] %vm62, %v1748
    %v2140 = vld [vmem:[%s1965 + $0x140] sm:$0x1]
    %v2141 = vsel %vm79, %v1749, %v2140
    %2142 = vst [vmem:[%s1965 + $0x140] sm:$0x1] %v2141
    %v2143 = vld [vmem:[%s1965 + $0x144] sm:$0xf]
    %v2144 = vsel %vm1967, %v1756, %v2143
    %2145 = vst [vmem:[%s1965 + $0x144] sm:$0xf] %v2144
    %2146 = vst.msk [vmem:[%s1965 + $0x148] sm:$0xf] %vm62, %v1765
    %v2147 = vld [vmem:[%s1965 + $0x14c] sm:$0x1]
    %v2148 = vsel %vm79, %v1766, %v2147
    %2149 = vst [vmem:[%s1965 + $0x14c] sm:$0x1] %v2148
    %v2150 = vld [vmem:[%s1965 + $0x150] sm:$0xf]
    %v2151 = vsel %vm1967, %v1773, %v2150
    %2152 = vst [vmem:[%s1965 + $0x150] sm:$0xf] %v2151
    %2153 = vst.msk [vmem:[%s1965 + $0x154] sm:$0xf] %vm62, %v1782
    %v2154 = vld [vmem:[%s1965 + $0x158] sm:$0x1]
    %v2155 = vsel %vm79, %v1783, %v2154
    %2156 = vst [vmem:[%s1965 + $0x158] sm:$0x1] %v2155
    %v2157 = vld [vmem:[%s1965 + $0x15c] sm:$0xf]
    %v2158 = vsel %vm1967, %v1790, %v2157
    %2159 = vst [vmem:[%s1965 + $0x15c] sm:$0xf] %v2158
    %2160 = vst.msk [vmem:[%s1965 + $0x160] sm:$0xf] %vm62, %v1799
    %v2161 = vld [vmem:[%s1965 + $0x164] sm:$0x1]
    %v2162 = vsel %vm79, %v1800, %v2161
    %2163 = vst [vmem:[%s1965 + $0x164] sm:$0x1] %v2162
    %v2164 = vld [vmem:[%s1965 + $0x168] sm:$0xf]
    %v2165 = vsel %vm1967, %v1807, %v2164
    %2166 = vst [vmem:[%s1965 + $0x168] sm:$0xf] %v2165
    %2167 = vst.msk [vmem:[%s1965 + $0x16c] sm:$0xf] %vm62, %v1816
    %v2168 = vld [vmem:[%s1965 + $0x170] sm:$0x1]
    %v2169 = vsel %vm79, %v1817, %v2168
    %2170 = vst [vmem:[%s1965 + $0x170] sm:$0x1] %v2169
    %v2171 = vld [vmem:[%s1965 + $0x174] sm:$0xf]
    %v2172 = vsel %vm1967, %v1824, %v2171
    %2173 = vst [vmem:[%s1965 + $0x174] sm:$0xf] %v2172
    %2174 = vst.msk [vmem:[%s1965 + $0x178] sm:$0xf] %vm62, %v1833
    %v2175 = vld [vmem:[%s1965 + $0x17c] sm:$0x1]
    %v2176 = vsel %vm79, %v1834, %v2175
    %2177 = vst [vmem:[%s1965 + $0x17c] sm:$0x1] %v2176
    %v2178 = vld [vmem:[%s1965 + $0x180] sm:$0xf]
    %v2179 = vsel %vm1967, %v1841, %v2178
    %2180 = vst [vmem:[%s1965 + $0x180] sm:$0xf] %v2179
    %2181 = vst.msk [vmem:[%s1965 + $0x184] sm:$0xf] %vm62, %v1850
    %v2182 = vld [vmem:[%s1965 + $0x188] sm:$0x1]
    %v2183 = vsel %vm79, %v1851, %v2182
    %2184 = vst [vmem:[%s1965 + $0x188] sm:$0x1] %v2183
    %v2185 = vld [vmem:[%s1965 + $0x18c] sm:$0xf]
    %v2186 = vsel %vm1967, %v1858, %v2185
    %2187 = vst [vmem:[%s1965 + $0x18c] sm:$0xf] %v2186
    %2188 = vst.msk [vmem:[%s1965 + $0x190] sm:$0xf] %vm62, %v1867
    %v2189 = vld [vmem:[%s1965 + $0x194] sm:$0x1]
    %v2190 = vsel %vm79, %v1868, %v2189
    %2191 = vst [vmem:[%s1965 + $0x194] sm:$0x1] %v2190
    %v2192 = vld [vmem:[#allocation2] sm:$0xf]
    %v2193 = vld [vmem:[#allocation2 + $0x4] sm:$0xf]
    %v2194 = vld [vmem:[#allocation2 + $0x8] sm:$0x1]
    %v2195 = vld [vmem:[#allocation2 + $0xc] sm:$0xf]
    %v2196 = vld [vmem:[#allocation2 + $0x10] sm:$0xf]
    %v2197 = vld [vmem:[#allocation2 + $0x14] sm:$0x1]
    %v2198 = vld [vmem:[#allocation2 + $0x18] sm:$0xf]
    %v2199 = vld [vmem:[#allocation2 + $0x1c] sm:$0xf]
    %v2200 = vld [vmem:[#allocation2 + $0x20] sm:$0x1]
    %v2201 = vld [vmem:[#allocation2 + $0x24] sm:$0xf]
    %v2202 = vld [vmem:[#allocation2 + $0x28] sm:$0xf]
    %v2203 = vld [vmem:[#allocation2 + $0x2c] sm:$0x1]
    %v2204 = vld [vmem:[#allocation2 + $0x30] sm:$0xf]
    %v2205 = vld [vmem:[#allocation2 + $0x34] sm:$0xf]
    %v2206 = vld [vmem:[#allocation2 + $0x38] sm:$0x1]
    %v2207 = vld [vmem:[#allocation2 + $0x3c] sm:$0xf]
    %v2208 = vld [vmem:[#allocation2 + $0x40] sm:$0xf]
    %v2209 = vld [vmem:[#allocation2 + $0x44] sm:$0x1]
    %v2210 = vld [vmem:[#allocation2 + $0x48] sm:$0xf]
    %v2211 = vld [vmem:[#allocation2 + $0x4c] sm:$0xf]
    %v2212 = vld [vmem:[#allocation2 + $0x50] sm:$0x1]
    %v2213 = vld [vmem:[#allocation2 + $0x54] sm:$0xf]
    %v2214 = vld [vmem:[#allocation2 + $0x58] sm:$0xf]
    %v2215 = vld [vmem:[#allocation2 + $0x5c] sm:$0x1]
    %v2216 = vld [vmem:[#allocation2 + $0x60] sm:$0xf]
    %v2217 = vld [vmem:[#allocation2 + $0x64] sm:$0xf]
    %v2218 = vld [vmem:[#allocation2 + $0x68] sm:$0x1]
    %v2219 = vld [vmem:[#allocation2 + $0x6c] sm:$0xf]
    %v2220 = vld [vmem:[#allocation2 + $0x70] sm:$0xf]
    %v2221 = vld [vmem:[#allocation2 + $0x74] sm:$0x1]
    %v2222 = vld [vmem:[#allocation2 + $0x78] sm:$0xf]
    %v2223 = vld [vmem:[#allocation2 + $0x7c] sm:$0xf]
    %v2224 = vld [vmem:[#allocation2 + $0x80] sm:$0x1]
    %v2225 = vld [vmem:[#allocation2 + $0x84] sm:$0xf]
    %v2226 = vld [vmem:[#allocation2 + $0x88] sm:$0xf]
    %v2227 = vld [vmem:[#allocation2 + $0x8c] sm:$0x1]
    %v2228 = vld [vmem:[#allocation2 + $0x90] sm:$0xf]
    %v2229 = vld [vmem:[#allocation2 + $0x94] sm:$0xf]
    %v2230 = vld [vmem:[#allocation2 + $0x98] sm:$0x1]
    %v2231 = vld [vmem:[#allocation2 + $0x9c] sm:$0xf]
    %v2232 = vld [vmem:[#allocation2 + $0xa0] sm:$0xf]
    %v2233 = vld [vmem:[#allocation2 + $0xa4] sm:$0x1]
    %v2234 = vld [vmem:[#allocation2 + $0xa8] sm:$0xf]
    %v2235 = vld [vmem:[#allocation2 + $0xac] sm:$0xf]
    %v2236 = vld [vmem:[#allocation2 + $0xb0] sm:$0x1]
    %v2237 = vld [vmem:[#allocation2 + $0xb4] sm:$0xf]
    %v2238 = vld [vmem:[#allocation2 + $0xb8] sm:$0xf]
    %v2239 = vld [vmem:[#allocation2 + $0xbc] sm:$0x1]
    %v2240 = vld [vmem:[#allocation2 + $0xc0] sm:$0xf]
    %v2241 = vld [vmem:[#allocation2 + $0xc4] sm:$0xf]
    %v2242 = vld [vmem:[#allocation2 + $0xc8] sm:$0x1]
    %v2243 = vld [vmem:[#allocation2 + $0xcc] sm:$0xf]
    %v2244 = vld [vmem:[#allocation2 + $0xd0] sm:$0xf]
    %v2245 = vld [vmem:[#allocation2 + $0xd4] sm:$0x1]
    %v2246 = vld [vmem:[#allocation2 + $0xd8] sm:$0xf]
    %v2247 = vld [vmem:[#allocation2 + $0xdc] sm:$0xf]
    %v2248 = vld [vmem:[#allocation2 + $0xe0] sm:$0x1]
    %v2249 = vld [vmem:[#allocation2 + $0xe4] sm:$0xf]
    %v2250 = vld [vmem:[#allocation2 + $0xe8] sm:$0xf]
    %v2251 = vld [vmem:[#allocation2 + $0xec] sm:$0x1]
    %v2252 = vld [vmem:[#allocation2 + $0xf0] sm:$0xf]
    %v2253 = vld [vmem:[#allocation2 + $0xf4] sm:$0xf]
    %v2254 = vld [vmem:[#allocation2 + $0xf8] sm:$0x1]
    %v2255 = vld [vmem:[#allocation2 + $0xfc] sm:$0xf]
    %v2256 = vld [vmem:[#allocation2 + $0x100] sm:$0xf]
    %v2257 = vld [vmem:[#allocation2 + $0x104] sm:$0x1]
    %v2258 = vld [vmem:[#allocation2 + $0x108] sm:$0xf]
    %v2259 = vld [vmem:[#allocation2 + $0x10c] sm:$0xf]
    %v2260 = vld [vmem:[#allocation2 + $0x110] sm:$0x1]
    %v2261 = vld [vmem:[#allocation2 + $0x114] sm:$0xf]
    %v2262 = vld [vmem:[#allocation2 + $0x118] sm:$0xf]
    %v2263 = vld [vmem:[#allocation2 + $0x11c] sm:$0x1]
    %v2264 = vld [vmem:[#allocation2 + $0x120] sm:$0xf]
    %v2265 = vld [vmem:[#allocation2 + $0x124] sm:$0xf]
    %v2266 = vld [vmem:[#allocation2 + $0x128] sm:$0x1]
    %v2267 = vld [vmem:[#allocation2 + $0x12c] sm:$0xf]
    %v2268 = vld [vmem:[#allocation2 + $0x130] sm:$0xf]
    %v2269 = vld [vmem:[#allocation2 + $0x134] sm:$0x1]
    %v2270 = vld [vmem:[#allocation2 + $0x138] sm:$0xf]
    %v2271 = vld [vmem:[#allocation2 + $0x13c] sm:$0xf]
    %v2272 = vld [vmem:[#allocation2 + $0x140] sm:$0x1]
    %v2273 = vld [vmem:[#allocation2 + $0x144] sm:$0xf]
    %v2274 = vld [vmem:[#allocation2 + $0x148] sm:$0xf]
    %v2275 = vld [vmem:[#allocation2 + $0x14c] sm:$0x1]
    %v2276 = vld [vmem:[#allocation2 + $0x150] sm:$0xf]
    %v2277 = vld [vmem:[#allocation2 + $0x154] sm:$0xf]
    %v2278 = vld [vmem:[#allocation2 + $0x158] sm:$0x1]
    %v2279 = vld [vmem:[#allocation2 + $0x15c] sm:$0xf]
    %v2280 = vld [vmem:[#allocation2 + $0x160] sm:$0xf]
    %v2281 = vld [vmem:[#allocation2 + $0x164] sm:$0x1]
    %v2282 = vld [vmem:[#allocation2 + $0x168] sm:$0xf]
    %v2283 = vld [vmem:[#allocation2 + $0x16c] sm:$0xf]
    %v2284 = vld [vmem:[#allocation2 + $0x170] sm:$0x1]
    %v2285 = vld [vmem:[#allocation2 + $0x174] sm:$0xf]
    %v2286 = vld [vmem:[#allocation2 + $0x178] sm:$0xf]
    %v2287 = vld [vmem:[#allocation2 + $0x17c] sm:$0x1]
    %v2288 = vld [vmem:[#allocation2 + $0x180] sm:$0xf]
    %v2289 = vld [vmem:[#allocation2 + $0x184] sm:$0xf]
    %v2290 = vld [vmem:[#allocation2 + $0x188] sm:$0x1]
    %v2291 = vld [vmem:[#allocation2 + $0x18c] sm:$0xf]
    %v2292 = vld [vmem:[#allocation2 + $0x190] sm:$0xf]
    %v2293 = vld [vmem:[#allocation2 + $0x194] sm:$0x1]
    %v2294 = vld [vmem:[#allocation2 + $0x198] sm:$0xf]
    %v2295 = vld [vmem:[#allocation2 + $0x19c] sm:$0xf]
    %v2296 = vld [vmem:[#allocation2 + $0x1a0] sm:$0x1]
    %v2297 = vld [vmem:[#allocation2 + $0x1a4] sm:$0xf]
    %v2298 = vld [vmem:[#allocation2 + $0x1a8] sm:$0xf]
    %v2299 = vld [vmem:[#allocation2 + $0x1ac] sm:$0x1]
    %v2300 = vld [vmem:[%s2] sm:$0xf]
    %v2301 = vld [vmem:[%s2 + $0x4] sm:$0xf]
    %v2302 = vld [vmem:[%s2 + $0x8] sm:$0xf]
    %v2303 = vld [vmem:[%s2 + $0xc] sm:$0xf]
    %v2304 = vld [vmem:[%s2 + $0x10] sm:$0xf]
    %v2305 = vld [vmem:[%s2 + $0x14] sm:$0xf]
    %v2306 = vld [vmem:[%s2 + $0x18] sm:$0xf]
    %v2307 = vld [vmem:[%s2 + $0x1c] sm:$0xf]
    %s2308 = scalar_lea.vmem %s2, 96
    %v2309 = vld [vmem:[%s2308] sm:$0xf]
    %v2310 = vld [vmem:[%s2308 + $0x4] sm:$0xf]
    %v2311 = vld [vmem:[%s2308 + $0x8] sm:$0xf]
    %v2312 = vld [vmem:[%s2308 + $0xc] sm:$0xf]
    %v2313 = vld [vmem:[%s2308 + $0x10] sm:$0xf]
    %v2314 = vld [vmem:[%s2308 + $0x14] sm:$0xf]
    %v2315 = vld [vmem:[%s2308 + $0x18] sm:$0xf]
    %v2316 = vld [vmem:[%s2308 + $0x1c] sm:$0xf]
    %v2381 = vunpack.c.l.b16 %v2195
    %v2382 = vunpack.c.l.b16 %v2196
    %v2383 = vunpack.c.l.b16 %v2198
    %v2384 = vunpack.c.l.b16 %v2199
    %v2385 = vunpack.c.l.b16 %v2201
    %v2386 = vunpack.c.l.b16 %v2202
    %v2387 = vunpack.c.l.b16 %v2204
    %v2388 = vunpack.c.l.b16 %v2205
    %v2389 = vunpack.c.l.b16 %v2207
    %v2390 = vunpack.c.l.b16 %v2208
    %v2391 = vunpack.c.l.b16 %v2210
    %v2392 = vunpack.c.l.b16 %v2211
    %v2393 = vunpack.c.l.b16 %v2213
    %v2394 = vunpack.c.l.b16 %v2214
    %v2395 = vunpack.c.l.b16 %v2216
    %v2396 = vunpack.c.l.b16 %v2217
    %v2397 = vunpack.c.l.b16 %v2219
    %v2398 = vunpack.c.l.b16 %v2220
    %v2399 = vunpack.c.l.b16 %v2222
    %v2400 = vunpack.c.l.b16 %v2223
    %v2401 = vunpack.c.l.b16 %v2225
    %v2402 = vunpack.c.l.b16 %v2226
    %v2403 = vunpack.c.l.b16 %v2228
    %v2404 = vunpack.c.l.b16 %v2229
    %v2405 = vunpack.c.l.b16 %v2231
    %v2406 = vunpack.c.l.b16 %v2232
    %v2407 = vunpack.c.l.b16 %v2234
    %v2408 = vunpack.c.l.b16 %v2235
    %v2409 = vunpack.c.l.b16 %v2237
    %v2410 = vunpack.c.l.b16 %v2238
    %v2411 = vunpack.c.l.b16 %v2240
    %v2412 = vunpack.c.l.b16 %v2241
    %v2413 = vunpack.c.l.b16 %v2249
    %v2414 = vunpack.c.l.b16 %v2250
    %v2415 = vunpack.c.l.b16 %v2252
    %v2416 = vunpack.c.l.b16 %v2253
    %v2417 = vunpack.c.l.b16 %v2255
    %v2418 = vunpack.c.l.b16 %v2256
    %v2419 = vunpack.c.l.b16 %v2258
    %v2420 = vunpack.c.l.b16 %v2259
    %v2421 = vunpack.c.l.b16 %v2261
    %v2422 = vunpack.c.l.b16 %v2262
    %v2423 = vunpack.c.l.b16 %v2264
    %v2424 = vunpack.c.l.b16 %v2265
    %v2425 = vunpack.c.l.b16 %v2267
    %v2426 = vunpack.c.l.b16 %v2268
    %v2427 = vunpack.c.l.b16 %v2270
    %v2428 = vunpack.c.l.b16 %v2271
    %v2429 = vunpack.c.l.b16 %v2273
    %v2430 = vunpack.c.l.b16 %v2274
    %v2431 = vunpack.c.l.b16 %v2276
    %v2432 = vunpack.c.l.b16 %v2277
    %v2433 = vunpack.c.l.b16 %v2279
    %v2434 = vunpack.c.l.b16 %v2280
    %v2435 = vunpack.c.l.b16 %v2282
    %v2436 = vunpack.c.l.b16 %v2283
    %v2437 = vunpack.c.l.b16 %v2285
    %v2438 = vunpack.c.l.b16 %v2286
    %v2439 = vunpack.c.l.b16 %v2288
    %v2440 = vunpack.c.l.b16 %v2289
    %v2441 = vunpack.c.l.b16 %v2291
    %v2442 = vunpack.c.l.b16 %v2292
    %v2443 = vunpack.c.l.b16 %v2294
    %v2444 = vunpack.c.l.b16 %v2295
    %v2445 = vpack.c.b16 %v2382, %v2381
    %v2446 = vpack.c.b16 %v2384, %v2383
    %v2447 = vpack.c.b16 %v2386, %v2385
    %v2448 = vpack.c.b16 %v2388, %v2387
    %v2449 = vpack.c.b16 %v2390, %v2389
    %v2450 = vpack.c.b16 %v2392, %v2391
    %v2451 = vpack.c.b16 %v2394, %v2393
    %v2452 = vpack.c.b16 %v2396, %v2395
    %v2453 = vpack.c.b16 %v2398, %v2397
    %v2454 = vpack.c.b16 %v2400, %v2399
    %v2455 = vpack.c.b16 %v2402, %v2401
    %v2456 = vpack.c.b16 %v2404, %v2403
    %v2457 = vpack.c.b16 %v2406, %v2405
    %v2458 = vpack.c.b16 %v2408, %v2407
    %v2459 = vpack.c.b16 %v2410, %v2409
    %v2460 = vpack.c.b16 %v2412, %v2411
    %v2461 = vpack.c.b16 %v2414, %v2413
    %v2462 = vpack.c.b16 %v2416, %v2415
    %v2463 = vpack.c.b16 %v2418, %v2417
    %v2464 = vpack.c.b16 %v2420, %v2419
    %v2465 = vpack.c.b16 %v2422, %v2421
    %v2466 = vpack.c.b16 %v2424, %v2423
    %v2467 = vpack.c.b16 %v2426, %v2425
    %v2468 = vpack.c.b16 %v2428, %v2427
    %v2469 = vpack.c.b16 %v2430, %v2429
    %v2470 = vpack.c.b16 %v2432, %v2431
    %v2471 = vpack.c.b16 %v2434, %v2433
    %v2472 = vpack.c.b16 %v2436, %v2435
    %v2473 = vpack.c.b16 %v2438, %v2437
    %v2474 = vpack.c.b16 %v2440, %v2439
    %v2475 = vpack.c.b16 %v2442, %v2441
    %v2476 = vpack.c.b16 %v2444, %v2443
    %v2485 = vunpack.c.l.b16 %v2309
    %v2486 = vunpack.c.l.b16 %v2310
    %v2487 = vunpack.c.l.b16 %v2311
    %v2488 = vunpack.c.l.b16 %v2312
    %v2489 = vunpack.c.l.b16 %v2313
    %v2490 = vunpack.c.l.b16 %v2314
    %v2491 = vunpack.c.l.b16 %v2315
    %v2492 = vunpack.c.l.b16 %v2316
    %v2493 = vpack.c.b16 %v2486, %v2485
    %v2494 = vpack.c.b16 %v2488, %v2487
    %v2495 = vpack.c.b16 %v2490, %v2489
    %v2496 = vpack.c.b16 %v2492, %v2491
    %vm2501 = vcmask 523264
    %v2503 = vsel %vm2501, %v2445, 0
    %v2506 = vsel %vm2501, %v2446, 0
    %v2509 = vsel %vm2501, %v2447, 0
    %v2512 = vsel %vm2501, %v2448, 0
    %v2515 = vsel %vm2501, %v2449, 0
    %v2518 = vsel %vm2501, %v2450, 0
    %v2521 = vsel %vm2501, %v2451, 0
    %v2524 = vsel %vm2501, %v2452, 0
    %v2527 = vsel %vm2501, %v2453, 0
    %v2530 = vsel %vm2501, %v2454, 0
    %v2533 = vsel %vm2501, %v2455, 0
    %v2536 = vsel %vm2501, %v2456, 0
    %v2539 = vsel %vm2501, %v2457, 0
    %v2542 = vsel %vm2501, %v2458, 0
    %v2545 = vsel %vm2501, %v2459, 0
    %v2548 = vsel %vm2501, %v2460, 0
    %v2551 = vsel %vm2501, %v2461, 0
    %v2554 = vsel %vm2501, %v2462, 0
    %v2557 = vsel %vm2501, %v2463, 0
    %v2560 = vsel %vm2501, %v2464, 0
    %v2563 = vsel %vm2501, %v2465, 0
    %v2566 = vsel %vm2501, %v2466, 0
    %v2569 = vsel %vm2501, %v2467, 0
    %v2572 = vsel %vm2501, %v2468, 0
    %v2575 = vsel %vm2501, %v2469, 0
    %v2578 = vsel %vm2501, %v2470, 0
    %v2581 = vsel %vm2501, %v2471, 0
    %v2584 = vsel %vm2501, %v2472, 0
    %v2587 = vsel %vm2501, %v2473, 0
    %v2590 = vsel %vm2501, %v2474, 0
    %v2593 = vsel %vm2501, %v2475, 0
    %v2596 = vsel %vm2501, %v2476, 0
    %2598 = vmatprep.subr.bf16.mxu0 0
    %2599 = vmatpush1.bf16.msra.mxu0 0
    %2600 = vmatprep.subr.bf16.mxu0 0
    %2601 = vmatpush1.bf16.msra.mxu0 0
    %2602 = vmatprep.subr.bf16.mxu0 0
    %2603 = vmatpush1.bf16.msra.mxu0 0
    %2604 = vmatprep.subr.bf16.mxu0 0
    %2605 = vmatpush1.bf16.msra.mxu0 0
    %2606 = vmatprep.subr.bf16.mxu0 0
    %2607 = vmatpush1.bf16.msra.mxu0 %v2496
    %2608 = vmatprep.subr.bf16.mxu0 0
    %2609 = vmatpush1.bf16.msra.mxu0 %v2495
    %2610 = vmatprep.subr.bf16.mxu0 0
    %2611 = vmatpush1.bf16.msra.mxu0 %v2494
    %2612 = vmatprep.subr.bf16.mxu0 0
    %2613 = vmatpush1.bf16.msra.mxu0 %v2493
    %2614 = vmatprep.subr.bf16.mxu0 0
    %2615 = vmatpush2.bf16.msra.mxu0 0
    %2616 = vmatprep.subr.bf16.mxu0 0
    %2617 = vmatpush2.bf16.msra.mxu0 0
    %2618 = vmatprep.subr.bf16.mxu0 0
    %2619 = vmatpush2.bf16.msra.mxu0 0
    %2620 = vmatprep.subr.bf16.mxu0 0
    %2621 = vmatpush2.bf16.msra.mxu0 0
    %2622 = vmatprep.subr.bf16.mxu0 0
    %2623 = vmatpush2.bf16.msra.mxu0 0
    %2624 = vmatprep.subr.bf16.mxu0 0
    %2625 = vmatpush2.bf16.msra.mxu0 0
    %2626 = vmatprep.subr.bf16.mxu0 0
    %2627 = vmatpush2.bf16.msra.mxu0 0
    %2628 = vmatprep.subr.bf16.mxu0 0
    %2629 = vmatpush2.bf16.msra.mxu0 0
    %2630 = vmatprep.mubr.bf16.mxu0 0
    %2631 = vmatmul.mubr.bf16.gmra.mxu0 %v2503
    %v2632 = vpop.f32.mrf.mxu0
    %v2633 = vadd.f32 0.0, %v2632
    %v2634 = vpop.f32.mrf.mxu0
    %v2635 = vpop.f32.mrf.mxu0
    %v2636 = vadd.f32 0.0, %v2635
    %v2637 = vpop.f32.mrf.mxu0
    %2638 = vmatprep.mubr.bf16.mxu0 0
    %2639 = vmatmul.mubr.bf16.gmra.mxu0 %v2506
    %v2640 = vpop.f32.mrf.mxu0
    %v2641 = vadd.f32 0.0, %v2640
    %v2642 = vpop.f32.mrf.mxu0
    %v2643 = vpop.f32.mrf.mxu0
    %v2644 = vadd.f32 0.0, %v2643
    %v2645 = vpop.f32.mrf.mxu0
    %2646 = vmatprep.mubr.bf16.mxu0 0
    %2647 = vmatmul.mubr.bf16.gmra.mxu0 %v2509
    %v2648 = vpop.f32.mrf.mxu0
    %v2649 = vadd.f32 0.0, %v2648
    %v2650 = vpop.f32.mrf.mxu0
    %v2651 = vpop.f32.mrf.mxu0
    %v2652 = vadd.f32 0.0, %v2651
    %v2653 = vpop.f32.mrf.mxu0
    %2654 = vmatprep.mubr.bf16.mxu0 0
    %2655 = vmatmul.mubr.bf16.gmra.mxu0 %v2512
    %v2656 = vpop.f32.mrf.mxu0
    %v2657 = vadd.f32 0.0, %v2656
    %v2658 = vpop.f32.mrf.mxu0
    %v2659 = vpop.f32.mrf.mxu0
    %v2660 = vadd.f32 0.0, %v2659
    %v2661 = vpop.f32.mrf.mxu0
    %2662 = vmatprep.mubr.bf16.mxu0 0
    %2663 = vmatmul.mubr.bf16.gmra.mxu0 %v2515
    %v2664 = vpop.f32.mrf.mxu0
    %v2665 = vadd.f32 0.0, %v2664
    %v2666 = vpop.f32.mrf.mxu0
    %v2667 = vpop.f32.mrf.mxu0
    %v2668 = vadd.f32 0.0, %v2667
    %v2669 = vpop.f32.mrf.mxu0
    %2670 = vmatprep.mubr.bf16.mxu0 0
    %2671 = vmatmul.mubr.bf16.gmra.mxu0 %v2518
    %v2672 = vpop.f32.mrf.mxu0
    %v2673 = vadd.f32 0.0, %v2672
    %v2674 = vpop.f32.mrf.mxu0
    %v2675 = vpop.f32.mrf.mxu0
    %v2676 = vadd.f32 0.0, %v2675
    %v2677 = vpop.f32.mrf.mxu0
    %2678 = vmatprep.mubr.bf16.mxu0 0
    %2679 = vmatmul.mubr.bf16.gmra.mxu0 %v2521
    %v2680 = vpop.f32.mrf.mxu0
    %v2681 = vadd.f32 0.0, %v2680
    %v2682 = vpop.f32.mrf.mxu0
    %v2683 = vpop.f32.mrf.mxu0
    %v2684 = vadd.f32 0.0, %v2683
    %v2685 = vpop.f32.mrf.mxu0
    %2686 = vmatprep.mubr.bf16.mxu0 0
    %2687 = vmatmul.mubr.bf16.gmra.mxu0 %v2524
    %v2688 = vpop.f32.mrf.mxu0
    %v2689 = vadd.f32 0.0, %v2688
    %v2690 = vpop.f32.mrf.mxu0
    %v2691 = vpop.f32.mrf.mxu0
    %v2692 = vadd.f32 0.0, %v2691
    %v2693 = vpop.f32.mrf.mxu0
    %2694 = vmatprep.mubr.bf16.mxu0 0
    %2695 = vmatmul.mubr.bf16.gmra.mxu0 %v2527
    %v2696 = vpop.f32.mrf.mxu0
    %v2697 = vadd.f32 0.0, %v2696
    %v2698 = vpop.f32.mrf.mxu0
    %v2699 = vpop.f32.mrf.mxu0
    %v2700 = vadd.f32 0.0, %v2699
    %v2701 = vpop.f32.mrf.mxu0
    %2702 = vmatprep.mubr.bf16.mxu0 0
    %2703 = vmatmul.mubr.bf16.gmra.mxu0 %v2530
    %v2704 = vpop.f32.mrf.mxu0
    %v2705 = vadd.f32 0.0, %v2704
    %v2706 = vpop.f32.mrf.mxu0
    %v2707 = vpop.f32.mrf.mxu0
    %v2708 = vadd.f32 0.0, %v2707
    %v2709 = vpop.f32.mrf.mxu0
    %2710 = vmatprep.mubr.bf16.mxu0 0
    %2711 = vmatmul.mubr.bf16.gmra.mxu0 %v2533
    %v2712 = vpop.f32.mrf.mxu0
    %v2713 = vadd.f32 0.0, %v2712
    %v2714 = vpop.f32.mrf.mxu0
    %v2715 = vpop.f32.mrf.mxu0
    %v2716 = vadd.f32 0.0, %v2715
    %v2717 = vpop.f32.mrf.mxu0
    %2718 = vmatprep.mubr.bf16.mxu0 0
    %2719 = vmatmul.mubr.bf16.gmra.mxu0 %v2536
    %v2720 = vpop.f32.mrf.mxu0
    %v2721 = vadd.f32 0.0, %v2720
    %v2722 = vpop.f32.mrf.mxu0
    %v2723 = vpop.f32.mrf.mxu0
    %v2724 = vadd.f32 0.0, %v2723
    %v2725 = vpop.f32.mrf.mxu0
    %2726 = vmatprep.mubr.bf16.mxu0 0
    %2727 = vmatmul.mubr.bf16.gmra.mxu0 %v2539
    %v2728 = vpop.f32.mrf.mxu0
    %v2729 = vadd.f32 0.0, %v2728
    %v2730 = vpop.f32.mrf.mxu0
    %v2731 = vpop.f32.mrf.mxu0
    %v2732 = vadd.f32 0.0, %v2731
    %v2733 = vpop.f32.mrf.mxu0
    %2734 = vmatprep.mubr.bf16.mxu0 0
    %2735 = vmatmul.mubr.bf16.gmra.mxu0 %v2542
    %v2736 = vpop.f32.mrf.mxu0
    %v2737 = vadd.f32 0.0, %v2736
    %v2738 = vpop.f32.mrf.mxu0
    %v2739 = vpop.f32.mrf.mxu0
    %v2740 = vadd.f32 0.0, %v2739
    %v2741 = vpop.f32.mrf.mxu0
    %2742 = vmatprep.mubr.bf16.mxu0 0
    %2743 = vmatmul.mubr.bf16.gmra.mxu0 %v2545
    %v2744 = vpop.f32.mrf.mxu0
    %v2745 = vadd.f32 0.0, %v2744
    %v2746 = vpop.f32.mrf.mxu0
    %v2747 = vpop.f32.mrf.mxu0
    %v2748 = vadd.f32 0.0, %v2747
    %v2749 = vpop.f32.mrf.mxu0
    %2750 = vmatprep.mubr.bf16.mxu0 0
    %2751 = vmatmul.mubr.bf16.gmra.mxu0 %v2548
    %v2752 = vpop.f32.mrf.mxu0
    %v2753 = vadd.f32 0.0, %v2752
    %v2754 = vpop.f32.mrf.mxu0
    %v2755 = vpop.f32.mrf.mxu0
    %v2756 = vadd.f32 0.0, %v2755
    %v2757 = vpop.f32.mrf.mxu0
    %2758 = vmatprep.mubr.bf16.mxu0 0
    %2759 = vmatmul.mubr.bf16.gmra.mxu0 %v2551
    %v2760 = vpop.f32.mrf.mxu0
    %v2761 = vadd.f32 0.0, %v2760
    %v2762 = vpop.f32.mrf.mxu0
    %v2763 = vpop.f32.mrf.mxu0
    %v2764 = vadd.f32 0.0, %v2763
    %v2765 = vpop.f32.mrf.mxu0
    %2766 = vmatprep.mubr.bf16.mxu0 0
    %2767 = vmatmul.mubr.bf16.gmra.mxu0 %v2554
    %v2768 = vpop.f32.mrf.mxu0
    %v2769 = vadd.f32 0.0, %v2768
    %v2770 = vpop.f32.mrf.mxu0
    %v2771 = vpop.f32.mrf.mxu0
    %v2772 = vadd.f32 0.0, %v2771
    %v2773 = vpop.f32.mrf.mxu0
    %2774 = vmatprep.mubr.bf16.mxu0 0
    %2775 = vmatmul.mubr.bf16.gmra.mxu0 %v2557
    %v2776 = vpop.f32.mrf.mxu0
    %v2777 = vadd.f32 0.0, %v2776
    %v2778 = vpop.f32.mrf.mxu0
    %v2779 = vpop.f32.mrf.mxu0
    %v2780 = vadd.f32 0.0, %v2779
    %v2781 = vpop.f32.mrf.mxu0
    %2782 = vmatprep.mubr.bf16.mxu0 0
    %2783 = vmatmul.mubr.bf16.gmra.mxu0 %v2560
    %v2784 = vpop.f32.mrf.mxu0
    %v2785 = vadd.f32 0.0, %v2784
    %v2786 = vpop.f32.mrf.mxu0
    %v2787 = vpop.f32.mrf.mxu0
    %v2788 = vadd.f32 0.0, %v2787
    %v2789 = vpop.f32.mrf.mxu0
    %2790 = vmatprep.mubr.bf16.mxu0 0
    %2791 = vmatmul.mubr.bf16.gmra.mxu0 %v2563
    %v2792 = vpop.f32.mrf.mxu0
    %v2793 = vadd.f32 0.0, %v2792
    %v2794 = vpop.f32.mrf.mxu0
    %v2795 = vpop.f32.mrf.mxu0
    %v2796 = vadd.f32 0.0, %v2795
    %v2797 = vpop.f32.mrf.mxu0
    %2798 = vmatprep.mubr.bf16.mxu0 0
    %2799 = vmatmul.mubr.bf16.gmra.mxu0 %v2566
    %v2800 = vpop.f32.mrf.mxu0
    %v2801 = vadd.f32 0.0, %v2800
    %v2802 = vpop.f32.mrf.mxu0
    %v2803 = vpop.f32.mrf.mxu0
    %v2804 = vadd.f32 0.0, %v2803
    %v2805 = vpop.f32.mrf.mxu0
    %2806 = vmatprep.mubr.bf16.mxu0 0
    %2807 = vmatmul.mubr.bf16.gmra.mxu0 %v2569
    %v2808 = vpop.f32.mrf.mxu0
    %v2809 = vadd.f32 0.0, %v2808
    %v2810 = vpop.f32.mrf.mxu0
    %v2811 = vpop.f32.mrf.mxu0
    %v2812 = vadd.f32 0.0, %v2811
    %v2813 = vpop.f32.mrf.mxu0
    %2814 = vmatprep.mubr.bf16.mxu0 0
    %2815 = vmatmul.mubr.bf16.gmra.mxu0 %v2572
    %v2816 = vpop.f32.mrf.mxu0
    %v2817 = vadd.f32 0.0, %v2816
    %v2818 = vpop.f32.mrf.mxu0
    %v2819 = vpop.f32.mrf.mxu0
    %v2820 = vadd.f32 0.0, %v2819
    %v2821 = vpop.f32.mrf.mxu0
    %2822 = vmatprep.mubr.bf16.mxu0 0
    %2823 = vmatmul.mubr.bf16.gmra.mxu0 %v2575
    %v2824 = vpop.f32.mrf.mxu0
    %v2825 = vadd.f32 0.0, %v2824
    %v2826 = vpop.f32.mrf.mxu0
    %v2827 = vpop.f32.mrf.mxu0
    %v2828 = vadd.f32 0.0, %v2827
    %v2829 = vpop.f32.mrf.mxu0
    %2830 = vmatprep.mubr.bf16.mxu0 0
    %2831 = vmatmul.mubr.bf16.gmra.mxu0 %v2578
    %v2832 = vpop.f32.mrf.mxu0
    %v2833 = vadd.f32 0.0, %v2832
    %v2834 = vpop.f32.mrf.mxu0
    %v2835 = vpop.f32.mrf.mxu0
    %v2836 = vadd.f32 0.0, %v2835
    %v2837 = vpop.f32.mrf.mxu0
    %2838 = vmatprep.mubr.bf16.mxu0 0
    %2839 = vmatmul.mubr.bf16.gmra.mxu0 %v2581
    %v2840 = vpop.f32.mrf.mxu0
    %v2841 = vadd.f32 0.0, %v2840
    %v2842 = vpop.f32.mrf.mxu0
    %v2843 = vpop.f32.mrf.mxu0
    %v2844 = vadd.f32 0.0, %v2843
    %v2845 = vpop.f32.mrf.mxu0
    %2846 = vmatprep.mubr.bf16.mxu0 0
    %2847 = vmatmul.mubr.bf16.gmra.mxu0 %v2584
    %v2848 = vpop.f32.mrf.mxu0
    %v2849 = vadd.f32 0.0, %v2848
    %v2850 = vpop.f32.mrf.mxu0
    %v2851 = vpop.f32.mrf.mxu0
    %v2852 = vadd.f32 0.0, %v2851
    %v2853 = vpop.f32.mrf.mxu0
    %2854 = vmatprep.mubr.bf16.mxu0 0
    %2855 = vmatmul.mubr.bf16.gmra.mxu0 %v2587
    %v2856 = vpop.f32.mrf.mxu0
    %v2857 = vadd.f32 0.0, %v2856
    %v2858 = vpop.f32.mrf.mxu0
    %v2859 = vpop.f32.mrf.mxu0
    %v2860 = vadd.f32 0.0, %v2859
    %v2861 = vpop.f32.mrf.mxu0
    %2862 = vmatprep.mubr.bf16.mxu0 0
    %2863 = vmatmul.mubr.bf16.gmra.mxu0 %v2590
    %v2864 = vpop.f32.mrf.mxu0
    %v2865 = vadd.f32 0.0, %v2864
    %v2866 = vpop.f32.mrf.mxu0
    %v2867 = vpop.f32.mrf.mxu0
    %v2868 = vadd.f32 0.0, %v2867
    %v2869 = vpop.f32.mrf.mxu0
    %2870 = vmatprep.mubr.bf16.mxu0 0
    %2871 = vmatmul.mubr.bf16.gmra.mxu0 %v2593
    %v2872 = vpop.f32.mrf.mxu0
    %v2873 = vadd.f32 0.0, %v2872
    %v2874 = vpop.f32.mrf.mxu0
    %v2875 = vpop.f32.mrf.mxu0
    %v2876 = vadd.f32 0.0, %v2875
    %v2877 = vpop.f32.mrf.mxu0
    %2878 = vmatprep.mubr.bf16.mxu0 0
    %2879 = vmatmul.mubr.bf16.gmra.mxu0 %v2596
    %v2880 = vpop.f32.mrf.mxu0
    %v2881 = vadd.f32 0.0, %v2880
    %v2882 = vpop.f32.mrf.mxu0
    %v2883 = vpop.f32.mrf.mxu0
    %v2884 = vadd.f32 0.0, %v2883
    %v2885 = vpop.f32.mrf.mxu0
    %2886 = vdwg.mxu0
    %v2891 = vunpack.c.l.b16 %v2192
    %v2892 = vunpack.c.l.b16 %v2193
    %v2893 = vunpack.c.l.b16 %v2246
    %v2894 = vunpack.c.l.b16 %v2247
    %v2895 = vpack.c.b16 %v2892, %v2891
    %v2896 = vpack.c.b16 %v2894, %v2893
    %v2905 = vunpack.c.l.b16 %v2300
    %v2906 = vunpack.c.l.b16 %v2301
    %v2907 = vunpack.c.l.b16 %v2302
    %v2908 = vunpack.c.l.b16 %v2303
    %v2909 = vunpack.c.l.b16 %v2304
    %v2910 = vunpack.c.l.b16 %v2305
    %v2911 = vunpack.c.l.b16 %v2306
    %v2912 = vunpack.c.l.b16 %v2307
    %v2913 = vpack.c.b16 %v2906, %v2905
    %v2914 = vpack.c.b16 %v2908, %v2907
    %v2915 = vpack.c.b16 %v2910, %v2909
    %v2916 = vpack.c.b16 %v2912, %v2911
    %v2922 = vsel %vm2501, %v2895, 0
    %v2925 = vsel %vm2501, %v2896, 0
    %2927 = vmatprep.subr.bf16.mxu0 0
    %2928 = vmatpush1.bf16.msra.mxu0 0
    %2929 = vmatprep.subr.bf16.mxu0 0
    %2930 = vmatpush1.bf16.msra.mxu0 0
    %2931 = vmatprep.subr.bf16.mxu0 0
    %2932 = vmatpush1.bf16.msra.mxu0 0
    %2933 = vmatprep.subr.bf16.mxu0 0
    %2934 = vmatpush1.bf16.msra.mxu0 0
    %2935 = vmatprep.subr.bf16.mxu0 0
    %2936 = vmatpush1.bf16.msra.mxu0 %v2916
    %2937 = vmatprep.subr.bf16.mxu0 0
    %2938 = vmatpush1.bf16.msra.mxu0 %v2915
    %2939 = vmatprep.subr.bf16.mxu0 0
    %2940 = vmatpush1.bf16.msra.mxu0 %v2914
    %2941 = vmatprep.subr.bf16.mxu0 0
    %2942 = vmatpush1.bf16.msra.mxu0 %v2913
    %2943 = vmatprep.subr.bf16.mxu0 0
    %2944 = vmatpush2.bf16.msra.mxu0 0
    %2945 = vmatprep.subr.bf16.mxu0 0
    %2946 = vmatpush2.bf16.msra.mxu0 0
    %2947 = vmatprep.subr.bf16.mxu0 0
    %2948 = vmatpush2.bf16.msra.mxu0 0
    %2949 = vmatprep.subr.bf16.mxu0 0
    %2950 = vmatpush2.bf16.msra.mxu0 0
    %2951 = vmatprep.subr.bf16.mxu0 0
    %2952 = vmatpush2.bf16.msra.mxu0 0
    %2953 = vmatprep.subr.bf16.mxu0 0
    %2954 = vmatpush2.bf16.msra.mxu0 0
    %2955 = vmatprep.subr.bf16.mxu0 0
    %2956 = vmatpush2.bf16.msra.mxu0 0
    %2957 = vmatprep.subr.bf16.mxu0 0
    %2958 = vmatpush2.bf16.msra.mxu0 0
    %2959 = vmatprep.mubr.bf16.mxu0 0
    %2960 = vmatmul.mubr.bf16.gmra.mxu0 %v2922
    %v2961 = vpop.f32.mrf.mxu0
    %v2962 = vadd.f32 %v2633, %v2961
    %v2963 = vpop.f32.mrf.mxu0
    %v2964 = vpop.f32.mrf.mxu0
    %v2965 = vadd.f32 %v2636, %v2964
    %v2966 = vpop.f32.mrf.mxu0
    %2967 = vmatprep.mubr.bf16.mxu0 0
    %2968 = vmatmul.mubr.bf16.gmra.mxu0 %v2503
    %v2969 = vpop.f32.mrf.mxu0
    %v2970 = vadd.f32 %v2641, %v2969
    %v2971 = vpop.f32.mrf.mxu0
    %v2972 = vpop.f32.mrf.mxu0
    %v2973 = vadd.f32 %v2644, %v2972
    %v2974 = vpop.f32.mrf.mxu0
    %2975 = vmatprep.mubr.bf16.mxu0 0
    %2976 = vmatmul.mubr.bf16.gmra.mxu0 %v2506
    %v2977 = vpop.f32.mrf.mxu0
    %v2978 = vadd.f32 %v2649, %v2977
    %v2979 = vpop.f32.mrf.mxu0
    %v2980 = vpop.f32.mrf.mxu0
    %v2981 = vadd.f32 %v2652, %v2980
    %v2982 = vpop.f32.mrf.mxu0
    %2983 = vmatprep.mubr.bf16.mxu0 0
    %2984 = vmatmul.mubr.bf16.gmra.mxu0 %v2509
    %v2985 = vpop.f32.mrf.mxu0
    %v2986 = vadd.f32 %v2657, %v2985
    %v2987 = vpop.f32.mrf.mxu0
    %v2988 = vpop.f32.mrf.mxu0
    %v2989 = vadd.f32 %v2660, %v2988
    %v2990 = vpop.f32.mrf.mxu0
    %2991 = vmatprep.mubr.bf16.mxu0 0
    %2992 = vmatmul.mubr.bf16.gmra.mxu0 %v2512
    %v2993 = vpop.f32.mrf.mxu0
    %v2994 = vadd.f32 %v2665, %v2993
    %v2995 = vpop.f32.mrf.mxu0
    %v2996 = vpop.f32.mrf.mxu0
    %v2997 = vadd.f32 %v2668, %v2996
    %v2998 = vpop.f32.mrf.mxu0
    %2999 = vmatprep.mubr.bf16.mxu0 0
    %3000 = vmatmul.mubr.bf16.gmra.mxu0 %v2515
    %v3001 = vpop.f32.mrf.mxu0
    %v3002 = vadd.f32 %v2673, %v3001
    %v3003 = vpop.f32.mrf.mxu0
    %v3004 = vpop.f32.mrf.mxu0
    %v3005 = vadd.f32 %v2676, %v3004
    %v3006 = vpop.f32.mrf.mxu0
    %3007 = vmatprep.mubr.bf16.mxu0 0
    %3008 = vmatmul.mubr.bf16.gmra.mxu0 %v2518
    %v3009 = vpop.f32.mrf.mxu0
    %v3010 = vadd.f32 %v2681, %v3009
    %v3011 = vpop.f32.mrf.mxu0
    %v3012 = vpop.f32.mrf.mxu0
    %v3013 = vadd.f32 %v2684, %v3012
    %v3014 = vpop.f32.mrf.mxu0
    %3015 = vmatprep.mubr.bf16.mxu0 0
    %3016 = vmatmul.mubr.bf16.gmra.mxu0 %v2521
    %v3017 = vpop.f32.mrf.mxu0
    %v3018 = vadd.f32 %v2689, %v3017
    %v3019 = vpop.f32.mrf.mxu0
    %v3020 = vpop.f32.mrf.mxu0
    %v3021 = vadd.f32 %v2692, %v3020
    %v3022 = vpop.f32.mrf.mxu0
    %3023 = vmatprep.mubr.bf16.mxu0 0
    %3024 = vmatmul.mubr.bf16.gmra.mxu0 %v2524
    %v3025 = vpop.f32.mrf.mxu0
    %v3026 = vadd.f32 %v2697, %v3025
    %v3027 = vpop.f32.mrf.mxu0
    %v3028 = vpop.f32.mrf.mxu0
    %v3029 = vadd.f32 %v2700, %v3028
    %v3030 = vpop.f32.mrf.mxu0
    %3031 = vmatprep.mubr.bf16.mxu0 0
    %3032 = vmatmul.mubr.bf16.gmra.mxu0 %v2527
    %v3033 = vpop.f32.mrf.mxu0
    %v3034 = vadd.f32 %v2705, %v3033
    %v3035 = vpop.f32.mrf.mxu0
    %v3036 = vpop.f32.mrf.mxu0
    %v3037 = vadd.f32 %v2708, %v3036
    %v3038 = vpop.f32.mrf.mxu0
    %3039 = vmatprep.mubr.bf16.mxu0 0
    %3040 = vmatmul.mubr.bf16.gmra.mxu0 %v2530
    %v3041 = vpop.f32.mrf.mxu0
    %v3042 = vadd.f32 %v2713, %v3041
    %v3043 = vpop.f32.mrf.mxu0
    %v3044 = vpop.f32.mrf.mxu0
    %v3045 = vadd.f32 %v2716, %v3044
    %v3046 = vpop.f32.mrf.mxu0
    %3047 = vmatprep.mubr.bf16.mxu0 0
    %3048 = vmatmul.mubr.bf16.gmra.mxu0 %v2533
    %v3049 = vpop.f32.mrf.mxu0
    %v3050 = vadd.f32 %v2721, %v3049
    %v3051 = vpop.f32.mrf.mxu0
    %v3052 = vpop.f32.mrf.mxu0
    %v3053 = vadd.f32 %v2724, %v3052
    %v3054 = vpop.f32.mrf.mxu0
    %3055 = vmatprep.mubr.bf16.mxu0 0
    %3056 = vmatmul.mubr.bf16.gmra.mxu0 %v2536
    %v3057 = vpop.f32.mrf.mxu0
    %v3058 = vadd.f32 %v2729, %v3057
    %v3059 = vpop.f32.mrf.mxu0
    %v3060 = vpop.f32.mrf.mxu0
    %v3061 = vadd.f32 %v2732, %v3060
    %v3062 = vpop.f32.mrf.mxu0
    %3063 = vmatprep.mubr.bf16.mxu0 0
    %3064 = vmatmul.mubr.bf16.gmra.mxu0 %v2539
    %v3065 = vpop.f32.mrf.mxu0
    %v3066 = vadd.f32 %v2737, %v3065
    %v3067 = vpop.f32.mrf.mxu0
    %v3068 = vpop.f32.mrf.mxu0
    %v3069 = vadd.f32 %v2740, %v3068
    %v3070 = vpop.f32.mrf.mxu0
    %3071 = vmatprep.mubr.bf16.mxu0 0
    %3072 = vmatmul.mubr.bf16.gmra.mxu0 %v2542
    %v3073 = vpop.f32.mrf.mxu0
    %v3074 = vadd.f32 %v2745, %v3073
    %v3075 = vpop.f32.mrf.mxu0
    %v3076 = vpop.f32.mrf.mxu0
    %v3077 = vadd.f32 %v2748, %v3076
    %v3078 = vpop.f32.mrf.mxu0
    %3079 = vmatprep.mubr.bf16.mxu0 0
    %3080 = vmatmul.mubr.bf16.gmra.mxu0 %v2545
    %v3081 = vpop.f32.mrf.mxu0
    %v3082 = vadd.f32 %v2753, %v3081
    %v3083 = vpop.f32.mrf.mxu0
    %v3084 = vpop.f32.mrf.mxu0
    %v3085 = vadd.f32 %v2756, %v3084
    %v3086 = vpop.f32.mrf.mxu0
    %3087 = vmatprep.mubr.bf16.mxu0 0
    %3088 = vmatmul.mubr.bf16.gmra.mxu0 %v2925
    %v3089 = vpop.f32.mrf.mxu0
    %v3090 = vadd.f32 %v2761, %v3089
    %v3091 = vpop.f32.mrf.mxu0
    %v3092 = vpop.f32.mrf.mxu0
    %v3093 = vadd.f32 %v2764, %v3092
    %v3094 = vpop.f32.mrf.mxu0
    %3095 = vmatprep.mubr.bf16.mxu0 0
    %3096 = vmatmul.mubr.bf16.gmra.mxu0 %v2551
    %v3097 = vpop.f32.mrf.mxu0
    %v3098 = vadd.f32 %v2769, %v3097
    %v3099 = vpop.f32.mrf.mxu0
    %v3100 = vpop.f32.mrf.mxu0
    %v3101 = vadd.f32 %v2772, %v3100
    %v3102 = vpop.f32.mrf.mxu0
    %3103 = vmatprep.mubr.bf16.mxu0 0
    %3104 = vmatmul.mubr.bf16.gmra.mxu0 %v2554
    %v3105 = vpop.f32.mrf.mxu0
    %v3106 = vadd.f32 %v2777, %v3105
    %v3107 = vpop.f32.mrf.mxu0
    %v3108 = vpop.f32.mrf.mxu0
    %v3109 = vadd.f32 %v2780, %v3108
    %v3110 = vpop.f32.mrf.mxu0
    %3111 = vmatprep.mubr.bf16.mxu0 0
    %3112 = vmatmul.mubr.bf16.gmra.mxu0 %v2557
    %v3113 = vpop.f32.mrf.mxu0
    %v3114 = vadd.f32 %v2785, %v3113
    %v3115 = vpop.f32.mrf.mxu0
    %v3116 = vpop.f32.mrf.mxu0
    %v3117 = vadd.f32 %v2788, %v3116
    %v3118 = vpop.f32.mrf.mxu0
    %3119 = vmatprep.mubr.bf16.mxu0 0
    %3120 = vmatmul.mubr.bf16.gmra.mxu0 %v2560
    %v3121 = vpop.f32.mrf.mxu0
    %v3122 = vadd.f32 %v2793, %v3121
    %v3123 = vpop.f32.mrf.mxu0
    %v3124 = vpop.f32.mrf.mxu0
    %v3125 = vadd.f32 %v2796, %v3124
    %v3126 = vpop.f32.mrf.mxu0
    %3127 = vmatprep.mubr.bf16.mxu0 0
    %3128 = vmatmul.mubr.bf16.gmra.mxu0 %v2563
    %v3129 = vpop.f32.mrf.mxu0
    %v3130 = vadd.f32 %v2801, %v3129
    %v3131 = vpop.f32.mrf.mxu0
    %v3132 = vpop.f32.mrf.mxu0
    %v3133 = vadd.f32 %v2804, %v3132
    %v3134 = vpop.f32.mrf.mxu0
    %3135 = vmatprep.mubr.bf16.mxu0 0
    %3136 = vmatmul.mubr.bf16.gmra.mxu0 %v2566
    %v3137 = vpop.f32.mrf.mxu0
    %v3138 = vadd.f32 %v2809, %v3137
    %v3139 = vpop.f32.mrf.mxu0
    %v3140 = vpop.f32.mrf.mxu0
    %v3141 = vadd.f32 %v2812, %v3140
    %v3142 = vpop.f32.mrf.mxu0
    %3143 = vmatprep.mubr.bf16.mxu0 0
    %3144 = vmatmul.mubr.bf16.gmra.mxu0 %v2569
    %v3145 = vpop.f32.mrf.mxu0
    %v3146 = vadd.f32 %v2817, %v3145
    %v3147 = vpop.f32.mrf.mxu0
    %v3148 = vpop.f32.mrf.mxu0
    %v3149 = vadd.f32 %v2820, %v3148
    %v3150 = vpop.f32.mrf.mxu0
    %3151 = vmatprep.mubr.bf16.mxu0 0
    %3152 = vmatmul.mubr.bf16.gmra.mxu0 %v2572
    %v3153 = vpop.f32.mrf.mxu0
    %v3154 = vadd.f32 %v2825, %v3153
    %v3155 = vpop.f32.mrf.mxu0
    %v3156 = vpop.f32.mrf.mxu0
    %v3157 = vadd.f32 %v2828, %v3156
    %v3158 = vpop.f32.mrf.mxu0
    %3159 = vmatprep.mubr.bf16.mxu0 0
    %3160 = vmatmul.mubr.bf16.gmra.mxu0 %v2575
    %v3161 = vpop.f32.mrf.mxu0
    %v3162 = vadd.f32 %v2833, %v3161
    %v3163 = vpop.f32.mrf.mxu0
    %v3164 = vpop.f32.mrf.mxu0
    %v3165 = vadd.f32 %v2836, %v3164
    %v3166 = vpop.f32.mrf.mxu0
    %3167 = vmatprep.mubr.bf16.mxu0 0
    %3168 = vmatmul.mubr.bf16.gmra.mxu0 %v2578
    %v3169 = vpop.f32.mrf.mxu0
    %v3170 = vadd.f32 %v2841, %v3169
    %v3171 = vpop.f32.mrf.mxu0
    %v3172 = vpop.f32.mrf.mxu0
    %v3173 = vadd.f32 %v2844, %v3172
    %v3174 = vpop.f32.mrf.mxu0
    %3175 = vmatprep.mubr.bf16.mxu0 0
    %3176 = vmatmul.mubr.bf16.gmra.mxu0 %v2581
    %v3177 = vpop.f32.mrf.mxu0
    %v3178 = vadd.f32 %v2849, %v3177
    %v3179 = vpop.f32.mrf.mxu0
    %v3180 = vpop.f32.mrf.mxu0
    %v3181 = vadd.f32 %v2852, %v3180
    %v3182 = vpop.f32.mrf.mxu0
    %3183 = vmatprep.mubr.bf16.mxu0 0
    %3184 = vmatmul.mubr.bf16.gmra.mxu0 %v2584
    %v3185 = vpop.f32.mrf.mxu0
    %v3186 = vadd.f32 %v2857, %v3185
    %v3187 = vpop.f32.mrf.mxu0
    %v3188 = vpop.f32.mrf.mxu0
    %v3189 = vadd.f32 %v2860, %v3188
    %v3190 = vpop.f32.mrf.mxu0
    %3191 = vmatprep.mubr.bf16.mxu0 0
    %3192 = vmatmul.mubr.bf16.gmra.mxu0 %v2587
    %v3193 = vpop.f32.mrf.mxu0
    %v3194 = vadd.f32 %v2865, %v3193
    %v3195 = vpop.f32.mrf.mxu0
    %v3196 = vpop.f32.mrf.mxu0
    %v3197 = vadd.f32 %v2868, %v3196
    %v3198 = vpop.f32.mrf.mxu0
    %3199 = vmatprep.mubr.bf16.mxu0 0
    %3200 = vmatmul.mubr.bf16.gmra.mxu0 %v2590
    %v3201 = vpop.f32.mrf.mxu0
    %v3202 = vadd.f32 %v2873, %v3201
    %v3203 = vpop.f32.mrf.mxu0
    %v3204 = vpop.f32.mrf.mxu0
    %v3205 = vadd.f32 %v2876, %v3204
    %v3206 = vpop.f32.mrf.mxu0
    %3207 = vmatprep.mubr.bf16.mxu0 0
    %3208 = vmatmul.mubr.bf16.gmra.mxu0 %v2593
    %v3209 = vpop.f32.mrf.mxu0
    %v3210 = vadd.f32 %v2881, %v3209
    %v3211 = vpop.f32.mrf.mxu0
    %v3212 = vpop.f32.mrf.mxu0
    %v3213 = vadd.f32 %v2884, %v3212
    %v3214 = vpop.f32.mrf.mxu0
    %3215 = vdwg.mxu0
    %s3216 = scalar_lea.vmem %s2, 192
    %v3217 = vld [vmem:[%s3216] sm:$0xf]
    %v3218 = vld [vmem:[%s3216 + $0x4] sm:$0xf]
    %v3219 = vld [vmem:[%s3216 + $0x8] sm:$0xf]
    %v3220 = vld [vmem:[%s3216 + $0xc] sm:$0xf]
    %v3221 = vld [vmem:[%s3216 + $0x10] sm:$0xf]
    %v3222 = vld [vmem:[%s3216 + $0x14] sm:$0xf]
    %v3223 = vld [vmem:[%s3216 + $0x18] sm:$0xf]
    %v3224 = vld [vmem:[%s3216 + $0x1c] sm:$0xf]
    %v3229 = vunpack.c.l.b16 %v2243
    %v3230 = vunpack.c.l.b16 %v2244
    %v3231 = vunpack.c.l.b16 %v2297
    %v3232 = vunpack.c.l.b16 %v2298
    %v3233 = vpack.c.b16 %v3230, %v3229
    %v3234 = vpack.c.b16 %v3232, %v3231
    %v3243 = vunpack.c.l.b16 %v3217
    %v3244 = vunpack.c.l.b16 %v3218
    %v3245 = vunpack.c.l.b16 %v3219
    %v3246 = vunpack.c.l.b16 %v3220
    %v3247 = vunpack.c.l.b16 %v3221
    %v3248 = vunpack.c.l.b16 %v3222
    %v3249 = vunpack.c.l.b16 %v3223
    %v3250 = vunpack.c.l.b16 %v3224
    %v3251 = vpack.c.b16 %v3244, %v3243
    %v3252 = vpack.c.b16 %v3246, %v3245
    %v3253 = vpack.c.b16 %v3248, %v3247
    %v3254 = vpack.c.b16 %v3250, %v3249
    %v3260 = vsel %vm2501, %v3233, 0
    %v3263 = vsel %vm2501, %v3234, 0
    %3265 = vmatprep.subr.bf16.mxu0 0
    %3266 = vmatpush1.bf16.msra.mxu0 0
    %3267 = vmatprep.subr.bf16.mxu0 0
    %3268 = vmatpush1.bf16.msra.mxu0 0
    %3269 = vmatprep.subr.bf16.mxu0 0
    %3270 = vmatpush1.bf16.msra.mxu0 0
    %3271 = vmatprep.subr.bf16.mxu0 0
    %3272 = vmatpush1.bf16.msra.mxu0 0
    %3273 = vmatprep.subr.bf16.mxu0 0
    %3274 = vmatpush1.bf16.msra.mxu0 %v3254
    %3275 = vmatprep.subr.bf16.mxu0 0
    %3276 = vmatpush1.bf16.msra.mxu0 %v3253
    %3277 = vmatprep.subr.bf16.mxu0 0
    %3278 = vmatpush1.bf16.msra.mxu0 %v3252
    %3279 = vmatprep.subr.bf16.mxu0 0
    %3280 = vmatpush1.bf16.msra.mxu0 %v3251
    %3281 = vmatprep.subr.bf16.mxu0 0
    %3282 = vmatpush2.bf16.msra.mxu0 0
    %3283 = vmatprep.subr.bf16.mxu0 0
    %3284 = vmatpush2.bf16.msra.mxu0 0
    %3285 = vmatprep.subr.bf16.mxu0 0
    %3286 = vmatpush2.bf16.msra.mxu0 0
    %3287 = vmatprep.subr.bf16.mxu0 0
    %3288 = vmatpush2.bf16.msra.mxu0 0
    %3289 = vmatprep.subr.bf16.mxu0 0
    %3290 = vmatpush2.bf16.msra.mxu0 0
    %3291 = vmatprep.subr.bf16.mxu0 0
    %3292 = vmatpush2.bf16.msra.mxu0 0
    %3293 = vmatprep.subr.bf16.mxu0 0
    %3294 = vmatpush2.bf16.msra.mxu0 0
    %3295 = vmatprep.subr.bf16.mxu0 0
    %3296 = vmatpush2.bf16.msra.mxu0 0
    %3297 = vmatprep.mubr.bf16.mxu0 0
    %3298 = vmatmul.mubr.bf16.gmra.mxu0 %v2506
    %v3299 = vpop.f32.mrf.mxu0
    %v3300 = vadd.f32 0.0, %v3299
    %v3301 = vpop.f32.mrf.mxu0
    %v3302 = vpop.f32.mrf.mxu0
    %v3303 = vadd.f32 0.0, %v3302
    %v3304 = vpop.f32.mrf.mxu0
    %3305 = vmatprep.mubr.bf16.mxu0 0
    %3306 = vmatmul.mubr.bf16.gmra.mxu0 %v2509
    %v3307 = vpop.f32.mrf.mxu0
    %v3308 = vadd.f32 0.0, %v3307
    %v3309 = vpop.f32.mrf.mxu0
    %v3310 = vpop.f32.mrf.mxu0
    %v3311 = vadd.f32 0.0, %v3310
    %v3312 = vpop.f32.mrf.mxu0
    %3313 = vmatprep.mubr.bf16.mxu0 0
    %3314 = vmatmul.mubr.bf16.gmra.mxu0 %v2512
    %v3315 = vpop.f32.mrf.mxu0
    %v3316 = vadd.f32 0.0, %v3315
    %v3317 = vpop.f32.mrf.mxu0
    %v3318 = vpop.f32.mrf.mxu0
    %v3319 = vadd.f32 0.0, %v3318
    %v3320 = vpop.f32.mrf.mxu0
    %3321 = vmatprep.mubr.bf16.mxu0 0
    %3322 = vmatmul.mubr.bf16.gmra.mxu0 %v2515
    %v3323 = vpop.f32.mrf.mxu0
    %v3324 = vadd.f32 0.0, %v3323
    %v3325 = vpop.f32.mrf.mxu0
    %v3326 = vpop.f32.mrf.mxu0
    %v3327 = vadd.f32 0.0, %v3326
    %v3328 = vpop.f32.mrf.mxu0
    %3329 = vmatprep.mubr.bf16.mxu0 0
    %3330 = vmatmul.mubr.bf16.gmra.mxu0 %v2518
    %v3331 = vpop.f32.mrf.mxu0
    %v3332 = vadd.f32 0.0, %v3331
    %v3333 = vpop.f32.mrf.mxu0
    %v3334 = vpop.f32.mrf.mxu0
    %v3335 = vadd.f32 0.0, %v3334
    %v3336 = vpop.f32.mrf.mxu0
    %3337 = vmatprep.mubr.bf16.mxu0 0
    %3338 = vmatmul.mubr.bf16.gmra.mxu0 %v2521
    %v3339 = vpop.f32.mrf.mxu0
    %v3340 = vadd.f32 0.0, %v3339
    %v3341 = vpop.f32.mrf.mxu0
    %v3342 = vpop.f32.mrf.mxu0
    %v3343 = vadd.f32 0.0, %v3342
    %v3344 = vpop.f32.mrf.mxu0
    %3345 = vmatprep.mubr.bf16.mxu0 0
    %3346 = vmatmul.mubr.bf16.gmra.mxu0 %v2524
    %v3347 = vpop.f32.mrf.mxu0
    %v3348 = vadd.f32 0.0, %v3347
    %v3349 = vpop.f32.mrf.mxu0
    %v3350 = vpop.f32.mrf.mxu0
    %v3351 = vadd.f32 0.0, %v3350
    %v3352 = vpop.f32.mrf.mxu0
    %3353 = vmatprep.mubr.bf16.mxu0 0
    %3354 = vmatmul.mubr.bf16.gmra.mxu0 %v2527
    %v3355 = vpop.f32.mrf.mxu0
    %v3356 = vadd.f32 0.0, %v3355
    %v3357 = vpop.f32.mrf.mxu0
    %v3358 = vpop.f32.mrf.mxu0
    %v3359 = vadd.f32 0.0, %v3358
    %v3360 = vpop.f32.mrf.mxu0
    %3361 = vmatprep.mubr.bf16.mxu0 0
    %3362 = vmatmul.mubr.bf16.gmra.mxu0 %v2530
    %v3363 = vpop.f32.mrf.mxu0
    %v3364 = vadd.f32 0.0, %v3363
    %v3365 = vpop.f32.mrf.mxu0
    %v3366 = vpop.f32.mrf.mxu0
    %v3367 = vadd.f32 0.0, %v3366
    %v3368 = vpop.f32.mrf.mxu0
    %3369 = vmatprep.mubr.bf16.mxu0 0
    %3370 = vmatmul.mubr.bf16.gmra.mxu0 %v2533
    %v3371 = vpop.f32.mrf.mxu0
    %v3372 = vadd.f32 0.0, %v3371
    %v3373 = vpop.f32.mrf.mxu0
    %v3374 = vpop.f32.mrf.mxu0
    %v3375 = vadd.f32 0.0, %v3374
    %v3376 = vpop.f32.mrf.mxu0
    %3377 = vmatprep.mubr.bf16.mxu0 0
    %3378 = vmatmul.mubr.bf16.gmra.mxu0 %v2536
    %v3379 = vpop.f32.mrf.mxu0
    %v3380 = vadd.f32 0.0, %v3379
    %v3381 = vpop.f32.mrf.mxu0
    %v3382 = vpop.f32.mrf.mxu0
    %v3383 = vadd.f32 0.0, %v3382
    %v3384 = vpop.f32.mrf.mxu0
    %3385 = vmatprep.mubr.bf16.mxu0 0
    %3386 = vmatmul.mubr.bf16.gmra.mxu0 %v2539
    %v3387 = vpop.f32.mrf.mxu0
    %v3388 = vadd.f32 0.0, %v3387
    %v3389 = vpop.f32.mrf.mxu0
    %v3390 = vpop.f32.mrf.mxu0
    %v3391 = vadd.f32 0.0, %v3390
    %v3392 = vpop.f32.mrf.mxu0
    %3393 = vmatprep.mubr.bf16.mxu0 0
    %3394 = vmatmul.mubr.bf16.gmra.mxu0 %v2542
    %v3395 = vpop.f32.mrf.mxu0
    %v3396 = vadd.f32 0.0, %v3395
    %v3397 = vpop.f32.mrf.mxu0
    %v3398 = vpop.f32.mrf.mxu0
    %v3399 = vadd.f32 0.0, %v3398
    %v3400 = vpop.f32.mrf.mxu0
    %3401 = vmatprep.mubr.bf16.mxu0 0
    %3402 = vmatmul.mubr.bf16.gmra.mxu0 %v2545
    %v3403 = vpop.f32.mrf.mxu0
    %v3404 = vadd.f32 0.0, %v3403
    %v3405 = vpop.f32.mrf.mxu0
    %v3406 = vpop.f32.mrf.mxu0
    %v3407 = vadd.f32 0.0, %v3406
    %v3408 = vpop.f32.mrf.mxu0
    %3409 = vmatprep.mubr.bf16.mxu0 0
    %3410 = vmatmul.mubr.bf16.gmra.mxu0 %v2548
    %v3411 = vpop.f32.mrf.mxu0
    %v3412 = vadd.f32 0.0, %v3411
    %v3413 = vpop.f32.mrf.mxu0
    %v3414 = vpop.f32.mrf.mxu0
    %v3415 = vadd.f32 0.0, %v3414
    %v3416 = vpop.f32.mrf.mxu0
    %3417 = vmatprep.mubr.bf16.mxu0 0
    %3418 = vmatmul.mubr.bf16.gmra.mxu0 %v3260
    %v3419 = vpop.f32.mrf.mxu0
    %v3420 = vadd.f32 0.0, %v3419
    %v3421 = vpop.f32.mrf.mxu0
    %v3422 = vpop.f32.mrf.mxu0
    %v3423 = vadd.f32 0.0, %v3422
    %v3424 = vpop.f32.mrf.mxu0
    %3425 = vmatprep.mubr.bf16.mxu0 0
    %3426 = vmatmul.mubr.bf16.gmra.mxu0 %v2554
    %v3427 = vpop.f32.mrf.mxu0
    %v3428 = vadd.f32 0.0, %v3427
    %v3429 = vpop.f32.mrf.mxu0
    %v3430 = vpop.f32.mrf.mxu0
    %v3431 = vadd.f32 0.0, %v3430
    %v3432 = vpop.f32.mrf.mxu0
    %3433 = vmatprep.mubr.bf16.mxu0 0
    %3434 = vmatmul.mubr.bf16.gmra.mxu0 %v2557
    %v3435 = vpop.f32.mrf.mxu0
    %v3436 = vadd.f32 0.0, %v3435
    %v3437 = vpop.f32.mrf.mxu0
    %v3438 = vpop.f32.mrf.mxu0
    %v3439 = vadd.f32 0.0, %v3438
    %v3440 = vpop.f32.mrf.mxu0
    %3441 = vmatprep.mubr.bf16.mxu0 0
    %3442 = vmatmul.mubr.bf16.gmra.mxu0 %v2560
    %v3443 = vpop.f32.mrf.mxu0
    %v3444 = vadd.f32 0.0, %v3443
    %v3445 = vpop.f32.mrf.mxu0
    %v3446 = vpop.f32.mrf.mxu0
    %v3447 = vadd.f32 0.0, %v3446
    %v3448 = vpop.f32.mrf.mxu0
    %3449 = vmatprep.mubr.bf16.mxu0 0
    %3450 = vmatmul.mubr.bf16.gmra.mxu0 %v2563
    %v3451 = vpop.f32.mrf.mxu0
    %v3452 = vadd.f32 0.0, %v3451
    %v3453 = vpop.f32.mrf.mxu0
    %v3454 = vpop.f32.mrf.mxu0
    %v3455 = vadd.f32 0.0, %v3454
    %v3456 = vpop.f32.mrf.mxu0
    %3457 = vmatprep.mubr.bf16.mxu0 0
    %3458 = vmatmul.mubr.bf16.gmra.mxu0 %v2566
    %v3459 = vpop.f32.mrf.mxu0
    %v3460 = vadd.f32 0.0, %v3459
    %v3461 = vpop.f32.mrf.mxu0
    %v3462 = vpop.f32.mrf.mxu0
    %v3463 = vadd.f32 0.0, %v3462
    %v3464 = vpop.f32.mrf.mxu0
    %3465 = vmatprep.mubr.bf16.mxu0 0
    %3466 = vmatmul.mubr.bf16.gmra.mxu0 %v2569
    %v3467 = vpop.f32.mrf.mxu0
    %v3468 = vadd.f32 0.0, %v3467
    %v3469 = vpop.f32.mrf.mxu0
    %v3470 = vpop.f32.mrf.mxu0
    %v3471 = vadd.f32 0.0, %v3470
    %v3472 = vpop.f32.mrf.mxu0
    %3473 = vmatprep.mubr.bf16.mxu0 0
    %3474 = vmatmul.mubr.bf16.gmra.mxu0 %v2572
    %v3475 = vpop.f32.mrf.mxu0
    %v3476 = vadd.f32 0.0, %v3475
    %v3477 = vpop.f32.mrf.mxu0
    %v3478 = vpop.f32.mrf.mxu0
    %v3479 = vadd.f32 0.0, %v3478
    %v3480 = vpop.f32.mrf.mxu0
    %3481 = vmatprep.mubr.bf16.mxu0 0
    %3482 = vmatmul.mubr.bf16.gmra.mxu0 %v2575
    %v3483 = vpop.f32.mrf.mxu0
    %v3484 = vadd.f32 0.0, %v3483
    %v3485 = vpop.f32.mrf.mxu0
    %v3486 = vpop.f32.mrf.mxu0
    %v3487 = vadd.f32 0.0, %v3486
    %v3488 = vpop.f32.mrf.mxu0
    %3489 = vmatprep.mubr.bf16.mxu0 0
    %3490 = vmatmul.mubr.bf16.gmra.mxu0 %v2578
    %v3491 = vpop.f32.mrf.mxu0
    %v3492 = vadd.f32 0.0, %v3491
    %v3493 = vpop.f32.mrf.mxu0
    %v3494 = vpop.f32.mrf.mxu0
    %v3495 = vadd.f32 0.0, %v3494
    %v3496 = vpop.f32.mrf.mxu0
    %3497 = vmatprep.mubr.bf16.mxu0 0
    %3498 = vmatmul.mubr.bf16.gmra.mxu0 %v2581
    %v3499 = vpop.f32.mrf.mxu0
    %v3500 = vadd.f32 0.0, %v3499
    %v3501 = vpop.f32.mrf.mxu0
    %v3502 = vpop.f32.mrf.mxu0
    %v3503 = vadd.f32 0.0, %v3502
    %v3504 = vpop.f32.mrf.mxu0
    %3505 = vmatprep.mubr.bf16.mxu0 0
    %3506 = vmatmul.mubr.bf16.gmra.mxu0 %v2584
    %v3507 = vpop.f32.mrf.mxu0
    %v3508 = vadd.f32 0.0, %v3507
    %v3509 = vpop.f32.mrf.mxu0
    %v3510 = vpop.f32.mrf.mxu0
    %v3511 = vadd.f32 0.0, %v3510
    %v3512 = vpop.f32.mrf.mxu0
    %3513 = vmatprep.mubr.bf16.mxu0 0
    %3514 = vmatmul.mubr.bf16.gmra.mxu0 %v2587
    %v3515 = vpop.f32.mrf.mxu0
    %v3516 = vadd.f32 0.0, %v3515
    %v3517 = vpop.f32.mrf.mxu0
    %v3518 = vpop.f32.mrf.mxu0
    %v3519 = vadd.f32 0.0, %v3518
    %v3520 = vpop.f32.mrf.mxu0
    %3521 = vmatprep.mubr.bf16.mxu0 0
    %3522 = vmatmul.mubr.bf16.gmra.mxu0 %v2590
    %v3523 = vpop.f32.mrf.mxu0
    %v3524 = vadd.f32 0.0, %v3523
    %v3525 = vpop.f32.mrf.mxu0
    %v3526 = vpop.f32.mrf.mxu0
    %v3527 = vadd.f32 0.0, %v3526
    %v3528 = vpop.f32.mrf.mxu0
    %3529 = vmatprep.mubr.bf16.mxu0 0
    %3530 = vmatmul.mubr.bf16.gmra.mxu0 %v2593
    %v3531 = vpop.f32.mrf.mxu0
    %v3532 = vadd.f32 0.0, %v3531
    %v3533 = vpop.f32.mrf.mxu0
    %v3534 = vpop.f32.mrf.mxu0
    %v3535 = vadd.f32 0.0, %v3534
    %v3536 = vpop.f32.mrf.mxu0
    %3537 = vmatprep.mubr.bf16.mxu0 0
    %3538 = vmatmul.mubr.bf16.gmra.mxu0 %v2596
    %v3539 = vpop.f32.mrf.mxu0
    %v3540 = vadd.f32 0.0, %v3539
    %v3541 = vpop.f32.mrf.mxu0
    %v3542 = vpop.f32.mrf.mxu0
    %v3543 = vadd.f32 0.0, %v3542
    %v3544 = vpop.f32.mrf.mxu0
    %3545 = vmatprep.mubr.bf16.mxu0 0
    %3546 = vmatmul.mubr.bf16.gmra.mxu0 %v3263
    %v3547 = vpop.f32.mrf.mxu0
    %v3548 = vadd.f32 0.0, %v3547
    %v3549 = vpop.f32.mrf.mxu0
    %v3550 = vpop.f32.mrf.mxu0
    %v3551 = vadd.f32 0.0, %v3550
    %v3552 = vpop.f32.mrf.mxu0
    %3553 = vdwg.mxu0
    %v3554 = vadd.f32 %v2962, %v3300
    %v3555 = vadd.f32 %v2965, %v3303
    %v3556 = vadd.f32 %v2970, %v3308
    %v3557 = vadd.f32 %v2973, %v3311
    %v3558 = vadd.f32 %v2978, %v3316
    %v3559 = vadd.f32 %v2981, %v3319
    %v3560 = vadd.f32 %v2986, %v3324
    %v3561 = vadd.f32 %v2989, %v3327
    %v3562 = vadd.f32 %v2994, %v3332
    %v3563 = vadd.f32 %v2997, %v3335
    %v3564 = vadd.f32 %v3002, %v3340
    %v3565 = vadd.f32 %v3005, %v3343
    %v3566 = vadd.f32 %v3010, %v3348
    %v3567 = vadd.f32 %v3013, %v3351
    %v3568 = vadd.f32 %v3018, %v3356
    %v3569 = vadd.f32 %v3021, %v3359
    %v3570 = vadd.f32 %v3026, %v3364
    %v3571 = vadd.f32 %v3029, %v3367
    %v3572 = vadd.f32 %v3034, %v3372
    %v3573 = vadd.f32 %v3037, %v3375
    %v3574 = vadd.f32 %v3042, %v3380
    %v3575 = vadd.f32 %v3045, %v3383
    %v3576 = vadd.f32 %v3050, %v3388
    %v3577 = vadd.f32 %v3053, %v3391
    %v3578 = vadd.f32 %v3058, %v3396
    %v3579 = vadd.f32 %v3061, %v3399
    %v3580 = vadd.f32 %v3066, %v3404
    %v3581 = vadd.f32 %v3069, %v3407
    %v3582 = vadd.f32 %v3074, %v3412
    %v3583 = vadd.f32 %v3077, %v3415
    %v3584 = vadd.f32 %v3082, %v3420
    %v3585 = vadd.f32 %v3085, %v3423
    %v3586 = vadd.f32 %v3090, %v3428
    %v3587 = vadd.f32 %v3093, %v3431
    %v3588 = vadd.f32 %v3098, %v3436
    %v3589 = vadd.f32 %v3101, %v3439
    %v3590 = vadd.f32 %v3106, %v3444
    %v3591 = vadd.f32 %v3109, %v3447
    %v3592 = vadd.f32 %v3114, %v3452
    %v3593 = vadd.f32 %v3117, %v3455
    %v3594 = vadd.f32 %v3122, %v3460
    %v3595 = vadd.f32 %v3125, %v3463
    %v3596 = vadd.f32 %v3130, %v3468
    %v3597 = vadd.f32 %v3133, %v3471
    %v3598 = vadd.f32 %v3138, %v3476
    %v3599 = vadd.f32 %v3141, %v3479
    %v3600 = vadd.f32 %v3146, %v3484
    %v3601 = vadd.f32 %v3149, %v3487
    %v3602 = vadd.f32 %v3154, %v3492
    %v3603 = vadd.f32 %v3157, %v3495
    %v3604 = vadd.f32 %v3162, %v3500
    %v3605 = vadd.f32 %v3165, %v3503
    %v3606 = vadd.f32 %v3170, %v3508
    %v3607 = vadd.f32 %v3173, %v3511
    %v3608 = vadd.f32 %v3178, %v3516
    %v3609 = vadd.f32 %v3181, %v3519
    %v3610 = vadd.f32 %v3186, %v3524
    %v3611 = vadd.f32 %v3189, %v3527
    %v3612 = vadd.f32 %v3194, %v3532
    %v3613 = vadd.f32 %v3197, %v3535
    %v3614 = vadd.f32 %v3202, %v3540
    %v3615 = vadd.f32 %v3205, %v3543
    %v3616 = vadd.f32 %v3210, %v3548
    %v3617 = vadd.f32 %v3213, %v3551
    %vm3618 = vsmask.f32 3328
    %vm3619 = vsmask.f32 7440
    %vm3620 = vmor %vm3618, %vm3619
    %v3622 = vshrl.u32 %v2192, 16
    %v3624 = vrot.slane %v3622, 4
    %v3625 = vshll.u32 %v2192, 16
    %v3627 = vrot.slane %v3625, 5
    %v3628 = vor.u32 %v3624, %v3627
    %v3629 = vrot.slane %v3628, 4
    %v3631 = vshll.u32 %v2193, 16
    %v3633 = vrot.slane %v3631, 5
    %v3634 = vsel %vm3620, %v3629, %v3633
    %v3635 = vshrl.u32 %v2193, 16
    %v3637 = vrot.slane %v3635, 4
    %v3638 = vor.u32 %v3637, %v3633
    %v3639 = vrot.slane %v3638, 4
    %v3641 = vshll.u32 %v2194, 16
    %v3643 = vrot.slane %v3641, 5
    %v3644 = vsel %vm3620, %v3639, %v3643
    %v3646 = vshrl.u32 %v2195, 16
    %v3648 = vrot.slane %v3646, 4
    %v3649 = vshll.u32 %v2195, 16
    %v3651 = vrot.slane %v3649, 5
    %v3652 = vor.u32 %v3648, %v3651
    %v3653 = vrot.slane %v3652, 4
    %v3655 = vshll.u32 %v2196, 16
    %v3657 = vrot.slane %v3655, 5
    %v3658 = vsel %vm3620, %v3653, %v3657
    %v3659 = vshrl.u32 %v2196, 16
    %v3661 = vrot.slane %v3659, 4
    %v3662 = vor.u32 %v3661, %v3657
    %v3663 = vrot.slane %v3662, 4
    %v3665 = vshll.u32 %v2197, 16
    %v3667 = vrot.slane %v3665, 5
    %v3668 = vsel %vm3620, %v3663, %v3667
    %v3670 = vshrl.u32 %v2198, 16
    %v3672 = vrot.slane %v3670, 4
    %v3673 = vshll.u32 %v2198, 16
    %v3675 = vrot.slane %v3673, 5
    %v3676 = vor.u32 %v3672, %v3675
    %v3677 = vrot.slane %v3676, 4
    %v3679 = vshll.u32 %v2199, 16
    %v3681 = vrot.slane %v3679, 5
    %v3682 = vsel %vm3620, %v3677, %v3681
    %v3683 = vshrl.u32 %v2199, 16
    %v3685 = vrot.slane %v3683, 4
    %v3686 = vor.u32 %v3685, %v3681
    %v3687 = vrot.slane %v3686, 4
    %v3689 = vshll.u32 %v2200, 16
    %v3691 = vrot.slane %v3689, 5
    %v3692 = vsel %vm3620, %v3687, %v3691
    %v3694 = vshrl.u32 %v2201, 16
    %v3696 = vrot.slane %v3694, 4
    %v3697 = vshll.u32 %v2201, 16
    %v3699 = vrot.slane %v3697, 5
    %v3700 = vor.u32 %v3696, %v3699
    %v3701 = vrot.slane %v3700, 4
    %v3703 = vshll.u32 %v2202, 16
    %v3705 = vrot.slane %v3703, 5
    %v3706 = vsel %vm3620, %v3701, %v3705
    %v3707 = vshrl.u32 %v2202, 16
    %v3709 = vrot.slane %v3707, 4
    %v3710 = vor.u32 %v3709, %v3705
    %v3711 = vrot.slane %v3710, 4
    %v3713 = vshll.u32 %v2203, 16
    %v3715 = vrot.slane %v3713, 5
    %v3716 = vsel %vm3620, %v3711, %v3715
    %v3718 = vshrl.u32 %v2204, 16
    %v3720 = vrot.slane %v3718, 4
    %v3721 = vshll.u32 %v2204, 16
    %v3723 = vrot.slane %v3721, 5
    %v3724 = vor.u32 %v3720, %v3723
    %v3725 = vrot.slane %v3724, 4
    %v3727 = vshll.u32 %v2205, 16
    %v3729 = vrot.slane %v3727, 5
    %v3730 = vsel %vm3620, %v3725, %v3729
    %v3731 = vshrl.u32 %v2205, 16
    %v3733 = vrot.slane %v3731, 4
    %v3734 = vor.u32 %v3733, %v3729
    %v3735 = vrot.slane %v3734, 4
    %v3737 = vshll.u32 %v2206, 16
    %v3739 = vrot.slane %v3737, 5
    %v3740 = vsel %vm3620, %v3735, %v3739
    %v3742 = vshrl.u32 %v2207, 16
    %v3744 = vrot.slane %v3742, 4
    %v3745 = vshll.u32 %v2207, 16
    %v3747 = vrot.slane %v3745, 5
    %v3748 = vor.u32 %v3744, %v3747
    %v3749 = vrot.slane %v3748, 4
    %v3751 = vshll.u32 %v2208, 16
    %v3753 = vrot.slane %v3751, 5
    %v3754 = vsel %vm3620, %v3749, %v3753
    %v3755 = vshrl.u32 %v2208, 16
    %v3757 = vrot.slane %v3755, 4
    %v3758 = vor.u32 %v3757, %v3753
    %v3759 = vrot.slane %v3758, 4
    %v3761 = vshll.u32 %v2209, 16
    %v3763 = vrot.slane %v3761, 5
    %v3764 = vsel %vm3620, %v3759, %v3763
    %v3766 = vshrl.u32 %v2210, 16
    %v3768 = vrot.slane %v3766, 4
    %v3769 = vshll.u32 %v2210, 16
    %v3771 = vrot.slane %v3769, 5
    %v3772 = vor.u32 %v3768, %v3771
    %v3773 = vrot.slane %v3772, 4
    %v3775 = vshll.u32 %v2211, 16
    %v3777 = vrot.slane %v3775, 5
    %v3778 = vsel %vm3620, %v3773, %v3777
    %v3779 = vshrl.u32 %v2211, 16
    %v3781 = vrot.slane %v3779, 4
    %v3782 = vor.u32 %v3781, %v3777
    %v3783 = vrot.slane %v3782, 4
    %v3785 = vshll.u32 %v2212, 16
    %v3787 = vrot.slane %v3785, 5
    %v3788 = vsel %vm3620, %v3783, %v3787
    %v3790 = vshrl.u32 %v2213, 16
    %v3792 = vrot.slane %v3790, 4
    %v3793 = vshll.u32 %v2213, 16
    %v3795 = vrot.slane %v3793, 5
    %v3796 = vor.u32 %v3792, %v3795
    %v3797 = vrot.slane %v3796, 4
    %v3799 = vshll.u32 %v2214, 16
    %v3801 = vrot.slane %v3799, 5
    %v3802 = vsel %vm3620, %v3797, %v3801
    %v3803 = vshrl.u32 %v2214, 16
    %v3805 = vrot.slane %v3803, 4
    %v3806 = vor.u32 %v3805, %v3801
    %v3807 = vrot.slane %v3806, 4
    %v3809 = vshll.u32 %v2215, 16
    %v3811 = vrot.slane %v3809, 5
    %v3812 = vsel %vm3620, %v3807, %v3811
    %v3814 = vshrl.u32 %v2216, 16
    %v3816 = vrot.slane %v3814, 4
    %v3817 = vshll.u32 %v2216, 16
    %v3819 = vrot.slane %v3817, 5
    %v3820 = vor.u32 %v3816, %v3819
    %v3821 = vrot.slane %v3820, 4
    %v3823 = vshll.u32 %v2217, 16
    %v3825 = vrot.slane %v3823, 5
    %v3826 = vsel %vm3620, %v3821, %v3825
    %v3827 = vshrl.u32 %v2217, 16
    %v3829 = vrot.slane %v3827, 4
    %v3830 = vor.u32 %v3829, %v3825
    %v3831 = vrot.slane %v3830, 4
    %v3833 = vshll.u32 %v2218, 16
    %v3835 = vrot.slane %v3833, 5
    %v3836 = vsel %vm3620, %v3831, %v3835
    %v3838 = vshrl.u32 %v2219, 16
    %v3840 = vrot.slane %v3838, 4
    %v3841 = vshll.u32 %v2219, 16
    %v3843 = vrot.slane %v3841, 5
    %v3844 = vor.u32 %v3840, %v3843
    %v3845 = vrot.slane %v3844, 4
    %v3847 = vshll.u32 %v2220, 16
    %v3849 = vrot.slane %v3847, 5
    %v3850 = vsel %vm3620, %v3845, %v3849
    %v3851 = vshrl.u32 %v2220, 16
    %v3853 = vrot.slane %v3851, 4
    %v3854 = vor.u32 %v3853, %v3849
    %v3855 = vrot.slane %v3854, 4
    %v3857 = vshll.u32 %v2221, 16
    %v3859 = vrot.slane %v3857, 5
    %v3860 = vsel %vm3620, %v3855, %v3859
    %v3862 = vshrl.u32 %v2222, 16
    %v3864 = vrot.slane %v3862, 4
    %v3865 = vshll.u32 %v2222, 16
    %v3867 = vrot.slane %v3865, 5
    %v3868 = vor.u32 %v3864, %v3867
    %v3869 = vrot.slane %v3868, 4
    %v3871 = vshll.u32 %v2223, 16
    %v3873 = vrot.slane %v3871, 5
    %v3874 = vsel %vm3620, %v3869, %v3873
    %v3875 = vshrl.u32 %v2223, 16
    %v3877 = vrot.slane %v3875, 4
    %v3878 = vor.u32 %v3877, %v3873
    %v3879 = vrot.slane %v3878, 4
    %v3881 = vshll.u32 %v2224, 16
    %v3883 = vrot.slane %v3881, 5
    %v3884 = vsel %vm3620, %v3879, %v3883
    %v3886 = vshrl.u32 %v2225, 16
    %v3888 = vrot.slane %v3886, 4
    %v3889 = vshll.u32 %v2225, 16
    %v3891 = vrot.slane %v3889, 5
    %v3892 = vor.u32 %v3888, %v3891
    %v3893 = vrot.slane %v3892, 4
    %v3895 = vshll.u32 %v2226, 16
    %v3897 = vrot.slane %v3895, 5
    %v3898 = vsel %vm3620, %v3893, %v3897
    %v3899 = vshrl.u32 %v2226, 16
    %v3901 = vrot.slane %v3899, 4
    %v3902 = vor.u32 %v3901, %v3897
    %v3903 = vrot.slane %v3902, 4
    %v3905 = vshll.u32 %v2227, 16
    %v3907 = vrot.slane %v3905, 5
    %v3908 = vsel %vm3620, %v3903, %v3907
    %v3910 = vshrl.u32 %v2228, 16
    %v3912 = vrot.slane %v3910, 4
    %v3913 = vshll.u32 %v2228, 16
    %v3915 = vrot.slane %v3913, 5
    %v3916 = vor.u32 %v3912, %v3915
    %v3917 = vrot.slane %v3916, 4
    %v3919 = vshll.u32 %v2229, 16
    %v3921 = vrot.slane %v3919, 5
    %v3922 = vsel %vm3620, %v3917, %v3921
    %v3923 = vshrl.u32 %v2229, 16
    %v3925 = vrot.slane %v3923, 4
    %v3926 = vor.u32 %v3925, %v3921
    %v3927 = vrot.slane %v3926, 4
    %v3929 = vshll.u32 %v2230, 16
    %v3931 = vrot.slane %v3929, 5
    %v3932 = vsel %vm3620, %v3927, %v3931
    %v3934 = vshrl.u32 %v2231, 16
    %v3936 = vrot.slane %v3934, 4
    %v3937 = vshll.u32 %v2231, 16
    %v3939 = vrot.slane %v3937, 5
    %v3940 = vor.u32 %v3936, %v3939
    %v3941 = vrot.slane %v3940, 4
    %v3943 = vshll.u32 %v2232, 16
    %v3945 = vrot.slane %v3943, 5
    %v3946 = vsel %vm3620, %v3941, %v3945
    %v3947 = vshrl.u32 %v2232, 16
    %v3949 = vrot.slane %v3947, 4
    %v3950 = vor.u32 %v3949, %v3945
    %v3951 = vrot.slane %v3950, 4
    %v3953 = vshll.u32 %v2233, 16
    %v3955 = vrot.slane %v3953, 5
    %v3956 = vsel %vm3620, %v3951, %v3955
    %v3958 = vshrl.u32 %v2234, 16
    %v3960 = vrot.slane %v3958, 4
    %v3961 = vshll.u32 %v2234, 16
    %v3963 = vrot.slane %v3961, 5
    %v3964 = vor.u32 %v3960, %v3963
    %v3965 = vrot.slane %v3964, 4
    %v3967 = vshll.u32 %v2235, 16
    %v3969 = vrot.slane %v3967, 5
    %v3970 = vsel %vm3620, %v3965, %v3969
    %v3971 = vshrl.u32 %v2235, 16
    %v3973 = vrot.slane %v3971, 4
    %v3974 = vor.u32 %v3973, %v3969
    %v3975 = vrot.slane %v3974, 4
    %v3977 = vshll.u32 %v2236, 16
    %v3979 = vrot.slane %v3977, 5
    %v3980 = vsel %vm3620, %v3975, %v3979
    %v3982 = vshrl.u32 %v2237, 16
    %v3984 = vrot.slane %v3982, 4
    %v3985 = vshll.u32 %v2237, 16
    %v3987 = vrot.slane %v3985, 5
    %v3988 = vor.u32 %v3984, %v3987
    %v3989 = vrot.slane %v3988, 4
    %v3991 = vshll.u32 %v2238, 16
    %v3993 = vrot.slane %v3991, 5
    %v3994 = vsel %vm3620, %v3989, %v3993
    %v3995 = vshrl.u32 %v2238, 16
    %v3997 = vrot.slane %v3995, 4
    %v3998 = vor.u32 %v3997, %v3993
    %v3999 = vrot.slane %v3998, 4
    %v4001 = vshll.u32 %v2239, 16
    %v4003 = vrot.slane %v4001, 5
    %v4004 = vsel %vm3620, %v3999, %v4003
    %v4006 = vshrl.u32 %v2246, 16
    %v4008 = vrot.slane %v4006, 4
    %v4009 = vshll.u32 %v2246, 16
    %v4011 = vrot.slane %v4009, 5
    %v4012 = vor.u32 %v4008, %v4011
    %v4013 = vrot.slane %v4012, 4
    %v4015 = vshll.u32 %v2247, 16
    %v4017 = vrot.slane %v4015, 5
    %v4018 = vsel %vm3620, %v4013, %v4017
    %v4019 = vshrl.u32 %v2247, 16
    %v4021 = vrot.slane %v4019, 4
    %v4022 = vor.u32 %v4021, %v4017
    %v4023 = vrot.slane %v4022, 4
    %v4025 = vshll.u32 %v2248, 16
    %v4027 = vrot.slane %v4025, 5
    %v4028 = vsel %vm3620, %v4023, %v4027
    %v4030 = vshrl.u32 %v2249, 16
    %v4032 = vrot.slane %v4030, 4
    %v4033 = vshll.u32 %v2249, 16
    %v4035 = vrot.slane %v4033, 5
    %v4036 = vor.u32 %v4032, %v4035
    %v4037 = vrot.slane %v4036, 4
    %v4039 = vshll.u32 %v2250, 16
    %v4041 = vrot.slane %v4039, 5
    %v4042 = vsel %vm3620, %v4037, %v4041
    %v4043 = vshrl.u32 %v2250, 16
    %v4045 = vrot.slane %v4043, 4
    %v4046 = vor.u32 %v4045, %v4041
    %v4047 = vrot.slane %v4046, 4
    %v4049 = vshll.u32 %v2251, 16
    %v4051 = vrot.slane %v4049, 5
    %v4052 = vsel %vm3620, %v4047, %v4051
    %v4054 = vshrl.u32 %v2252, 16
    %v4056 = vrot.slane %v4054, 4
    %v4057 = vshll.u32 %v2252, 16
    %v4059 = vrot.slane %v4057, 5
    %v4060 = vor.u32 %v4056, %v4059
    %v4061 = vrot.slane %v4060, 4
    %v4063 = vshll.u32 %v2253, 16
    %v4065 = vrot.slane %v4063, 5
    %v4066 = vsel %vm3620, %v4061, %v4065
    %v4067 = vshrl.u32 %v2253, 16
    %v4069 = vrot.slane %v4067, 4
    %v4070 = vor.u32 %v4069, %v4065
    %v4071 = vrot.slane %v4070, 4
    %v4073 = vshll.u32 %v2254, 16
    %v4075 = vrot.slane %v4073, 5
    %v4076 = vsel %vm3620, %v4071, %v4075
    %v4078 = vshrl.u32 %v2255, 16
    %v4080 = vrot.slane %v4078, 4
    %v4081 = vshll.u32 %v2255, 16
    %v4083 = vrot.slane %v4081, 5
    %v4084 = vor.u32 %v4080, %v4083
    %v4085 = vrot.slane %v4084, 4
    %v4087 = vshll.u32 %v2256, 16
    %v4089 = vrot.slane %v4087, 5
    %v4090 = vsel %vm3620, %v4085, %v4089
    %v4091 = vshrl.u32 %v2256, 16
    %v4093 = vrot.slane %v4091, 4
    %v4094 = vor.u32 %v4093, %v4089
    %v4095 = vrot.slane %v4094, 4
    %v4097 = vshll.u32 %v2257, 16
    %v4099 = vrot.slane %v4097, 5
    %v4100 = vsel %vm3620, %v4095, %v4099
    %v4102 = vshrl.u32 %v2258, 16
    %v4104 = vrot.slane %v4102, 4
    %v4105 = vshll.u32 %v2258, 16
    %v4107 = vrot.slane %v4105, 5
    %v4108 = vor.u32 %v4104, %v4107
    %v4109 = vrot.slane %v4108, 4
    %v4111 = vshll.u32 %v2259, 16
    %v4113 = vrot.slane %v4111, 5
    %v4114 = vsel %vm3620, %v4109, %v4113
    %v4115 = vshrl.u32 %v2259, 16
    %v4117 = vrot.slane %v4115, 4
    %v4118 = vor.u32 %v4117, %v4113
    %v4119 = vrot.slane %v4118, 4
    %v4121 = vshll.u32 %v2260, 16
    %v4123 = vrot.slane %v4121, 5
    %v4124 = vsel %vm3620, %v4119, %v4123
    %v4126 = vshrl.u32 %v2261, 16
    %v4128 = vrot.slane %v4126, 4
    %v4129 = vshll.u32 %v2261, 16
    %v4131 = vrot.slane %v4129, 5
    %v4132 = vor.u32 %v4128, %v4131
    %v4133 = vrot.slane %v4132, 4
    %v4135 = vshll.u32 %v2262, 16
    %v4137 = vrot.slane %v4135, 5
    %v4138 = vsel %vm3620, %v4133, %v4137
    %v4139 = vshrl.u32 %v2262, 16
    %v4141 = vrot.slane %v4139, 4
    %v4142 = vor.u32 %v4141, %v4137
    %v4143 = vrot.slane %v4142, 4
    %v4145 = vshll.u32 %v2263, 16
    %v4147 = vrot.slane %v4145, 5
    %v4148 = vsel %vm3620, %v4143, %v4147
    %v4150 = vshrl.u32 %v2264, 16
    %v4152 = vrot.slane %v4150, 4
    %v4153 = vshll.u32 %v2264, 16
    %v4155 = vrot.slane %v4153, 5
    %v4156 = vor.u32 %v4152, %v4155
    %v4157 = vrot.slane %v4156, 4
    %v4159 = vshll.u32 %v2265, 16
    %v4161 = vrot.slane %v4159, 5
    %v4162 = vsel %vm3620, %v4157, %v4161
    %v4163 = vshrl.u32 %v2265, 16
    %v4165 = vrot.slane %v4163, 4
    %v4166 = vor.u32 %v4165, %v4161
    %v4167 = vrot.slane %v4166, 4
    %v4169 = vshll.u32 %v2266, 16
    %v4171 = vrot.slane %v4169, 5
    %v4172 = vsel %vm3620, %v4167, %v4171
    %v4174 = vshrl.u32 %v2267, 16
    %v4176 = vrot.slane %v4174, 4
    %v4177 = vshll.u32 %v2267, 16
    %v4179 = vrot.slane %v4177, 5
    %v4180 = vor.u32 %v4176, %v4179
    %v4181 = vrot.slane %v4180, 4
    %v4183 = vshll.u32 %v2268, 16
    %v4185 = vrot.slane %v4183, 5
    %v4186 = vsel %vm3620, %v4181, %v4185
    %v4187 = vshrl.u32 %v2268, 16
    %v4189 = vrot.slane %v4187, 4
    %v4190 = vor.u32 %v4189, %v4185
    %v4191 = vrot.slane %v4190, 4
    %v4193 = vshll.u32 %v2269, 16
    %v4195 = vrot.slane %v4193, 5
    %v4196 = vsel %vm3620, %v4191, %v4195
    %v4198 = vshrl.u32 %v2270, 16
    %v4200 = vrot.slane %v4198, 4
    %v4201 = vshll.u32 %v2270, 16
    %v4203 = vrot.slane %v4201, 5
    %v4204 = vor.u32 %v4200, %v4203
    %v4205 = vrot.slane %v4204, 4
    %v4207 = vshll.u32 %v2271, 16
    %v4209 = vrot.slane %v4207, 5
    %v4210 = vsel %vm3620, %v4205, %v4209
    %v4211 = vshrl.u32 %v2271, 16
    %v4213 = vrot.slane %v4211, 4
    %v4214 = vor.u32 %v4213, %v4209
    %v4215 = vrot.slane %v4214, 4
    %v4217 = vshll.u32 %v2272, 16
    %v4219 = vrot.slane %v4217, 5
    %v4220 = vsel %vm3620, %v4215, %v4219
    %v4222 = vshrl.u32 %v2273, 16
    %v4224 = vrot.slane %v4222, 4
    %v4225 = vshll.u32 %v2273, 16
    %v4227 = vrot.slane %v4225, 5
    %v4228 = vor.u32 %v4224, %v4227
    %v4229 = vrot.slane %v4228, 4
    %v4231 = vshll.u32 %v2274, 16
    %v4233 = vrot.slane %v4231, 5
    %v4234 = vsel %vm3620, %v4229, %v4233
    %v4235 = vshrl.u32 %v2274, 16
    %v4237 = vrot.slane %v4235, 4
    %v4238 = vor.u32 %v4237, %v4233
    %v4239 = vrot.slane %v4238, 4
    %v4241 = vshll.u32 %v2275, 16
    %v4243 = vrot.slane %v4241, 5
    %v4244 = vsel %vm3620, %v4239, %v4243
    %v4246 = vshrl.u32 %v2276, 16
    %v4248 = vrot.slane %v4246, 4
    %v4249 = vshll.u32 %v2276, 16
    %v4251 = vrot.slane %v4249, 5
    %v4252 = vor.u32 %v4248, %v4251
    %v4253 = vrot.slane %v4252, 4
    %v4255 = vshll.u32 %v2277, 16
    %v4257 = vrot.slane %v4255, 5
    %v4258 = vsel %vm3620, %v4253, %v4257
    %v4259 = vshrl.u32 %v2277, 16
    %v4261 = vrot.slane %v4259, 4
    %v4262 = vor.u32 %v4261, %v4257
    %v4263 = vrot.slane %v4262, 4
    %v4265 = vshll.u32 %v2278, 16
    %v4267 = vrot.slane %v4265, 5
    %v4268 = vsel %vm3620, %v4263, %v4267
    %v4270 = vshrl.u32 %v2279, 16
    %v4272 = vrot.slane %v4270, 4
    %v4273 = vshll.u32 %v2279, 16
    %v4275 = vrot.slane %v4273, 5
    %v4276 = vor.u32 %v4272, %v4275
    %v4277 = vrot.slane %v4276, 4
    %v4279 = vshll.u32 %v2280, 16
    %v4281 = vrot.slane %v4279, 5
    %v4282 = vsel %vm3620, %v4277, %v4281
    %v4283 = vshrl.u32 %v2280, 16
    %v4285 = vrot.slane %v4283, 4
    %v4286 = vor.u32 %v4285, %v4281
    %v4287 = vrot.slane %v4286, 4
    %v4289 = vshll.u32 %v2281, 16
    %v4291 = vrot.slane %v4289, 5
    %v4292 = vsel %vm3620, %v4287, %v4291
    %v4294 = vshrl.u32 %v2282, 16
    %v4296 = vrot.slane %v4294, 4
    %v4297 = vshll.u32 %v2282, 16
    %v4299 = vrot.slane %v4297, 5
    %v4300 = vor.u32 %v4296, %v4299
    %v4301 = vrot.slane %v4300, 4
    %v4303 = vshll.u32 %v2283, 16
    %v4305 = vrot.slane %v4303, 5
    %v4306 = vsel %vm3620, %v4301, %v4305
    %v4307 = vshrl.u32 %v2283, 16
    %v4309 = vrot.slane %v4307, 4
    %v4310 = vor.u32 %v4309, %v4305
    %v4311 = vrot.slane %v4310, 4
    %v4313 = vshll.u32 %v2284, 16
    %v4315 = vrot.slane %v4313, 5
    %v4316 = vsel %vm3620, %v4311, %v4315
    %v4318 = vshrl.u32 %v2285, 16
    %v4320 = vrot.slane %v4318, 4
    %v4321 = vshll.u32 %v2285, 16
    %v4323 = vrot.slane %v4321, 5
    %v4324 = vor.u32 %v4320, %v4323
    %v4325 = vrot.slane %v4324, 4
    %v4327 = vshll.u32 %v2286, 16
    %v4329 = vrot.slane %v4327, 5
    %v4330 = vsel %vm3620, %v4325, %v4329
    %v4331 = vshrl.u32 %v2286, 16
    %v4333 = vrot.slane %v4331, 4
    %v4334 = vor.u32 %v4333, %v4329
    %v4335 = vrot.slane %v4334, 4
    %v4337 = vshll.u32 %v2287, 16
    %v4339 = vrot.slane %v4337, 5
    %v4340 = vsel %vm3620, %v4335, %v4339
    %v4342 = vshrl.u32 %v2288, 16
    %v4344 = vrot.slane %v4342, 4
    %v4345 = vshll.u32 %v2288, 16
    %v4347 = vrot.slane %v4345, 5
    %v4348 = vor.u32 %v4344, %v4347
    %v4349 = vrot.slane %v4348, 4
    %v4351 = vshll.u32 %v2289, 16
    %v4353 = vrot.slane %v4351, 5
    %v4354 = vsel %vm3620, %v4349, %v4353
    %v4355 = vshrl.u32 %v2289, 16
    %v4357 = vrot.slane %v4355, 4
    %v4358 = vor.u32 %v4357, %v4353
    %v4359 = vrot.slane %v4358, 4
    %v4361 = vshll.u32 %v2290, 16
    %v4363 = vrot.slane %v4361, 5
    %v4364 = vsel %vm3620, %v4359, %v4363
    %v4366 = vshrl.u32 %v2291, 16
    %v4368 = vrot.slane %v4366, 4
    %v4369 = vshll.u32 %v2291, 16
    %v4371 = vrot.slane %v4369, 5
    %v4372 = vor.u32 %v4368, %v4371
    %v4373 = vrot.slane %v4372, 4
    %v4375 = vshll.u32 %v2292, 16
    %v4377 = vrot.slane %v4375, 5
    %v4378 = vsel %vm3620, %v4373, %v4377
    %v4379 = vshrl.u32 %v2292, 16
    %v4381 = vrot.slane %v4379, 4
    %v4382 = vor.u32 %v4381, %v4377
    %v4383 = vrot.slane %v4382, 4
    %v4385 = vshll.u32 %v2293, 16
    %v4387 = vrot.slane %v4385, 5
    %v4388 = vsel %vm3620, %v4383, %v4387
    %s4389 = scalar_lea.vmem %s2, 32
    %v4390 = vld [vmem:[%s4389] sm:$0xf]
    %v4391 = vld [vmem:[%s4389 + $0x4] sm:$0xf]
    %v4392 = vld [vmem:[%s4389 + $0x8] sm:$0xf]
    %v4393 = vld [vmem:[%s4389 + $0xc] sm:$0xf]
    %v4394 = vld [vmem:[%s4389 + $0x10] sm:$0xf]
    %v4395 = vld [vmem:[%s4389 + $0x14] sm:$0xf]
    %v4396 = vld [vmem:[%s4389 + $0x18] sm:$0xf]
    %v4397 = vld [vmem:[%s4389 + $0x1c] sm:$0xf]
    %v4398 = vunpack.c.l.b16 %v3634
    %v4399 = vunpack.c.l.b16 %v3644
    %v4400 = vunpack.c.l.b16 %v3658
    %v4401 = vunpack.c.l.b16 %v3668
    %v4402 = vunpack.c.l.b16 %v3682
    %v4403 = vunpack.c.l.b16 %v3692
    %v4404 = vunpack.c.l.b16 %v3706
    %v4405 = vunpack.c.l.b16 %v3716
    %v4406 = vunpack.c.l.b16 %v3730
    %v4407 = vunpack.c.l.b16 %v3740
    %v4408 = vunpack.c.l.b16 %v3754
    %v4409 = vunpack.c.l.b16 %v3764
    %v4410 = vunpack.c.l.b16 %v3778
    %v4411 = vunpack.c.l.b16 %v3788
    %v4412 = vunpack.c.l.b16 %v3802
    %v4413 = vunpack.c.l.b16 %v3812
    %v4414 = vunpack.c.l.b16 %v3826
    %v4415 = vunpack.c.l.b16 %v3836
    %v4416 = vunpack.c.l.b16 %v3850
    %v4417 = vunpack.c.l.b16 %v3860
    %v4418 = vunpack.c.l.b16 %v3874
    %v4419 = vunpack.c.l.b16 %v3884
    %v4420 = vunpack.c.l.b16 %v3898
    %v4421 = vunpack.c.l.b16 %v3908
    %v4422 = vunpack.c.l.b16 %v3922
    %v4423 = vunpack.c.l.b16 %v3932
    %v4424 = vunpack.c.l.b16 %v3946
    %v4425 = vunpack.c.l.b16 %v3956
    %v4426 = vunpack.c.l.b16 %v3970
    %v4427 = vunpack.c.l.b16 %v3980
    %v4428 = vunpack.c.l.b16 %v3994
    %v4429 = vunpack.c.l.b16 %v4004
    %v4430 = vunpack.c.l.b16 %v4018
    %v4431 = vunpack.c.l.b16 %v4028
    %v4432 = vunpack.c.l.b16 %v4042
    %v4433 = vunpack.c.l.b16 %v4052
    %v4434 = vunpack.c.l.b16 %v4066
    %v4435 = vunpack.c.l.b16 %v4076
    %v4436 = vunpack.c.l.b16 %v4090
    %v4437 = vunpack.c.l.b16 %v4100
    %v4438 = vunpack.c.l.b16 %v4114
    %v4439 = vunpack.c.l.b16 %v4124
    %v4440 = vunpack.c.l.b16 %v4138
    %v4441 = vunpack.c.l.b16 %v4148
    %v4442 = vunpack.c.l.b16 %v4162
    %v4443 = vunpack.c.l.b16 %v4172
    %v4444 = vunpack.c.l.b16 %v4186
    %v4445 = vunpack.c.l.b16 %v4196
    %v4446 = vunpack.c.l.b16 %v4210
    %v4447 = vunpack.c.l.b16 %v4220
    %v4448 = vunpack.c.l.b16 %v4234
    %v4449 = vunpack.c.l.b16 %v4244
    %v4450 = vunpack.c.l.b16 %v4258
    %v4451 = vunpack.c.l.b16 %v4268
    %v4452 = vunpack.c.l.b16 %v4282
    %v4453 = vunpack.c.l.b16 %v4292
    %v4454 = vunpack.c.l.b16 %v4306
    %v4455 = vunpack.c.l.b16 %v4316
    %v4456 = vunpack.c.l.b16 %v4330
    %v4457 = vunpack.c.l.b16 %v4340
    %v4458 = vunpack.c.l.b16 %v4354
    %v4459 = vunpack.c.l.b16 %v4364
    %v4460 = vunpack.c.l.b16 %v4378
    %v4461 = vunpack.c.l.b16 %v4388
    %v4462 = vpack.c.b16 %v4399, %v4398
    %v4463 = vpack.c.b16 %v4401, %v4400
    %v4464 = vpack.c.b16 %v4403, %v4402
    %v4465 = vpack.c.b16 %v4405, %v4404
    %v4466 = vpack.c.b16 %v4407, %v4406
    %v4467 = vpack.c.b16 %v4409, %v4408
    %v4468 = vpack.c.b16 %v4411, %v4410
    %v4469 = vpack.c.b16 %v4413, %v4412
    %v4470 = vpack.c.b16 %v4415, %v4414
    %v4471 = vpack.c.b16 %v4417, %v4416
    %v4472 = vpack.c.b16 %v4419, %v4418
    %v4473 = vpack.c.b16 %v4421, %v4420
    %v4474 = vpack.c.b16 %v4423, %v4422
    %v4475 = vpack.c.b16 %v4425, %v4424
    %v4476 = vpack.c.b16 %v4427, %v4426
    %v4477 = vpack.c.b16 %v4429, %v4428
    %v4478 = vpack.c.b16 %v4431, %v4430
    %v4479 = vpack.c.b16 %v4433, %v4432
    %v4480 = vpack.c.b16 %v4435, %v4434
    %v4481 = vpack.c.b16 %v4437, %v4436
    %v4482 = vpack.c.b16 %v4439, %v4438
    %v4483 = vpack.c.b16 %v4441, %v4440
    %v4484 = vpack.c.b16 %v4443, %v4442
    %v4485 = vpack.c.b16 %v4445, %v4444
    %v4486 = vpack.c.b16 %v4447, %v4446
    %v4487 = vpack.c.b16 %v4449, %v4448
    %v4488 = vpack.c.b16 %v4451, %v4450
    %v4489 = vpack.c.b16 %v4453, %v4452
    %v4490 = vpack.c.b16 %v4455, %v4454
    %v4491 = vpack.c.b16 %v4457, %v4456
    %v4492 = vpack.c.b16 %v4459, %v4458
    %v4493 = vpack.c.b16 %v4461, %v4460
    %v4502 = vunpack.c.l.b16 %v4390
    %v4503 = vunpack.c.l.b16 %v4391
    %v4504 = vunpack.c.l.b16 %v4392
    %v4505 = vunpack.c.l.b16 %v4393
    %v4506 = vunpack.c.l.b16 %v4394
    %v4507 = vunpack.c.l.b16 %v4395
    %v4508 = vunpack.c.l.b16 %v4396
    %v4509 = vunpack.c.l.b16 %v4397
    %v4510 = vpack.c.b16 %v4503, %v4502
    %v4511 = vpack.c.b16 %v4505, %v4504
    %v4512 = vpack.c.b16 %v4507, %v4506
    %v4513 = vpack.c.b16 %v4509, %v4508
    %v4519 = vsel %vm2501, %v4462, 0
    %v4522 = vsel %vm2501, %v4463, 0
    %v4525 = vsel %vm2501, %v4464, 0
    %v4528 = vsel %vm2501, %v4465, 0
    %v4531 = vsel %vm2501, %v4466, 0
    %v4534 = vsel %vm2501, %v4467, 0
    %v4537 = vsel %vm2501, %v4468, 0
    %v4540 = vsel %vm2501, %v4469, 0
    %v4543 = vsel %vm2501, %v4470, 0
    %v4546 = vsel %vm2501, %v4471, 0
    %v4549 = vsel %vm2501, %v4472, 0
    %v4552 = vsel %vm2501, %v4473, 0
    %v4555 = vsel %vm2501, %v4474, 0
    %v4558 = vsel %vm2501, %v4475, 0
    %v4561 = vsel %vm2501, %v4476, 0
    %v4564 = vsel %vm2501, %v4477, 0
    %v4567 = vsel %vm2501, %v4478, 0
    %v4570 = vsel %vm2501, %v4479, 0
    %v4573 = vsel %vm2501, %v4480, 0
    %v4576 = vsel %vm2501, %v4481, 0
    %v4579 = vsel %vm2501, %v4482, 0
    %v4582 = vsel %vm2501, %v4483, 0
    %v4585 = vsel %vm2501, %v4484, 0
    %v4588 = vsel %vm2501, %v4485, 0
    %v4591 = vsel %vm2501, %v4486, 0
    %v4594 = vsel %vm2501, %v4487, 0
    %v4597 = vsel %vm2501, %v4488, 0
    %v4600 = vsel %vm2501, %v4489, 0
    %v4603 = vsel %vm2501, %v4490, 0
    %v4606 = vsel %vm2501, %v4491, 0
    %v4609 = vsel %vm2501, %v4492, 0
    %v4612 = vsel %vm2501, %v4493, 0
    %4614 = vmatprep.subr.bf16.mxu0 0
    %4615 = vmatpush1.bf16.msra.mxu0 0
    %4616 = vmatprep.subr.bf16.mxu0 0
    %4617 = vmatpush1.bf16.msra.mxu0 0
    %4618 = vmatprep.subr.bf16.mxu0 0
    %4619 = vmatpush1.bf16.msra.mxu0 0
    %4620 = vmatprep.subr.bf16.mxu0 0
    %4621 = vmatpush1.bf16.msra.mxu0 0
    %4622 = vmatprep.subr.bf16.mxu0 0
    %4623 = vmatpush1.bf16.msra.mxu0 %v4513
    %4624 = vmatprep.subr.bf16.mxu0 0
    %4625 = vmatpush1.bf16.msra.mxu0 %v4512
    %4626 = vmatprep.subr.bf16.mxu0 0
    %4627 = vmatpush1.bf16.msra.mxu0 %v4511
    %4628 = vmatprep.subr.bf16.mxu0 0
    %4629 = vmatpush1.bf16.msra.mxu0 %v4510
    %4630 = vmatprep.subr.bf16.mxu0 0
    %4631 = vmatpush2.bf16.msra.mxu0 0
    %4632 = vmatprep.subr.bf16.mxu0 0
    %4633 = vmatpush2.bf16.msra.mxu0 0
    %4634 = vmatprep.subr.bf16.mxu0 0
    %4635 = vmatpush2.bf16.msra.mxu0 0
    %4636 = vmatprep.subr.bf16.mxu0 0
    %4637 = vmatpush2.bf16.msra.mxu0 0
    %4638 = vmatprep.subr.bf16.mxu0 0
    %4639 = vmatpush2.bf16.msra.mxu0 0
    %4640 = vmatprep.subr.bf16.mxu0 0
    %4641 = vmatpush2.bf16.msra.mxu0 0
    %4642 = vmatprep.subr.bf16.mxu0 0
    %4643 = vmatpush2.bf16.msra.mxu0 0
    %4644 = vmatprep.subr.bf16.mxu0 0
    %4645 = vmatpush2.bf16.msra.mxu0 0
    %4646 = vmatprep.mubr.bf16.mxu0 0
    %4647 = vmatmul.mubr.bf16.gmra.mxu0 %v4519
    %v4648 = vpop.f32.mrf.mxu0
    %v4649 = vadd.f32 0.0, %v4648
    %v4650 = vpop.f32.mrf.mxu0
    %v4651 = vpop.f32.mrf.mxu0
    %v4652 = vadd.f32 0.0, %v4651
    %v4653 = vpop.f32.mrf.mxu0
    %4654 = vmatprep.mubr.bf16.mxu0 0
    %4655 = vmatmul.mubr.bf16.gmra.mxu0 %v4522
    %v4656 = vpop.f32.mrf.mxu0
    %v4657 = vadd.f32 0.0, %v4656
    %v4658 = vpop.f32.mrf.mxu0
    %v4659 = vpop.f32.mrf.mxu0
    %v4660 = vadd.f32 0.0, %v4659
    %v4661 = vpop.f32.mrf.mxu0
    %4662 = vmatprep.mubr.bf16.mxu0 0
    %4663 = vmatmul.mubr.bf16.gmra.mxu0 %v4525
    %v4664 = vpop.f32.mrf.mxu0
    %v4665 = vadd.f32 0.0, %v4664
    %v4666 = vpop.f32.mrf.mxu0
    %v4667 = vpop.f32.mrf.mxu0
    %v4668 = vadd.f32 0.0, %v4667
    %v4669 = vpop.f32.mrf.mxu0
    %4670 = vmatprep.mubr.bf16.mxu0 0
    %4671 = vmatmul.mubr.bf16.gmra.mxu0 %v4528
    %v4672 = vpop.f32.mrf.mxu0
    %v4673 = vadd.f32 0.0, %v4672
    %v4674 = vpop.f32.mrf.mxu0
    %v4675 = vpop.f32.mrf.mxu0
    %v4676 = vadd.f32 0.0, %v4675
    %v4677 = vpop.f32.mrf.mxu0
    %4678 = vmatprep.mubr.bf16.mxu0 0
    %4679 = vmatmul.mubr.bf16.gmra.mxu0 %v4531
    %v4680 = vpop.f32.mrf.mxu0
    %v4681 = vadd.f32 0.0, %v4680
    %v4682 = vpop.f32.mrf.mxu0
    %v4683 = vpop.f32.mrf.mxu0
    %v4684 = vadd.f32 0.0, %v4683
    %v4685 = vpop.f32.mrf.mxu0
    %4686 = vmatprep.mubr.bf16.mxu0 0
    %4687 = vmatmul.mubr.bf16.gmra.mxu0 %v4534
    %v4688 = vpop.f32.mrf.mxu0
    %v4689 = vadd.f32 0.0, %v4688
    %v4690 = vpop.f32.mrf.mxu0
    %v4691 = vpop.f32.mrf.mxu0
    %v4692 = vadd.f32 0.0, %v4691
    %v4693 = vpop.f32.mrf.mxu0
    %4694 = vmatprep.mubr.bf16.mxu0 0
    %4695 = vmatmul.mubr.bf16.gmra.mxu0 %v4537
    %v4696 = vpop.f32.mrf.mxu0
    %v4697 = vadd.f32 0.0, %v4696
    %v4698 = vpop.f32.mrf.mxu0
    %v4699 = vpop.f32.mrf.mxu0
    %v4700 = vadd.f32 0.0, %v4699
    %v4701 = vpop.f32.mrf.mxu0
    %4702 = vmatprep.mubr.bf16.mxu0 0
    %4703 = vmatmul.mubr.bf16.gmra.mxu0 %v4540
    %v4704 = vpop.f32.mrf.mxu0
    %v4705 = vadd.f32 0.0, %v4704
    %v4706 = vpop.f32.mrf.mxu0
    %v4707 = vpop.f32.mrf.mxu0
    %v4708 = vadd.f32 0.0, %v4707
    %v4709 = vpop.f32.mrf.mxu0
    %4710 = vmatprep.mubr.bf16.mxu0 0
    %4711 = vmatmul.mubr.bf16.gmra.mxu0 %v4543
    %v4712 = vpop.f32.mrf.mxu0
    %v4713 = vadd.f32 0.0, %v4712
    %v4714 = vpop.f32.mrf.mxu0
    %v4715 = vpop.f32.mrf.mxu0
    %v4716 = vadd.f32 0.0, %v4715
    %v4717 = vpop.f32.mrf.mxu0
    %4718 = vmatprep.mubr.bf16.mxu0 0
    %4719 = vmatmul.mubr.bf16.gmra.mxu0 %v4546
    %v4720 = vpop.f32.mrf.mxu0
    %v4721 = vadd.f32 0.0, %v4720
    %v4722 = vpop.f32.mrf.mxu0
    %v4723 = vpop.f32.mrf.mxu0
    %v4724 = vadd.f32 0.0, %v4723
    %v4725 = vpop.f32.mrf.mxu0
    %4726 = vmatprep.mubr.bf16.mxu0 0
    %4727 = vmatmul.mubr.bf16.gmra.mxu0 %v4549
    %v4728 = vpop.f32.mrf.mxu0
    %v4729 = vadd.f32 0.0, %v4728
    %v4730 = vpop.f32.mrf.mxu0
    %v4731 = vpop.f32.mrf.mxu0
    %v4732 = vadd.f32 0.0, %v4731
    %v4733 = vpop.f32.mrf.mxu0
    %4734 = vmatprep.mubr.bf16.mxu0 0
    %4735 = vmatmul.mubr.bf16.gmra.mxu0 %v4552
    %v4736 = vpop.f32.mrf.mxu0
    %v4737 = vadd.f32 0.0, %v4736
    %v4738 = vpop.f32.mrf.mxu0
    %v4739 = vpop.f32.mrf.mxu0
    %v4740 = vadd.f32 0.0, %v4739
    %v4741 = vpop.f32.mrf.mxu0
    %4742 = vmatprep.mubr.bf16.mxu0 0
    %4743 = vmatmul.mubr.bf16.gmra.mxu0 %v4555
    %v4744 = vpop.f32.mrf.mxu0
    %v4745 = vadd.f32 0.0, %v4744
    %v4746 = vpop.f32.mrf.mxu0
    %v4747 = vpop.f32.mrf.mxu0
    %v4748 = vadd.f32 0.0, %v4747
    %v4749 = vpop.f32.mrf.mxu0
    %4750 = vmatprep.mubr.bf16.mxu0 0
    %4751 = vmatmul.mubr.bf16.gmra.mxu0 %v4558
    %v4752 = vpop.f32.mrf.mxu0
    %v4753 = vadd.f32 0.0, %v4752
    %v4754 = vpop.f32.mrf.mxu0
    %v4755 = vpop.f32.mrf.mxu0
    %v4756 = vadd.f32 0.0, %v4755
    %v4757 = vpop.f32.mrf.mxu0
    %4758 = vmatprep.mubr.bf16.mxu0 0
    %4759 = vmatmul.mubr.bf16.gmra.mxu0 %v4561
    %v4760 = vpop.f32.mrf.mxu0
    %v4761 = vadd.f32 0.0, %v4760
    %v4762 = vpop.f32.mrf.mxu0
    %v4763 = vpop.f32.mrf.mxu0
    %v4764 = vadd.f32 0.0, %v4763
    %v4765 = vpop.f32.mrf.mxu0
    %4766 = vmatprep.mubr.bf16.mxu0 0
    %4767 = vmatmul.mubr.bf16.gmra.mxu0 %v4564
    %v4768 = vpop.f32.mrf.mxu0
    %v4769 = vadd.f32 0.0, %v4768
    %v4770 = vpop.f32.mrf.mxu0
    %v4771 = vpop.f32.mrf.mxu0
    %v4772 = vadd.f32 0.0, %v4771
    %v4773 = vpop.f32.mrf.mxu0
    %4774 = vmatprep.mubr.bf16.mxu0 0
    %4775 = vmatmul.mubr.bf16.gmra.mxu0 %v4567
    %v4776 = vpop.f32.mrf.mxu0
    %v4777 = vadd.f32 0.0, %v4776
    %v4778 = vpop.f32.mrf.mxu0
    %v4779 = vpop.f32.mrf.mxu0
    %v4780 = vadd.f32 0.0, %v4779
    %v4781 = vpop.f32.mrf.mxu0
    %4782 = vmatprep.mubr.bf16.mxu0 0
    %4783 = vmatmul.mubr.bf16.gmra.mxu0 %v4570
    %v4784 = vpop.f32.mrf.mxu0
    %v4785 = vadd.f32 0.0, %v4784
    %v4786 = vpop.f32.mrf.mxu0
    %v4787 = vpop.f32.mrf.mxu0
    %v4788 = vadd.f32 0.0, %v4787
    %v4789 = vpop.f32.mrf.mxu0
    %4790 = vmatprep.mubr.bf16.mxu0 0
    %4791 = vmatmul.mubr.bf16.gmra.mxu0 %v4573
    %v4792 = vpop.f32.mrf.mxu0
    %v4793 = vadd.f32 0.0, %v4792
    %v4794 = vpop.f32.mrf.mxu0
    %v4795 = vpop.f32.mrf.mxu0
    %v4796 = vadd.f32 0.0, %v4795
    %v4797 = vpop.f32.mrf.mxu0
    %4798 = vmatprep.mubr.bf16.mxu0 0
    %4799 = vmatmul.mubr.bf16.gmra.mxu0 %v4576
    %v4800 = vpop.f32.mrf.mxu0
    %v4801 = vadd.f32 0.0, %v4800
    %v4802 = vpop.f32.mrf.mxu0
    %v4803 = vpop.f32.mrf.mxu0
    %v4804 = vadd.f32 0.0, %v4803
    %v4805 = vpop.f32.mrf.mxu0
    %4806 = vmatprep.mubr.bf16.mxu0 0
    %4807 = vmatmul.mubr.bf16.gmra.mxu0 %v4579
    %v4808 = vpop.f32.mrf.mxu0
    %v4809 = vadd.f32 0.0, %v4808
    %v4810 = vpop.f32.mrf.mxu0
    %v4811 = vpop.f32.mrf.mxu0
    %v4812 = vadd.f32 0.0, %v4811
    %v4813 = vpop.f32.mrf.mxu0
    %4814 = vmatprep.mubr.bf16.mxu0 0
    %4815 = vmatmul.mubr.bf16.gmra.mxu0 %v4582
    %v4816 = vpop.f32.mrf.mxu0
    %v4817 = vadd.f32 0.0, %v4816
    %v4818 = vpop.f32.mrf.mxu0
    %v4819 = vpop.f32.mrf.mxu0
    %v4820 = vadd.f32 0.0, %v4819
    %v4821 = vpop.f32.mrf.mxu0
    %4822 = vmatprep.mubr.bf16.mxu0 0
    %4823 = vmatmul.mubr.bf16.gmra.mxu0 %v4585
    %v4824 = vpop.f32.mrf.mxu0
    %v4825 = vadd.f32 0.0, %v4824
    %v4826 = vpop.f32.mrf.mxu0
    %v4827 = vpop.f32.mrf.mxu0
    %v4828 = vadd.f32 0.0, %v4827
    %v4829 = vpop.f32.mrf.mxu0
    %4830 = vmatprep.mubr.bf16.mxu0 0
    %4831 = vmatmul.mubr.bf16.gmra.mxu0 %v4588
    %v4832 = vpop.f32.mrf.mxu0
    %v4833 = vadd.f32 0.0, %v4832
    %v4834 = vpop.f32.mrf.mxu0
    %v4835 = vpop.f32.mrf.mxu0
    %v4836 = vadd.f32 0.0, %v4835
    %v4837 = vpop.f32.mrf.mxu0
    %4838 = vmatprep.mubr.bf16.mxu0 0
    %4839 = vmatmul.mubr.bf16.gmra.mxu0 %v4591
    %v4840 = vpop.f32.mrf.mxu0
    %v4841 = vadd.f32 0.0, %v4840
    %v4842 = vpop.f32.mrf.mxu0
    %v4843 = vpop.f32.mrf.mxu0
    %v4844 = vadd.f32 0.0, %v4843
    %v4845 = vpop.f32.mrf.mxu0
    %4846 = vmatprep.mubr.bf16.mxu0 0
    %4847 = vmatmul.mubr.bf16.gmra.mxu0 %v4594
    %v4848 = vpop.f32.mrf.mxu0
    %v4849 = vadd.f32 0.0, %v4848
    %v4850 = vpop.f32.mrf.mxu0
    %v4851 = vpop.f32.mrf.mxu0
    %v4852 = vadd.f32 0.0, %v4851
    %v4853 = vpop.f32.mrf.mxu0
    %4854 = vmatprep.mubr.bf16.mxu0 0
    %4855 = vmatmul.mubr.bf16.gmra.mxu0 %v4597
    %v4856 = vpop.f32.mrf.mxu0
    %v4857 = vadd.f32 0.0, %v4856
    %v4858 = vpop.f32.mrf.mxu0
    %v4859 = vpop.f32.mrf.mxu0
    %v4860 = vadd.f32 0.0, %v4859
    %v4861 = vpop.f32.mrf.mxu0
    %4862 = vmatprep.mubr.bf16.mxu0 0
    %4863 = vmatmul.mubr.bf16.gmra.mxu0 %v4600
    %v4864 = vpop.f32.mrf.mxu0
    %v4865 = vadd.f32 0.0, %v4864
    %v4866 = vpop.f32.mrf.mxu0
    %v4867 = vpop.f32.mrf.mxu0
    %v4868 = vadd.f32 0.0, %v4867
    %v4869 = vpop.f32.mrf.mxu0
    %4870 = vmatprep.mubr.bf16.mxu0 0
    %4871 = vmatmul.mubr.bf16.gmra.mxu0 %v4603
    %v4872 = vpop.f32.mrf.mxu0
    %v4873 = vadd.f32 0.0, %v4872
    %v4874 = vpop.f32.mrf.mxu0
    %v4875 = vpop.f32.mrf.mxu0
    %v4876 = vadd.f32 0.0, %v4875
    %v4877 = vpop.f32.mrf.mxu0
    %4878 = vmatprep.mubr.bf16.mxu0 0
    %4879 = vmatmul.mubr.bf16.gmra.mxu0 %v4606
    %v4880 = vpop.f32.mrf.mxu0
    %v4881 = vadd.f32 0.0, %v4880
    %v4882 = vpop.f32.mrf.mxu0
    %v4883 = vpop.f32.mrf.mxu0
    %v4884 = vadd.f32 0.0, %v4883
    %v4885 = vpop.f32.mrf.mxu0
    %4886 = vmatprep.mubr.bf16.mxu0 0
    %4887 = vmatmul.mubr.bf16.gmra.mxu0 %v4609
    %v4888 = vpop.f32.mrf.mxu0
    %v4889 = vadd.f32 0.0, %v4888
    %v4890 = vpop.f32.mrf.mxu0
    %v4891 = vpop.f32.mrf.mxu0
    %v4892 = vadd.f32 0.0, %v4891
    %v4893 = vpop.f32.mrf.mxu0
    %4894 = vmatprep.mubr.bf16.mxu0 0
    %4895 = vmatmul.mubr.bf16.gmra.mxu0 %v4612
    %v4896 = vpop.f32.mrf.mxu0
    %v4897 = vadd.f32 0.0, %v4896
    %v4898 = vpop.f32.mrf.mxu0
    %v4899 = vpop.f32.mrf.mxu0
    %v4900 = vadd.f32 0.0, %v4899
    %v4901 = vpop.f32.mrf.mxu0
    %4902 = vdwg.mxu0
    %v4903 = vadd.f32 %v3554, %v4649
    %v4904 = vadd.f32 %v3555, %v4652
    %v4905 = vadd.f32 %v3556, %v4657
    %v4906 = vadd.f32 %v3557, %v4660
    %v4907 = vadd.f32 %v3558, %v4665
    %v4908 = vadd.f32 %v3559, %v4668
    %v4909 = vadd.f32 %v3560, %v4673
    %v4910 = vadd.f32 %v3561, %v4676
    %v4911 = vadd.f32 %v3562, %v4681
    %v4912 = vadd.f32 %v3563, %v4684
    %v4913 = vadd.f32 %v3564, %v4689
    %v4914 = vadd.f32 %v3565, %v4692
    %v4915 = vadd.f32 %v3566, %v4697
    %v4916 = vadd.f32 %v3567, %v4700
    %v4917 = vadd.f32 %v3568, %v4705
    %v4918 = vadd.f32 %v3569, %v4708
    %v4919 = vadd.f32 %v3570, %v4713
    %v4920 = vadd.f32 %v3571, %v4716
    %v4921 = vadd.f32 %v3572, %v4721
    %v4922 = vadd.f32 %v3573, %v4724
    %v4923 = vadd.f32 %v3574, %v4729
    %v4924 = vadd.f32 %v3575, %v4732
    %v4925 = vadd.f32 %v3576, %v4737
    %v4926 = vadd.f32 %v3577, %v4740
    %v4927 = vadd.f32 %v3578, %v4745
    %v4928 = vadd.f32 %v3579, %v4748
    %v4929 = vadd.f32 %v3580, %v4753
    %v4930 = vadd.f32 %v3581, %v4756
    %v4931 = vadd.f32 %v3582, %v4761
    %v4932 = vadd.f32 %v3583, %v4764
    %v4933 = vadd.f32 %v3584, %v4769
    %v4934 = vadd.f32 %v3585, %v4772
    %v4935 = vadd.f32 %v3586, %v4777
    %v4936 = vadd.f32 %v3587, %v4780
    %v4937 = vadd.f32 %v3588, %v4785
    %v4938 = vadd.f32 %v3589, %v4788
    %v4939 = vadd.f32 %v3590, %v4793
    %v4940 = vadd.f32 %v3591, %v4796
    %v4941 = vadd.f32 %v3592, %v4801
    %v4942 = vadd.f32 %v3593, %v4804
    %v4943 = vadd.f32 %v3594, %v4809
    %v4944 = vadd.f32 %v3595, %v4812
    %v4945 = vadd.f32 %v3596, %v4817
    %v4946 = vadd.f32 %v3597, %v4820
    %v4947 = vadd.f32 %v3598, %v4825
    %v4948 = vadd.f32 %v3599, %v4828
    %v4949 = vadd.f32 %v3600, %v4833
    %v4950 = vadd.f32 %v3601, %v4836
    %v4951 = vadd.f32 %v3602, %v4841
    %v4952 = vadd.f32 %v3603, %v4844
    %v4953 = vadd.f32 %v3604, %v4849
    %v4954 = vadd.f32 %v3605, %v4852
    %v4955 = vadd.f32 %v3606, %v4857
    %v4956 = vadd.f32 %v3607, %v4860
    %v4957 = vadd.f32 %v3608, %v4865
    %v4958 = vadd.f32 %v3609, %v4868
    %v4959 = vadd.f32 %v3610, %v4873
    %v4960 = vadd.f32 %v3611, %v4876
    %v4961 = vadd.f32 %v3612, %v4881
    %v4962 = vadd.f32 %v3613, %v4884
    %v4963 = vadd.f32 %v3614, %v4889
    %v4964 = vadd.f32 %v3615, %v4892
    %v4965 = vadd.f32 %v3616, %v4897
    %v4966 = vadd.f32 %v3617, %v4900
    %v4968 = vshrl.u32 %v2240, 16
    %v4970 = vrot.slane %v4968, 4
    %v4971 = vshll.u32 %v2240, 16
    %v4973 = vrot.slane %v4971, 5
    %v4974 = vor.u32 %v4970, %v4973
    %v4975 = vrot.slane %v4974, 4
    %v4977 = vshll.u32 %v2241, 16
    %v4979 = vrot.slane %v4977, 5
    %v4980 = vsel %vm3620, %v4975, %v4979
    %v4981 = vshrl.u32 %v2241, 16
    %v4983 = vrot.slane %v4981, 4
    %v4984 = vor.u32 %v4983, %v4979
    %v4985 = vrot.slane %v4984, 4
    %v4987 = vshll.u32 %v2242, 16
    %v4989 = vrot.slane %v4987, 5
    %v4990 = vsel %vm3620, %v4985, %v4989
    %v4992 = vshrl.u32 %v2294, 16
    %v4994 = vrot.slane %v4992, 4
    %v4995 = vshll.u32 %v2294, 16
    %v4997 = vrot.slane %v4995, 5
    %v4998 = vor.u32 %v4994, %v4997
    %v4999 = vrot.slane %v4998, 4
    %v5001 = vshll.u32 %v2295, 16
    %v5003 = vrot.slane %v5001, 5
    %v5004 = vsel %vm3620, %v4999, %v5003
    %v5005 = vshrl.u32 %v2295, 16
    %v5007 = vrot.slane %v5005, 4
    %v5008 = vor.u32 %v5007, %v5003
    %v5009 = vrot.slane %v5008, 4
    %v5011 = vshll.u32 %v2296, 16
    %v5013 = vrot.slane %v5011, 5
    %v5014 = vsel %vm3620, %v5009, %v5013
    %s5015 = scalar_lea.vmem %s2, 128
    %v5016 = vld [vmem:[%s5015] sm:$0xf]
    %v5017 = vld [vmem:[%s5015 + $0x4] sm:$0xf]
    %v5018 = vld [vmem:[%s5015 + $0x8] sm:$0xf]
    %v5019 = vld [vmem:[%s5015 + $0xc] sm:$0xf]
    %v5020 = vld [vmem:[%s5015 + $0x10] sm:$0xf]
    %v5021 = vld [vmem:[%s5015 + $0x14] sm:$0xf]
    %v5022 = vld [vmem:[%s5015 + $0x18] sm:$0xf]
    %v5023 = vld [vmem:[%s5015 + $0x1c] sm:$0xf]
    %v5024 = vunpack.c.l.b16 %v4980
    %v5025 = vunpack.c.l.b16 %v4990
    %v5026 = vunpack.c.l.b16 %v5004
    %v5027 = vunpack.c.l.b16 %v5014
    %v5028 = vpack.c.b16 %v5025, %v5024
    %v5029 = vpack.c.b16 %v5027, %v5026
    %v5038 = vunpack.c.l.b16 %v5016
    %v5039 = vunpack.c.l.b16 %v5017
    %v5040 = vunpack.c.l.b16 %v5018
    %v5041 = vunpack.c.l.b16 %v5019
    %v5042 = vunpack.c.l.b16 %v5020
    %v5043 = vunpack.c.l.b16 %v5021
    %v5044 = vunpack.c.l.b16 %v5022
    %v5045 = vunpack.c.l.b16 %v5023
    %v5046 = vpack.c.b16 %v5039, %v5038
    %v5047 = vpack.c.b16 %v5041, %v5040
    %v5048 = vpack.c.b16 %v5043, %v5042
    %v5049 = vpack.c.b16 %v5045, %v5044
    %v5055 = vsel %vm2501, %v5028, 0
    %v5058 = vsel %vm2501, %v5029, 0
    %5060 = vmatprep.subr.bf16.mxu0 0
    %5061 = vmatpush1.bf16.msra.mxu0 0
    %5062 = vmatprep.subr.bf16.mxu0 0
    %5063 = vmatpush1.bf16.msra.mxu0 0
    %5064 = vmatprep.subr.bf16.mxu0 0
    %5065 = vmatpush1.bf16.msra.mxu0 0
    %5066 = vmatprep.subr.bf16.mxu0 0
    %5067 = vmatpush1.bf16.msra.mxu0 0
    %5068 = vmatprep.subr.bf16.mxu0 0
    %5069 = vmatpush1.bf16.msra.mxu0 %v5049
    %5070 = vmatprep.subr.bf16.mxu0 0
    %5071 = vmatpush1.bf16.msra.mxu0 %v5048
    %5072 = vmatprep.subr.bf16.mxu0 0
    %5073 = vmatpush1.bf16.msra.mxu0 %v5047
    %5074 = vmatprep.subr.bf16.mxu0 0
    %5075 = vmatpush1.bf16.msra.mxu0 %v5046
    %5076 = vmatprep.subr.bf16.mxu0 0
    %5077 = vmatpush2.bf16.msra.mxu0 0
    %5078 = vmatprep.subr.bf16.mxu0 0
    %5079 = vmatpush2.bf16.msra.mxu0 0
    %5080 = vmatprep.subr.bf16.mxu0 0
    %5081 = vmatpush2.bf16.msra.mxu0 0
    %5082 = vmatprep.subr.bf16.mxu0 0
    %5083 = vmatpush2.bf16.msra.mxu0 0
    %5084 = vmatprep.subr.bf16.mxu0 0
    %5085 = vmatpush2.bf16.msra.mxu0 0
    %5086 = vmatprep.subr.bf16.mxu0 0
    %5087 = vmatpush2.bf16.msra.mxu0 0
    %5088 = vmatprep.subr.bf16.mxu0 0
    %5089 = vmatpush2.bf16.msra.mxu0 0
    %5090 = vmatprep.subr.bf16.mxu0 0
    %5091 = vmatpush2.bf16.msra.mxu0 0
    %5092 = vmatprep.mubr.bf16.mxu0 0
    %5093 = vmatmul.mubr.bf16.gmra.mxu0 %v4522
    %v5094 = vpop.f32.mrf.mxu0
    %v5095 = vadd.f32 0.0, %v5094
    %v5096 = vpop.f32.mrf.mxu0
    %v5097 = vpop.f32.mrf.mxu0
    %v5098 = vadd.f32 0.0, %v5097
    %v5099 = vpop.f32.mrf.mxu0
    %5100 = vmatprep.mubr.bf16.mxu0 0
    %5101 = vmatmul.mubr.bf16.gmra.mxu0 %v4525
    %v5102 = vpop.f32.mrf.mxu0
    %v5103 = vadd.f32 0.0, %v5102
    %v5104 = vpop.f32.mrf.mxu0
    %v5105 = vpop.f32.mrf.mxu0
    %v5106 = vadd.f32 0.0, %v5105
    %v5107 = vpop.f32.mrf.mxu0
    %5108 = vmatprep.mubr.bf16.mxu0 0
    %5109 = vmatmul.mubr.bf16.gmra.mxu0 %v4528
    %v5110 = vpop.f32.mrf.mxu0
    %v5111 = vadd.f32 0.0, %v5110
    %v5112 = vpop.f32.mrf.mxu0
    %v5113 = vpop.f32.mrf.mxu0
    %v5114 = vadd.f32 0.0, %v5113
    %v5115 = vpop.f32.mrf.mxu0
    %5116 = vmatprep.mubr.bf16.mxu0 0
    %5117 = vmatmul.mubr.bf16.gmra.mxu0 %v4531
    %v5118 = vpop.f32.mrf.mxu0
    %v5119 = vadd.f32 0.0, %v5118
    %v5120 = vpop.f32.mrf.mxu0
    %v5121 = vpop.f32.mrf.mxu0
    %v5122 = vadd.f32 0.0, %v5121
    %v5123 = vpop.f32.mrf.mxu0
    %5124 = vmatprep.mubr.bf16.mxu0 0
    %5125 = vmatmul.mubr.bf16.gmra.mxu0 %v4534
    %v5126 = vpop.f32.mrf.mxu0
    %v5127 = vadd.f32 0.0, %v5126
    %v5128 = vpop.f32.mrf.mxu0
    %v5129 = vpop.f32.mrf.mxu0
    %v5130 = vadd.f32 0.0, %v5129
    %v5131 = vpop.f32.mrf.mxu0
    %5132 = vmatprep.mubr.bf16.mxu0 0
    %5133 = vmatmul.mubr.bf16.gmra.mxu0 %v4537
    %v5134 = vpop.f32.mrf.mxu0
    %v5135 = vadd.f32 0.0, %v5134
    %v5136 = vpop.f32.mrf.mxu0
    %v5137 = vpop.f32.mrf.mxu0
    %v5138 = vadd.f32 0.0, %v5137
    %v5139 = vpop.f32.mrf.mxu0
    %5140 = vmatprep.mubr.bf16.mxu0 0
    %5141 = vmatmul.mubr.bf16.gmra.mxu0 %v4540
    %v5142 = vpop.f32.mrf.mxu0
    %v5143 = vadd.f32 0.0, %v5142
    %v5144 = vpop.f32.mrf.mxu0
    %v5145 = vpop.f32.mrf.mxu0
    %v5146 = vadd.f32 0.0, %v5145
    %v5147 = vpop.f32.mrf.mxu0
    %5148 = vmatprep.mubr.bf16.mxu0 0
    %5149 = vmatmul.mubr.bf16.gmra.mxu0 %v4543
    %v5150 = vpop.f32.mrf.mxu0
    %v5151 = vadd.f32 0.0, %v5150
    %v5152 = vpop.f32.mrf.mxu0
    %v5153 = vpop.f32.mrf.mxu0
    %v5154 = vadd.f32 0.0, %v5153
    %v5155 = vpop.f32.mrf.mxu0
    %5156 = vmatprep.mubr.bf16.mxu0 0
    %5157 = vmatmul.mubr.bf16.gmra.mxu0 %v4546
    %v5158 = vpop.f32.mrf.mxu0
    %v5159 = vadd.f32 0.0, %v5158
    %v5160 = vpop.f32.mrf.mxu0
    %v5161 = vpop.f32.mrf.mxu0
    %v5162 = vadd.f32 0.0, %v5161
    %v5163 = vpop.f32.mrf.mxu0
    %5164 = vmatprep.mubr.bf16.mxu0 0
    %5165 = vmatmul.mubr.bf16.gmra.mxu0 %v4549
    %v5166 = vpop.f32.mrf.mxu0
    %v5167 = vadd.f32 0.0, %v5166
    %v5168 = vpop.f32.mrf.mxu0
    %v5169 = vpop.f32.mrf.mxu0
    %v5170 = vadd.f32 0.0, %v5169
    %v5171 = vpop.f32.mrf.mxu0
    %5172 = vmatprep.mubr.bf16.mxu0 0
    %5173 = vmatmul.mubr.bf16.gmra.mxu0 %v4552
    %v5174 = vpop.f32.mrf.mxu0
    %v5175 = vadd.f32 0.0, %v5174
    %v5176 = vpop.f32.mrf.mxu0
    %v5177 = vpop.f32.mrf.mxu0
    %v5178 = vadd.f32 0.0, %v5177
    %v5179 = vpop.f32.mrf.mxu0
    %5180 = vmatprep.mubr.bf16.mxu0 0
    %5181 = vmatmul.mubr.bf16.gmra.mxu0 %v4555
    %v5182 = vpop.f32.mrf.mxu0
    %v5183 = vadd.f32 0.0, %v5182
    %v5184 = vpop.f32.mrf.mxu0
    %v5185 = vpop.f32.mrf.mxu0
    %v5186 = vadd.f32 0.0, %v5185
    %v5187 = vpop.f32.mrf.mxu0
    %5188 = vmatprep.mubr.bf16.mxu0 0
    %5189 = vmatmul.mubr.bf16.gmra.mxu0 %v4558
    %v5190 = vpop.f32.mrf.mxu0
    %v5191 = vadd.f32 0.0, %v5190
    %v5192 = vpop.f32.mrf.mxu0
    %v5193 = vpop.f32.mrf.mxu0
    %v5194 = vadd.f32 0.0, %v5193
    %v5195 = vpop.f32.mrf.mxu0
    %5196 = vmatprep.mubr.bf16.mxu0 0
    %5197 = vmatmul.mubr.bf16.gmra.mxu0 %v4561
    %v5198 = vpop.f32.mrf.mxu0
    %v5199 = vadd.f32 0.0, %v5198
    %v5200 = vpop.f32.mrf.mxu0
    %v5201 = vpop.f32.mrf.mxu0
    %v5202 = vadd.f32 0.0, %v5201
    %v5203 = vpop.f32.mrf.mxu0
    %5204 = vmatprep.mubr.bf16.mxu0 0
    %5205 = vmatmul.mubr.bf16.gmra.mxu0 %v4564
    %v5206 = vpop.f32.mrf.mxu0
    %v5207 = vadd.f32 0.0, %v5206
    %v5208 = vpop.f32.mrf.mxu0
    %v5209 = vpop.f32.mrf.mxu0
    %v5210 = vadd.f32 0.0, %v5209
    %v5211 = vpop.f32.mrf.mxu0
    %5212 = vmatprep.mubr.bf16.mxu0 0
    %5213 = vmatmul.mubr.bf16.gmra.mxu0 %v5055
    %v5214 = vpop.f32.mrf.mxu0
    %v5215 = vadd.f32 0.0, %v5214
    %v5216 = vpop.f32.mrf.mxu0
    %v5217 = vpop.f32.mrf.mxu0
    %v5218 = vadd.f32 0.0, %v5217
    %v5219 = vpop.f32.mrf.mxu0
    %5220 = vmatprep.mubr.bf16.mxu0 0
    %5221 = vmatmul.mubr.bf16.gmra.mxu0 %v4570
    %v5222 = vpop.f32.mrf.mxu0
    %v5223 = vadd.f32 0.0, %v5222
    %v5224 = vpop.f32.mrf.mxu0
    %v5225 = vpop.f32.mrf.mxu0
    %v5226 = vadd.f32 0.0, %v5225
    %v5227 = vpop.f32.mrf.mxu0
    %5228 = vmatprep.mubr.bf16.mxu0 0
    %5229 = vmatmul.mubr.bf16.gmra.mxu0 %v4573
    %v5230 = vpop.f32.mrf.mxu0
    %v5231 = vadd.f32 0.0, %v5230
    %v5232 = vpop.f32.mrf.mxu0
    %v5233 = vpop.f32.mrf.mxu0
    %v5234 = vadd.f32 0.0, %v5233
    %v5235 = vpop.f32.mrf.mxu0
    %5236 = vmatprep.mubr.bf16.mxu0 0
    %5237 = vmatmul.mubr.bf16.gmra.mxu0 %v4576
    %v5238 = vpop.f32.mrf.mxu0
    %v5239 = vadd.f32 0.0, %v5238
    %v5240 = vpop.f32.mrf.mxu0
    %v5241 = vpop.f32.mrf.mxu0
    %v5242 = vadd.f32 0.0, %v5241
    %v5243 = vpop.f32.mrf.mxu0
    %5244 = vmatprep.mubr.bf16.mxu0 0
    %5245 = vmatmul.mubr.bf16.gmra.mxu0 %v4579
    %v5246 = vpop.f32.mrf.mxu0
    %v5247 = vadd.f32 0.0, %v5246
    %v5248 = vpop.f32.mrf.mxu0
    %v5249 = vpop.f32.mrf.mxu0
    %v5250 = vadd.f32 0.0, %v5249
    %v5251 = vpop.f32.mrf.mxu0
    %5252 = vmatprep.mubr.bf16.mxu0 0
    %5253 = vmatmul.mubr.bf16.gmra.mxu0 %v4582
    %v5254 = vpop.f32.mrf.mxu0
    %v5255 = vadd.f32 0.0, %v5254
    %v5256 = vpop.f32.mrf.mxu0
    %v5257 = vpop.f32.mrf.mxu0
    %v5258 = vadd.f32 0.0, %v5257
    %v5259 = vpop.f32.mrf.mxu0
    %5260 = vmatprep.mubr.bf16.mxu0 0
    %5261 = vmatmul.mubr.bf16.gmra.mxu0 %v4585
    %v5262 = vpop.f32.mrf.mxu0
    %v5263 = vadd.f32 0.0, %v5262
    %v5264 = vpop.f32.mrf.mxu0
    %v5265 = vpop.f32.mrf.mxu0
    %v5266 = vadd.f32 0.0, %v5265
    %v5267 = vpop.f32.mrf.mxu0
    %5268 = vmatprep.mubr.bf16.mxu0 0
    %5269 = vmatmul.mubr.bf16.gmra.mxu0 %v4588
    %v5270 = vpop.f32.mrf.mxu0
    %v5271 = vadd.f32 0.0, %v5270
    %v5272 = vpop.f32.mrf.mxu0
    %v5273 = vpop.f32.mrf.mxu0
    %v5274 = vadd.f32 0.0, %v5273
    %v5275 = vpop.f32.mrf.mxu0
    %5276 = vmatprep.mubr.bf16.mxu0 0
    %5277 = vmatmul.mubr.bf16.gmra.mxu0 %v4591
    %v5278 = vpop.f32.mrf.mxu0
    %v5279 = vadd.f32 0.0, %v5278
    %v5280 = vpop.f32.mrf.mxu0
    %v5281 = vpop.f32.mrf.mxu0
    %v5282 = vadd.f32 0.0, %v5281
    %v5283 = vpop.f32.mrf.mxu0
    %5284 = vmatprep.mubr.bf16.mxu0 0
    %5285 = vmatmul.mubr.bf16.gmra.mxu0 %v4594
    %v5286 = vpop.f32.mrf.mxu0
    %v5287 = vadd.f32 0.0, %v5286
    %v5288 = vpop.f32.mrf.mxu0
    %v5289 = vpop.f32.mrf.mxu0
    %v5290 = vadd.f32 0.0, %v5289
    %v5291 = vpop.f32.mrf.mxu0
    %5292 = vmatprep.mubr.bf16.mxu0 0
    %5293 = vmatmul.mubr.bf16.gmra.mxu0 %v4597
    %v5294 = vpop.f32.mrf.mxu0
    %v5295 = vadd.f32 0.0, %v5294
    %v5296 = vpop.f32.mrf.mxu0
    %v5297 = vpop.f32.mrf.mxu0
    %v5298 = vadd.f32 0.0, %v5297
    %v5299 = vpop.f32.mrf.mxu0
    %5300 = vmatprep.mubr.bf16.mxu0 0
    %5301 = vmatmul.mubr.bf16.gmra.mxu0 %v4600
    %v5302 = vpop.f32.mrf.mxu0
    %v5303 = vadd.f32 0.0, %v5302
    %v5304 = vpop.f32.mrf.mxu0
    %v5305 = vpop.f32.mrf.mxu0
    %v5306 = vadd.f32 0.0, %v5305
    %v5307 = vpop.f32.mrf.mxu0
    %5308 = vmatprep.mubr.bf16.mxu0 0
    %5309 = vmatmul.mubr.bf16.gmra.mxu0 %v4603
    %v5310 = vpop.f32.mrf.mxu0
    %v5311 = vadd.f32 0.0, %v5310
    %v5312 = vpop.f32.mrf.mxu0
    %v5313 = vpop.f32.mrf.mxu0
    %v5314 = vadd.f32 0.0, %v5313
    %v5315 = vpop.f32.mrf.mxu0
    %5316 = vmatprep.mubr.bf16.mxu0 0
    %5317 = vmatmul.mubr.bf16.gmra.mxu0 %v4606
    %v5318 = vpop.f32.mrf.mxu0
    %v5319 = vadd.f32 0.0, %v5318
    %v5320 = vpop.f32.mrf.mxu0
    %v5321 = vpop.f32.mrf.mxu0
    %v5322 = vadd.f32 0.0, %v5321
    %v5323 = vpop.f32.mrf.mxu0
    %5324 = vmatprep.mubr.bf16.mxu0 0
    %5325 = vmatmul.mubr.bf16.gmra.mxu0 %v4609
    %v5326 = vpop.f32.mrf.mxu0
    %v5327 = vadd.f32 0.0, %v5326
    %v5328 = vpop.f32.mrf.mxu0
    %v5329 = vpop.f32.mrf.mxu0
    %v5330 = vadd.f32 0.0, %v5329
    %v5331 = vpop.f32.mrf.mxu0
    %5332 = vmatprep.mubr.bf16.mxu0 0
    %5333 = vmatmul.mubr.bf16.gmra.mxu0 %v4612
    %v5334 = vpop.f32.mrf.mxu0
    %v5335 = vadd.f32 0.0, %v5334
    %v5336 = vpop.f32.mrf.mxu0
    %v5337 = vpop.f32.mrf.mxu0
    %v5338 = vadd.f32 0.0, %v5337
    %v5339 = vpop.f32.mrf.mxu0
    %5340 = vmatprep.mubr.bf16.mxu0 0
    %5341 = vmatmul.mubr.bf16.gmra.mxu0 %v5058
    %v5342 = vpop.f32.mrf.mxu0
    %v5343 = vadd.f32 0.0, %v5342
    %v5344 = vpop.f32.mrf.mxu0
    %v5345 = vpop.f32.mrf.mxu0
    %v5346 = vadd.f32 0.0, %v5345
    %v5347 = vpop.f32.mrf.mxu0
    %5348 = vdwg.mxu0
    %v5349 = vadd.f32 %v4903, %v5095
    %v5350 = vadd.f32 %v4904, %v5098
    %v5351 = vadd.f32 %v4905, %v5103
    %v5352 = vadd.f32 %v4906, %v5106
    %v5353 = vadd.f32 %v4907, %v5111
    %v5354 = vadd.f32 %v4908, %v5114
    %v5355 = vadd.f32 %v4909, %v5119
    %v5356 = vadd.f32 %v4910, %v5122
    %v5357 = vadd.f32 %v4911, %v5127
    %v5358 = vadd.f32 %v4912, %v5130
    %v5359 = vadd.f32 %v4913, %v5135
    %v5360 = vadd.f32 %v4914, %v5138
    %v5361 = vadd.f32 %v4915, %v5143
    %v5362 = vadd.f32 %v4916, %v5146
    %v5363 = vadd.f32 %v4917, %v5151
    %v5364 = vadd.f32 %v4918, %v5154
    %v5365 = vadd.f32 %v4919, %v5159
    %v5366 = vadd.f32 %v4920, %v5162
    %v5367 = vadd.f32 %v4921, %v5167
    %v5368 = vadd.f32 %v4922, %v5170
    %v5369 = vadd.f32 %v4923, %v5175
    %v5370 = vadd.f32 %v4924, %v5178
    %v5371 = vadd.f32 %v4925, %v5183
    %v5372 = vadd.f32 %v4926, %v5186
    %v5373 = vadd.f32 %v4927, %v5191
    %v5374 = vadd.f32 %v4928, %v5194
    %v5375 = vadd.f32 %v4929, %v5199
    %v5376 = vadd.f32 %v4930, %v5202
    %v5377 = vadd.f32 %v4931, %v5207
    %v5378 = vadd.f32 %v4932, %v5210
    %v5379 = vadd.f32 %v4933, %v5215
    %v5380 = vadd.f32 %v4934, %v5218
    %v5381 = vadd.f32 %v4935, %v5223
    %v5382 = vadd.f32 %v4936, %v5226
    %v5383 = vadd.f32 %v4937, %v5231
    %v5384 = vadd.f32 %v4938, %v5234
    %v5385 = vadd.f32 %v4939, %v5239
    %v5386 = vadd.f32 %v4940, %v5242
    %v5387 = vadd.f32 %v4941, %v5247
    %v5388 = vadd.f32 %v4942, %v5250
    %v5389 = vadd.f32 %v4943, %v5255
    %v5390 = vadd.f32 %v4944, %v5258
    %v5391 = vadd.f32 %v4945, %v5263
    %v5392 = vadd.f32 %v4946, %v5266
    %v5393 = vadd.f32 %v4947, %v5271
    %v5394 = vadd.f32 %v4948, %v5274
    %v5395 = vadd.f32 %v4949, %v5279
    %v5396 = vadd.f32 %v4950, %v5282
    %v5397 = vadd.f32 %v4951, %v5287
    %v5398 = vadd.f32 %v4952, %v5290
    %v5399 = vadd.f32 %v4953, %v5295
    %v5400 = vadd.f32 %v4954, %v5298
    %v5401 = vadd.f32 %v4955, %v5303
    %v5402 = vadd.f32 %v4956, %v5306
    %v5403 = vadd.f32 %v4957, %v5311
    %v5404 = vadd.f32 %v4958, %v5314
    %v5405 = vadd.f32 %v4959, %v5319
    %v5406 = vadd.f32 %v4960, %v5322
    %v5407 = vadd.f32 %v4961, %v5327
    %v5408 = vadd.f32 %v4962, %v5330
    %v5409 = vadd.f32 %v4963, %v5335
    %v5410 = vadd.f32 %v4964, %v5338
    %v5411 = vadd.f32 %v4965, %v5343
    %v5412 = vadd.f32 %v4966, %v5346
    %v5414 = vshrl.u32 %v2243, 16
    %v5416 = vrot.slane %v5414, 4
    %v5417 = vshll.u32 %v2243, 16
    %v5419 = vrot.slane %v5417, 5
    %v5420 = vor.u32 %v5416, %v5419
    %v5421 = vrot.slane %v5420, 4
    %v5423 = vshll.u32 %v2244, 16
    %v5425 = vrot.slane %v5423, 5
    %v5426 = vsel %vm3620, %v5421, %v5425
    %v5427 = vshrl.u32 %v2244, 16
    %v5429 = vrot.slane %v5427, 4
    %v5430 = vor.u32 %v5429, %v5425
    %v5431 = vrot.slane %v5430, 4
    %v5433 = vshll.u32 %v2245, 16
    %v5435 = vrot.slane %v5433, 5
    %v5436 = vsel %vm3620, %v5431, %v5435
    %v5438 = vshrl.u32 %v2297, 16
    %v5440 = vrot.slane %v5438, 4
    %v5441 = vshll.u32 %v2297, 16
    %v5443 = vrot.slane %v5441, 5
    %v5444 = vor.u32 %v5440, %v5443
    %v5445 = vrot.slane %v5444, 4
    %v5447 = vshll.u32 %v2298, 16
    %v5449 = vrot.slane %v5447, 5
    %v5450 = vsel %vm3620, %v5445, %v5449
    %v5451 = vshrl.u32 %v2298, 16
    %v5453 = vrot.slane %v5451, 4
    %v5454 = vor.u32 %v5453, %v5449
    %v5455 = vrot.slane %v5454, 4
    %v5457 = vshll.u32 %v2299, 16
    %v5459 = vrot.slane %v5457, 5
    %v5460 = vsel %vm3620, %v5455, %v5459
    %s5461 = scalar_lea.vmem %s2, 224
    %v5462 = vld [vmem:[%s5461] sm:$0xf]
    %v5463 = vld [vmem:[%s5461 + $0x4] sm:$0xf]
    %v5464 = vld [vmem:[%s5461 + $0x8] sm:$0xf]
    %v5465 = vld [vmem:[%s5461 + $0xc] sm:$0xf]
    %v5466 = vld [vmem:[%s5461 + $0x10] sm:$0xf]
    %v5467 = vld [vmem:[%s5461 + $0x14] sm:$0xf]
    %v5468 = vld [vmem:[%s5461 + $0x18] sm:$0xf]
    %v5469 = vld [vmem:[%s5461 + $0x1c] sm:$0xf]
    %v5470 = vunpack.c.l.b16 %v5426
    %v5471 = vunpack.c.l.b16 %v5436
    %v5472 = vunpack.c.l.b16 %v5450
    %v5473 = vunpack.c.l.b16 %v5460
    %v5474 = vpack.c.b16 %v5471, %v5470
    %v5475 = vpack.c.b16 %v5473, %v5472
    %v5484 = vunpack.c.l.b16 %v5462
    %v5485 = vunpack.c.l.b16 %v5463
    %v5486 = vunpack.c.l.b16 %v5464
    %v5487 = vunpack.c.l.b16 %v5465
    %v5488 = vunpack.c.l.b16 %v5466
    %v5489 = vunpack.c.l.b16 %v5467
    %v5490 = vunpack.c.l.b16 %v5468
    %v5491 = vunpack.c.l.b16 %v5469
    %v5492 = vpack.c.b16 %v5485, %v5484
    %v5493 = vpack.c.b16 %v5487, %v5486
    %v5494 = vpack.c.b16 %v5489, %v5488
    %v5495 = vpack.c.b16 %v5491, %v5490
    %v5501 = vsel %vm2501, %v5474, 0
    %v5504 = vsel %vm2501, %v5475, 0
    %5506 = vmatprep.subr.bf16.mxu0 0
    %5507 = vmatpush1.bf16.msra.mxu0 0
    %5508 = vmatprep.subr.bf16.mxu0 0
    %5509 = vmatpush1.bf16.msra.mxu0 0
    %5510 = vmatprep.subr.bf16.mxu0 0
    %5511 = vmatpush1.bf16.msra.mxu0 0
    %5512 = vmatprep.subr.bf16.mxu0 0
    %5513 = vmatpush1.bf16.msra.mxu0 0
    %5514 = vmatprep.subr.bf16.mxu0 0
    %5515 = vmatpush1.bf16.msra.mxu0 %v5495
    %5516 = vmatprep.subr.bf16.mxu0 0
    %5517 = vmatpush1.bf16.msra.mxu0 %v5494
    %5518 = vmatprep.subr.bf16.mxu0 0
    %5519 = vmatpush1.bf16.msra.mxu0 %v5493
    %5520 = vmatprep.subr.bf16.mxu0 0
    %5521 = vmatpush1.bf16.msra.mxu0 %v5492
    %5522 = vmatprep.subr.bf16.mxu0 0
    %5523 = vmatpush2.bf16.msra.mxu0 0
    %5524 = vmatprep.subr.bf16.mxu0 0
    %5525 = vmatpush2.bf16.msra.mxu0 0
    %5526 = vmatprep.subr.bf16.mxu0 0
    %5527 = vmatpush2.bf16.msra.mxu0 0
    %5528 = vmatprep.subr.bf16.mxu0 0
    %5529 = vmatpush2.bf16.msra.mxu0 0
    %5530 = vmatprep.subr.bf16.mxu0 0
    %5531 = vmatpush2.bf16.msra.mxu0 0
    %5532 = vmatprep.subr.bf16.mxu0 0
    %5533 = vmatpush2.bf16.msra.mxu0 0
    %5534 = vmatprep.subr.bf16.mxu0 0
    %5535 = vmatpush2.bf16.msra.mxu0 0
    %5536 = vmatprep.subr.bf16.mxu0 0
    %5537 = vmatpush2.bf16.msra.mxu0 0
    %5538 = vmatprep.mubr.bf16.mxu0 0
    %5539 = vmatmul.mubr.bf16.gmra.mxu0 %v4525
    %v5540 = vpop.f32.mrf.mxu0
    %v5541 = vadd.f32 0.0, %v5540
    %v5542 = vpop.f32.mrf.mxu0
    %v5543 = vpop.f32.mrf.mxu0
    %v5544 = vadd.f32 0.0, %v5543
    %v5545 = vpop.f32.mrf.mxu0
    %5546 = vmatprep.mubr.bf16.mxu0 0
    %5547 = vmatmul.mubr.bf16.gmra.mxu0 %v4528
    %v5548 = vpop.f32.mrf.mxu0
    %v5549 = vadd.f32 0.0, %v5548
    %v5550 = vpop.f32.mrf.mxu0
    %v5551 = vpop.f32.mrf.mxu0
    %v5552 = vadd.f32 0.0, %v5551
    %v5553 = vpop.f32.mrf.mxu0
    %5554 = vmatprep.mubr.bf16.mxu0 0
    %5555 = vmatmul.mubr.bf16.gmra.mxu0 %v4531
    %v5556 = vpop.f32.mrf.mxu0
    %v5557 = vadd.f32 0.0, %v5556
    %v5558 = vpop.f32.mrf.mxu0
    %v5559 = vpop.f32.mrf.mxu0
    %v5560 = vadd.f32 0.0, %v5559
    %v5561 = vpop.f32.mrf.mxu0
    %5562 = vmatprep.mubr.bf16.mxu0 0
    %5563 = vmatmul.mubr.bf16.gmra.mxu0 %v4534
    %v5564 = vpop.f32.mrf.mxu0
    %v5565 = vadd.f32 0.0, %v5564
    %v5566 = vpop.f32.mrf.mxu0
    %v5567 = vpop.f32.mrf.mxu0
    %v5568 = vadd.f32 0.0, %v5567
    %v5569 = vpop.f32.mrf.mxu0
    %5570 = vmatprep.mubr.bf16.mxu0 0
    %5571 = vmatmul.mubr.bf16.gmra.mxu0 %v4537
    %v5572 = vpop.f32.mrf.mxu0
    %v5573 = vadd.f32 0.0, %v5572
    %v5574 = vpop.f32.mrf.mxu0
    %v5575 = vpop.f32.mrf.mxu0
    %v5576 = vadd.f32 0.0, %v5575
    %v5577 = vpop.f32.mrf.mxu0
    %5578 = vmatprep.mubr.bf16.mxu0 0
    %5579 = vmatmul.mubr.bf16.gmra.mxu0 %v4540
    %v5580 = vpop.f32.mrf.mxu0
    %v5581 = vadd.f32 0.0, %v5580
    %v5582 = vpop.f32.mrf.mxu0
    %v5583 = vpop.f32.mrf.mxu0
    %v5584 = vadd.f32 0.0, %v5583
    %v5585 = vpop.f32.mrf.mxu0
    %5586 = vmatprep.mubr.bf16.mxu0 0
    %5587 = vmatmul.mubr.bf16.gmra.mxu0 %v4543
    %v5588 = vpop.f32.mrf.mxu0
    %v5589 = vadd.f32 0.0, %v5588
    %v5590 = vpop.f32.mrf.mxu0
    %v5591 = vpop.f32.mrf.mxu0
    %v5592 = vadd.f32 0.0, %v5591
    %v5593 = vpop.f32.mrf.mxu0
    %5594 = vmatprep.mubr.bf16.mxu0 0
    %5595 = vmatmul.mubr.bf16.gmra.mxu0 %v4546
    %v5596 = vpop.f32.mrf.mxu0
    %v5597 = vadd.f32 0.0, %v5596
    %v5598 = vpop.f32.mrf.mxu0
    %v5599 = vpop.f32.mrf.mxu0
    %v5600 = vadd.f32 0.0, %v5599
    %v5601 = vpop.f32.mrf.mxu0
    %5602 = vmatprep.mubr.bf16.mxu0 0
    %5603 = vmatmul.mubr.bf16.gmra.mxu0 %v4549
    %v5604 = vpop.f32.mrf.mxu0
    %v5605 = vadd.f32 0.0, %v5604
    %v5606 = vpop.f32.mrf.mxu0
    %v5607 = vpop.f32.mrf.mxu0
    %v5608 = vadd.f32 0.0, %v5607
    %v5609 = vpop.f32.mrf.mxu0
    %5610 = vmatprep.mubr.bf16.mxu0 0
    %5611 = vmatmul.mubr.bf16.gmra.mxu0 %v4552
    %v5612 = vpop.f32.mrf.mxu0
    %v5613 = vadd.f32 0.0, %v5612
    %v5614 = vpop.f32.mrf.mxu0
    %v5615 = vpop.f32.mrf.mxu0
    %v5616 = vadd.f32 0.0, %v5615
    %v5617 = vpop.f32.mrf.mxu0
    %5618 = vmatprep.mubr.bf16.mxu0 0
    %5619 = vmatmul.mubr.bf16.gmra.mxu0 %v4555
    %v5620 = vpop.f32.mrf.mxu0
    %v5621 = vadd.f32 0.0, %v5620
    %v5622 = vpop.f32.mrf.mxu0
    %v5623 = vpop.f32.mrf.mxu0
    %v5624 = vadd.f32 0.0, %v5623
    %v5625 = vpop.f32.mrf.mxu0
    %5626 = vmatprep.mubr.bf16.mxu0 0
    %5627 = vmatmul.mubr.bf16.gmra.mxu0 %v4558
    %v5628 = vpop.f32.mrf.mxu0
    %v5629 = vadd.f32 0.0, %v5628
    %v5630 = vpop.f32.mrf.mxu0
    %v5631 = vpop.f32.mrf.mxu0
    %v5632 = vadd.f32 0.0, %v5631
    %v5633 = vpop.f32.mrf.mxu0
    %5634 = vmatprep.mubr.bf16.mxu0 0
    %5635 = vmatmul.mubr.bf16.gmra.mxu0 %v4561
    %v5636 = vpop.f32.mrf.mxu0
    %v5637 = vadd.f32 0.0, %v5636
    %v5638 = vpop.f32.mrf.mxu0
    %v5639 = vpop.f32.mrf.mxu0
    %v5640 = vadd.f32 0.0, %v5639
    %v5641 = vpop.f32.mrf.mxu0
    %5642 = vmatprep.mubr.bf16.mxu0 0
    %5643 = vmatmul.mubr.bf16.gmra.mxu0 %v4564
    %v5644 = vpop.f32.mrf.mxu0
    %v5645 = vadd.f32 0.0, %v5644
    %v5646 = vpop.f32.mrf.mxu0
    %v5647 = vpop.f32.mrf.mxu0
    %v5648 = vadd.f32 0.0, %v5647
    %v5649 = vpop.f32.mrf.mxu0
    %5650 = vmatprep.mubr.bf16.mxu0 0
    %5651 = vmatmul.mubr.bf16.gmra.mxu0 %v5055
    %v5652 = vpop.f32.mrf.mxu0
    %v5653 = vadd.f32 0.0, %v5652
    %v5654 = vpop.f32.mrf.mxu0
    %v5655 = vpop.f32.mrf.mxu0
    %v5656 = vadd.f32 0.0, %v5655
    %v5657 = vpop.f32.mrf.mxu0
    %5658 = vmatprep.mubr.bf16.mxu0 0
    %5659 = vmatmul.mubr.bf16.gmra.mxu0 %v5501
    %v5660 = vpop.f32.mrf.mxu0
    %v5661 = vadd.f32 0.0, %v5660
    %v5662 = vpop.f32.mrf.mxu0
    %v5663 = vpop.f32.mrf.mxu0
    %v5664 = vadd.f32 0.0, %v5663
    %v5665 = vpop.f32.mrf.mxu0
    %5666 = vmatprep.mubr.bf16.mxu0 0
    %5667 = vmatmul.mubr.bf16.gmra.mxu0 %v4573
    %v5668 = vpop.f32.mrf.mxu0
    %v5669 = vadd.f32 0.0, %v5668
    %v5670 = vpop.f32.mrf.mxu0
    %v5671 = vpop.f32.mrf.mxu0
    %v5672 = vadd.f32 0.0, %v5671
    %v5673 = vpop.f32.mrf.mxu0
    %5674 = vmatprep.mubr.bf16.mxu0 0
    %5675 = vmatmul.mubr.bf16.gmra.mxu0 %v4576
    %v5676 = vpop.f32.mrf.mxu0
    %v5677 = vadd.f32 0.0, %v5676
    %v5678 = vpop.f32.mrf.mxu0
    %v5679 = vpop.f32.mrf.mxu0
    %v5680 = vadd.f32 0.0, %v5679
    %v5681 = vpop.f32.mrf.mxu0
    %5682 = vmatprep.mubr.bf16.mxu0 0
    %5683 = vmatmul.mubr.bf16.gmra.mxu0 %v4579
    %v5684 = vpop.f32.mrf.mxu0
    %v5685 = vadd.f32 0.0, %v5684
    %v5686 = vpop.f32.mrf.mxu0
    %v5687 = vpop.f32.mrf.mxu0
    %v5688 = vadd.f32 0.0, %v5687
    %v5689 = vpop.f32.mrf.mxu0
    %5690 = vmatprep.mubr.bf16.mxu0 0
    %5691 = vmatmul.mubr.bf16.gmra.mxu0 %v4582
    %v5692 = vpop.f32.mrf.mxu0
    %v5693 = vadd.f32 0.0, %v5692
    %v5694 = vpop.f32.mrf.mxu0
    %v5695 = vpop.f32.mrf.mxu0
    %v5696 = vadd.f32 0.0, %v5695
    %v5697 = vpop.f32.mrf.mxu0
    %5698 = vmatprep.mubr.bf16.mxu0 0
    %5699 = vmatmul.mubr.bf16.gmra.mxu0 %v4585
    %v5700 = vpop.f32.mrf.mxu0
    %v5701 = vadd.f32 0.0, %v5700
    %v5702 = vpop.f32.mrf.mxu0
    %v5703 = vpop.f32.mrf.mxu0
    %v5704 = vadd.f32 0.0, %v5703
    %v5705 = vpop.f32.mrf.mxu0
    %5706 = vmatprep.mubr.bf16.mxu0 0
    %5707 = vmatmul.mubr.bf16.gmra.mxu0 %v4588
    %v5708 = vpop.f32.mrf.mxu0
    %v5709 = vadd.f32 0.0, %v5708
    %v5710 = vpop.f32.mrf.mxu0
    %v5711 = vpop.f32.mrf.mxu0
    %v5712 = vadd.f32 0.0, %v5711
    %v5713 = vpop.f32.mrf.mxu0
    %5714 = vmatprep.mubr.bf16.mxu0 0
    %5715 = vmatmul.mubr.bf16.gmra.mxu0 %v4591
    %v5716 = vpop.f32.mrf.mxu0
    %v5717 = vadd.f32 0.0, %v5716
    %v5718 = vpop.f32.mrf.mxu0
    %v5719 = vpop.f32.mrf.mxu0
    %v5720 = vadd.f32 0.0, %v5719
    %v5721 = vpop.f32.mrf.mxu0
    %5722 = vmatprep.mubr.bf16.mxu0 0
    %5723 = vmatmul.mubr.bf16.gmra.mxu0 %v4594
    %v5724 = vpop.f32.mrf.mxu0
    %v5725 = vadd.f32 0.0, %v5724
    %v5726 = vpop.f32.mrf.mxu0
    %v5727 = vpop.f32.mrf.mxu0
    %v5728 = vadd.f32 0.0, %v5727
    %v5729 = vpop.f32.mrf.mxu0
    %5730 = vmatprep.mubr.bf16.mxu0 0
    %5731 = vmatmul.mubr.bf16.gmra.mxu0 %v4597
    %v5732 = vpop.f32.mrf.mxu0
    %v5733 = vadd.f32 0.0, %v5732
    %v5734 = vpop.f32.mrf.mxu0
    %v5735 = vpop.f32.mrf.mxu0
    %v5736 = vadd.f32 0.0, %v5735
    %v5737 = vpop.f32.mrf.mxu0
    %5738 = vmatprep.mubr.bf16.mxu0 0
    %5739 = vmatmul.mubr.bf16.gmra.mxu0 %v4600
    %v5740 = vpop.f32.mrf.mxu0
    %v5741 = vadd.f32 0.0, %v5740
    %v5742 = vpop.f32.mrf.mxu0
    %v5743 = vpop.f32.mrf.mxu0
    %v5744 = vadd.f32 0.0, %v5743
    %v5745 = vpop.f32.mrf.mxu0
    %5746 = vmatprep.mubr.bf16.mxu0 0
    %5747 = vmatmul.mubr.bf16.gmra.mxu0 %v4603
    %v5748 = vpop.f32.mrf.mxu0
    %v5749 = vadd.f32 0.0, %v5748
    %v5750 = vpop.f32.mrf.mxu0
    %v5751 = vpop.f32.mrf.mxu0
    %v5752 = vadd.f32 0.0, %v5751
    %v5753 = vpop.f32.mrf.mxu0
    %5754 = vmatprep.mubr.bf16.mxu0 0
    %5755 = vmatmul.mubr.bf16.gmra.mxu0 %v4606
    %v5756 = vpop.f32.mrf.mxu0
    %v5757 = vadd.f32 0.0, %v5756
    %v5758 = vpop.f32.mrf.mxu0
    %v5759 = vpop.f32.mrf.mxu0
    %v5760 = vadd.f32 0.0, %v5759
    %v5761 = vpop.f32.mrf.mxu0
    %5762 = vmatprep.mubr.bf16.mxu0 0
    %5763 = vmatmul.mubr.bf16.gmra.mxu0 %v4609
    %v5764 = vpop.f32.mrf.mxu0
    %v5765 = vadd.f32 0.0, %v5764
    %v5766 = vpop.f32.mrf.mxu0
    %v5767 = vpop.f32.mrf.mxu0
    %v5768 = vadd.f32 0.0, %v5767
    %v5769 = vpop.f32.mrf.mxu0
    %5770 = vmatprep.mubr.bf16.mxu0 0
    %5771 = vmatmul.mubr.bf16.gmra.mxu0 %v4612
    %v5772 = vpop.f32.mrf.mxu0
    %v5773 = vadd.f32 0.0, %v5772
    %v5774 = vpop.f32.mrf.mxu0
    %v5775 = vpop.f32.mrf.mxu0
    %v5776 = vadd.f32 0.0, %v5775
    %v5777 = vpop.f32.mrf.mxu0
    %5778 = vmatprep.mubr.bf16.mxu0 0
    %5779 = vmatmul.mubr.bf16.gmra.mxu0 %v5058
    %v5780 = vpop.f32.mrf.mxu0
    %v5781 = vadd.f32 0.0, %v5780
    %v5782 = vpop.f32.mrf.mxu0
    %v5783 = vpop.f32.mrf.mxu0
    %v5784 = vadd.f32 0.0, %v5783
    %v5785 = vpop.f32.mrf.mxu0
    %5786 = vmatprep.mubr.bf16.mxu0 0
    %5787 = vmatmul.mubr.bf16.gmra.mxu0 %v5504
    %v5788 = vpop.f32.mrf.mxu0
    %v5789 = vadd.f32 0.0, %v5788
    %v5790 = vpop.f32.mrf.mxu0
    %v5791 = vpop.f32.mrf.mxu0
    %v5792 = vadd.f32 0.0, %v5791
    %v5793 = vpop.f32.mrf.mxu0
    %5794 = vdwg.mxu0
    %v5795 = vadd.f32 %v5349, %v5541
    %v5796 = vadd.f32 %v5350, %v5544
    %v5797 = vadd.f32 %v5351, %v5549
    %v5798 = vadd.f32 %v5352, %v5552
    %v5799 = vadd.f32 %v5353, %v5557
    %v5800 = vadd.f32 %v5354, %v5560
    %v5801 = vadd.f32 %v5355, %v5565
    %v5802 = vadd.f32 %v5356, %v5568
    %v5803 = vadd.f32 %v5357, %v5573
    %v5804 = vadd.f32 %v5358, %v5576
    %v5805 = vadd.f32 %v5359, %v5581
    %v5806 = vadd.f32 %v5360, %v5584
    %v5807 = vadd.f32 %v5361, %v5589
    %v5808 = vadd.f32 %v5362, %v5592
    %v5809 = vadd.f32 %v5363, %v5597
    %v5810 = vadd.f32 %v5364, %v5600
    %v5811 = vadd.f32 %v5365, %v5605
    %v5812 = vadd.f32 %v5366, %v5608
    %v5813 = vadd.f32 %v5367, %v5613
    %v5814 = vadd.f32 %v5368, %v5616
    %v5815 = vadd.f32 %v5369, %v5621
    %v5816 = vadd.f32 %v5370, %v5624
    %v5817 = vadd.f32 %v5371, %v5629
    %v5818 = vadd.f32 %v5372, %v5632
    %v5819 = vadd.f32 %v5373, %v5637
    %v5820 = vadd.f32 %v5374, %v5640
    %v5821 = vadd.f32 %v5375, %v5645
    %v5822 = vadd.f32 %v5376, %v5648
    %v5823 = vadd.f32 %v5377, %v5653
    %v5824 = vadd.f32 %v5378, %v5656
    %v5825 = vadd.f32 %v5379, %v5661
    %v5826 = vadd.f32 %v5380, %v5664
    %v5827 = vadd.f32 %v5381, %v5669
    %v5828 = vadd.f32 %v5382, %v5672
    %v5829 = vadd.f32 %v5383, %v5677
    %v5830 = vadd.f32 %v5384, %v5680
    %v5831 = vadd.f32 %v5385, %v5685
    %v5832 = vadd.f32 %v5386, %v5688
    %v5833 = vadd.f32 %v5387, %v5693
    %v5834 = vadd.f32 %v5388, %v5696
    %v5835 = vadd.f32 %v5389, %v5701
    %v5836 = vadd.f32 %v5390, %v5704
    %v5837 = vadd.f32 %v5391, %v5709
    %v5838 = vadd.f32 %v5392, %v5712
    %v5839 = vadd.f32 %v5393, %v5717
    %v5840 = vadd.f32 %v5394, %v5720
    %v5841 = vadd.f32 %v5395, %v5725
    %v5842 = vadd.f32 %v5396, %v5728
    %v5843 = vadd.f32 %v5397, %v5733
    %v5844 = vadd.f32 %v5398, %v5736
    %v5845 = vadd.f32 %v5399, %v5741
    %v5846 = vadd.f32 %v5400, %v5744
    %v5847 = vadd.f32 %v5401, %v5749
    %v5848 = vadd.f32 %v5402, %v5752
    %v5849 = vadd.f32 %v5403, %v5757
    %v5850 = vadd.f32 %v5404, %v5760
    %v5851 = vadd.f32 %v5405, %v5765
    %v5852 = vadd.f32 %v5406, %v5768
    %v5853 = vadd.f32 %v5407, %v5773
    %v5854 = vadd.f32 %v5408, %v5776
    %v5855 = vadd.f32 %v5409, %v5781
    %v5856 = vadd.f32 %v5410, %v5784
    %v5857 = vadd.f32 %v5411, %v5789
    %v5858 = vadd.f32 %v5412, %v5792
    %vm5891 = vcmask 1042432
    %vm5892 = vcmask 1046532
    %vm5893 = vmor %vm5891, %vm5892
    %v5894 = vrot.slane %v2192, 5
    %v5895 = vrot.slane %v5894, 4
    %v5896 = vrot.slane %v2193, 5
    %v5897 = vsel %vm5893, %v5895, %v5896
    %v5898 = vrot.slane %v5896, 4
    %v5899 = vrot.slane %v2194, 5
    %v5900 = vsel %vm5893, %v5898, %v5899
    %v5901 = vrot.slane %v2195, 5
    %v5902 = vrot.slane %v5901, 4
    %v5903 = vrot.slane %v2196, 5
    %v5904 = vsel %vm5893, %v5902, %v5903
    %v5905 = vrot.slane %v5903, 4
    %v5906 = vrot.slane %v2197, 5
    %v5907 = vsel %vm5893, %v5905, %v5906
    %v5908 = vrot.slane %v2198, 5
    %v5909 = vrot.slane %v5908, 4
    %v5910 = vrot.slane %v2199, 5
    %v5911 = vsel %vm5893, %v5909, %v5910
    %v5912 = vrot.slane %v5910, 4
    %v5913 = vrot.slane %v2200, 5
    %v5914 = vsel %vm5893, %v5912, %v5913
    %v5915 = vrot.slane %v2201, 5
    %v5916 = vrot.slane %v5915, 4
    %v5917 = vrot.slane %v2202, 5
    %v5918 = vsel %vm5893, %v5916, %v5917
    %v5919 = vrot.slane %v5917, 4
    %v5920 = vrot.slane %v2203, 5
    %v5921 = vsel %vm5893, %v5919, %v5920
    %v5922 = vrot.slane %v2204, 5
    %v5923 = vrot.slane %v5922, 4
    %v5924 = vrot.slane %v2205, 5
    %v5925 = vsel %vm5893, %v5923, %v5924
    %v5926 = vrot.slane %v5924, 4
    %v5927 = vrot.slane %v2206, 5
    %v5928 = vsel %vm5893, %v5926, %v5927
    %v5929 = vrot.slane %v2207, 5
    %v5930 = vrot.slane %v5929, 4
    %v5931 = vrot.slane %v2208, 5
    %v5932 = vsel %vm5893, %v5930, %v5931
    %v5933 = vrot.slane %v5931, 4
    %v5934 = vrot.slane %v2209, 5
    %v5935 = vsel %vm5893, %v5933, %v5934
    %v5936 = vrot.slane %v2210, 5
    %v5937 = vrot.slane %v5936, 4
    %v5938 = vrot.slane %v2211, 5
    %v5939 = vsel %vm5893, %v5937, %v5938
    %v5940 = vrot.slane %v5938, 4
    %v5941 = vrot.slane %v2212, 5
    %v5942 = vsel %vm5893, %v5940, %v5941
    %v5943 = vrot.slane %v2213, 5
    %v5944 = vrot.slane %v5943, 4
    %v5945 = vrot.slane %v2214, 5
    %v5946 = vsel %vm5893, %v5944, %v5945
    %v5947 = vrot.slane %v5945, 4
    %v5948 = vrot.slane %v2215, 5
    %v5949 = vsel %vm5893, %v5947, %v5948
    %v5950 = vrot.slane %v2216, 5
    %v5951 = vrot.slane %v5950, 4
    %v5952 = vrot.slane %v2217, 5
    %v5953 = vsel %vm5893, %v5951, %v5952
    %v5954 = vrot.slane %v5952, 4
    %v5955 = vrot.slane %v2218, 5
    %v5956 = vsel %vm5893, %v5954, %v5955
    %v5957 = vrot.slane %v2219, 5
    %v5958 = vrot.slane %v5957, 4
    %v5959 = vrot.slane %v2220, 5
    %v5960 = vsel %vm5893, %v5958, %v5959
    %v5961 = vrot.slane %v5959, 4
    %v5962 = vrot.slane %v2221, 5
    %v5963 = vsel %vm5893, %v5961, %v5962
    %v5964 = vrot.slane %v2222, 5
    %v5965 = vrot.slane %v5964, 4
    %v5966 = vrot.slane %v2223, 5
    %v5967 = vsel %vm5893, %v5965, %v5966
    %v5968 = vrot.slane %v5966, 4
    %v5969 = vrot.slane %v2224, 5
    %v5970 = vsel %vm5893, %v5968, %v5969
    %v5971 = vrot.slane %v2225, 5
    %v5972 = vrot.slane %v5971, 4
    %v5973 = vrot.slane %v2226, 5
    %v5974 = vsel %vm5893, %v5972, %v5973
    %v5975 = vrot.slane %v5973, 4
    %v5976 = vrot.slane %v2227, 5
    %v5977 = vsel %vm5893, %v5975, %v5976
    %v5978 = vrot.slane %v2228, 5
    %v5979 = vrot.slane %v5978, 4
    %v5980 = vrot.slane %v2229, 5
    %v5981 = vsel %vm5893, %v5979, %v5980
    %v5982 = vrot.slane %v5980, 4
    %v5983 = vrot.slane %v2230, 5
    %v5984 = vsel %vm5893, %v5982, %v5983
    %v5985 = vrot.slane %v2231, 5
    %v5986 = vrot.slane %v5985, 4
    %v5987 = vrot.slane %v2232, 5
    %v5988 = vsel %vm5893, %v5986, %v5987
    %v5989 = vrot.slane %v5987, 4
    %v5990 = vrot.slane %v2233, 5
    %v5991 = vsel %vm5893, %v5989, %v5990
    %v5992 = vrot.slane %v2234, 5
    %v5993 = vrot.slane %v5992, 4
    %v5994 = vrot.slane %v2235, 5
    %v5995 = vsel %vm5893, %v5993, %v5994
    %v5996 = vrot.slane %v5994, 4
    %v5997 = vrot.slane %v2236, 5
    %v5998 = vsel %vm5893, %v5996, %v5997
    %v5999 = vrot.slane %v2237, 5
    %v6000 = vrot.slane %v5999, 4
    %v6001 = vrot.slane %v2238, 5
    %v6002 = vsel %vm5893, %v6000, %v6001
    %v6003 = vrot.slane %v6001, 4
    %v6004 = vrot.slane %v2239, 5
    %v6005 = vsel %vm5893, %v6003, %v6004
    %v6006 = vrot.slane %v2246, 5
    %v6007 = vrot.slane %v6006, 4
    %v6008 = vrot.slane %v2247, 5
    %v6009 = vsel %vm5893, %v6007, %v6008
    %v6010 = vrot.slane %v6008, 4
    %v6011 = vrot.slane %v2248, 5
    %v6012 = vsel %vm5893, %v6010, %v6011
    %v6013 = vrot.slane %v2249, 5
    %v6014 = vrot.slane %v6013, 4
    %v6015 = vrot.slane %v2250, 5
    %v6016 = vsel %vm5893, %v6014, %v6015
    %v6017 = vrot.slane %v6015, 4
    %v6018 = vrot.slane %v2251, 5
    %v6019 = vsel %vm5893, %v6017, %v6018
    %v6020 = vrot.slane %v2252, 5
    %v6021 = vrot.slane %v6020, 4
    %v6022 = vrot.slane %v2253, 5
    %v6023 = vsel %vm5893, %v6021, %v6022
    %v6024 = vrot.slane %v6022, 4
    %v6025 = vrot.slane %v2254, 5
    %v6026 = vsel %vm5893, %v6024, %v6025
    %v6027 = vrot.slane %v2255, 5
    %v6028 = vrot.slane %v6027, 4
    %v6029 = vrot.slane %v2256, 5
    %v6030 = vsel %vm5893, %v6028, %v6029
    %v6031 = vrot.slane %v6029, 4
    %v6032 = vrot.slane %v2257, 5
    %v6033 = vsel %vm5893, %v6031, %v6032
    %v6034 = vrot.slane %v2258, 5
    %v6035 = vrot.slane %v6034, 4
    %v6036 = vrot.slane %v2259, 5
    %v6037 = vsel %vm5893, %v6035, %v6036
    %v6038 = vrot.slane %v6036, 4
    %v6039 = vrot.slane %v2260, 5
    %v6040 = vsel %vm5893, %v6038, %v6039
    %v6041 = vrot.slane %v2261, 5
    %v6042 = vrot.slane %v6041, 4
    %v6043 = vrot.slane %v2262, 5
    %v6044 = vsel %vm5893, %v6042, %v6043
    %v6045 = vrot.slane %v6043, 4
    %v6046 = vrot.slane %v2263, 5
    %v6047 = vsel %vm5893, %v6045, %v6046
    %v6048 = vrot.slane %v2264, 5
    %v6049 = vrot.slane %v6048, 4
    %v6050 = vrot.slane %v2265, 5
    %v6051 = vsel %vm5893, %v6049, %v6050
    %v6052 = vrot.slane %v6050, 4
    %v6053 = vrot.slane %v2266, 5
    %v6054 = vsel %vm5893, %v6052, %v6053
    %v6055 = vrot.slane %v2267, 5
    %v6056 = vrot.slane %v6055, 4
    %v6057 = vrot.slane %v2268, 5
    %v6058 = vsel %vm5893, %v6056, %v6057
    %v6059 = vrot.slane %v6057, 4
    %v6060 = vrot.slane %v2269, 5
    %v6061 = vsel %vm5893, %v6059, %v6060
    %v6062 = vrot.slane %v2270, 5
    %v6063 = vrot.slane %v6062, 4
    %v6064 = vrot.slane %v2271, 5
    %v6065 = vsel %vm5893, %v6063, %v6064
    %v6066 = vrot.slane %v6064, 4
    %v6067 = vrot.slane %v2272, 5
    %v6068 = vsel %vm5893, %v6066, %v6067
    %v6069 = vrot.slane %v2273, 5
    %v6070 = vrot.slane %v6069, 4
    %v6071 = vrot.slane %v2274, 5
    %v6072 = vsel %vm5893, %v6070, %v6071
    %v6073 = vrot.slane %v6071, 4
    %v6074 = vrot.slane %v2275, 5
    %v6075 = vsel %vm5893, %v6073, %v6074
    %v6076 = vrot.slane %v2276, 5
    %v6077 = vrot.slane %v6076, 4
    %v6078 = vrot.slane %v2277, 5
    %v6079 = vsel %vm5893, %v6077, %v6078
    %v6080 = vrot.slane %v6078, 4
    %v6081 = vrot.slane %v2278, 5
    %v6082 = vsel %vm5893, %v6080, %v6081
    %v6083 = vrot.slane %v2279, 5
    %v6084 = vrot.slane %v6083, 4
    %v6085 = vrot.slane %v2280, 5
    %v6086 = vsel %vm5893, %v6084, %v6085
    %v6087 = vrot.slane %v6085, 4
    %v6088 = vrot.slane %v2281, 5
    %v6089 = vsel %vm5893, %v6087, %v6088
    %v6090 = vrot.slane %v2282, 5
    %v6091 = vrot.slane %v6090, 4
    %v6092 = vrot.slane %v2283, 5
    %v6093 = vsel %vm5893, %v6091, %v6092
    %v6094 = vrot.slane %v6092, 4
    %v6095 = vrot.slane %v2284, 5
    %v6096 = vsel %vm5893, %v6094, %v6095
    %v6097 = vrot.slane %v2285, 5
    %v6098 = vrot.slane %v6097, 4
    %v6099 = vrot.slane %v2286, 5
    %v6100 = vsel %vm5893, %v6098, %v6099
    %v6101 = vrot.slane %v6099, 4
    %v6102 = vrot.slane %v2287, 5
    %v6103 = vsel %vm5893, %v6101, %v6102
    %v6104 = vrot.slane %v2288, 5
    %v6105 = vrot.slane %v6104, 4
    %v6106 = vrot.slane %v2289, 5
    %v6107 = vsel %vm5893, %v6105, %v6106
    %v6108 = vrot.slane %v6106, 4
    %v6109 = vrot.slane %v2290, 5
    %v6110 = vsel %vm5893, %v6108, %v6109
    %v6111 = vrot.slane %v2291, 5
    %v6112 = vrot.slane %v6111, 4
    %v6113 = vrot.slane %v2292, 5
    %v6114 = vsel %vm5893, %v6112, %v6113
    %v6115 = vrot.slane %v6113, 4
    %v6116 = vrot.slane %v2293, 5
    %v6117 = vsel %vm5893, %v6115, %v6116
    %s6118 = scalar_lea.vmem %s2, 64
    %v6119 = vld [vmem:[%s6118] sm:$0xf]
    %v6120 = vld [vmem:[%s6118 + $0x4] sm:$0xf]
    %v6121 = vld [vmem:[%s6118 + $0x8] sm:$0xf]
    %v6122 = vld [vmem:[%s6118 + $0xc] sm:$0xf]
    %v6123 = vld [vmem:[%s6118 + $0x10] sm:$0xf]
    %v6124 = vld [vmem:[%s6118 + $0x14] sm:$0xf]
    %v6125 = vld [vmem:[%s6118 + $0x18] sm:$0xf]
    %v6126 = vld [vmem:[%s6118 + $0x1c] sm:$0xf]
    %v6127 = vunpack.c.l.b16 %v5897
    %v6128 = vunpack.c.l.b16 %v5900
    %v6129 = vunpack.c.l.b16 %v5904
    %v6130 = vunpack.c.l.b16 %v5907
    %v6131 = vunpack.c.l.b16 %v5911
    %v6132 = vunpack.c.l.b16 %v5914
    %v6133 = vunpack.c.l.b16 %v5918
    %v6134 = vunpack.c.l.b16 %v5921
    %v6135 = vunpack.c.l.b16 %v5925
    %v6136 = vunpack.c.l.b16 %v5928
    %v6137 = vunpack.c.l.b16 %v5932
    %v6138 = vunpack.c.l.b16 %v5935
    %v6139 = vunpack.c.l.b16 %v5939
    %v6140 = vunpack.c.l.b16 %v5942
    %v6141 = vunpack.c.l.b16 %v5946
    %v6142 = vunpack.c.l.b16 %v5949
    %v6143 = vunpack.c.l.b16 %v5953
    %v6144 = vunpack.c.l.b16 %v5956
    %v6145 = vunpack.c.l.b16 %v5960
    %v6146 = vunpack.c.l.b16 %v5963
    %v6147 = vunpack.c.l.b16 %v5967
    %v6148 = vunpack.c.l.b16 %v5970
    %v6149 = vunpack.c.l.b16 %v5974
    %v6150 = vunpack.c.l.b16 %v5977
    %v6151 = vunpack.c.l.b16 %v5981
    %v6152 = vunpack.c.l.b16 %v5984
    %v6153 = vunpack.c.l.b16 %v5988
    %v6154 = vunpack.c.l.b16 %v5991
    %v6155 = vunpack.c.l.b16 %v5995
    %v6156 = vunpack.c.l.b16 %v5998
    %v6157 = vunpack.c.l.b16 %v6002
    %v6158 = vunpack.c.l.b16 %v6005
    %v6159 = vunpack.c.l.b16 %v6009
    %v6160 = vunpack.c.l.b16 %v6012
    %v6161 = vunpack.c.l.b16 %v6016
    %v6162 = vunpack.c.l.b16 %v6019
    %v6163 = vunpack.c.l.b16 %v6023
    %v6164 = vunpack.c.l.b16 %v6026
    %v6165 = vunpack.c.l.b16 %v6030
    %v6166 = vunpack.c.l.b16 %v6033
    %v6167 = vunpack.c.l.b16 %v6037
    %v6168 = vunpack.c.l.b16 %v6040
    %v6169 = vunpack.c.l.b16 %v6044
    %v6170 = vunpack.c.l.b16 %v6047
    %v6171 = vunpack.c.l.b16 %v6051
    %v6172 = vunpack.c.l.b16 %v6054
    %v6173 = vunpack.c.l.b16 %v6058
    %v6174 = vunpack.c.l.b16 %v6061
    %v6175 = vunpack.c.l.b16 %v6065
    %v6176 = vunpack.c.l.b16 %v6068
    %v6177 = vunpack.c.l.b16 %v6072
    %v6178 = vunpack.c.l.b16 %v6075
    %v6179 = vunpack.c.l.b16 %v6079
    %v6180 = vunpack.c.l.b16 %v6082
    %v6181 = vunpack.c.l.b16 %v6086
    %v6182 = vunpack.c.l.b16 %v6089
    %v6183 = vunpack.c.l.b16 %v6093
    %v6184 = vunpack.c.l.b16 %v6096
    %v6185 = vunpack.c.l.b16 %v6100
    %v6186 = vunpack.c.l.b16 %v6103
    %v6187 = vunpack.c.l.b16 %v6107
    %v6188 = vunpack.c.l.b16 %v6110
    %v6189 = vunpack.c.l.b16 %v6114
    %v6190 = vunpack.c.l.b16 %v6117
    %v6191 = vpack.c.b16 %v6128, %v6127
    %v6192 = vpack.c.b16 %v6130, %v6129
    %v6193 = vpack.c.b16 %v6132, %v6131
    %v6194 = vpack.c.b16 %v6134, %v6133
    %v6195 = vpack.c.b16 %v6136, %v6135
    %v6196 = vpack.c.b16 %v6138, %v6137
    %v6197 = vpack.c.b16 %v6140, %v6139
    %v6198 = vpack.c.b16 %v6142, %v6141
    %v6199 = vpack.c.b16 %v6144, %v6143
    %v6200 = vpack.c.b16 %v6146, %v6145
    %v6201 = vpack.c.b16 %v6148, %v6147
    %v6202 = vpack.c.b16 %v6150, %v6149
    %v6203 = vpack.c.b16 %v6152, %v6151
    %v6204 = vpack.c.b16 %v6154, %v6153
    %v6205 = vpack.c.b16 %v6156, %v6155
    %v6206 = vpack.c.b16 %v6158, %v6157
    %v6207 = vpack.c.b16 %v6160, %v6159
    %v6208 = vpack.c.b16 %v6162, %v6161
    %v6209 = vpack.c.b16 %v6164, %v6163
    %v6210 = vpack.c.b16 %v6166, %v6165
    %v6211 = vpack.c.b16 %v6168, %v6167
    %v6212 = vpack.c.b16 %v6170, %v6169
    %v6213 = vpack.c.b16 %v6172, %v6171
    %v6214 = vpack.c.b16 %v6174, %v6173
    %v6215 = vpack.c.b16 %v6176, %v6175
    %v6216 = vpack.c.b16 %v6178, %v6177
    %v6217 = vpack.c.b16 %v6180, %v6179
    %v6218 = vpack.c.b16 %v6182, %v6181
    %v6219 = vpack.c.b16 %v6184, %v6183
    %v6220 = vpack.c.b16 %v6186, %v6185
    %v6221 = vpack.c.b16 %v6188, %v6187
    %v6222 = vpack.c.b16 %v6190, %v6189
    %v6231 = vunpack.c.l.b16 %v6119
    %v6232 = vunpack.c.l.b16 %v6120
    %v6233 = vunpack.c.l.b16 %v6121
    %v6234 = vunpack.c.l.b16 %v6122
    %v6235 = vunpack.c.l.b16 %v6123
    %v6236 = vunpack.c.l.b16 %v6124
    %v6237 = vunpack.c.l.b16 %v6125
    %v6238 = vunpack.c.l.b16 %v6126
    %v6239 = vpack.c.b16 %v6232, %v6231
    %v6240 = vpack.c.b16 %v6234, %v6233
    %v6241 = vpack.c.b16 %v6236, %v6235
    %v6242 = vpack.c.b16 %v6238, %v6237
    %v6248 = vsel %vm2501, %v6191, 0
    %v6251 = vsel %vm2501, %v6192, 0
    %v6254 = vsel %vm2501, %v6193, 0
    %v6257 = vsel %vm2501, %v6194, 0
    %v6260 = vsel %vm2501, %v6195, 0
    %v6263 = vsel %vm2501, %v6196, 0
    %v6266 = vsel %vm2501, %v6197, 0
    %v6269 = vsel %vm2501, %v6198, 0
    %v6272 = vsel %vm2501, %v6199, 0
    %v6275 = vsel %vm2501, %v6200, 0
    %v6278 = vsel %vm2501, %v6201, 0
    %v6281 = vsel %vm2501, %v6202, 0
    %v6284 = vsel %vm2501, %v6203, 0
    %v6287 = vsel %vm2501, %v6204, 0
    %v6290 = vsel %vm2501, %v6205, 0
    %v6293 = vsel %vm2501, %v6206, 0
    %v6296 = vsel %vm2501, %v6207, 0
    %v6299 = vsel %vm2501, %v6208, 0
    %v6302 = vsel %vm2501, %v6209, 0
    %v6305 = vsel %vm2501, %v6210, 0
    %v6308 = vsel %vm2501, %v6211, 0
    %v6311 = vsel %vm2501, %v6212, 0
    %v6314 = vsel %vm2501, %v6213, 0
    %v6317 = vsel %vm2501, %v6214, 0
    %v6320 = vsel %vm2501, %v6215, 0
    %v6323 = vsel %vm2501, %v6216, 0
    %v6326 = vsel %vm2501, %v6217, 0
    %v6329 = vsel %vm2501, %v6218, 0
    %v6332 = vsel %vm2501, %v6219, 0
    %v6335 = vsel %vm2501, %v6220, 0
    %v6338 = vsel %vm2501, %v6221, 0
    %v6341 = vsel %vm2501, %v6222, 0
    %6343 = vmatprep.subr.bf16.mxu0 0
    %6344 = vmatpush1.bf16.msra.mxu0 0
    %6345 = vmatprep.subr.bf16.mxu0 0
    %6346 = vmatpush1.bf16.msra.mxu0 0
    %6347 = vmatprep.subr.bf16.mxu0 0
    %6348 = vmatpush1.bf16.msra.mxu0 0
    %6349 = vmatprep.subr.bf16.mxu0 0
    %6350 = vmatpush1.bf16.msra.mxu0 0
    %6351 = vmatprep.subr.bf16.mxu0 0
    %6352 = vmatpush1.bf16.msra.mxu0 %v6242
    %6353 = vmatprep.subr.bf16.mxu0 0
    %6354 = vmatpush1.bf16.msra.mxu0 %v6241
    %6355 = vmatprep.subr.bf16.mxu0 0
    %6356 = vmatpush1.bf16.msra.mxu0 %v6240
    %6357 = vmatprep.subr.bf16.mxu0 0
    %6358 = vmatpush1.bf16.msra.mxu0 %v6239
    %6359 = vmatprep.subr.bf16.mxu0 0
    %6360 = vmatpush2.bf16.msra.mxu0 0
    %6361 = vmatprep.subr.bf16.mxu0 0
    %6362 = vmatpush2.bf16.msra.mxu0 0
    %6363 = vmatprep.subr.bf16.mxu0 0
    %6364 = vmatpush2.bf16.msra.mxu0 0
    %6365 = vmatprep.subr.bf16.mxu0 0
    %6366 = vmatpush2.bf16.msra.mxu0 0
    %6367 = vmatprep.subr.bf16.mxu0 0
    %6368 = vmatpush2.bf16.msra.mxu0 0
    %6369 = vmatprep.subr.bf16.mxu0 0
    %6370 = vmatpush2.bf16.msra.mxu0 0
    %6371 = vmatprep.subr.bf16.mxu0 0
    %6372 = vmatpush2.bf16.msra.mxu0 0
    %6373 = vmatprep.subr.bf16.mxu0 0
    %6374 = vmatpush2.bf16.msra.mxu0 0
    %6375 = vmatprep.mubr.bf16.mxu0 0
    %6376 = vmatmul.mubr.bf16.gmra.mxu0 %v6248
    %v6377 = vpop.f32.mrf.mxu0
    %v6378 = vadd.f32 0.0, %v6377
    %v6379 = vpop.f32.mrf.mxu0
    %v6380 = vpop.f32.mrf.mxu0
    %v6381 = vadd.f32 0.0, %v6380
    %v6382 = vpop.f32.mrf.mxu0
    %6383 = vmatprep.mubr.bf16.mxu0 0
    %6384 = vmatmul.mubr.bf16.gmra.mxu0 %v6251
    %v6385 = vpop.f32.mrf.mxu0
    %v6386 = vadd.f32 0.0, %v6385
    %v6387 = vpop.f32.mrf.mxu0
    %v6388 = vpop.f32.mrf.mxu0
    %v6389 = vadd.f32 0.0, %v6388
    %v6390 = vpop.f32.mrf.mxu0
    %6391 = vmatprep.mubr.bf16.mxu0 0
    %6392 = vmatmul.mubr.bf16.gmra.mxu0 %v6254
    %v6393 = vpop.f32.mrf.mxu0
    %v6394 = vadd.f32 0.0, %v6393
    %v6395 = vpop.f32.mrf.mxu0
    %v6396 = vpop.f32.mrf.mxu0
    %v6397 = vadd.f32 0.0, %v6396
    %v6398 = vpop.f32.mrf.mxu0
    %6399 = vmatprep.mubr.bf16.mxu0 0
    %6400 = vmatmul.mubr.bf16.gmra.mxu0 %v6257
    %v6401 = vpop.f32.mrf.mxu0
    %v6402 = vadd.f32 0.0, %v6401
    %v6403 = vpop.f32.mrf.mxu0
    %v6404 = vpop.f32.mrf.mxu0
    %v6405 = vadd.f32 0.0, %v6404
    %v6406 = vpop.f32.mrf.mxu0
    %6407 = vmatprep.mubr.bf16.mxu0 0
    %6408 = vmatmul.mubr.bf16.gmra.mxu0 %v6260
    %v6409 = vpop.f32.mrf.mxu0
    %v6410 = vadd.f32 0.0, %v6409
    %v6411 = vpop.f32.mrf.mxu0
    %v6412 = vpop.f32.mrf.mxu0
    %v6413 = vadd.f32 0.0, %v6412
    %v6414 = vpop.f32.mrf.mxu0
    %6415 = vmatprep.mubr.bf16.mxu0 0
    %6416 = vmatmul.mubr.bf16.gmra.mxu0 %v6263
    %v6417 = vpop.f32.mrf.mxu0
    %v6418 = vadd.f32 0.0, %v6417
    %v6419 = vpop.f32.mrf.mxu0
    %v6420 = vpop.f32.mrf.mxu0
    %v6421 = vadd.f32 0.0, %v6420
    %v6422 = vpop.f32.mrf.mxu0
    %6423 = vmatprep.mubr.bf16.mxu0 0
    %6424 = vmatmul.mubr.bf16.gmra.mxu0 %v6266
    %v6425 = vpop.f32.mrf.mxu0
    %v6426 = vadd.f32 0.0, %v6425
    %v6427 = vpop.f32.mrf.mxu0
    %v6428 = vpop.f32.mrf.mxu0
    %v6429 = vadd.f32 0.0, %v6428
    %v6430 = vpop.f32.mrf.mxu0
    %6431 = vmatprep.mubr.bf16.mxu0 0
    %6432 = vmatmul.mubr.bf16.gmra.mxu0 %v6269
    %v6433 = vpop.f32.mrf.mxu0
    %v6434 = vadd.f32 0.0, %v6433
    %v6435 = vpop.f32.mrf.mxu0
    %v6436 = vpop.f32.mrf.mxu0
    %v6437 = vadd.f32 0.0, %v6436
    %v6438 = vpop.f32.mrf.mxu0
    %6439 = vmatprep.mubr.bf16.mxu0 0
    %6440 = vmatmul.mubr.bf16.gmra.mxu0 %v6272
    %v6441 = vpop.f32.mrf.mxu0
    %v6442 = vadd.f32 0.0, %v6441
    %v6443 = vpop.f32.mrf.mxu0
    %v6444 = vpop.f32.mrf.mxu0
    %v6445 = vadd.f32 0.0, %v6444
    %v6446 = vpop.f32.mrf.mxu0
    %6447 = vmatprep.mubr.bf16.mxu0 0
    %6448 = vmatmul.mubr.bf16.gmra.mxu0 %v6275
    %v6449 = vpop.f32.mrf.mxu0
    %v6450 = vadd.f32 0.0, %v6449
    %v6451 = vpop.f32.mrf.mxu0
    %v6452 = vpop.f32.mrf.mxu0
    %v6453 = vadd.f32 0.0, %v6452
    %v6454 = vpop.f32.mrf.mxu0
    %6455 = vmatprep.mubr.bf16.mxu0 0
    %6456 = vmatmul.mubr.bf16.gmra.mxu0 %v6278
    %v6457 = vpop.f32.mrf.mxu0
    %v6458 = vadd.f32 0.0, %v6457
    %v6459 = vpop.f32.mrf.mxu0
    %v6460 = vpop.f32.mrf.mxu0
    %v6461 = vadd.f32 0.0, %v6460
    %v6462 = vpop.f32.mrf.mxu0
    %6463 = vmatprep.mubr.bf16.mxu0 0
    %6464 = vmatmul.mubr.bf16.gmra.mxu0 %v6281
    %v6465 = vpop.f32.mrf.mxu0
    %v6466 = vadd.f32 0.0, %v6465
    %v6467 = vpop.f32.mrf.mxu0
    %v6468 = vpop.f32.mrf.mxu0
    %v6469 = vadd.f32 0.0, %v6468
    %v6470 = vpop.f32.mrf.mxu0
    %6471 = vmatprep.mubr.bf16.mxu0 0
    %6472 = vmatmul.mubr.bf16.gmra.mxu0 %v6284
    %v6473 = vpop.f32.mrf.mxu0
    %v6474 = vadd.f32 0.0, %v6473
    %v6475 = vpop.f32.mrf.mxu0
    %v6476 = vpop.f32.mrf.mxu0
    %v6477 = vadd.f32 0.0, %v6476
    %v6478 = vpop.f32.mrf.mxu0
    %6479 = vmatprep.mubr.bf16.mxu0 0
    %6480 = vmatmul.mubr.bf16.gmra.mxu0 %v6287
    %v6481 = vpop.f32.mrf.mxu0
    %v6482 = vadd.f32 0.0, %v6481
    %v6483 = vpop.f32.mrf.mxu0
    %v6484 = vpop.f32.mrf.mxu0
    %v6485 = vadd.f32 0.0, %v6484
    %v6486 = vpop.f32.mrf.mxu0
    %6487 = vmatprep.mubr.bf16.mxu0 0
    %6488 = vmatmul.mubr.bf16.gmra.mxu0 %v6290
    %v6489 = vpop.f32.mrf.mxu0
    %v6490 = vadd.f32 0.0, %v6489
    %v6491 = vpop.f32.mrf.mxu0
    %v6492 = vpop.f32.mrf.mxu0
    %v6493 = vadd.f32 0.0, %v6492
    %v6494 = vpop.f32.mrf.mxu0
    %6495 = vmatprep.mubr.bf16.mxu0 0
    %6496 = vmatmul.mubr.bf16.gmra.mxu0 %v6293
    %v6497 = vpop.f32.mrf.mxu0
    %v6498 = vadd.f32 0.0, %v6497
    %v6499 = vpop.f32.mrf.mxu0
    %v6500 = vpop.f32.mrf.mxu0
    %v6501 = vadd.f32 0.0, %v6500
    %v6502 = vpop.f32.mrf.mxu0
    %6503 = vmatprep.mubr.bf16.mxu0 0
    %6504 = vmatmul.mubr.bf16.gmra.mxu0 %v6296
    %v6505 = vpop.f32.mrf.mxu0
    %v6506 = vadd.f32 0.0, %v6505
    %v6507 = vpop.f32.mrf.mxu0
    %v6508 = vpop.f32.mrf.mxu0
    %v6509 = vadd.f32 0.0, %v6508
    %v6510 = vpop.f32.mrf.mxu0
    %6511 = vmatprep.mubr.bf16.mxu0 0
    %6512 = vmatmul.mubr.bf16.gmra.mxu0 %v6299
    %v6513 = vpop.f32.mrf.mxu0
    %v6514 = vadd.f32 0.0, %v6513
    %v6515 = vpop.f32.mrf.mxu0
    %v6516 = vpop.f32.mrf.mxu0
    %v6517 = vadd.f32 0.0, %v6516
    %v6518 = vpop.f32.mrf.mxu0
    %6519 = vmatprep.mubr.bf16.mxu0 0
    %6520 = vmatmul.mubr.bf16.gmra.mxu0 %v6302
    %v6521 = vpop.f32.mrf.mxu0
    %v6522 = vadd.f32 0.0, %v6521
    %v6523 = vpop.f32.mrf.mxu0
    %v6524 = vpop.f32.mrf.mxu0
    %v6525 = vadd.f32 0.0, %v6524
    %v6526 = vpop.f32.mrf.mxu0
    %6527 = vmatprep.mubr.bf16.mxu0 0
    %6528 = vmatmul.mubr.bf16.gmra.mxu0 %v6305
    %v6529 = vpop.f32.mrf.mxu0
    %v6530 = vadd.f32 0.0, %v6529
    %v6531 = vpop.f32.mrf.mxu0
    %v6532 = vpop.f32.mrf.mxu0
    %v6533 = vadd.f32 0.0, %v6532
    %v6534 = vpop.f32.mrf.mxu0
    %6535 = vmatprep.mubr.bf16.mxu0 0
    %6536 = vmatmul.mubr.bf16.gmra.mxu0 %v6308
    %v6537 = vpop.f32.mrf.mxu0
    %v6538 = vadd.f32 0.0, %v6537
    %v6539 = vpop.f32.mrf.mxu0
    %v6540 = vpop.f32.mrf.mxu0
    %v6541 = vadd.f32 0.0, %v6540
    %v6542 = vpop.f32.mrf.mxu0
    %6543 = vmatprep.mubr.bf16.mxu0 0
    %6544 = vmatmul.mubr.bf16.gmra.mxu0 %v6311
    %v6545 = vpop.f32.mrf.mxu0
    %v6546 = vadd.f32 0.0, %v6545
    %v6547 = vpop.f32.mrf.mxu0
    %v6548 = vpop.f32.mrf.mxu0
    %v6549 = vadd.f32 0.0, %v6548
    %v6550 = vpop.f32.mrf.mxu0
    %6551 = vmatprep.mubr.bf16.mxu0 0
    %6552 = vmatmul.mubr.bf16.gmra.mxu0 %v6314
    %v6553 = vpop.f32.mrf.mxu0
    %v6554 = vadd.f32 0.0, %v6553
    %v6555 = vpop.f32.mrf.mxu0
    %v6556 = vpop.f32.mrf.mxu0
    %v6557 = vadd.f32 0.0, %v6556
    %v6558 = vpop.f32.mrf.mxu0
    %6559 = vmatprep.mubr.bf16.mxu0 0
    %6560 = vmatmul.mubr.bf16.gmra.mxu0 %v6317
    %v6561 = vpop.f32.mrf.mxu0
    %v6562 = vadd.f32 0.0, %v6561
    %v6563 = vpop.f32.mrf.mxu0
    %v6564 = vpop.f32.mrf.mxu0
    %v6565 = vadd.f32 0.0, %v6564
    %v6566 = vpop.f32.mrf.mxu0
    %6567 = vmatprep.mubr.bf16.mxu0 0
    %6568 = vmatmul.mubr.bf16.gmra.mxu0 %v6320
    %v6569 = vpop.f32.mrf.mxu0
    %v6570 = vadd.f32 0.0, %v6569
    %v6571 = vpop.f32.mrf.mxu0
    %v6572 = vpop.f32.mrf.mxu0
    %v6573 = vadd.f32 0.0, %v6572
    %v6574 = vpop.f32.mrf.mxu0
    %6575 = vmatprep.mubr.bf16.mxu0 0
    %6576 = vmatmul.mubr.bf16.gmra.mxu0 %v6323
    %v6577 = vpop.f32.mrf.mxu0
    %v6578 = vadd.f32 0.0, %v6577
    %v6579 = vpop.f32.mrf.mxu0
    %v6580 = vpop.f32.mrf.mxu0
    %v6581 = vadd.f32 0.0, %v6580
    %v6582 = vpop.f32.mrf.mxu0
    %6583 = vmatprep.mubr.bf16.mxu0 0
    %6584 = vmatmul.mubr.bf16.gmra.mxu0 %v6326
    %v6585 = vpop.f32.mrf.mxu0
    %v6586 = vadd.f32 0.0, %v6585
    %v6587 = vpop.f32.mrf.mxu0
    %v6588 = vpop.f32.mrf.mxu0
    %v6589 = vadd.f32 0.0, %v6588
    %v6590 = vpop.f32.mrf.mxu0
    %6591 = vmatprep.mubr.bf16.mxu0 0
    %6592 = vmatmul.mubr.bf16.gmra.mxu0 %v6329
    %v6593 = vpop.f32.mrf.mxu0
    %v6594 = vadd.f32 0.0, %v6593
    %v6595 = vpop.f32.mrf.mxu0
    %v6596 = vpop.f32.mrf.mxu0
    %v6597 = vadd.f32 0.0, %v6596
    %v6598 = vpop.f32.mrf.mxu0
    %6599 = vmatprep.mubr.bf16.mxu0 0
    %6600 = vmatmul.mubr.bf16.gmra.mxu0 %v6332
    %v6601 = vpop.f32.mrf.mxu0
    %v6602 = vadd.f32 0.0, %v6601
    %v6603 = vpop.f32.mrf.mxu0
    %v6604 = vpop.f32.mrf.mxu0
    %v6605 = vadd.f32 0.0, %v6604
    %v6606 = vpop.f32.mrf.mxu0
    %6607 = vmatprep.mubr.bf16.mxu0 0
    %6608 = vmatmul.mubr.bf16.gmra.mxu0 %v6335
    %v6609 = vpop.f32.mrf.mxu0
    %v6610 = vadd.f32 0.0, %v6609
    %v6611 = vpop.f32.mrf.mxu0
    %v6612 = vpop.f32.mrf.mxu0
    %v6613 = vadd.f32 0.0, %v6612
    %v6614 = vpop.f32.mrf.mxu0
    %6615 = vmatprep.mubr.bf16.mxu0 0
    %6616 = vmatmul.mubr.bf16.gmra.mxu0 %v6338
    %v6617 = vpop.f32.mrf.mxu0
    %v6618 = vadd.f32 0.0, %v6617
    %v6619 = vpop.f32.mrf.mxu0
    %v6620 = vpop.f32.mrf.mxu0
    %v6621 = vadd.f32 0.0, %v6620
    %v6622 = vpop.f32.mrf.mxu0
    %6623 = vmatprep.mubr.bf16.mxu0 0
    %6624 = vmatmul.mubr.bf16.gmra.mxu0 %v6341
    %v6625 = vpop.f32.mrf.mxu0
    %v6626 = vadd.f32 0.0, %v6625
    %v6627 = vpop.f32.mrf.mxu0
    %v6628 = vpop.f32.mrf.mxu0
    %v6629 = vadd.f32 0.0, %v6628
    %v6630 = vpop.f32.mrf.mxu0
    %6631 = vdwg.mxu0
    %v6632 = vadd.f32 %v5795, %v6378
    %v6633 = vadd.f32 %v5796, %v6381
    %v6634 = vadd.f32 %v5797, %v6386
    %v6635 = vadd.f32 %v5798, %v6389
    %v6636 = vadd.f32 %v5799, %v6394
    %v6637 = vadd.f32 %v5800, %v6397
    %v6638 = vadd.f32 %v5801, %v6402
    %v6639 = vadd.f32 %v5802, %v6405
    %v6640 = vadd.f32 %v5803, %v6410
    %v6641 = vadd.f32 %v5804, %v6413
    %v6642 = vadd.f32 %v5805, %v6418
    %v6643 = vadd.f32 %v5806, %v6421
    %v6644 = vadd.f32 %v5807, %v6426
    %v6645 = vadd.f32 %v5808, %v6429
    %v6646 = vadd.f32 %v5809, %v6434
    %v6647 = vadd.f32 %v5810, %v6437
    %v6648 = vadd.f32 %v5811, %v6442
    %v6649 = vadd.f32 %v5812, %v6445
    %v6650 = vadd.f32 %v5813, %v6450
    %v6651 = vadd.f32 %v5814, %v6453
    %v6652 = vadd.f32 %v5815, %v6458
    %v6653 = vadd.f32 %v5816, %v6461
    %v6654 = vadd.f32 %v5817, %v6466
    %v6655 = vadd.f32 %v5818, %v6469
    %v6656 = vadd.f32 %v5819, %v6474
    %v6657 = vadd.f32 %v5820, %v6477
    %v6658 = vadd.f32 %v5821, %v6482
    %v6659 = vadd.f32 %v5822, %v6485
    %v6660 = vadd.f32 %v5823, %v6490
    %v6661 = vadd.f32 %v5824, %v6493
    %v6662 = vadd.f32 %v5825, %v6498
    %v6663 = vadd.f32 %v5826, %v6501
    %v6664 = vadd.f32 %v5827, %v6506
    %v6665 = vadd.f32 %v5828, %v6509
    %v6666 = vadd.f32 %v5829, %v6514
    %v6667 = vadd.f32 %v5830, %v6517
    %v6668 = vadd.f32 %v5831, %v6522
    %v6669 = vadd.f32 %v5832, %v6525
    %v6670 = vadd.f32 %v5833, %v6530
    %v6671 = vadd.f32 %v5834, %v6533
    %v6672 = vadd.f32 %v5835, %v6538
    %v6673 = vadd.f32 %v5836, %v6541
    %v6674 = vadd.f32 %v5837, %v6546
    %v6675 = vadd.f32 %v5838, %v6549
    %v6676 = vadd.f32 %v5839, %v6554
    %v6677 = vadd.f32 %v5840, %v6557
    %v6678 = vadd.f32 %v5841, %v6562
    %v6679 = vadd.f32 %v5842, %v6565
    %v6680 = vadd.f32 %v5843, %v6570
    %v6681 = vadd.f32 %v5844, %v6573
    %v6682 = vadd.f32 %v5845, %v6578
    %v6683 = vadd.f32 %v5846, %v6581
    %v6684 = vadd.f32 %v5847, %v6586
    %v6685 = vadd.f32 %v5848, %v6589
    %v6686 = vadd.f32 %v5849, %v6594
    %v6687 = vadd.f32 %v5850, %v6597
    %v6688 = vadd.f32 %v5851, %v6602
    %v6689 = vadd.f32 %v5852, %v6605
    %v6690 = vadd.f32 %v5853, %v6610
    %v6691 = vadd.f32 %v5854, %v6613
    %v6692 = vadd.f32 %v5855, %v6618
    %v6693 = vadd.f32 %v5856, %v6621
    %v6694 = vadd.f32 %v5857, %v6626
    %v6695 = vadd.f32 %v5858, %v6629
    %v6698 = vrot.slane %v2240, 5
    %v6699 = vrot.slane %v6698, 4
    %v6700 = vrot.slane %v2241, 5
    %v6701 = vsel %vm5893, %v6699, %v6700
    %v6702 = vrot.slane %v6700, 4
    %v6703 = vrot.slane %v2242, 5
    %v6704 = vsel %vm5893, %v6702, %v6703
    %v6705 = vrot.slane %v2294, 5
    %v6706 = vrot.slane %v6705, 4
    %v6707 = vrot.slane %v2295, 5
    %v6708 = vsel %vm5893, %v6706, %v6707
    %v6709 = vrot.slane %v6707, 4
    %v6710 = vrot.slane %v2296, 5
    %v6711 = vsel %vm5893, %v6709, %v6710
    %s6712 = scalar_lea.vmem %s2, 160
    %v6713 = vld [vmem:[%s6712] sm:$0xf]
    %v6714 = vld [vmem:[%s6712 + $0x4] sm:$0xf]
    %v6715 = vld [vmem:[%s6712 + $0x8] sm:$0xf]
    %v6716 = vld [vmem:[%s6712 + $0xc] sm:$0xf]
    %v6717 = vld [vmem:[%s6712 + $0x10] sm:$0xf]
    %v6718 = vld [vmem:[%s6712 + $0x14] sm:$0xf]
    %v6719 = vld [vmem:[%s6712 + $0x18] sm:$0xf]
    %v6720 = vld [vmem:[%s6712 + $0x1c] sm:$0xf]
    %v6721 = vunpack.c.l.b16 %v6701
    %v6722 = vunpack.c.l.b16 %v6704
    %v6723 = vunpack.c.l.b16 %v6708
    %v6724 = vunpack.c.l.b16 %v6711
    %v6725 = vpack.c.b16 %v6722, %v6721
    %v6726 = vpack.c.b16 %v6724, %v6723
    %v6735 = vunpack.c.l.b16 %v6713
    %v6736 = vunpack.c.l.b16 %v6714
    %v6737 = vunpack.c.l.b16 %v6715
    %v6738 = vunpack.c.l.b16 %v6716
    %v6739 = vunpack.c.l.b16 %v6717
    %v6740 = vunpack.c.l.b16 %v6718
    %v6741 = vunpack.c.l.b16 %v6719
    %v6742 = vunpack.c.l.b16 %v6720
    %v6743 = vpack.c.b16 %v6736, %v6735
    %v6744 = vpack.c.b16 %v6738, %v6737
    %v6745 = vpack.c.b16 %v6740, %v6739
    %v6746 = vpack.c.b16 %v6742, %v6741
    %v6752 = vsel %vm2501, %v6725, 0
    %v6755 = vsel %vm2501, %v6726, 0
    %6757 = vmatprep.subr.bf16.mxu0 0
    %6758 = vmatpush1.bf16.msra.mxu0 0
    %6759 = vmatprep.subr.bf16.mxu0 0
    %6760 = vmatpush1.bf16.msra.mxu0 0
    %6761 = vmatprep.subr.bf16.mxu0 0
    %6762 = vmatpush1.bf16.msra.mxu0 0
    %6763 = vmatprep.subr.bf16.mxu0 0
    %6764 = vmatpush1.bf16.msra.mxu0 0
    %6765 = vmatprep.subr.bf16.mxu0 0
    %6766 = vmatpush1.bf16.msra.mxu0 %v6746
    %6767 = vmatprep.subr.bf16.mxu0 0
    %6768 = vmatpush1.bf16.msra.mxu0 %v6745
    %6769 = vmatprep.subr.bf16.mxu0 0
    %6770 = vmatpush1.bf16.msra.mxu0 %v6744
    %6771 = vmatprep.subr.bf16.mxu0 0
    %6772 = vmatpush1.bf16.msra.mxu0 %v6743
    %6773 = vmatprep.subr.bf16.mxu0 0
    %6774 = vmatpush2.bf16.msra.mxu0 0
    %6775 = vmatprep.subr.bf16.mxu0 0
    %6776 = vmatpush2.bf16.msra.mxu0 0
    %6777 = vmatprep.subr.bf16.mxu0 0
    %6778 = vmatpush2.bf16.msra.mxu0 0
    %6779 = vmatprep.subr.bf16.mxu0 0
    %6780 = vmatpush2.bf16.msra.mxu0 0
    %6781 = vmatprep.subr.bf16.mxu0 0
    %6782 = vmatpush2.bf16.msra.mxu0 0
    %6783 = vmatprep.subr.bf16.mxu0 0
    %6784 = vmatpush2.bf16.msra.mxu0 0
    %6785 = vmatprep.subr.bf16.mxu0 0
    %6786 = vmatpush2.bf16.msra.mxu0 0
    %6787 = vmatprep.subr.bf16.mxu0 0
    %6788 = vmatpush2.bf16.msra.mxu0 0
    %6789 = vmatprep.mubr.bf16.mxu0 0
    %6790 = vmatmul.mubr.bf16.gmra.mxu0 %v6251
    %v6791 = vpop.f32.mrf.mxu0
    %v6792 = vadd.f32 0.0, %v6791
    %v6793 = vpop.f32.mrf.mxu0
    %v6794 = vpop.f32.mrf.mxu0
    %v6795 = vadd.f32 0.0, %v6794
    %v6796 = vpop.f32.mrf.mxu0
    %6797 = vmatprep.mubr.bf16.mxu0 0
    %6798 = vmatmul.mubr.bf16.gmra.mxu0 %v6254
    %v6799 = vpop.f32.mrf.mxu0
    %v6800 = vadd.f32 0.0, %v6799
    %v6801 = vpop.f32.mrf.mxu0
    %v6802 = vpop.f32.mrf.mxu0
    %v6803 = vadd.f32 0.0, %v6802
    %v6804 = vpop.f32.mrf.mxu0
    %6805 = vmatprep.mubr.bf16.mxu0 0
    %6806 = vmatmul.mubr.bf16.gmra.mxu0 %v6257
    %v6807 = vpop.f32.mrf.mxu0
    %v6808 = vadd.f32 0.0, %v6807
    %v6809 = vpop.f32.mrf.mxu0
    %v6810 = vpop.f32.mrf.mxu0
    %v6811 = vadd.f32 0.0, %v6810
    %v6812 = vpop.f32.mrf.mxu0
    %6813 = vmatprep.mubr.bf16.mxu0 0
    %6814 = vmatmul.mubr.bf16.gmra.mxu0 %v6260
    %v6815 = vpop.f32.mrf.mxu0
    %v6816 = vadd.f32 0.0, %v6815
    %v6817 = vpop.f32.mrf.mxu0
    %v6818 = vpop.f32.mrf.mxu0
    %v6819 = vadd.f32 0.0, %v6818
    %v6820 = vpop.f32.mrf.mxu0
    %6821 = vmatprep.mubr.bf16.mxu0 0
    %6822 = vmatmul.mubr.bf16.gmra.mxu0 %v6263
    %v6823 = vpop.f32.mrf.mxu0
    %v6824 = vadd.f32 0.0, %v6823
    %v6825 = vpop.f32.mrf.mxu0
    %v6826 = vpop.f32.mrf.mxu0
    %v6827 = vadd.f32 0.0, %v6826
    %v6828 = vpop.f32.mrf.mxu0
    %6829 = vmatprep.mubr.bf16.mxu0 0
    %6830 = vmatmul.mubr.bf16.gmra.mxu0 %v6266
    %v6831 = vpop.f32.mrf.mxu0
    %v6832 = vadd.f32 0.0, %v6831
    %v6833 = vpop.f32.mrf.mxu0
    %v6834 = vpop.f32.mrf.mxu0
    %v6835 = vadd.f32 0.0, %v6834
    %v6836 = vpop.f32.mrf.mxu0
    %6837 = vmatprep.mubr.bf16.mxu0 0
    %6838 = vmatmul.mubr.bf16.gmra.mxu0 %v6269
    %v6839 = vpop.f32.mrf.mxu0
    %v6840 = vadd.f32 0.0, %v6839
    %v6841 = vpop.f32.mrf.mxu0
    %v6842 = vpop.f32.mrf.mxu0
    %v6843 = vadd.f32 0.0, %v6842
    %v6844 = vpop.f32.mrf.mxu0
    %6845 = vmatprep.mubr.bf16.mxu0 0
    %6846 = vmatmul.mubr.bf16.gmra.mxu0 %v6272
    %v6847 = vpop.f32.mrf.mxu0
    %v6848 = vadd.f32 0.0, %v6847
    %v6849 = vpop.f32.mrf.mxu0
    %v6850 = vpop.f32.mrf.mxu0
    %v6851 = vadd.f32 0.0, %v6850
    %v6852 = vpop.f32.mrf.mxu0
    %6853 = vmatprep.mubr.bf16.mxu0 0
    %6854 = vmatmul.mubr.bf16.gmra.mxu0 %v6275
    %v6855 = vpop.f32.mrf.mxu0
    %v6856 = vadd.f32 0.0, %v6855
    %v6857 = vpop.f32.mrf.mxu0
    %v6858 = vpop.f32.mrf.mxu0
    %v6859 = vadd.f32 0.0, %v6858
    %v6860 = vpop.f32.mrf.mxu0
    %6861 = vmatprep.mubr.bf16.mxu0 0
    %6862 = vmatmul.mubr.bf16.gmra.mxu0 %v6278
    %v6863 = vpop.f32.mrf.mxu0
    %v6864 = vadd.f32 0.0, %v6863
    %v6865 = vpop.f32.mrf.mxu0
    %v6866 = vpop.f32.mrf.mxu0
    %v6867 = vadd.f32 0.0, %v6866
    %v6868 = vpop.f32.mrf.mxu0
    %6869 = vmatprep.mubr.bf16.mxu0 0
    %6870 = vmatmul.mubr.bf16.gmra.mxu0 %v6281
    %v6871 = vpop.f32.mrf.mxu0
    %v6872 = vadd.f32 0.0, %v6871
    %v6873 = vpop.f32.mrf.mxu0
    %v6874 = vpop.f32.mrf.mxu0
    %v6875 = vadd.f32 0.0, %v6874
    %v6876 = vpop.f32.mrf.mxu0
    %6877 = vmatprep.mubr.bf16.mxu0 0
    %6878 = vmatmul.mubr.bf16.gmra.mxu0 %v6284
    %v6879 = vpop.f32.mrf.mxu0
    %v6880 = vadd.f32 0.0, %v6879
    %v6881 = vpop.f32.mrf.mxu0
    %v6882 = vpop.f32.mrf.mxu0
    %v6883 = vadd.f32 0.0, %v6882
    %v6884 = vpop.f32.mrf.mxu0
    %6885 = vmatprep.mubr.bf16.mxu0 0
    %6886 = vmatmul.mubr.bf16.gmra.mxu0 %v6287
    %v6887 = vpop.f32.mrf.mxu0
    %v6888 = vadd.f32 0.0, %v6887
    %v6889 = vpop.f32.mrf.mxu0
    %v6890 = vpop.f32.mrf.mxu0
    %v6891 = vadd.f32 0.0, %v6890
    %v6892 = vpop.f32.mrf.mxu0
    %6893 = vmatprep.mubr.bf16.mxu0 0
    %6894 = vmatmul.mubr.bf16.gmra.mxu0 %v6290
    %v6895 = vpop.f32.mrf.mxu0
    %v6896 = vadd.f32 0.0, %v6895
    %v6897 = vpop.f32.mrf.mxu0
    %v6898 = vpop.f32.mrf.mxu0
    %v6899 = vadd.f32 0.0, %v6898
    %v6900 = vpop.f32.mrf.mxu0
    %6901 = vmatprep.mubr.bf16.mxu0 0
    %6902 = vmatmul.mubr.bf16.gmra.mxu0 %v6293
    %v6903 = vpop.f32.mrf.mxu0
    %v6904 = vadd.f32 0.0, %v6903
    %v6905 = vpop.f32.mrf.mxu0
    %v6906 = vpop.f32.mrf.mxu0
    %v6907 = vadd.f32 0.0, %v6906
    %v6908 = vpop.f32.mrf.mxu0
    %6909 = vmatprep.mubr.bf16.mxu0 0
    %6910 = vmatmul.mubr.bf16.gmra.mxu0 %v6752
    %v6911 = vpop.f32.mrf.mxu0
    %v6912 = vadd.f32 0.0, %v6911
    %v6913 = vpop.f32.mrf.mxu0
    %v6914 = vpop.f32.mrf.mxu0
    %v6915 = vadd.f32 0.0, %v6914
    %v6916 = vpop.f32.mrf.mxu0
    %6917 = vmatprep.mubr.bf16.mxu0 0
    %6918 = vmatmul.mubr.bf16.gmra.mxu0 %v6299
    %v6919 = vpop.f32.mrf.mxu0
    %v6920 = vadd.f32 0.0, %v6919
    %v6921 = vpop.f32.mrf.mxu0
    %v6922 = vpop.f32.mrf.mxu0
    %v6923 = vadd.f32 0.0, %v6922
    %v6924 = vpop.f32.mrf.mxu0
    %6925 = vmatprep.mubr.bf16.mxu0 0
    %6926 = vmatmul.mubr.bf16.gmra.mxu0 %v6302
    %v6927 = vpop.f32.mrf.mxu0
    %v6928 = vadd.f32 0.0, %v6927
    %v6929 = vpop.f32.mrf.mxu0
    %v6930 = vpop.f32.mrf.mxu0
    %v6931 = vadd.f32 0.0, %v6930
    %v6932 = vpop.f32.mrf.mxu0
    %6933 = vmatprep.mubr.bf16.mxu0 0
    %6934 = vmatmul.mubr.bf16.gmra.mxu0 %v6305
    %v6935 = vpop.f32.mrf.mxu0
    %v6936 = vadd.f32 0.0, %v6935
    %v6937 = vpop.f32.mrf.mxu0
    %v6938 = vpop.f32.mrf.mxu0
    %v6939 = vadd.f32 0.0, %v6938
    %v6940 = vpop.f32.mrf.mxu0
    %6941 = vmatprep.mubr.bf16.mxu0 0
    %6942 = vmatmul.mubr.bf16.gmra.mxu0 %v6308
    %v6943 = vpop.f32.mrf.mxu0
    %v6944 = vadd.f32 0.0, %v6943
    %v6945 = vpop.f32.mrf.mxu0
    %v6946 = vpop.f32.mrf.mxu0
    %v6947 = vadd.f32 0.0, %v6946
    %v6948 = vpop.f32.mrf.mxu0
    %6949 = vmatprep.mubr.bf16.mxu0 0
    %6950 = vmatmul.mubr.bf16.gmra.mxu0 %v6311
    %v6951 = vpop.f32.mrf.mxu0
    %v6952 = vadd.f32 0.0, %v6951
    %v6953 = vpop.f32.mrf.mxu0
    %v6954 = vpop.f32.mrf.mxu0
    %v6955 = vadd.f32 0.0, %v6954
    %v6956 = vpop.f32.mrf.mxu0
    %6957 = vmatprep.mubr.bf16.mxu0 0
    %6958 = vmatmul.mubr.bf16.gmra.mxu0 %v6314
    %v6959 = vpop.f32.mrf.mxu0
    %v6960 = vadd.f32 0.0, %v6959
    %v6961 = vpop.f32.mrf.mxu0
    %v6962 = vpop.f32.mrf.mxu0
    %v6963 = vadd.f32 0.0, %v6962
    %v6964 = vpop.f32.mrf.mxu0
    %6965 = vmatprep.mubr.bf16.mxu0 0
    %6966 = vmatmul.mubr.bf16.gmra.mxu0 %v6317
    %v6967 = vpop.f32.mrf.mxu0
    %v6968 = vadd.f32 0.0, %v6967
    %v6969 = vpop.f32.mrf.mxu0
    %v6970 = vpop.f32.mrf.mxu0
    %v6971 = vadd.f32 0.0, %v6970
    %v6972 = vpop.f32.mrf.mxu0
    %6973 = vmatprep.mubr.bf16.mxu0 0
    %6974 = vmatmul.mubr.bf16.gmra.mxu0 %v6320
    %v6975 = vpop.f32.mrf.mxu0
    %v6976 = vadd.f32 0.0, %v6975
    %v6977 = vpop.f32.mrf.mxu0
    %v6978 = vpop.f32.mrf.mxu0
    %v6979 = vadd.f32 0.0, %v6978
    %v6980 = vpop.f32.mrf.mxu0
    %6981 = vmatprep.mubr.bf16.mxu0 0
    %6982 = vmatmul.mubr.bf16.gmra.mxu0 %v6323
    %v6983 = vpop.f32.mrf.mxu0
    %v6984 = vadd.f32 0.0, %v6983
    %v6985 = vpop.f32.mrf.mxu0
    %v6986 = vpop.f32.mrf.mxu0
    %v6987 = vadd.f32 0.0, %v6986
    %v6988 = vpop.f32.mrf.mxu0
    %6989 = vmatprep.mubr.bf16.mxu0 0
    %6990 = vmatmul.mubr.bf16.gmra.mxu0 %v6326
    %v6991 = vpop.f32.mrf.mxu0
    %v6992 = vadd.f32 0.0, %v6991
    %v6993 = vpop.f32.mrf.mxu0
    %v6994 = vpop.f32.mrf.mxu0
    %v6995 = vadd.f32 0.0, %v6994
    %v6996 = vpop.f32.mrf.mxu0
    %6997 = vmatprep.mubr.bf16.mxu0 0
    %6998 = vmatmul.mubr.bf16.gmra.mxu0 %v6329
    %v6999 = vpop.f32.mrf.mxu0
    %v7000 = vadd.f32 0.0, %v6999
    %v7001 = vpop.f32.mrf.mxu0
    %v7002 = vpop.f32.mrf.mxu0
    %v7003 = vadd.f32 0.0, %v7002
    %v7004 = vpop.f32.mrf.mxu0
    %7005 = vmatprep.mubr.bf16.mxu0 0
    %7006 = vmatmul.mubr.bf16.gmra.mxu0 %v6332
    %v7007 = vpop.f32.mrf.mxu0
    %v7008 = vadd.f32 0.0, %v7007
    %v7009 = vpop.f32.mrf.mxu0
    %v7010 = vpop.f32.mrf.mxu0
    %v7011 = vadd.f32 0.0, %v7010
    %v7012 = vpop.f32.mrf.mxu0
    %7013 = vmatprep.mubr.bf16.mxu0 0
    %7014 = vmatmul.mubr.bf16.gmra.mxu0 %v6335
    %v7015 = vpop.f32.mrf.mxu0
    %v7016 = vadd.f32 0.0, %v7015
    %v7017 = vpop.f32.mrf.mxu0
    %v7018 = vpop.f32.mrf.mxu0
    %v7019 = vadd.f32 0.0, %v7018
    %v7020 = vpop.f32.mrf.mxu0
    %7021 = vmatprep.mubr.bf16.mxu0 0
    %7022 = vmatmul.mubr.bf16.gmra.mxu0 %v6338
    %v7023 = vpop.f32.mrf.mxu0
    %v7024 = vadd.f32 0.0, %v7023
    %v7025 = vpop.f32.mrf.mxu0
    %v7026 = vpop.f32.mrf.mxu0
    %v7027 = vadd.f32 0.0, %v7026
    %v7028 = vpop.f32.mrf.mxu0
    %7029 = vmatprep.mubr.bf16.mxu0 0
    %7030 = vmatmul.mubr.bf16.gmra.mxu0 %v6341
    %v7031 = vpop.f32.mrf.mxu0
    %v7032 = vadd.f32 0.0, %v7031
    %v7033 = vpop.f32.mrf.mxu0
    %v7034 = vpop.f32.mrf.mxu0
    %v7035 = vadd.f32 0.0, %v7034
    %v7036 = vpop.f32.mrf.mxu0
    %7037 = vmatprep.mubr.bf16.mxu0 0
    %7038 = vmatmul.mubr.bf16.gmra.mxu0 %v6755
    %v7039 = vpop.f32.mrf.mxu0
    %v7040 = vadd.f32 0.0, %v7039
    %v7041 = vpop.f32.mrf.mxu0
    %v7042 = vpop.f32.mrf.mxu0
    %v7043 = vadd.f32 0.0, %v7042
    %v7044 = vpop.f32.mrf.mxu0
    %7045 = vdwg.mxu0
    %v7046 = vadd.f32 %v6632, %v6792
    %v7047 = vadd.f32 %v6633, %v6795
    %v7048 = vadd.f32 %v6634, %v6800
    %v7049 = vadd.f32 %v6635, %v6803
    %v7050 = vadd.f32 %v6636, %v6808
    %v7051 = vadd.f32 %v6637, %v6811
    %v7052 = vadd.f32 %v6638, %v6816
    %v7053 = vadd.f32 %v6639, %v6819
    %v7054 = vadd.f32 %v6640, %v6824
    %v7055 = vadd.f32 %v6641, %v6827
    %v7056 = vadd.f32 %v6642, %v6832
    %v7057 = vadd.f32 %v6643, %v6835
    %v7058 = vadd.f32 %v6644, %v6840
    %v7059 = vadd.f32 %v6645, %v6843
    %v7060 = vadd.f32 %v6646, %v6848
    %v7061 = vadd.f32 %v6647, %v6851
    %v7062 = vadd.f32 %v6648, %v6856
    %v7063 = vadd.f32 %v6649, %v6859
    %v7064 = vadd.f32 %v6650, %v6864
    %v7065 = vadd.f32 %v6651, %v6867
    %v7066 = vadd.f32 %v6652, %v6872
    %v7067 = vadd.f32 %v6653, %v6875
    %v7068 = vadd.f32 %v6654, %v6880
    %v7069 = vadd.f32 %v6655, %v6883
    %v7070 = vadd.f32 %v6656, %v6888
    %v7071 = vadd.f32 %v6657, %v6891
    %v7072 = vadd.f32 %v6658, %v6896
    %v7073 = vadd.f32 %v6659, %v6899
    %v7074 = vadd.f32 %v6660, %v6904
    %v7075 = vadd.f32 %v6661, %v6907
    %v7076 = vadd.f32 %v6662, %v6912
    %v7077 = vadd.f32 %v6663, %v6915
    %v7078 = vadd.f32 %v6664, %v6920
    %v7079 = vadd.f32 %v6665, %v6923
    %v7080 = vadd.f32 %v6666, %v6928
    %v7081 = vadd.f32 %v6667, %v6931
    %v7082 = vadd.f32 %v6668, %v6936
    %v7083 = vadd.f32 %v6669, %v6939
    %v7084 = vadd.f32 %v6670, %v6944
    %v7085 = vadd.f32 %v6671, %v6947
    %v7086 = vadd.f32 %v6672, %v6952
    %v7087 = vadd.f32 %v6673, %v6955
    %v7088 = vadd.f32 %v6674, %v6960
    %v7089 = vadd.f32 %v6675, %v6963
    %v7090 = vadd.f32 %v6676, %v6968
    %v7091 = vadd.f32 %v6677, %v6971
    %v7092 = vadd.f32 %v6678, %v6976
    %v7093 = vadd.f32 %v6679, %v6979
    %v7094 = vadd.f32 %v6680, %v6984
    %v7095 = vadd.f32 %v6681, %v6987
    %v7096 = vadd.f32 %v6682, %v6992
    %v7097 = vadd.f32 %v6683, %v6995
    %v7098 = vadd.f32 %v6684, %v7000
    %v7099 = vadd.f32 %v6685, %v7003
    %v7100 = vadd.f32 %v6686, %v7008
    %v7101 = vadd.f32 %v6687, %v7011
    %v7102 = vadd.f32 %v6688, %v7016
    %v7103 = vadd.f32 %v6689, %v7019
    %v7104 = vadd.f32 %v6690, %v7024
    %v7105 = vadd.f32 %v6691, %v7027
    %v7106 = vadd.f32 %v6692, %v7032
    %v7107 = vadd.f32 %v6693, %v7035
    %v7108 = vadd.f32 %v6694, %v7040
    %v7109 = vadd.f32 %v6695, %v7043
    %v7112 = vrot.slane %v2243, 5
    %v7113 = vrot.slane %v7112, 4
    %v7114 = vrot.slane %v2244, 5
    %v7115 = vsel %vm5893, %v7113, %v7114
    %v7116 = vrot.slane %v7114, 4
    %v7117 = vrot.slane %v2245, 5
    %v7118 = vsel %vm5893, %v7116, %v7117
    %v7119 = vrot.slane %v2297, 5
    %v7120 = vrot.slane %v7119, 4
    %v7121 = vrot.slane %v2298, 5
    %v7122 = vsel %vm5893, %v7120, %v7121
    %v7123 = vrot.slane %v7121, 4
    %v7124 = vrot.slane %v2299, 5
    %v7125 = vsel %vm5893, %v7123, %v7124
    %s7126 = scalar_lea.vmem %s2, 256
    %v7127 = vld [vmem:[%s7126] sm:$0xf]
    %v7128 = vld [vmem:[%s7126 + $0x4] sm:$0xf]
    %v7129 = vld [vmem:[%s7126 + $0x8] sm:$0xf]
    %v7130 = vld [vmem:[%s7126 + $0xc] sm:$0xf]
    %v7131 = vld [vmem:[%s7126 + $0x10] sm:$0xf]
    %v7132 = vld [vmem:[%s7126 + $0x14] sm:$0xf]
    %v7133 = vld [vmem:[%s7126 + $0x18] sm:$0xf]
    %v7134 = vld [vmem:[%s7126 + $0x1c] sm:$0xf]
    %v7135 = vunpack.c.l.b16 %v7115
    %v7136 = vunpack.c.l.b16 %v7118
    %v7137 = vunpack.c.l.b16 %v7122
    %v7138 = vunpack.c.l.b16 %v7125
    %v7139 = vpack.c.b16 %v7136, %v7135
    %v7140 = vpack.c.b16 %v7138, %v7137
    %v7149 = vunpack.c.l.b16 %v7127
    %v7150 = vunpack.c.l.b16 %v7128
    %v7151 = vunpack.c.l.b16 %v7129
    %v7152 = vunpack.c.l.b16 %v7130
    %v7153 = vunpack.c.l.b16 %v7131
    %v7154 = vunpack.c.l.b16 %v7132
    %v7155 = vunpack.c.l.b16 %v7133
    %v7156 = vunpack.c.l.b16 %v7134
    %v7157 = vpack.c.b16 %v7150, %v7149
    %v7158 = vpack.c.b16 %v7152, %v7151
    %v7159 = vpack.c.b16 %v7154, %v7153
    %v7160 = vpack.c.b16 %v7156, %v7155
    %v7166 = vsel %vm2501, %v7139, 0
    %v7169 = vsel %vm2501, %v7140, 0
    %7171 = vmatprep.subr.bf16.mxu0 0
    %7172 = vmatpush1.bf16.msra.mxu0 0
    %7173 = vmatprep.subr.bf16.mxu0 0
    %7174 = vmatpush1.bf16.msra.mxu0 0
    %7175 = vmatprep.subr.bf16.mxu0 0
    %7176 = vmatpush1.bf16.msra.mxu0 0
    %7177 = vmatprep.subr.bf16.mxu0 0
    %7178 = vmatpush1.bf16.msra.mxu0 0
    %7179 = vmatprep.subr.bf16.mxu0 0
    %7180 = vmatpush1.bf16.msra.mxu0 %v7160
    %7181 = vmatprep.subr.bf16.mxu0 0
    %7182 = vmatpush1.bf16.msra.mxu0 %v7159
    %7183 = vmatprep.subr.bf16.mxu0 0
    %7184 = vmatpush1.bf16.msra.mxu0 %v7158
    %7185 = vmatprep.subr.bf16.mxu0 0
    %7186 = vmatpush1.bf16.msra.mxu0 %v7157
    %7187 = vmatprep.subr.bf16.mxu0 0
    %7188 = vmatpush2.bf16.msra.mxu0 0
    %7189 = vmatprep.subr.bf16.mxu0 0
    %7190 = vmatpush2.bf16.msra.mxu0 0
    %7191 = vmatprep.subr.bf16.mxu0 0
    %7192 = vmatpush2.bf16.msra.mxu0 0
    %7193 = vmatprep.subr.bf16.mxu0 0
    %7194 = vmatpush2.bf16.msra.mxu0 0
    %7195 = vmatprep.subr.bf16.mxu0 0
    %7196 = vmatpush2.bf16.msra.mxu0 0
    %7197 = vmatprep.subr.bf16.mxu0 0
    %7198 = vmatpush2.bf16.msra.mxu0 0
    %7199 = vmatprep.subr.bf16.mxu0 0
    %7200 = vmatpush2.bf16.msra.mxu0 0
    %7201 = vmatprep.subr.bf16.mxu0 0
    %7202 = vmatpush2.bf16.msra.mxu0 0
    %7203 = vmatprep.mubr.bf16.mxu0 0
    %7204 = vmatmul.mubr.bf16.gmra.mxu0 %v6254
    %v7205 = vpop.f32.mrf.mxu0
    %v7206 = vadd.f32 0.0, %v7205
    %v7207 = vpop.f32.mrf.mxu0
    %v7208 = vpop.f32.mrf.mxu0
    %v7209 = vadd.f32 0.0, %v7208
    %v7210 = vpop.f32.mrf.mxu0
    %7211 = vmatprep.mubr.bf16.mxu0 0
    %7212 = vmatmul.mubr.bf16.gmra.mxu0 %v6257
    %v7213 = vpop.f32.mrf.mxu0
    %v7214 = vadd.f32 0.0, %v7213
    %v7215 = vpop.f32.mrf.mxu0
    %v7216 = vpop.f32.mrf.mxu0
    %v7217 = vadd.f32 0.0, %v7216
    %v7218 = vpop.f32.mrf.mxu0
    %7219 = vmatprep.mubr.bf16.mxu0 0
    %7220 = vmatmul.mubr.bf16.gmra.mxu0 %v6260
    %v7221 = vpop.f32.mrf.mxu0
    %v7222 = vadd.f32 0.0, %v7221
    %v7223 = vpop.f32.mrf.mxu0
    %v7224 = vpop.f32.mrf.mxu0
    %v7225 = vadd.f32 0.0, %v7224
    %v7226 = vpop.f32.mrf.mxu0
    %7227 = vmatprep.mubr.bf16.mxu0 0
    %7228 = vmatmul.mubr.bf16.gmra.mxu0 %v6263
    %v7229 = vpop.f32.mrf.mxu0
    %v7230 = vadd.f32 0.0, %v7229
    %v7231 = vpop.f32.mrf.mxu0
    %v7232 = vpop.f32.mrf.mxu0
    %v7233 = vadd.f32 0.0, %v7232
    %v7234 = vpop.f32.mrf.mxu0
    %7235 = vmatprep.mubr.bf16.mxu0 0
    %7236 = vmatmul.mubr.bf16.gmra.mxu0 %v6266
    %v7237 = vpop.f32.mrf.mxu0
    %v7238 = vadd.f32 0.0, %v7237
    %v7239 = vpop.f32.mrf.mxu0
    %v7240 = vpop.f32.mrf.mxu0
    %v7241 = vadd.f32 0.0, %v7240
    %v7242 = vpop.f32.mrf.mxu0
    %7243 = vmatprep.mubr.bf16.mxu0 0
    %7244 = vmatmul.mubr.bf16.gmra.mxu0 %v6269
    %v7245 = vpop.f32.mrf.mxu0
    %v7246 = vadd.f32 0.0, %v7245
    %v7247 = vpop.f32.mrf.mxu0
    %v7248 = vpop.f32.mrf.mxu0
    %v7249 = vadd.f32 0.0, %v7248
    %v7250 = vpop.f32.mrf.mxu0
    %7251 = vmatprep.mubr.bf16.mxu0 0
    %7252 = vmatmul.mubr.bf16.gmra.mxu0 %v6272
    %v7253 = vpop.f32.mrf.mxu0
    %v7254 = vadd.f32 0.0, %v7253
    %v7255 = vpop.f32.mrf.mxu0
    %v7256 = vpop.f32.mrf.mxu0
    %v7257 = vadd.f32 0.0, %v7256
    %v7258 = vpop.f32.mrf.mxu0
    %7259 = vmatprep.mubr.bf16.mxu0 0
    %7260 = vmatmul.mubr.bf16.gmra.mxu0 %v6275
    %v7261 = vpop.f32.mrf.mxu0
    %v7262 = vadd.f32 0.0, %v7261
    %v7263 = vpop.f32.mrf.mxu0
    %v7264 = vpop.f32.mrf.mxu0
    %v7265 = vadd.f32 0.0, %v7264
    %v7266 = vpop.f32.mrf.mxu0
    %7267 = vmatprep.mubr.bf16.mxu0 0
    %7268 = vmatmul.mubr.bf16.gmra.mxu0 %v6278
    %v7269 = vpop.f32.mrf.mxu0
    %v7270 = vadd.f32 0.0, %v7269
    %v7271 = vpop.f32.mrf.mxu0
    %v7272 = vpop.f32.mrf.mxu0
    %v7273 = vadd.f32 0.0, %v7272
    %v7274 = vpop.f32.mrf.mxu0
    %7275 = vmatprep.mubr.bf16.mxu0 0
    %7276 = vmatmul.mubr.bf16.gmra.mxu0 %v6281
    %v7277 = vpop.f32.mrf.mxu0
    %v7278 = vadd.f32 0.0, %v7277
    %v7279 = vpop.f32.mrf.mxu0
    %v7280 = vpop.f32.mrf.mxu0
    %v7281 = vadd.f32 0.0, %v7280
    %v7282 = vpop.f32.mrf.mxu0
    %7283 = vmatprep.mubr.bf16.mxu0 0
    %7284 = vmatmul.mubr.bf16.gmra.mxu0 %v6284
    %v7285 = vpop.f32.mrf.mxu0
    %v7286 = vadd.f32 0.0, %v7285
    %v7287 = vpop.f32.mrf.mxu0
    %v7288 = vpop.f32.mrf.mxu0
    %v7289 = vadd.f32 0.0, %v7288
    %v7290 = vpop.f32.mrf.mxu0
    %7291 = vmatprep.mubr.bf16.mxu0 0
    %7292 = vmatmul.mubr.bf16.gmra.mxu0 %v6287
    %v7293 = vpop.f32.mrf.mxu0
    %v7294 = vadd.f32 0.0, %v7293
    %v7295 = vpop.f32.mrf.mxu0
    %v7296 = vpop.f32.mrf.mxu0
    %v7297 = vadd.f32 0.0, %v7296
    %v7298 = vpop.f32.mrf.mxu0
    %7299 = vmatprep.mubr.bf16.mxu0 0
    %7300 = vmatmul.mubr.bf16.gmra.mxu0 %v6290
    %v7301 = vpop.f32.mrf.mxu0
    %v7302 = vadd.f32 0.0, %v7301
    %v7303 = vpop.f32.mrf.mxu0
    %v7304 = vpop.f32.mrf.mxu0
    %v7305 = vadd.f32 0.0, %v7304
    %v7306 = vpop.f32.mrf.mxu0
    %7307 = vmatprep.mubr.bf16.mxu0 0
    %7308 = vmatmul.mubr.bf16.gmra.mxu0 %v6293
    %v7309 = vpop.f32.mrf.mxu0
    %v7310 = vadd.f32 0.0, %v7309
    %v7311 = vpop.f32.mrf.mxu0
    %v7312 = vpop.f32.mrf.mxu0
    %v7313 = vadd.f32 0.0, %v7312
    %v7314 = vpop.f32.mrf.mxu0
    %7315 = vmatprep.mubr.bf16.mxu0 0
    %7316 = vmatmul.mubr.bf16.gmra.mxu0 %v6752
    %v7317 = vpop.f32.mrf.mxu0
    %v7318 = vadd.f32 0.0, %v7317
    %v7319 = vpop.f32.mrf.mxu0
    %v7320 = vpop.f32.mrf.mxu0
    %v7321 = vadd.f32 0.0, %v7320
    %v7322 = vpop.f32.mrf.mxu0
    %7323 = vmatprep.mubr.bf16.mxu0 0
    %7324 = vmatmul.mubr.bf16.gmra.mxu0 %v7166
    %v7325 = vpop.f32.mrf.mxu0
    %v7326 = vadd.f32 0.0, %v7325
    %v7327 = vpop.f32.mrf.mxu0
    %v7328 = vpop.f32.mrf.mxu0
    %v7329 = vadd.f32 0.0, %v7328
    %v7330 = vpop.f32.mrf.mxu0
    %7331 = vmatprep.mubr.bf16.mxu0 0
    %7332 = vmatmul.mubr.bf16.gmra.mxu0 %v6302
    %v7333 = vpop.f32.mrf.mxu0
    %v7334 = vadd.f32 0.0, %v7333
    %v7335 = vpop.f32.mrf.mxu0
    %v7336 = vpop.f32.mrf.mxu0
    %v7337 = vadd.f32 0.0, %v7336
    %v7338 = vpop.f32.mrf.mxu0
    %7339 = vmatprep.mubr.bf16.mxu0 0
    %7340 = vmatmul.mubr.bf16.gmra.mxu0 %v6305
    %v7341 = vpop.f32.mrf.mxu0
    %v7342 = vadd.f32 0.0, %v7341
    %v7343 = vpop.f32.mrf.mxu0
    %v7344 = vpop.f32.mrf.mxu0
    %v7345 = vadd.f32 0.0, %v7344
    %v7346 = vpop.f32.mrf.mxu0
    %7347 = vmatprep.mubr.bf16.mxu0 0
    %7348 = vmatmul.mubr.bf16.gmra.mxu0 %v6308
    %v7349 = vpop.f32.mrf.mxu0
    %v7350 = vadd.f32 0.0, %v7349
    %v7351 = vpop.f32.mrf.mxu0
    %v7352 = vpop.f32.mrf.mxu0
    %v7353 = vadd.f32 0.0, %v7352
    %v7354 = vpop.f32.mrf.mxu0
    %7355 = vmatprep.mubr.bf16.mxu0 0
    %7356 = vmatmul.mubr.bf16.gmra.mxu0 %v6311
    %v7357 = vpop.f32.mrf.mxu0
    %v7358 = vadd.f32 0.0, %v7357
    %v7359 = vpop.f32.mrf.mxu0
    %v7360 = vpop.f32.mrf.mxu0
    %v7361 = vadd.f32 0.0, %v7360
    %v7362 = vpop.f32.mrf.mxu0
    %7363 = vmatprep.mubr.bf16.mxu0 0
    %7364 = vmatmul.mubr.bf16.gmra.mxu0 %v6314
    %v7365 = vpop.f32.mrf.mxu0
    %v7366 = vadd.f32 0.0, %v7365
    %v7367 = vpop.f32.mrf.mxu0
    %v7368 = vpop.f32.mrf.mxu0
    %v7369 = vadd.f32 0.0, %v7368
    %v7370 = vpop.f32.mrf.mxu0
    %7371 = vmatprep.mubr.bf16.mxu0 0
    %7372 = vmatmul.mubr.bf16.gmra.mxu0 %v6317
    %v7373 = vpop.f32.mrf.mxu0
    %v7374 = vadd.f32 0.0, %v7373
    %v7375 = vpop.f32.mrf.mxu0
    %v7376 = vpop.f32.mrf.mxu0
    %v7377 = vadd.f32 0.0, %v7376
    %v7378 = vpop.f32.mrf.mxu0
    %7379 = vmatprep.mubr.bf16.mxu0 0
    %7380 = vmatmul.mubr.bf16.gmra.mxu0 %v6320
    %v7381 = vpop.f32.mrf.mxu0
    %v7382 = vadd.f32 0.0, %v7381
    %v7383 = vpop.f32.mrf.mxu0
    %v7384 = vpop.f32.mrf.mxu0
    %v7385 = vadd.f32 0.0, %v7384
    %v7386 = vpop.f32.mrf.mxu0
    %7387 = vmatprep.mubr.bf16.mxu0 0
    %7388 = vmatmul.mubr.bf16.gmra.mxu0 %v6323
    %v7389 = vpop.f32.mrf.mxu0
    %v7390 = vadd.f32 0.0, %v7389
    %v7391 = vpop.f32.mrf.mxu0
    %v7392 = vpop.f32.mrf.mxu0
    %v7393 = vadd.f32 0.0, %v7392
    %v7394 = vpop.f32.mrf.mxu0
    %7395 = vmatprep.mubr.bf16.mxu0 0
    %7396 = vmatmul.mubr.bf16.gmra.mxu0 %v6326
    %v7397 = vpop.f32.mrf.mxu0
    %v7398 = vadd.f32 0.0, %v7397
    %v7399 = vpop.f32.mrf.mxu0
    %v7400 = vpop.f32.mrf.mxu0
    %v7401 = vadd.f32 0.0, %v7400
    %v7402 = vpop.f32.mrf.mxu0
    %7403 = vmatprep.mubr.bf16.mxu0 0
    %7404 = vmatmul.mubr.bf16.gmra.mxu0 %v6329
    %v7405 = vpop.f32.mrf.mxu0
    %v7406 = vadd.f32 0.0, %v7405
    %v7407 = vpop.f32.mrf.mxu0
    %v7408 = vpop.f32.mrf.mxu0
    %v7409 = vadd.f32 0.0, %v7408
    %v7410 = vpop.f32.mrf.mxu0
    %7411 = vmatprep.mubr.bf16.mxu0 0
    %7412 = vmatmul.mubr.bf16.gmra.mxu0 %v6332
    %v7413 = vpop.f32.mrf.mxu0
    %v7414 = vadd.f32 0.0, %v7413
    %v7415 = vpop.f32.mrf.mxu0
    %v7416 = vpop.f32.mrf.mxu0
    %v7417 = vadd.f32 0.0, %v7416
    %v7418 = vpop.f32.mrf.mxu0
    %7419 = vmatprep.mubr.bf16.mxu0 0
    %7420 = vmatmul.mubr.bf16.gmra.mxu0 %v6335
    %v7421 = vpop.f32.mrf.mxu0
    %v7422 = vadd.f32 0.0, %v7421
    %v7423 = vpop.f32.mrf.mxu0
    %v7424 = vpop.f32.mrf.mxu0
    %v7425 = vadd.f32 0.0, %v7424
    %v7426 = vpop.f32.mrf.mxu0
    %7427 = vmatprep.mubr.bf16.mxu0 0
    %7428 = vmatmul.mubr.bf16.gmra.mxu0 %v6338
    %v7429 = vpop.f32.mrf.mxu0
    %v7430 = vadd.f32 0.0, %v7429
    %v7431 = vpop.f32.mrf.mxu0
    %v7432 = vpop.f32.mrf.mxu0
    %v7433 = vadd.f32 0.0, %v7432
    %v7434 = vpop.f32.mrf.mxu0
    %7435 = vmatprep.mubr.bf16.mxu0 0
    %7436 = vmatmul.mubr.bf16.gmra.mxu0 %v6341
    %v7437 = vpop.f32.mrf.mxu0
    %v7438 = vadd.f32 0.0, %v7437
    %v7439 = vpop.f32.mrf.mxu0
    %v7440 = vpop.f32.mrf.mxu0
    %v7441 = vadd.f32 0.0, %v7440
    %v7442 = vpop.f32.mrf.mxu0
    %7443 = vmatprep.mubr.bf16.mxu0 0
    %7444 = vmatmul.mubr.bf16.gmra.mxu0 %v6755
    %v7445 = vpop.f32.mrf.mxu0
    %v7446 = vadd.f32 0.0, %v7445
    %v7447 = vpop.f32.mrf.mxu0
    %v7448 = vpop.f32.mrf.mxu0
    %v7449 = vadd.f32 0.0, %v7448
    %v7450 = vpop.f32.mrf.mxu0
    %7451 = vmatprep.mubr.bf16.mxu0 0
    %7452 = vmatmul.mubr.bf16.gmra.mxu0 %v7169
    %v7453 = vpop.f32.mrf.mxu0
    %v7454 = vadd.f32 0.0, %v7453
    %v7455 = vpop.f32.mrf.mxu0
    %v7456 = vpop.f32.mrf.mxu0
    %v7457 = vadd.f32 0.0, %v7456
    %v7458 = vpop.f32.mrf.mxu0
    %7459 = vdwg.mxu0
    %v7460 = vadd.f32 %v7046, %v7206
    %v7461 = vadd.f32 %v7047, %v7209
    %v7462 = vadd.f32 %v7048, %v7214
    %v7463 = vadd.f32 %v7049, %v7217
    %v7464 = vadd.f32 %v7050, %v7222
    %v7465 = vadd.f32 %v7051, %v7225
    %v7466 = vadd.f32 %v7052, %v7230
    %v7467 = vadd.f32 %v7053, %v7233
    %v7468 = vadd.f32 %v7054, %v7238
    %v7469 = vadd.f32 %v7055, %v7241
    %v7470 = vadd.f32 %v7056, %v7246
    %v7471 = vadd.f32 %v7057, %v7249
    %v7472 = vadd.f32 %v7058, %v7254
    %v7473 = vadd.f32 %v7059, %v7257
    %v7474 = vadd.f32 %v7060, %v7262
    %v7475 = vadd.f32 %v7061, %v7265
    %v7476 = vadd.f32 %v7062, %v7270
    %v7477 = vadd.f32 %v7063, %v7273
    %v7478 = vadd.f32 %v7064, %v7278
    %v7479 = vadd.f32 %v7065, %v7281
    %v7480 = vadd.f32 %v7066, %v7286
    %v7481 = vadd.f32 %v7067, %v7289
    %v7482 = vadd.f32 %v7068, %v7294
    %v7483 = vadd.f32 %v7069, %v7297
    %v7484 = vadd.f32 %v7070, %v7302
    %v7485 = vadd.f32 %v7071, %v7305
    %v7486 = vadd.f32 %v7072, %v7310
    %v7487 = vadd.f32 %v7073, %v7313
    %v7488 = vadd.f32 %v7074, %v7318
    %v7489 = vadd.f32 %v7075, %v7321
    %v7490 = vadd.f32 %v7076, %v7326
    %v7491 = vadd.f32 %v7077, %v7329
    %v7492 = vadd.f32 %v7078, %v7334
    %v7493 = vadd.f32 %v7079, %v7337
    %v7494 = vadd.f32 %v7080, %v7342
    %v7495 = vadd.f32 %v7081, %v7345
    %v7496 = vadd.f32 %v7082, %v7350
    %v7497 = vadd.f32 %v7083, %v7353
    %v7498 = vadd.f32 %v7084, %v7358
    %v7499 = vadd.f32 %v7085, %v7361
    %v7500 = vadd.f32 %v7086, %v7366
    %v7501 = vadd.f32 %v7087, %v7369
    %v7502 = vadd.f32 %v7088, %v7374
    %v7503 = vadd.f32 %v7089, %v7377
    %v7504 = vadd.f32 %v7090, %v7382
    %v7505 = vadd.f32 %v7091, %v7385
    %v7506 = vadd.f32 %v7092, %v7390
    %v7507 = vadd.f32 %v7093, %v7393
    %v7508 = vadd.f32 %v7094, %v7398
    %v7509 = vadd.f32 %v7095, %v7401
    %v7510 = vadd.f32 %v7096, %v7406
    %v7511 = vadd.f32 %v7097, %v7409
    %v7512 = vadd.f32 %v7098, %v7414
    %v7513 = vadd.f32 %v7099, %v7417
    %v7514 = vadd.f32 %v7100, %v7422
    %v7515 = vadd.f32 %v7101, %v7425
    %v7516 = vadd.f32 %v7102, %v7430
    %v7517 = vadd.f32 %v7103, %v7433
    %v7518 = vadd.f32 %v7104, %v7438
    %v7519 = vadd.f32 %v7105, %v7441
    %v7520 = vadd.f32 %v7106, %v7446
    %v7521 = vadd.f32 %v7107, %v7449
    %v7522 = vadd.f32 %v7108, %v7454
    %v7523 = vadd.f32 %v7109, %v7457
    %v7525 = vlaneseq
    %v7526 = vshrl.u32 %v7525, 7
    %v7527 = vsub.s32 0, %v7526
    %v7528 = vrot.slane %v60, %v7527
    %v7530 = vadd.f32 %v7460, %v7528
    %v7531 = vadd.f32 %v7461, %v7528
    %v7532 = vadd.f32 %v7462, %v7528
    %v7533 = vadd.f32 %v7463, %v7528
    %v7534 = vadd.f32 %v7464, %v7528
    %v7535 = vadd.f32 %v7465, %v7528
    %v7536 = vadd.f32 %v7466, %v7528
    %v7537 = vadd.f32 %v7467, %v7528
    %v7538 = vadd.f32 %v7468, %v7528
    %v7539 = vadd.f32 %v7469, %v7528
    %v7540 = vadd.f32 %v7470, %v7528
    %v7541 = vadd.f32 %v7471, %v7528
    %v7542 = vadd.f32 %v7472, %v7528
    %v7543 = vadd.f32 %v7473, %v7528
    %v7544 = vadd.f32 %v7474, %v7528
    %v7545 = vadd.f32 %v7475, %v7528
    %v7546 = vadd.f32 %v7476, %v7528
    %v7547 = vadd.f32 %v7477, %v7528
    %v7548 = vadd.f32 %v7478, %v7528
    %v7549 = vadd.f32 %v7479, %v7528
    %v7550 = vadd.f32 %v7480, %v7528
    %v7551 = vadd.f32 %v7481, %v7528
    %v7552 = vadd.f32 %v7482, %v7528
    %v7553 = vadd.f32 %v7483, %v7528
    %v7554 = vadd.f32 %v7484, %v7528
    %v7555 = vadd.f32 %v7485, %v7528
    %v7556 = vadd.f32 %v7486, %v7528
    %v7557 = vadd.f32 %v7487, %v7528
    %v7558 = vadd.f32 %v7488, %v7528
    %v7559 = vadd.f32 %v7489, %v7528
    %v7560 = vadd.f32 %v7490, %v7528
    %v7561 = vadd.f32 %v7491, %v7528
    %v7562 = vadd.f32 %v7492, %v7528
    %v7563 = vadd.f32 %v7493, %v7528
    %v7564 = vadd.f32 %v7494, %v7528
    %v7565 = vadd.f32 %v7495, %v7528
    %v7566 = vadd.f32 %v7496, %v7528
    %v7567 = vadd.f32 %v7497, %v7528
    %v7568 = vadd.f32 %v7498, %v7528
    %v7569 = vadd.f32 %v7499, %v7528
    %v7570 = vadd.f32 %v7500, %v7528
    %v7571 = vadd.f32 %v7501, %v7528
    %v7572 = vadd.f32 %v7502, %v7528
    %v7573 = vadd.f32 %v7503, %v7528
    %v7574 = vadd.f32 %v7504, %v7528
    %v7575 = vadd.f32 %v7505, %v7528
    %v7576 = vadd.f32 %v7506, %v7528
    %v7577 = vadd.f32 %v7507, %v7528
    %v7578 = vadd.f32 %v7508, %v7528
    %v7579 = vadd.f32 %v7509, %v7528
    %v7580 = vadd.f32 %v7510, %v7528
    %v7581 = vadd.f32 %v7511, %v7528
    %v7582 = vadd.f32 %v7512, %v7528
    %v7583 = vadd.f32 %v7513, %v7528
    %v7584 = vadd.f32 %v7514, %v7528
    %v7585 = vadd.f32 %v7515, %v7528
    %v7586 = vadd.f32 %v7516, %v7528
    %v7587 = vadd.f32 %v7517, %v7528
    %v7588 = vadd.f32 %v7518, %v7528
    %v7589 = vadd.f32 %v7519, %v7528
    %v7590 = vadd.f32 %v7520, %v7528
    %v7591 = vadd.f32 %v7521, %v7528
    %v7592 = vadd.f32 %v7522, %v7528
    %v7593 = vadd.f32 %v7523, %v7528
    %vm7594 = vcmp.gt.f32.partialorder %v7530, 0.0
    %vm7595 = vcmp.gt.f32.partialorder %v7531, 0.0
    %vm7596 = vcmp.gt.f32.partialorder %v7532, 0.0
    %vm7597 = vcmp.gt.f32.partialorder %v7533, 0.0
    %vm7598 = vcmp.gt.f32.partialorder %v7534, 0.0
    %vm7599 = vcmp.gt.f32.partialorder %v7535, 0.0
    %vm7600 = vcmp.gt.f32.partialorder %v7536, 0.0
    %vm7601 = vcmp.gt.f32.partialorder %v7537, 0.0
    %vm7602 = vcmp.gt.f32.partialorder %v7538, 0.0
    %vm7603 = vcmp.gt.f32.partialorder %v7539, 0.0
    %vm7604 = vcmp.gt.f32.partialorder %v7540, 0.0
    %vm7605 = vcmp.gt.f32.partialorder %v7541, 0.0
    %vm7606 = vcmp.gt.f32.partialorder %v7542, 0.0
    %vm7607 = vcmp.gt.f32.partialorder %v7543, 0.0
    %vm7608 = vcmp.gt.f32.partialorder %v7544, 0.0
    %vm7609 = vcmp.gt.f32.partialorder %v7545, 0.0
    %vm7610 = vcmp.gt.f32.partialorder %v7546, 0.0
    %vm7611 = vcmp.gt.f32.partialorder %v7547, 0.0
    %vm7612 = vcmp.gt.f32.partialorder %v7548, 0.0
    %vm7613 = vcmp.gt.f32.partialorder %v7549, 0.0
    %vm7614 = vcmp.gt.f32.partialorder %v7550, 0.0
    %vm7615 = vcmp.gt.f32.partialorder %v7551, 0.0
    %vm7616 = vcmp.gt.f32.partialorder %v7552, 0.0
    %vm7617 = vcmp.gt.f32.partialorder %v7553, 0.0
    %vm7618 = vcmp.gt.f32.partialorder %v7554, 0.0
    %vm7619 = vcmp.gt.f32.partialorder %v7555, 0.0
    %vm7620 = vcmp.gt.f32.partialorder %v7556, 0.0
    %vm7621 = vcmp.gt.f32.partialorder %v7557, 0.0
    %vm7622 = vcmp.gt.f32.partialorder %v7558, 0.0
    %vm7623 = vcmp.gt.f32.partialorder %v7559, 0.0
    %vm7624 = vcmp.gt.f32.partialorder %v7560, 0.0
    %vm7625 = vcmp.gt.f32.partialorder %v7561, 0.0
    %vm7626 = vcmp.gt.f32.partialorder %v7562, 0.0
    %vm7627 = vcmp.gt.f32.partialorder %v7563, 0.0
    %vm7628 = vcmp.gt.f32.partialorder %v7564, 0.0
    %vm7629 = vcmp.gt.f32.partialorder %v7565, 0.0
    %vm7630 = vcmp.gt.f32.partialorder %v7566, 0.0
    %vm7631 = vcmp.gt.f32.partialorder %v7567, 0.0
    %vm7632 = vcmp.gt.f32.partialorder %v7568, 0.0
    %vm7633 = vcmp.gt.f32.partialorder %v7569, 0.0
    %vm7634 = vcmp.gt.f32.partialorder %v7570, 0.0
    %vm7635 = vcmp.gt.f32.partialorder %v7571, 0.0
    %vm7636 = vcmp.gt.f32.partialorder %v7572, 0.0
    %vm7637 = vcmp.gt.f32.partialorder %v7573, 0.0
    %vm7638 = vcmp.gt.f32.partialorder %v7574, 0.0
    %vm7639 = vcmp.gt.f32.partialorder %v7575, 0.0
    %vm7640 = vcmp.gt.f32.partialorder %v7576, 0.0
    %vm7641 = vcmp.gt.f32.partialorder %v7577, 0.0
    %vm7642 = vcmp.gt.f32.partialorder %v7578, 0.0
    %vm7643 = vcmp.gt.f32.partialorder %v7579, 0.0
    %vm7644 = vcmp.gt.f32.partialorder %v7580, 0.0
    %vm7645 = vcmp.gt.f32.partialorder %v7581, 0.0
    %vm7646 = vcmp.gt.f32.partialorder %v7582, 0.0
    %vm7647 = vcmp.gt.f32.partialorder %v7583, 0.0
    %vm7648 = vcmp.gt.f32.partialorder %v7584, 0.0
    %vm7649 = vcmp.gt.f32.partialorder %v7585, 0.0
    %vm7650 = vcmp.gt.f32.partialorder %v7586, 0.0
    %vm7651 = vcmp.gt.f32.partialorder %v7587, 0.0
    %vm7652 = vcmp.gt.f32.partialorder %v7588, 0.0
    %vm7653 = vcmp.gt.f32.partialorder %v7589, 0.0
    %vm7654 = vcmp.gt.f32.partialorder %v7590, 0.0
    %vm7655 = vcmp.gt.f32.partialorder %v7591, 0.0
    %vm7656 = vcmp.gt.f32.partialorder %v7592, 0.0
    %vm7657 = vcmp.gt.f32.partialorder %v7593, 0.0
    %v7658 = vstv %s58
    %v7659 = vmul.f32 %v7658, %v7530
    %v7660 = vmul.f32 %v7658, %v7531
    %v7661 = vmul.f32 %v7658, %v7532
    %v7662 = vmul.f32 %v7658, %v7533
    %v7663 = vmul.f32 %v7658, %v7534
    %v7664 = vmul.f32 %v7658, %v7535
    %v7665 = vmul.f32 %v7658, %v7536
    %v7666 = vmul.f32 %v7658, %v7537
    %v7667 = vmul.f32 %v7658, %v7538
    %v7668 = vmul.f32 %v7658, %v7539
    %v7669 = vmul.f32 %v7658, %v7540
    %v7670 = vmul.f32 %v7658, %v7541
    %v7671 = vmul.f32 %v7658, %v7542
    %v7672 = vmul.f32 %v7658, %v7543
    %v7673 = vmul.f32 %v7658, %v7544
    %v7674 = vmul.f32 %v7658, %v7545
    %v7675 = vmul.f32 %v7658, %v7546
    %v7676 = vmul.f32 %v7658, %v7547
    %v7677 = vmul.f32 %v7658, %v7548
    %v7678 = vmul.f32 %v7658, %v7549
    %v7679 = vmul.f32 %v7658, %v7550
    %v7680 = vmul.f32 %v7658, %v7551
    %v7681 = vmul.f32 %v7658, %v7552
    %v7682 = vmul.f32 %v7658, %v7553
    %v7683 = vmul.f32 %v7658, %v7554
    %v7684 = vmul.f32 %v7658, %v7555
    %v7685 = vmul.f32 %v7658, %v7556
    %v7686 = vmul.f32 %v7658, %v7557
    %v7687 = vmul.f32 %v7658, %v7558
    %v7688 = vmul.f32 %v7658, %v7559
    %v7689 = vmul.f32 %v7658, %v7560
    %v7690 = vmul.f32 %v7658, %v7561
    %v7691 = vmul.f32 %v7658, %v7562
    %v7692 = vmul.f32 %v7658, %v7563
    %v7693 = vmul.f32 %v7658, %v7564
    %v7694 = vmul.f32 %v7658, %v7565
    %v7695 = vmul.f32 %v7658, %v7566
    %v7696 = vmul.f32 %v7658, %v7567
    %v7697 = vmul.f32 %v7658, %v7568
    %v7698 = vmul.f32 %v7658, %v7569
    %v7699 = vmul.f32 %v7658, %v7570
    %v7700 = vmul.f32 %v7658, %v7571
    %v7701 = vmul.f32 %v7658, %v7572
    %v7702 = vmul.f32 %v7658, %v7573
    %v7703 = vmul.f32 %v7658, %v7574
    %v7704 = vmul.f32 %v7658, %v7575
    %v7705 = vmul.f32 %v7658, %v7576
    %v7706 = vmul.f32 %v7658, %v7577
    %v7707 = vmul.f32 %v7658, %v7578
    %v7708 = vmul.f32 %v7658, %v7579
    %v7709 = vmul.f32 %v7658, %v7580
    %v7710 = vmul.f32 %v7658, %v7581
    %v7711 = vmul.f32 %v7658, %v7582
    %v7712 = vmul.f32 %v7658, %v7583
    %v7713 = vmul.f32 %v7658, %v7584
    %v7714 = vmul.f32 %v7658, %v7585
    %v7715 = vmul.f32 %v7658, %v7586
    %v7716 = vmul.f32 %v7658, %v7587
    %v7717 = vmul.f32 %v7658, %v7588
    %v7718 = vmul.f32 %v7658, %v7589
    %v7719 = vmul.f32 %v7658, %v7590
    %v7720 = vmul.f32 %v7658, %v7591
    %v7721 = vmul.f32 %v7658, %v7592
    %v7722 = vmul.f32 %v7658, %v7593
    %v7723 = vsel %vm7594, %v7530, %v7659
    %v7724 = vsel %vm7595, %v7531, %v7660
    %v7725 = vsel %vm7596, %v7532, %v7661
    %v7726 = vsel %vm7597, %v7533, %v7662
    %v7727 = vsel %vm7598, %v7534, %v7663
    %v7728 = vsel %vm7599, %v7535, %v7664
    %v7729 = vsel %vm7600, %v7536, %v7665
    %v7730 = vsel %vm7601, %v7537, %v7666
    %v7731 = vsel %vm7602, %v7538, %v7667
    %v7732 = vsel %vm7603, %v7539, %v7668
    %v7733 = vsel %vm7604, %v7540, %v7669
    %v7734 = vsel %vm7605, %v7541, %v7670
    %v7735 = vsel %vm7606, %v7542, %v7671
    %v7736 = vsel %vm7607, %v7543, %v7672
    %v7737 = vsel %vm7608, %v7544, %v7673
    %v7738 = vsel %vm7609, %v7545, %v7674
    %v7739 = vsel %vm7610, %v7546, %v7675
    %v7740 = vsel %vm7611, %v7547, %v7676
    %v7741 = vsel %vm7612, %v7548, %v7677
    %v7742 = vsel %vm7613, %v7549, %v7678
    %v7743 = vsel %vm7614, %v7550, %v7679
    %v7744 = vsel %vm7615, %v7551, %v7680
    %v7745 = vsel %vm7616, %v7552, %v7681
    %v7746 = vsel %vm7617, %v7553, %v7682
    %v7747 = vsel %vm7618, %v7554, %v7683
    %v7748 = vsel %vm7619, %v7555, %v7684
    %v7749 = vsel %vm7620, %v7556, %v7685
    %v7750 = vsel %vm7621, %v7557, %v7686
    %v7751 = vsel %vm7622, %v7558, %v7687
    %v7752 = vsel %vm7623, %v7559, %v7688
    %v7753 = vsel %vm7624, %v7560, %v7689
    %v7754 = vsel %vm7625, %v7561, %v7690
    %v7755 = vsel %vm7626, %v7562, %v7691
    %v7756 = vsel %vm7627, %v7563, %v7692
    %v7757 = vsel %vm7628, %v7564, %v7693
    %v7758 = vsel %vm7629, %v7565, %v7694
    %v7759 = vsel %vm7630, %v7566, %v7695
    %v7760 = vsel %vm7631, %v7567, %v7696
    %v7761 = vsel %vm7632, %v7568, %v7697
    %v7762 = vsel %vm7633, %v7569, %v7698
    %v7763 = vsel %vm7634, %v7570, %v7699
    %v7764 = vsel %vm7635, %v7571, %v7700
    %v7765 = vsel %vm7636, %v7572, %v7701
    %v7766 = vsel %vm7637, %v7573, %v7702
    %v7767 = vsel %vm7638, %v7574, %v7703
    %v7768 = vsel %vm7639, %v7575, %v7704
    %v7769 = vsel %vm7640, %v7576, %v7705
    %v7770 = vsel %vm7641, %v7577, %v7706
    %v7771 = vsel %vm7642, %v7578, %v7707
    %v7772 = vsel %vm7643, %v7579, %v7708
    %v7773 = vsel %vm7644, %v7580, %v7709
    %v7774 = vsel %vm7645, %v7581, %v7710
    %v7775 = vsel %vm7646, %v7582, %v7711
    %v7776 = vsel %vm7647, %v7583, %v7712
    %v7777 = vsel %vm7648, %v7584, %v7713
    %v7778 = vsel %vm7649, %v7585, %v7714
    %v7779 = vsel %vm7650, %v7586, %v7715
    %v7780 = vsel %vm7651, %v7587, %v7716
    %v7781 = vsel %vm7652, %v7588, %v7717
    %v7782 = vsel %vm7653, %v7589, %v7718
    %v7783 = vsel %vm7654, %v7590, %v7719
    %v7784 = vsel %vm7655, %v7591, %v7720
    %v7785 = vsel %vm7656, %v7592, %v7721
    %v7786 = vsel %vm7657, %v7593, %v7722
    %v7787 = vld [vmem:[#allocation3] sm:$0xff]
    %v7788 = vld [vmem:[#allocation3 + $0x8] sm:$0xff]
    %v7789 = vld [vmem:[#allocation3 + $0x10] sm:$0xff]
    %v7790 = vld [vmem:[#allocation3 + $0x18] sm:$0xff]
    %v7791 = vld [vmem:[#allocation3 + $0x20] sm:$0xff]
    %v7792 = vld [vmem:[#allocation3 + $0x28] sm:$0xff]
    %v7793 = vld [vmem:[#allocation3 + $0x30] sm:$0xff]
    %v7794 = vld [vmem:[#allocation3 + $0x38] sm:$0xff]
    %v7796 = vlaneseq
    %v7797 = vshrl.u32 %v7796, 7
    %v7798 = vsub.s32 0, %v7797
    %v7799 = vrot.slane %v61, %v7798
    %v7802 = vsel %vm2501, %v7723, 0
    %v7805 = vsel %vm2501, %v7724, 0
    %v7808 = vsel %vm2501, %v7725, 0
    %v7811 = vsel %vm2501, %v7726, 0
    %v7814 = vsel %vm2501, %v7727, 0
    %v7817 = vsel %vm2501, %v7728, 0
    %v7820 = vsel %vm2501, %v7729, 0
    %v7823 = vsel %vm2501, %v7730, 0
    %v7826 = vsel %vm2501, %v7731, 0
    %v7829 = vsel %vm2501, %v7732, 0
    %v7832 = vsel %vm2501, %v7733, 0
    %v7835 = vsel %vm2501, %v7734, 0
    %v7838 = vsel %vm2501, %v7735, 0
    %v7841 = vsel %vm2501, %v7736, 0
    %v7844 = vsel %vm2501, %v7737, 0
    %v7847 = vsel %vm2501, %v7738, 0
    %v7850 = vsel %vm2501, %v7739, 0
    %v7853 = vsel %vm2501, %v7740, 0
    %v7856 = vsel %vm2501, %v7741, 0
    %v7859 = vsel %vm2501, %v7742, 0
    %v7862 = vsel %vm2501, %v7743, 0
    %v7865 = vsel %vm2501, %v7744, 0
    %v7868 = vsel %vm2501, %v7745, 0
    %v7871 = vsel %vm2501, %v7746, 0
    %v7874 = vsel %vm2501, %v7747, 0
    %v7877 = vsel %vm2501, %v7748, 0
    %v7880 = vsel %vm2501, %v7749, 0
    %v7883 = vsel %vm2501, %v7750, 0
    %v7886 = vsel %vm2501, %v7751, 0
    %v7889 = vsel %vm2501, %v7752, 0
    %v7892 = vsel %vm2501, %v7753, 0
    %v7895 = vsel %vm2501, %v7754, 0
    %v7898 = vsel %vm2501, %v7755, 0
    %v7901 = vsel %vm2501, %v7756, 0
    %v7904 = vsel %vm2501, %v7757, 0
    %v7907 = vsel %vm2501, %v7758, 0
    %v7910 = vsel %vm2501, %v7759, 0
    %v7913 = vsel %vm2501, %v7760, 0
    %v7916 = vsel %vm2501, %v7761, 0
    %v7919 = vsel %vm2501, %v7762, 0
    %v7922 = vsel %vm2501, %v7763, 0
    %v7925 = vsel %vm2501, %v7764, 0
    %v7928 = vsel %vm2501, %v7765, 0
    %v7931 = vsel %vm2501, %v7766, 0
    %v7934 = vsel %vm2501, %v7767, 0
    %v7937 = vsel %vm2501, %v7768, 0
    %v7940 = vsel %vm2501, %v7769, 0
    %v7943 = vsel %vm2501, %v7770, 0
    %v7946 = vsel %vm2501, %v7771, 0
    %v7949 = vsel %vm2501, %v7772, 0
    %v7952 = vsel %vm2501, %v7773, 0
    %v7955 = vsel %vm2501, %v7774, 0
    %v7958 = vsel %vm2501, %v7775, 0
    %v7961 = vsel %vm2501, %v7776, 0
    %v7964 = vsel %vm2501, %v7777, 0
    %v7967 = vsel %vm2501, %v7778, 0
    %v7970 = vsel %vm2501, %v7779, 0
    %v7973 = vsel %vm2501, %v7780, 0
    %v7976 = vsel %vm2501, %v7781, 0
    %v7979 = vsel %vm2501, %v7782, 0
    %v7982 = vsel %vm2501, %v7783, 0
    %v7985 = vsel %vm2501, %v7784, 0
    %v7988 = vsel %vm2501, %v7785, 0
    %v7991 = vsel %vm2501, %v7786, 0
    %7993 = vmatprep.subr.mxu0 0.0
    %7994 = vmatpush1.msra.mxu0 0.0
    %7995 = vmatprep.subr.mxu0 0.0
    %7996 = vmatpush1.msra.mxu0 0.0
    %7997 = vmatprep.subr.mxu0 0.0
    %7998 = vmatpush1.msra.mxu0 0.0
    %7999 = vmatprep.subr.mxu0 0.0
    %8000 = vmatpush1.msra.mxu0 0.0
    %8001 = vmatprep.subr.mxu0 0.0
    %8002 = vmatpush1.msra.mxu0 0.0
    %8003 = vmatprep.subr.mxu0 0.0
    %8004 = vmatpush1.msra.mxu0 0.0
    %8005 = vmatprep.subr.mxu0 0.0
    %8006 = vmatpush1.msra.mxu0 0.0
    %8007 = vmatprep.subr.mxu0 0.0
    %8008 = vmatpush1.msra.mxu0 0.0
    %8009 = vmatprep.subr.mxu0 0.0
    %8010 = vmatpush1.msra.mxu0 %v7794
    %8011 = vmatprep.subr.mxu0 0.0
    %8012 = vmatpush1.msra.mxu0 %v7793
    %8013 = vmatprep.subr.mxu0 0.0
    %8014 = vmatpush1.msra.mxu0 %v7792
    %8015 = vmatprep.subr.mxu0 0.0
    %8016 = vmatpush1.msra.mxu0 %v7791
    %8017 = vmatprep.subr.mxu0 0.0
    %8018 = vmatpush1.msra.mxu0 %v7790
    %8019 = vmatprep.subr.mxu0 0.0
    %8020 = vmatpush1.msra.mxu0 %v7789
    %8021 = vmatprep.subr.mxu0 0.0
    %8022 = vmatpush1.msra.mxu0 %v7788
    %8023 = vmatprep.subr.mxu0 0.0
    %8024 = vmatpush1.msra.mxu0 %v7787
    %8025 = vmatprep.subr.mxu0 0.0
    %8026 = vmatpush2.msra.mxu0 0.0
    %8027 = vmatprep.subr.mxu0 0.0
    %8028 = vmatpush2.msra.mxu0 0.0
    %8029 = vmatprep.subr.mxu0 0.0
    %8030 = vmatpush2.msra.mxu0 0.0
    %8031 = vmatprep.subr.mxu0 0.0
    %8032 = vmatpush2.msra.mxu0 0.0
    %8033 = vmatprep.subr.mxu0 0.0
    %8034 = vmatpush2.msra.mxu0 0.0
    %8035 = vmatprep.subr.mxu0 0.0
    %8036 = vmatpush2.msra.mxu0 0.0
    %8037 = vmatprep.subr.mxu0 0.0
    %8038 = vmatpush2.msra.mxu0 0.0
    %8039 = vmatprep.subr.mxu0 0.0
    %8040 = vmatpush2.msra.mxu0 0.0
    %8041 = vmatprep.subr.mxu0 0.0
    %8042 = vmatpush2.msra.mxu0 0.0
    %8043 = vmatprep.subr.mxu0 0.0
    %8044 = vmatpush2.msra.mxu0 0.0
    %8045 = vmatprep.subr.mxu0 0.0
    %8046 = vmatpush2.msra.mxu0 0.0
    %8047 = vmatprep.subr.mxu0 0.0
    %8048 = vmatpush2.msra.mxu0 0.0
    %8049 = vmatprep.subr.mxu0 0.0
    %8050 = vmatpush2.msra.mxu0 0.0
    %8051 = vmatprep.subr.mxu0 0.0
    %8052 = vmatpush2.msra.mxu0 0.0
    %8053 = vmatprep.subr.mxu0 0.0
    %8054 = vmatpush2.msra.mxu0 0.0
    %8055 = vmatprep.subr.mxu0 0.0
    %8056 = vmatpush2.msra.mxu0 0.0
    %8057 = vmatprep.mubr.f32.mxu0 0.0
    %8058 = vmatmul.mubr.f32.gmra.mxu0 %v7802
    %v8059 = vpop.f32.mrf.mxu0
    %v8060 = vadd.f32 %v7799, %v8059
    %v8061 = vpop.f32.mrf.mxu0
    %8062 = vmatprep.mubr.f32.mxu0 0.0
    %8063 = vmatmul.mubr.f32.gmra.mxu0 %v7805
    %v8064 = vpop.f32.mrf.mxu0
    %v8065 = vadd.f32 %v7799, %v8064
    %v8066 = vpop.f32.mrf.mxu0
    %8067 = vmatprep.mubr.f32.mxu0 0.0
    %8068 = vmatmul.mubr.f32.gmra.mxu0 %v7808
    %v8069 = vpop.f32.mrf.mxu0
    %v8070 = vadd.f32 %v7799, %v8069
    %v8071 = vpop.f32.mrf.mxu0
    %8072 = vmatprep.mubr.f32.mxu0 0.0
    %8073 = vmatmul.mubr.f32.gmra.mxu0 %v7811
    %v8074 = vpop.f32.mrf.mxu0
    %v8075 = vadd.f32 %v7799, %v8074
    %v8076 = vpop.f32.mrf.mxu0
    %8077 = vmatprep.mubr.f32.mxu0 0.0
    %8078 = vmatmul.mubr.f32.gmra.mxu0 %v7814
    %v8079 = vpop.f32.mrf.mxu0
    %v8080 = vadd.f32 %v7799, %v8079
    %v8081 = vpop.f32.mrf.mxu0
    %8082 = vmatprep.mubr.f32.mxu0 0.0
    %8083 = vmatmul.mubr.f32.gmra.mxu0 %v7817
    %v8084 = vpop.f32.mrf.mxu0
    %v8085 = vadd.f32 %v7799, %v8084
    %v8086 = vpop.f32.mrf.mxu0
    %8087 = vmatprep.mubr.f32.mxu0 0.0
    %8088 = vmatmul.mubr.f32.gmra.mxu0 %v7820
    %v8089 = vpop.f32.mrf.mxu0
    %v8090 = vadd.f32 %v7799, %v8089
    %v8091 = vpop.f32.mrf.mxu0
    %8092 = vmatprep.mubr.f32.mxu0 0.0
    %8093 = vmatmul.mubr.f32.gmra.mxu0 %v7823
    %v8094 = vpop.f32.mrf.mxu0
    %v8095 = vadd.f32 %v7799, %v8094
    %v8096 = vpop.f32.mrf.mxu0
    %8097 = vmatprep.mubr.f32.mxu0 0.0
    %8098 = vmatmul.mubr.f32.gmra.mxu0 %v7826
    %v8099 = vpop.f32.mrf.mxu0
    %v8100 = vadd.f32 %v7799, %v8099
    %v8101 = vpop.f32.mrf.mxu0
    %8102 = vmatprep.mubr.f32.mxu0 0.0
    %8103 = vmatmul.mubr.f32.gmra.mxu0 %v7829
    %v8104 = vpop.f32.mrf.mxu0
    %v8105 = vadd.f32 %v7799, %v8104
    %v8106 = vpop.f32.mrf.mxu0
    %8107 = vmatprep.mubr.f32.mxu0 0.0
    %8108 = vmatmul.mubr.f32.gmra.mxu0 %v7832
    %v8109 = vpop.f32.mrf.mxu0
    %v8110 = vadd.f32 %v7799, %v8109
    %v8111 = vpop.f32.mrf.mxu0
    %8112 = vmatprep.mubr.f32.mxu0 0.0
    %8113 = vmatmul.mubr.f32.gmra.mxu0 %v7835
    %v8114 = vpop.f32.mrf.mxu0
    %v8115 = vadd.f32 %v7799, %v8114
    %v8116 = vpop.f32.mrf.mxu0
    %8117 = vmatprep.mubr.f32.mxu0 0.0
    %8118 = vmatmul.mubr.f32.gmra.mxu0 %v7838
    %v8119 = vpop.f32.mrf.mxu0
    %v8120 = vadd.f32 %v7799, %v8119
    %v8121 = vpop.f32.mrf.mxu0
    %8122 = vmatprep.mubr.f32.mxu0 0.0
    %8123 = vmatmul.mubr.f32.gmra.mxu0 %v7841
    %v8124 = vpop.f32.mrf.mxu0
    %v8125 = vadd.f32 %v7799, %v8124
    %v8126 = vpop.f32.mrf.mxu0
    %8127 = vmatprep.mubr.f32.mxu0 0.0
    %8128 = vmatmul.mubr.f32.gmra.mxu0 %v7844
    %v8129 = vpop.f32.mrf.mxu0
    %v8130 = vadd.f32 %v7799, %v8129
    %v8131 = vpop.f32.mrf.mxu0
    %8132 = vmatprep.mubr.f32.mxu0 0.0
    %8133 = vmatmul.mubr.f32.gmra.mxu0 %v7847
    %v8134 = vpop.f32.mrf.mxu0
    %v8135 = vadd.f32 %v7799, %v8134
    %v8136 = vpop.f32.mrf.mxu0
    %8137 = vmatprep.mubr.f32.mxu0 0.0
    %8138 = vmatmul.mubr.f32.gmra.mxu0 %v7850
    %v8139 = vpop.f32.mrf.mxu0
    %v8140 = vadd.f32 %v7799, %v8139
    %v8141 = vpop.f32.mrf.mxu0
    %8142 = vmatprep.mubr.f32.mxu0 0.0
    %8143 = vmatmul.mubr.f32.gmra.mxu0 %v7853
    %v8144 = vpop.f32.mrf.mxu0
    %v8145 = vadd.f32 %v7799, %v8144
    %v8146 = vpop.f32.mrf.mxu0
    %8147 = vmatprep.mubr.f32.mxu0 0.0
    %8148 = vmatmul.mubr.f32.gmra.mxu0 %v7856
    %v8149 = vpop.f32.mrf.mxu0
    %v8150 = vadd.f32 %v7799, %v8149
    %v8151 = vpop.f32.mrf.mxu0
    %8152 = vmatprep.mubr.f32.mxu0 0.0
    %8153 = vmatmul.mubr.f32.gmra.mxu0 %v7859
    %v8154 = vpop.f32.mrf.mxu0
    %v8155 = vadd.f32 %v7799, %v8154
    %v8156 = vpop.f32.mrf.mxu0
    %8157 = vmatprep.mubr.f32.mxu0 0.0
    %8158 = vmatmul.mubr.f32.gmra.mxu0 %v7862
    %v8159 = vpop.f32.mrf.mxu0
    %v8160 = vadd.f32 %v7799, %v8159
    %v8161 = vpop.f32.mrf.mxu0
    %8162 = vmatprep.mubr.f32.mxu0 0.0
    %8163 = vmatmul.mubr.f32.gmra.mxu0 %v7865
    %v8164 = vpop.f32.mrf.mxu0
    %v8165 = vadd.f32 %v7799, %v8164
    %v8166 = vpop.f32.mrf.mxu0
    %8167 = vmatprep.mubr.f32.mxu0 0.0
    %8168 = vmatmul.mubr.f32.gmra.mxu0 %v7868
    %v8169 = vpop.f32.mrf.mxu0
    %v8170 = vadd.f32 %v7799, %v8169
    %v8171 = vpop.f32.mrf.mxu0
    %8172 = vmatprep.mubr.f32.mxu0 0.0
    %8173 = vmatmul.mubr.f32.gmra.mxu0 %v7871
    %v8174 = vpop.f32.mrf.mxu0
    %v8175 = vadd.f32 %v7799, %v8174
    %v8176 = vpop.f32.mrf.mxu0
    %8177 = vmatprep.mubr.f32.mxu0 0.0
    %8178 = vmatmul.mubr.f32.gmra.mxu0 %v7874
    %v8179 = vpop.f32.mrf.mxu0
    %v8180 = vadd.f32 %v7799, %v8179
    %v8181 = vpop.f32.mrf.mxu0
    %8182 = vmatprep.mubr.f32.mxu0 0.0
    %8183 = vmatmul.mubr.f32.gmra.mxu0 %v7877
    %v8184 = vpop.f32.mrf.mxu0
    %v8185 = vadd.f32 %v7799, %v8184
    %v8186 = vpop.f32.mrf.mxu0
    %8187 = vmatprep.mubr.f32.mxu0 0.0
    %8188 = vmatmul.mubr.f32.gmra.mxu0 %v7880
    %v8189 = vpop.f32.mrf.mxu0
    %v8190 = vadd.f32 %v7799, %v8189
    %v8191 = vpop.f32.mrf.mxu0
    %8192 = vmatprep.mubr.f32.mxu0 0.0
    %8193 = vmatmul.mubr.f32.gmra.mxu0 %v7883
    %v8194 = vpop.f32.mrf.mxu0
    %v8195 = vadd.f32 %v7799, %v8194
    %v8196 = vpop.f32.mrf.mxu0
    %8197 = vmatprep.mubr.f32.mxu0 0.0
    %8198 = vmatmul.mubr.f32.gmra.mxu0 %v7886
    %v8199 = vpop.f32.mrf.mxu0
    %v8200 = vadd.f32 %v7799, %v8199
    %v8201 = vpop.f32.mrf.mxu0
    %8202 = vmatprep.mubr.f32.mxu0 0.0
    %8203 = vmatmul.mubr.f32.gmra.mxu0 %v7889
    %v8204 = vpop.f32.mrf.mxu0
    %v8205 = vadd.f32 %v7799, %v8204
    %v8206 = vpop.f32.mrf.mxu0
    %8207 = vmatprep.mubr.f32.mxu0 0.0
    %8208 = vmatmul.mubr.f32.gmra.mxu0 %v7892
    %v8209 = vpop.f32.mrf.mxu0
    %v8210 = vadd.f32 %v7799, %v8209
    %v8211 = vpop.f32.mrf.mxu0
    %8212 = vmatprep.mubr.f32.mxu0 0.0
    %8213 = vmatmul.mubr.f32.gmra.mxu0 %v7895
    %v8214 = vpop.f32.mrf.mxu0
    %v8215 = vadd.f32 %v7799, %v8214
    %v8216 = vpop.f32.mrf.mxu0
    %8217 = vmatprep.mubr.f32.mxu0 0.0
    %8218 = vmatmul.mubr.f32.gmra.mxu0 %v7898
    %v8219 = vpop.f32.mrf.mxu0
    %v8220 = vadd.f32 %v7799, %v8219
    %v8221 = vpop.f32.mrf.mxu0
    %8222 = vmatprep.mubr.f32.mxu0 0.0
    %8223 = vmatmul.mubr.f32.gmra.mxu0 %v7901
    %v8224 = vpop.f32.mrf.mxu0
    %v8225 = vadd.f32 %v7799, %v8224
    %v8226 = vpop.f32.mrf.mxu0
    %8227 = vmatprep.mubr.f32.mxu0 0.0
    %8228 = vmatmul.mubr.f32.gmra.mxu0 %v7904
    %v8229 = vpop.f32.mrf.mxu0
    %v8230 = vadd.f32 %v7799, %v8229
    %v8231 = vpop.f32.mrf.mxu0
    %8232 = vmatprep.mubr.f32.mxu0 0.0
    %8233 = vmatmul.mubr.f32.gmra.mxu0 %v7907
    %v8234 = vpop.f32.mrf.mxu0
    %v8235 = vadd.f32 %v7799, %v8234
    %v8236 = vpop.f32.mrf.mxu0
    %8237 = vmatprep.mubr.f32.mxu0 0.0
    %8238 = vmatmul.mubr.f32.gmra.mxu0 %v7910
    %v8239 = vpop.f32.mrf.mxu0
    %v8240 = vadd.f32 %v7799, %v8239
    %v8241 = vpop.f32.mrf.mxu0
    %8242 = vmatprep.mubr.f32.mxu0 0.0
    %8243 = vmatmul.mubr.f32.gmra.mxu0 %v7913
    %v8244 = vpop.f32.mrf.mxu0
    %v8245 = vadd.f32 %v7799, %v8244
    %v8246 = vpop.f32.mrf.mxu0
    %8247 = vmatprep.mubr.f32.mxu0 0.0
    %8248 = vmatmul.mubr.f32.gmra.mxu0 %v7916
    %v8249 = vpop.f32.mrf.mxu0
    %v8250 = vadd.f32 %v7799, %v8249
    %v8251 = vpop.f32.mrf.mxu0
    %8252 = vmatprep.mubr.f32.mxu0 0.0
    %8253 = vmatmul.mubr.f32.gmra.mxu0 %v7919
    %v8254 = vpop.f32.mrf.mxu0
    %v8255 = vadd.f32 %v7799, %v8254
    %v8256 = vpop.f32.mrf.mxu0
    %8257 = vmatprep.mubr.f32.mxu0 0.0
    %8258 = vmatmul.mubr.f32.gmra.mxu0 %v7922
    %v8259 = vpop.f32.mrf.mxu0
    %v8260 = vadd.f32 %v7799, %v8259
    %v8261 = vpop.f32.mrf.mxu0
    %8262 = vmatprep.mubr.f32.mxu0 0.0
    %8263 = vmatmul.mubr.f32.gmra.mxu0 %v7925
    %v8264 = vpop.f32.mrf.mxu0
    %v8265 = vadd.f32 %v7799, %v8264
    %v8266 = vpop.f32.mrf.mxu0
    %8267 = vmatprep.mubr.f32.mxu0 0.0
    %8268 = vmatmul.mubr.f32.gmra.mxu0 %v7928
    %v8269 = vpop.f32.mrf.mxu0
    %v8270 = vadd.f32 %v7799, %v8269
    %v8271 = vpop.f32.mrf.mxu0
    %8272 = vmatprep.mubr.f32.mxu0 0.0
    %8273 = vmatmul.mubr.f32.gmra.mxu0 %v7931
    %v8274 = vpop.f32.mrf.mxu0
    %v8275 = vadd.f32 %v7799, %v8274
    %v8276 = vpop.f32.mrf.mxu0
    %8277 = vmatprep.mubr.f32.mxu0 0.0
    %8278 = vmatmul.mubr.f32.gmra.mxu0 %v7934
    %v8279 = vpop.f32.mrf.mxu0
    %v8280 = vadd.f32 %v7799, %v8279
    %v8281 = vpop.f32.mrf.mxu0
    %8282 = vmatprep.mubr.f32.mxu0 0.0
    %8283 = vmatmul.mubr.f32.gmra.mxu0 %v7937
    %v8284 = vpop.f32.mrf.mxu0
    %v8285 = vadd.f32 %v7799, %v8284
    %v8286 = vpop.f32.mrf.mxu0
    %8287 = vmatprep.mubr.f32.mxu0 0.0
    %8288 = vmatmul.mubr.f32.gmra.mxu0 %v7940
    %v8289 = vpop.f32.mrf.mxu0
    %v8290 = vadd.f32 %v7799, %v8289
    %v8291 = vpop.f32.mrf.mxu0
    %8292 = vmatprep.mubr.f32.mxu0 0.0
    %8293 = vmatmul.mubr.f32.gmra.mxu0 %v7943
    %v8294 = vpop.f32.mrf.mxu0
    %v8295 = vadd.f32 %v7799, %v8294
    %v8296 = vpop.f32.mrf.mxu0
    %8297 = vmatprep.mubr.f32.mxu0 0.0
    %8298 = vmatmul.mubr.f32.gmra.mxu0 %v7946
    %v8299 = vpop.f32.mrf.mxu0
    %v8300 = vadd.f32 %v7799, %v8299
    %v8301 = vpop.f32.mrf.mxu0
    %8302 = vmatprep.mubr.f32.mxu0 0.0
    %8303 = vmatmul.mubr.f32.gmra.mxu0 %v7949
    %v8304 = vpop.f32.mrf.mxu0
    %v8305 = vadd.f32 %v7799, %v8304
    %v8306 = vpop.f32.mrf.mxu0
    %8307 = vmatprep.mubr.f32.mxu0 0.0
    %8308 = vmatmul.mubr.f32.gmra.mxu0 %v7952
    %v8309 = vpop.f32.mrf.mxu0
    %v8310 = vadd.f32 %v7799, %v8309
    %v8311 = vpop.f32.mrf.mxu0
    %8312 = vmatprep.mubr.f32.mxu0 0.0
    %8313 = vmatmul.mubr.f32.gmra.mxu0 %v7955
    %v8314 = vpop.f32.mrf.mxu0
    %v8315 = vadd.f32 %v7799, %v8314
    %v8316 = vpop.f32.mrf.mxu0
    %8317 = vmatprep.mubr.f32.mxu0 0.0
    %8318 = vmatmul.mubr.f32.gmra.mxu0 %v7958
    %v8319 = vpop.f32.mrf.mxu0
    %v8320 = vadd.f32 %v7799, %v8319
    %v8321 = vpop.f32.mrf.mxu0
    %8322 = vmatprep.mubr.f32.mxu0 0.0
    %8323 = vmatmul.mubr.f32.gmra.mxu0 %v7961
    %v8324 = vpop.f32.mrf.mxu0
    %v8325 = vadd.f32 %v7799, %v8324
    %v8326 = vpop.f32.mrf.mxu0
    %8327 = vmatprep.mubr.f32.mxu0 0.0
    %8328 = vmatmul.mubr.f32.gmra.mxu0 %v7964
    %v8329 = vpop.f32.mrf.mxu0
    %v8330 = vadd.f32 %v7799, %v8329
    %v8331 = vpop.f32.mrf.mxu0
    %8332 = vmatprep.mubr.f32.mxu0 0.0
    %8333 = vmatmul.mubr.f32.gmra.mxu0 %v7967
    %v8334 = vpop.f32.mrf.mxu0
    %v8335 = vadd.f32 %v7799, %v8334
    %v8336 = vpop.f32.mrf.mxu0
    %8337 = vmatprep.mubr.f32.mxu0 0.0
    %8338 = vmatmul.mubr.f32.gmra.mxu0 %v7970
    %v8339 = vpop.f32.mrf.mxu0
    %v8340 = vadd.f32 %v7799, %v8339
    %v8341 = vpop.f32.mrf.mxu0
    %8342 = vmatprep.mubr.f32.mxu0 0.0
    %8343 = vmatmul.mubr.f32.gmra.mxu0 %v7973
    %v8344 = vpop.f32.mrf.mxu0
    %v8345 = vadd.f32 %v7799, %v8344
    %v8346 = vpop.f32.mrf.mxu0
    %8347 = vmatprep.mubr.f32.mxu0 0.0
    %8348 = vmatmul.mubr.f32.gmra.mxu0 %v7976
    %v8349 = vpop.f32.mrf.mxu0
    %v8350 = vadd.f32 %v7799, %v8349
    %v8351 = vpop.f32.mrf.mxu0
    %8352 = vmatprep.mubr.f32.mxu0 0.0
    %8353 = vmatmul.mubr.f32.gmra.mxu0 %v7979
    %v8354 = vpop.f32.mrf.mxu0
    %v8355 = vadd.f32 %v7799, %v8354
    %v8356 = vpop.f32.mrf.mxu0
    %8357 = vmatprep.mubr.f32.mxu0 0.0
    %8358 = vmatmul.mubr.f32.gmra.mxu0 %v7982
    %v8359 = vpop.f32.mrf.mxu0
    %v8360 = vadd.f32 %v7799, %v8359
    %v8361 = vpop.f32.mrf.mxu0
    %8362 = vmatprep.mubr.f32.mxu0 0.0
    %8363 = vmatmul.mubr.f32.gmra.mxu0 %v7985
    %v8364 = vpop.f32.mrf.mxu0
    %v8365 = vadd.f32 %v7799, %v8364
    %v8366 = vpop.f32.mrf.mxu0
    %8367 = vmatprep.mubr.f32.mxu0 0.0
    %8368 = vmatmul.mubr.f32.gmra.mxu0 %v7988
    %v8369 = vpop.f32.mrf.mxu0
    %v8370 = vadd.f32 %v7799, %v8369
    %v8371 = vpop.f32.mrf.mxu0
    %8372 = vmatprep.mubr.f32.mxu0 0.0
    %8373 = vmatmul.mubr.f32.gmra.mxu0 %v7991
    %v8374 = vpop.f32.mrf.mxu0
    %v8375 = vadd.f32 %v7799, %v8374
    %v8376 = vpop.f32.mrf.mxu0
    %8377 = vdwg.mxu0
    %v8378 = vsel %vm2501, %v8060, -inf
    %8379 = vmax.xlane.f32.xlu0 %v8378
    %v8380 = vpop.xlane.xlu0 %8379
    %v8381 = vsel %vm2501, %v8065, -inf
    %8382 = vmax.xlane.f32.xlu0 %v8381
    %v8383 = vpop.xlane.xlu0 %8382
    %v8384 = vsel %vm2501, %v8070, -inf
    %8385 = vmax.xlane.f32.xlu0 %v8384
    %v8386 = vpop.xlane.xlu0 %8385
    %v8387 = vsel %vm2501, %v8075, -inf
    %8388 = vmax.xlane.f32.xlu0 %v8387
    %v8389 = vpop.xlane.xlu0 %8388
    %v8390 = vsel %vm2501, %v8080, -inf
    %8391 = vmax.xlane.f32.xlu0 %v8390
    %v8392 = vpop.xlane.xlu0 %8391
    %v8393 = vsel %vm2501, %v8085, -inf
    %8394 = vmax.xlane.f32.xlu0 %v8393
    %v8395 = vpop.xlane.xlu0 %8394
    %v8396 = vsel %vm2501, %v8090, -inf
    %8397 = vmax.xlane.f32.xlu0 %v8396
    %v8398 = vpop.xlane.xlu0 %8397
    %v8399 = vsel %vm2501, %v8095, -inf
    %8400 = vmax.xlane.f32.xlu0 %v8399
    %v8401 = vpop.xlane.xlu0 %8400
    %v8402 = vsel %vm2501, %v8100, -inf
    %8403 = vmax.xlane.f32.xlu0 %v8402
    %v8404 = vpop.xlane.xlu0 %8403
    %v8405 = vsel %vm2501, %v8105, -inf
    %8406 = vmax.xlane.f32.xlu0 %v8405
    %v8407 = vpop.xlane.xlu0 %8406
    %v8408 = vsel %vm2501, %v8110, -inf
    %8409 = vmax.xlane.f32.xlu0 %v8408
    %v8410 = vpop.xlane.xlu0 %8409
    %v8411 = vsel %vm2501, %v8115, -inf
    %8412 = vmax.xlane.f32.xlu0 %v8411
    %v8413 = vpop.xlane.xlu0 %8412
    %v8414 = vsel %vm2501, %v8120, -inf
    %8415 = vmax.xlane.f32.xlu0 %v8414
    %v8416 = vpop.xlane.xlu0 %8415
    %v8417 = vsel %vm2501, %v8125, -inf
    %8418 = vmax.xlane.f32.xlu0 %v8417
    %v8419 = vpop.xlane.xlu0 %8418
    %v8420 = vsel %vm2501, %v8130, -inf
    %8421 = vmax.xlane.f32.xlu0 %v8420
    %v8422 = vpop.xlane.xlu0 %8421
    %v8423 = vsel %vm2501, %v8135, -inf
    %8424 = vmax.xlane.f32.xlu0 %v8423
    %v8425 = vpop.xlane.xlu0 %8424
    %v8426 = vsel %vm2501, %v8140, -inf
    %8427 = vmax.xlane.f32.xlu0 %v8426
    %v8428 = vpop.xlane.xlu0 %8427
    %v8429 = vsel %vm2501, %v8145, -inf
    %8430 = vmax.xlane.f32.xlu0 %v8429
    %v8431 = vpop.xlane.xlu0 %8430
    %v8432 = vsel %vm2501, %v8150, -inf
    %8433 = vmax.xlane.f32.xlu0 %v8432
    %v8434 = vpop.xlane.xlu0 %8433
    %v8435 = vsel %vm2501, %v8155, -inf
    %8436 = vmax.xlane.f32.xlu0 %v8435
    %v8437 = vpop.xlane.xlu0 %8436
    %v8438 = vsel %vm2501, %v8160, -inf
    %8439 = vmax.xlane.f32.xlu0 %v8438
    %v8440 = vpop.xlane.xlu0 %8439
    %v8441 = vsel %vm2501, %v8165, -inf
    %8442 = vmax.xlane.f32.xlu0 %v8441
    %v8443 = vpop.xlane.xlu0 %8442
    %v8444 = vsel %vm2501, %v8170, -inf
    %8445 = vmax.xlane.f32.xlu0 %v8444
    %v8446 = vpop.xlane.xlu0 %8445
    %v8447 = vsel %vm2501, %v8175, -inf
    %8448 = vmax.xlane.f32.xlu0 %v8447
    %v8449 = vpop.xlane.xlu0 %8448
    %v8450 = vsel %vm2501, %v8180, -inf
    %8451 = vmax.xlane.f32.xlu0 %v8450
    %v8452 = vpop.xlane.xlu0 %8451
    %v8453 = vsel %vm2501, %v8185, -inf
    %8454 = vmax.xlane.f32.xlu0 %v8453
    %v8455 = vpop.xlane.xlu0 %8454
    %v8456 = vsel %vm2501, %v8190, -inf
    %8457 = vmax.xlane.f32.xlu0 %v8456
    %v8458 = vpop.xlane.xlu0 %8457
    %v8459 = vsel %vm2501, %v8195, -inf
    %8460 = vmax.xlane.f32.xlu0 %v8459
    %v8461 = vpop.xlane.xlu0 %8460
    %v8462 = vsel %vm2501, %v8200, -inf
    %8463 = vmax.xlane.f32.xlu0 %v8462
    %v8464 = vpop.xlane.xlu0 %8463
    %v8465 = vsel %vm2501, %v8205, -inf
    %8466 = vmax.xlane.f32.xlu0 %v8465
    %v8467 = vpop.xlane.xlu0 %8466
    %v8468 = vsel %vm2501, %v8210, -inf
    %8469 = vmax.xlane.f32.xlu0 %v8468
    %v8470 = vpop.xlane.xlu0 %8469
    %v8471 = vsel %vm2501, %v8215, -inf
    %8472 = vmax.xlane.f32.xlu0 %v8471
    %v8473 = vpop.xlane.xlu0 %8472
    %v8474 = vsel %vm2501, %v8220, -inf
    %8475 = vmax.xlane.f32.xlu0 %v8474
    %v8476 = vpop.xlane.xlu0 %8475
    %v8477 = vsel %vm2501, %v8225, -inf
    %8478 = vmax.xlane.f32.xlu0 %v8477
    %v8479 = vpop.xlane.xlu0 %8478
    %v8480 = vsel %vm2501, %v8230, -inf
    %8481 = vmax.xlane.f32.xlu0 %v8480
    %v8482 = vpop.xlane.xlu0 %8481
    %v8483 = vsel %vm2501, %v8235, -inf
    %8484 = vmax.xlane.f32.xlu0 %v8483
    %v8485 = vpop.xlane.xlu0 %8484
    %v8486 = vsel %vm2501, %v8240, -inf
    %8487 = vmax.xlane.f32.xlu0 %v8486
    %v8488 = vpop.xlane.xlu0 %8487
    %v8489 = vsel %vm2501, %v8245, -inf
    %8490 = vmax.xlane.f32.xlu0 %v8489
    %v8491 = vpop.xlane.xlu0 %8490
    %v8492 = vsel %vm2501, %v8250, -inf
    %8493 = vmax.xlane.f32.xlu0 %v8492
    %v8494 = vpop.xlane.xlu0 %8493
    %v8495 = vsel %vm2501, %v8255, -inf
    %8496 = vmax.xlane.f32.xlu0 %v8495
    %v8497 = vpop.xlane.xlu0 %8496
    %v8498 = vsel %vm2501, %v8260, -inf
    %8499 = vmax.xlane.f32.xlu0 %v8498
    %v8500 = vpop.xlane.xlu0 %8499
    %v8501 = vsel %vm2501, %v8265, -inf
    %8502 = vmax.xlane.f32.xlu0 %v8501
    %v8503 = vpop.xlane.xlu0 %8502
    %v8504 = vsel %vm2501, %v8270, -inf
    %8505 = vmax.xlane.f32.xlu0 %v8504
    %v8506 = vpop.xlane.xlu0 %8505
    %v8507 = vsel %vm2501, %v8275, -inf
    %8508 = vmax.xlane.f32.xlu0 %v8507
    %v8509 = vpop.xlane.xlu0 %8508
    %v8510 = vsel %vm2501, %v8280, -inf
    %8511 = vmax.xlane.f32.xlu0 %v8510
    %v8512 = vpop.xlane.xlu0 %8511
    %v8513 = vsel %vm2501, %v8285, -inf
    %8514 = vmax.xlane.f32.xlu0 %v8513
    %v8515 = vpop.xlane.xlu0 %8514
    %v8516 = vsel %vm2501, %v8290, -inf
    %8517 = vmax.xlane.f32.xlu0 %v8516
    %v8518 = vpop.xlane.xlu0 %8517
    %v8519 = vsel %vm2501, %v8295, -inf
    %8520 = vmax.xlane.f32.xlu0 %v8519
    %v8521 = vpop.xlane.xlu0 %8520
    %v8522 = vsel %vm2501, %v8300, -inf
    %8523 = vmax.xlane.f32.xlu0 %v8522
    %v8524 = vpop.xlane.xlu0 %8523
    %v8525 = vsel %vm2501, %v8305, -inf
    %8526 = vmax.xlane.f32.xlu0 %v8525
    %v8527 = vpop.xlane.xlu0 %8526
    %v8528 = vsel %vm2501, %v8310, -inf
    %8529 = vmax.xlane.f32.xlu0 %v8528
    %v8530 = vpop.xlane.xlu0 %8529
    %v8531 = vsel %vm2501, %v8315, -inf
    %8532 = vmax.xlane.f32.xlu0 %v8531
    %v8533 = vpop.xlane.xlu0 %8532
    %v8534 = vsel %vm2501, %v8320, -inf
    %8535 = vmax.xlane.f32.xlu0 %v8534
    %v8536 = vpop.xlane.xlu0 %8535
    %v8537 = vsel %vm2501, %v8325, -inf
    %8538 = vmax.xlane.f32.xlu0 %v8537
    %v8539 = vpop.xlane.xlu0 %8538
    %v8540 = vsel %vm2501, %v8330, -inf
    %8541 = vmax.xlane.f32.xlu0 %v8540
    %v8542 = vpop.xlane.xlu0 %8541
    %v8543 = vsel %vm2501, %v8335, -inf
    %8544 = vmax.xlane.f32.xlu0 %v8543
    %v8545 = vpop.xlane.xlu0 %8544
    %v8546 = vsel %vm2501, %v8340, -inf
    %8547 = vmax.xlane.f32.xlu0 %v8546
    %v8548 = vpop.xlane.xlu0 %8547
    %v8549 = vsel %vm2501, %v8345, -inf
    %8550 = vmax.xlane.f32.xlu0 %v8549
    %v8551 = vpop.xlane.xlu0 %8550
    %v8552 = vsel %vm2501, %v8350, -inf
    %8553 = vmax.xlane.f32.xlu0 %v8552
    %v8554 = vpop.xlane.xlu0 %8553
    %v8555 = vsel %vm2501, %v8355, -inf
    %8556 = vmax.xlane.f32.xlu0 %v8555
    %v8557 = vpop.xlane.xlu0 %8556
    %v8558 = vsel %vm2501, %v8360, -inf
    %8559 = vmax.xlane.f32.xlu0 %v8558
    %v8560 = vpop.xlane.xlu0 %8559
    %v8561 = vsel %vm2501, %v8365, -inf
    %8562 = vmax.xlane.f32.xlu0 %v8561
    %v8563 = vpop.xlane.xlu0 %8562
    %v8564 = vsel %vm2501, %v8370, -inf
    %8565 = vmax.xlane.f32.xlu0 %v8564
    %v8566 = vpop.xlane.xlu0 %8565
    %v8567 = vsel %vm2501, %v8375, -inf
    %8568 = vmax.xlane.f32.xlu0 %v8567
    %v8569 = vpop.xlane.xlu0 %8568
    %v8570 = vsub.f32 %v8060, %v8380
    %v8571 = vsub.f32 %v8065, %v8383
    %v8572 = vsub.f32 %v8070, %v8386
    %v8573 = vsub.f32 %v8075, %v8389
    %v8574 = vsub.f32 %v8080, %v8392
    %v8575 = vsub.f32 %v8085, %v8395
    %v8576 = vsub.f32 %v8090, %v8398
    %v8577 = vsub.f32 %v8095, %v8401
    %v8578 = vsub.f32 %v8100, %v8404
    %v8579 = vsub.f32 %v8105, %v8407
    %v8580 = vsub.f32 %v8110, %v8410
    %v8581 = vsub.f32 %v8115, %v8413
    %v8582 = vsub.f32 %v8120, %v8416
    %v8583 = vsub.f32 %v8125, %v8419
    %v8584 = vsub.f32 %v8130, %v8422
    %v8585 = vsub.f32 %v8135, %v8425
    %v8586 = vsub.f32 %v8140, %v8428
    %v8587 = vsub.f32 %v8145, %v8431
    %v8588 = vsub.f32 %v8150, %v8434
    %v8589 = vsub.f32 %v8155, %v8437
    %v8590 = vsub.f32 %v8160, %v8440
    %v8591 = vsub.f32 %v8165, %v8443
    %v8592 = vsub.f32 %v8170, %v8446
    %v8593 = vsub.f32 %v8175, %v8449
    %v8594 = vsub.f32 %v8180, %v8452
    %v8595 = vsub.f32 %v8185, %v8455
    %v8596 = vsub.f32 %v8190, %v8458
    %v8597 = vsub.f32 %v8195, %v8461
    %v8598 = vsub.f32 %v8200, %v8464
    %v8599 = vsub.f32 %v8205, %v8467
    %v8600 = vsub.f32 %v8210, %v8470
    %v8601 = vsub.f32 %v8215, %v8473
    %v8602 = vsub.f32 %v8220, %v8476
    %v8603 = vsub.f32 %v8225, %v8479
    %v8604 = vsub.f32 %v8230, %v8482
    %v8605 = vsub.f32 %v8235, %v8485
    %v8606 = vsub.f32 %v8240, %v8488
    %v8607 = vsub.f32 %v8245, %v8491
    %v8608 = vsub.f32 %v8250, %v8494
    %v8609 = vsub.f32 %v8255, %v8497
    %v8610 = vsub.f32 %v8260, %v8500
    %v8611 = vsub.f32 %v8265, %v8503
    %v8612 = vsub.f32 %v8270, %v8506
    %v8613 = vsub.f32 %v8275, %v8509
    %v8614 = vsub.f32 %v8280, %v8512
    %v8615 = vsub.f32 %v8285, %v8515
    %v8616 = vsub.f32 %v8290, %v8518
    %v8617 = vsub.f32 %v8295, %v8521
    %v8618 = vsub.f32 %v8300, %v8524
    %v8619 = vsub.f32 %v8305, %v8527
    %v8620 = vsub.f32 %v8310, %v8530
    %v8621 = vsub.f32 %v8315, %v8533
    %v8622 = vsub.f32 %v8320, %v8536
    %v8623 = vsub.f32 %v8325, %v8539
    %v8624 = vsub.f32 %v8330, %v8542
    %v8625 = vsub.f32 %v8335, %v8545
    %v8626 = vsub.f32 %v8340, %v8548
    %v8627 = vsub.f32 %v8345, %v8551
    %v8628 = vsub.f32 %v8350, %v8554
    %v8629 = vsub.f32 %v8355, %v8557
    %v8630 = vsub.f32 %v8360, %v8560
    %v8631 = vsub.f32 %v8365, %v8563
    %v8632 = vsub.f32 %v8370, %v8566
    %v8633 = vsub.f32 %v8375, %v8569
    %v8634 = vmul.f32 %v8570, 1.442695
    %v8635 = vpow.pop %v8634
    %v8636 = vmul.f32 %v8571, 1.442695
    %v8637 = vpow.pop %v8636
    %v8638 = vmul.f32 %v8572, 1.442695
    %v8639 = vpow.pop %v8638
    %v8640 = vmul.f32 %v8573, 1.442695
    %v8641 = vpow.pop %v8640
    %v8642 = vmul.f32 %v8574, 1.442695
    %v8643 = vpow.pop %v8642
    %v8644 = vmul.f32 %v8575, 1.442695
    %v8645 = vpow.pop %v8644
    %v8646 = vmul.f32 %v8576, 1.442695
    %v8647 = vpow.pop %v8646
    %v8648 = vmul.f32 %v8577, 1.442695
    %v8649 = vpow.pop %v8648
    %v8650 = vmul.f32 %v8578, 1.442695
    %v8651 = vpow.pop %v8650
    %v8652 = vmul.f32 %v8579, 1.442695
    %v8653 = vpow.pop %v8652
    %v8654 = vmul.f32 %v8580, 1.442695
    %v8655 = vpow.pop %v8654
    %v8656 = vmul.f32 %v8581, 1.442695
    %v8657 = vpow.pop %v8656
    %v8658 = vmul.f32 %v8582, 1.442695
    %v8659 = vpow.pop %v8658
    %v8660 = vmul.f32 %v8583, 1.442695
    %v8661 = vpow.pop %v8660
    %v8662 = vmul.f32 %v8584, 1.442695
    %v8663 = vpow.pop %v8662
    %v8664 = vmul.f32 %v8585, 1.442695
    %v8665 = vpow.pop %v8664
    %v8666 = vmul.f32 %v8586, 1.442695
    %v8667 = vpow.pop %v8666
    %v8668 = vmul.f32 %v8587, 1.442695
    %v8669 = vpow.pop %v8668
    %v8670 = vmul.f32 %v8588, 1.442695
    %v8671 = vpow.pop %v8670
    %v8672 = vmul.f32 %v8589, 1.442695
    %v8673 = vpow.pop %v8672
    %v8674 = vmul.f32 %v8590, 1.442695
    %v8675 = vpow.pop %v8674
    %v8676 = vmul.f32 %v8591, 1.442695
    %v8677 = vpow.pop %v8676
    %v8678 = vmul.f32 %v8592, 1.442695
    %v8679 = vpow.pop %v8678
    %v8680 = vmul.f32 %v8593, 1.442695
    %v8681 = vpow.pop %v8680
    %v8682 = vmul.f32 %v8594, 1.442695
    %v8683 = vpow.pop %v8682
    %v8684 = vmul.f32 %v8595, 1.442695
    %v8685 = vpow.pop %v8684
    %v8686 = vmul.f32 %v8596, 1.442695
    %v8687 = vpow.pop %v8686
    %v8688 = vmul.f32 %v8597, 1.442695
    %v8689 = vpow.pop %v8688
    %v8690 = vmul.f32 %v8598, 1.442695
    %v8691 = vpow.pop %v8690
    %v8692 = vmul.f32 %v8599, 1.442695
    %v8693 = vpow.pop %v8692
    %v8694 = vmul.f32 %v8600, 1.442695
    %v8695 = vpow.pop %v8694
    %v8696 = vmul.f32 %v8601, 1.442695
    %v8697 = vpow.pop %v8696
    %v8698 = vmul.f32 %v8602, 1.442695
    %v8699 = vpow.pop %v8698
    %v8700 = vmul.f32 %v8603, 1.442695
    %v8701 = vpow.pop %v8700
    %v8702 = vmul.f32 %v8604, 1.442695
    %v8703 = vpow.pop %v8702
    %v8704 = vmul.f32 %v8605, 1.442695
    %v8705 = vpow.pop %v8704
    %v8706 = vmul.f32 %v8606, 1.442695
    %v8707 = vpow.pop %v8706
    %v8708 = vmul.f32 %v8607, 1.442695
    %v8709 = vpow.pop %v8708
    %v8710 = vmul.f32 %v8608, 1.442695
    %v8711 = vpow.pop %v8710
    %v8712 = vmul.f32 %v8609, 1.442695
    %v8713 = vpow.pop %v8712
    %v8714 = vmul.f32 %v8610, 1.442695
    %v8715 = vpow.pop %v8714
    %v8716 = vmul.f32 %v8611, 1.442695
    %v8717 = vpow.pop %v8716
    %v8718 = vmul.f32 %v8612, 1.442695
    %v8719 = vpow.pop %v8718
    %v8720 = vmul.f32 %v8613, 1.442695
    %v8721 = vpow.pop %v8720
    %v8722 = vmul.f32 %v8614, 1.442695
    %v8723 = vpow.pop %v8722
    %v8724 = vmul.f32 %v8615, 1.442695
    %v8725 = vpow.pop %v8724
    %v8726 = vmul.f32 %v8616, 1.442695
    %v8727 = vpow.pop %v8726
    %v8728 = vmul.f32 %v8617, 1.442695
    %v8729 = vpow.pop %v8728
    %v8730 = vmul.f32 %v8618, 1.442695
    %v8731 = vpow.pop %v8730
    %v8732 = vmul.f32 %v8619, 1.442695
    %v8733 = vpow.pop %v8732
    %v8734 = vmul.f32 %v8620, 1.442695
    %v8735 = vpow.pop %v8734
    %v8736 = vmul.f32 %v8621, 1.442695
    %v8737 = vpow.pop %v8736
    %v8738 = vmul.f32 %v8622, 1.442695
    %v8739 = vpow.pop %v8738
    %v8740 = vmul.f32 %v8623, 1.442695
    %v8741 = vpow.pop %v8740
    %v8742 = vmul.f32 %v8624, 1.442695
    %v8743 = vpow.pop %v8742
    %v8744 = vmul.f32 %v8625, 1.442695
    %v8745 = vpow.pop %v8744
    %v8746 = vmul.f32 %v8626, 1.442695
    %v8747 = vpow.pop %v8746
    %v8748 = vmul.f32 %v8627, 1.442695
    %v8749 = vpow.pop %v8748
    %v8750 = vmul.f32 %v8628, 1.442695
    %v8751 = vpow.pop %v8750
    %v8752 = vmul.f32 %v8629, 1.442695
    %v8753 = vpow.pop %v8752
    %v8754 = vmul.f32 %v8630, 1.442695
    %v8755 = vpow.pop %v8754
    %v8756 = vmul.f32 %v8631, 1.442695
    %v8757 = vpow.pop %v8756
    %v8758 = vmul.f32 %v8632, 1.442695
    %v8759 = vpow.pop %v8758
    %v8760 = vmul.f32 %v8633, 1.442695
    %v8761 = vpow.pop %v8760
    %v8762 = vsel %vm2501, %v8635, 0.0
    %8763 = vadd.xlane.f32.xlu0 %v8762
    %v8764 = vpop.xlane.xlu0 %8763
    %v8765 = vsel %vm2501, %v8637, 0.0
    %8766 = vadd.xlane.f32.xlu0 %v8765
    %v8767 = vpop.xlane.xlu0 %8766
    %v8768 = vsel %vm2501, %v8639, 0.0
    %8769 = vadd.xlane.f32.xlu0 %v8768
    %v8770 = vpop.xlane.xlu0 %8769
    %v8771 = vsel %vm2501, %v8641, 0.0
    %8772 = vadd.xlane.f32.xlu0 %v8771
    %v8773 = vpop.xlane.xlu0 %8772
    %v8774 = vsel %vm2501, %v8643, 0.0
    %8775 = vadd.xlane.f32.xlu0 %v8774
    %v8776 = vpop.xlane.xlu0 %8775
    %v8777 = vsel %vm2501, %v8645, 0.0
    %8778 = vadd.xlane.f32.xlu0 %v8777
    %v8779 = vpop.xlane.xlu0 %8778
    %v8780 = vsel %vm2501, %v8647, 0.0
    %8781 = vadd.xlane.f32.xlu0 %v8780
    %v8782 = vpop.xlane.xlu0 %8781
    %v8783 = vsel %vm2501, %v8649, 0.0
    %8784 = vadd.xlane.f32.xlu0 %v8783
    %v8785 = vpop.xlane.xlu0 %8784
    %v8786 = vsel %vm2501, %v8651, 0.0
    %8787 = vadd.xlane.f32.xlu0 %v8786
    %v8788 = vpop.xlane.xlu0 %8787
    %v8789 = vsel %vm2501, %v8653, 0.0
    %8790 = vadd.xlane.f32.xlu0 %v8789
    %v8791 = vpop.xlane.xlu0 %8790
    %v8792 = vsel %vm2501, %v8655, 0.0
    %8793 = vadd.xlane.f32.xlu0 %v8792
    %v8794 = vpop.xlane.xlu0 %8793
    %v8795 = vsel %vm2501, %v8657, 0.0
    %8796 = vadd.xlane.f32.xlu0 %v8795
    %v8797 = vpop.xlane.xlu0 %8796
    %v8798 = vsel %vm2501, %v8659, 0.0
    %8799 = vadd.xlane.f32.xlu0 %v8798
    %v8800 = vpop.xlane.xlu0 %8799
    %v8801 = vsel %vm2501, %v8661, 0.0
    %8802 = vadd.xlane.f32.xlu0 %v8801
    %v8803 = vpop.xlane.xlu0 %8802
    %v8804 = vsel %vm2501, %v8663, 0.0
    %8805 = vadd.xlane.f32.xlu0 %v8804
    %v8806 = vpop.xlane.xlu0 %8805
    %v8807 = vsel %vm2501, %v8665, 0.0
    %8808 = vadd.xlane.f32.xlu0 %v8807
    %v8809 = vpop.xlane.xlu0 %8808
    %v8810 = vsel %vm2501, %v8667, 0.0
    %8811 = vadd.xlane.f32.xlu0 %v8810
    %v8812 = vpop.xlane.xlu0 %8811
    %v8813 = vsel %vm2501, %v8669, 0.0
    %8814 = vadd.xlane.f32.xlu0 %v8813
    %v8815 = vpop.xlane.xlu0 %8814
    %v8816 = vsel %vm2501, %v8671, 0.0
    %8817 = vadd.xlane.f32.xlu0 %v8816
    %v8818 = vpop.xlane.xlu0 %8817
    %v8819 = vsel %vm2501, %v8673, 0.0
    %8820 = vadd.xlane.f32.xlu0 %v8819
    %v8821 = vpop.xlane.xlu0 %8820
    %v8822 = vsel %vm2501, %v8675, 0.0
    %8823 = vadd.xlane.f32.xlu0 %v8822
    %v8824 = vpop.xlane.xlu0 %8823
    %v8825 = vsel %vm2501, %v8677, 0.0
    %8826 = vadd.xlane.f32.xlu0 %v8825
    %v8827 = vpop.xlane.xlu0 %8826
    %v8828 = vsel %vm2501, %v8679, 0.0
    %8829 = vadd.xlane.f32.xlu0 %v8828
    %v8830 = vpop.xlane.xlu0 %8829
    %v8831 = vsel %vm2501, %v8681, 0.0
    %8832 = vadd.xlane.f32.xlu0 %v8831
    %v8833 = vpop.xlane.xlu0 %8832
    %v8834 = vsel %vm2501, %v8683, 0.0
    %8835 = vadd.xlane.f32.xlu0 %v8834
    %v8836 = vpop.xlane.xlu0 %8835
    %v8837 = vsel %vm2501, %v8685, 0.0
    %8838 = vadd.xlane.f32.xlu0 %v8837
    %v8839 = vpop.xlane.xlu0 %8838
    %v8840 = vsel %vm2501, %v8687, 0.0
    %8841 = vadd.xlane.f32.xlu0 %v8840
    %v8842 = vpop.xlane.xlu0 %8841
    %v8843 = vsel %vm2501, %v8689, 0.0
    %8844 = vadd.xlane.f32.xlu0 %v8843
    %v8845 = vpop.xlane.xlu0 %8844
    %v8846 = vsel %vm2501, %v8691, 0.0
    %8847 = vadd.xlane.f32.xlu0 %v8846
    %v8848 = vpop.xlane.xlu0 %8847
    %v8849 = vsel %vm2501, %v8693, 0.0
    %8850 = vadd.xlane.f32.xlu0 %v8849
    %v8851 = vpop.xlane.xlu0 %8850
    %v8852 = vsel %vm2501, %v8695, 0.0
    %8853 = vadd.xlane.f32.xlu0 %v8852
    %v8854 = vpop.xlane.xlu0 %8853
    %v8855 = vsel %vm2501, %v8697, 0.0
    %8856 = vadd.xlane.f32.xlu0 %v8855
    %v8857 = vpop.xlane.xlu0 %8856
    %v8858 = vsel %vm2501, %v8699, 0.0
    %8859 = vadd.xlane.f32.xlu0 %v8858
    %v8860 = vpop.xlane.xlu0 %8859
    %v8861 = vsel %vm2501, %v8701, 0.0
    %8862 = vadd.xlane.f32.xlu0 %v8861
    %v8863 = vpop.xlane.xlu0 %8862
    %v8864 = vsel %vm2501, %v8703, 0.0
    %8865 = vadd.xlane.f32.xlu0 %v8864
    %v8866 = vpop.xlane.xlu0 %8865
    %v8867 = vsel %vm2501, %v8705, 0.0
    %8868 = vadd.xlane.f32.xlu0 %v8867
    %v8869 = vpop.xlane.xlu0 %8868
    %v8870 = vsel %vm2501, %v8707, 0.0
    %8871 = vadd.xlane.f32.xlu0 %v8870
    %v8872 = vpop.xlane.xlu0 %8871
    %v8873 = vsel %vm2501, %v8709, 0.0
    %8874 = vadd.xlane.f32.xlu0 %v8873
    %v8875 = vpop.xlane.xlu0 %8874
    %v8876 = vsel %vm2501, %v8711, 0.0
    %8877 = vadd.xlane.f32.xlu0 %v8876
    %v8878 = vpop.xlane.xlu0 %8877
    %v8879 = vsel %vm2501, %v8713, 0.0
    %8880 = vadd.xlane.f32.xlu0 %v8879
    %v8881 = vpop.xlane.xlu0 %8880
    %v8882 = vsel %vm2501, %v8715, 0.0
    %8883 = vadd.xlane.f32.xlu0 %v8882
    %v8884 = vpop.xlane.xlu0 %8883
    %v8885 = vsel %vm2501, %v8717, 0.0
    %8886 = vadd.xlane.f32.xlu0 %v8885
    %v8887 = vpop.xlane.xlu0 %8886
    %v8888 = vsel %vm2501, %v8719, 0.0
    %8889 = vadd.xlane.f32.xlu0 %v8888
    %v8890 = vpop.xlane.xlu0 %8889
    %v8891 = vsel %vm2501, %v8721, 0.0
    %8892 = vadd.xlane.f32.xlu0 %v8891
    %v8893 = vpop.xlane.xlu0 %8892
    %v8894 = vsel %vm2501, %v8723, 0.0
    %8895 = vadd.xlane.f32.xlu0 %v8894
    %v8896 = vpop.xlane.xlu0 %8895
    %v8897 = vsel %vm2501, %v8725, 0.0
    %8898 = vadd.xlane.f32.xlu0 %v8897
    %v8899 = vpop.xlane.xlu0 %8898
    %v8900 = vsel %vm2501, %v8727, 0.0
    %8901 = vadd.xlane.f32.xlu0 %v8900
    %v8902 = vpop.xlane.xlu0 %8901
    %v8903 = vsel %vm2501, %v8729, 0.0
    %8904 = vadd.xlane.f32.xlu0 %v8903
    %v8905 = vpop.xlane.xlu0 %8904
    %v8906 = vsel %vm2501, %v8731, 0.0
    %8907 = vadd.xlane.f32.xlu0 %v8906
    %v8908 = vpop.xlane.xlu0 %8907
    %v8909 = vsel %vm2501, %v8733, 0.0
    %8910 = vadd.xlane.f32.xlu0 %v8909
    %v8911 = vpop.xlane.xlu0 %8910
    %v8912 = vsel %vm2501, %v8735, 0.0
    %8913 = vadd.xlane.f32.xlu0 %v8912
    %v8914 = vpop.xlane.xlu0 %8913
    %v8915 = vsel %vm2501, %v8737, 0.0
    %8916 = vadd.xlane.f32.xlu0 %v8915
    %v8917 = vpop.xlane.xlu0 %8916
    %v8918 = vsel %vm2501, %v8739, 0.0
    %8919 = vadd.xlane.f32.xlu0 %v8918
    %v8920 = vpop.xlane.xlu0 %8919
    %v8921 = vsel %vm2501, %v8741, 0.0
    %8922 = vadd.xlane.f32.xlu0 %v8921
    %v8923 = vpop.xlane.xlu0 %8922
    %v8924 = vsel %vm2501, %v8743, 0.0
    %8925 = vadd.xlane.f32.xlu0 %v8924
    %v8926 = vpop.xlane.xlu0 %8925
    %v8927 = vsel %vm2501, %v8745, 0.0
    %8928 = vadd.xlane.f32.xlu0 %v8927
    %v8929 = vpop.xlane.xlu0 %8928
    %v8930 = vsel %vm2501, %v8747, 0.0
    %8931 = vadd.xlane.f32.xlu0 %v8930
    %v8932 = vpop.xlane.xlu0 %8931
    %v8933 = vsel %vm2501, %v8749, 0.0
    %8934 = vadd.xlane.f32.xlu0 %v8933
    %v8935 = vpop.xlane.xlu0 %8934
    %v8936 = vsel %vm2501, %v8751, 0.0
    %8937 = vadd.xlane.f32.xlu0 %v8936
    %v8938 = vpop.xlane.xlu0 %8937
    %v8939 = vsel %vm2501, %v8753, 0.0
    %8940 = vadd.xlane.f32.xlu0 %v8939
    %v8941 = vpop.xlane.xlu0 %8940
    %v8942 = vsel %vm2501, %v8755, 0.0
    %8943 = vadd.xlane.f32.xlu0 %v8942
    %v8944 = vpop.xlane.xlu0 %8943
    %v8945 = vsel %vm2501, %v8757, 0.0
    %8946 = vadd.xlane.f32.xlu0 %v8945
    %v8947 = vpop.xlane.xlu0 %8946
    %v8948 = vsel %vm2501, %v8759, 0.0
    %8949 = vadd.xlane.f32.xlu0 %v8948
    %v8950 = vpop.xlane.xlu0 %8949
    %v8951 = vsel %vm2501, %v8761, 0.0
    %8952 = vadd.xlane.f32.xlu0 %v8951
    %v8953 = vpop.xlane.xlu0 %8952
    %v8954 = vrcp.pop %v8764
    %v8955 = vrcp.pop %v8767
    %v8956 = vrcp.pop %v8770
    %v8957 = vrcp.pop %v8773
    %v8958 = vrcp.pop %v8776
    %v8959 = vrcp.pop %v8779
    %v8960 = vrcp.pop %v8782
    %v8961 = vrcp.pop %v8785
    %v8962 = vrcp.pop %v8788
    %v8963 = vrcp.pop %v8791
    %v8964 = vrcp.pop %v8794
    %v8965 = vrcp.pop %v8797
    %v8966 = vrcp.pop %v8800
    %v8967 = vrcp.pop %v8803
    %v8968 = vrcp.pop %v8806
    %v8969 = vrcp.pop %v8809
    %v8970 = vrcp.pop %v8812
    %v8971 = vrcp.pop %v8815
    %v8972 = vrcp.pop %v8818
    %v8973 = vrcp.pop %v8821
    %v8974 = vrcp.pop %v8824
    %v8975 = vrcp.pop %v8827
    %v8976 = vrcp.pop %v8830
    %v8977 = vrcp.pop %v8833
    %v8978 = vrcp.pop %v8836
    %v8979 = vrcp.pop %v8839
    %v8980 = vrcp.pop %v8842
    %v8981 = vrcp.pop %v8845
    %v8982 = vrcp.pop %v8848
    %v8983 = vrcp.pop %v8851
    %v8984 = vrcp.pop %v8854
    %v8985 = vrcp.pop %v8857
    %v8986 = vrcp.pop %v8860
    %v8987 = vrcp.pop %v8863
    %v8988 = vrcp.pop %v8866
    %v8989 = vrcp.pop %v8869
    %v8990 = vrcp.pop %v8872
    %v8991 = vrcp.pop %v8875
    %v8992 = vrcp.pop %v8878
    %v8993 = vrcp.pop %v8881
    %v8994 = vrcp.pop %v8884
    %v8995 = vrcp.pop %v8887
    %v8996 = vrcp.pop %v8890
    %v8997 = vrcp.pop %v8893
    %v8998 = vrcp.pop %v8896
    %v8999 = vrcp.pop %v8899
    %v9000 = vrcp.pop %v8902
    %v9001 = vrcp.pop %v8905
    %v9002 = vrcp.pop %v8908
    %v9003 = vrcp.pop %v8911
    %v9004 = vrcp.pop %v8914
    %v9005 = vrcp.pop %v8917
    %v9006 = vrcp.pop %v8920
    %v9007 = vrcp.pop %v8923
    %v9008 = vrcp.pop %v8926
    %v9009 = vrcp.pop %v8929
    %v9010 = vrcp.pop %v8932
    %v9011 = vrcp.pop %v8935
    %v9012 = vrcp.pop %v8938
    %v9013 = vrcp.pop %v8941
    %v9014 = vrcp.pop %v8944
    %v9015 = vrcp.pop %v8947
    %v9016 = vrcp.pop %v8950
    %v9017 = vrcp.pop %v8953
    %v9018 = vmul.f32 %v8635, %v8954
    %v9019 = vmul.f32 %v8637, %v8955
    %v9020 = vmul.f32 %v8639, %v8956
    %v9021 = vmul.f32 %v8641, %v8957
    %v9022 = vmul.f32 %v8643, %v8958
    %v9023 = vmul.f32 %v8645, %v8959
    %v9024 = vmul.f32 %v8647, %v8960
    %v9025 = vmul.f32 %v8649, %v8961
    %v9026 = vmul.f32 %v8651, %v8962
    %v9027 = vmul.f32 %v8653, %v8963
    %v9028 = vmul.f32 %v8655, %v8964
    %v9029 = vmul.f32 %v8657, %v8965
    %v9030 = vmul.f32 %v8659, %v8966
    %v9031 = vmul.f32 %v8661, %v8967
    %v9032 = vmul.f32 %v8663, %v8968
    %v9033 = vmul.f32 %v8665, %v8969
    %v9034 = vmul.f32 %v8667, %v8970
    %v9035 = vmul.f32 %v8669, %v8971
    %v9036 = vmul.f32 %v8671, %v8972
    %v9037 = vmul.f32 %v8673, %v8973
    %v9038 = vmul.f32 %v8675, %v8974
    %v9039 = vmul.f32 %v8677, %v8975
    %v9040 = vmul.f32 %v8679, %v8976
    %v9041 = vmul.f32 %v8681, %v8977
    %v9042 = vmul.f32 %v8683, %v8978
    %v9043 = vmul.f32 %v8685, %v8979
    %v9044 = vmul.f32 %v8687, %v8980
    %v9045 = vmul.f32 %v8689, %v8981
    %v9046 = vmul.f32 %v8691, %v8982
    %v9047 = vmul.f32 %v8693, %v8983
    %v9048 = vmul.f32 %v8695, %v8984
    %v9049 = vmul.f32 %v8697, %v8985
    %v9050 = vmul.f32 %v8699, %v8986
    %v9051 = vmul.f32 %v8701, %v8987
    %v9052 = vmul.f32 %v8703, %v8988
    %v9053 = vmul.f32 %v8705, %v8989
    %v9054 = vmul.f32 %v8707, %v8990
    %v9055 = vmul.f32 %v8709, %v8991
    %v9056 = vmul.f32 %v8711, %v8992
    %v9057 = vmul.f32 %v8713, %v8993
    %v9058 = vmul.f32 %v8715, %v8994
    %v9059 = vmul.f32 %v8717, %v8995
    %v9060 = vmul.f32 %v8719, %v8996
    %v9061 = vmul.f32 %v8721, %v8997
    %v9062 = vmul.f32 %v8723, %v8998
    %v9063 = vmul.f32 %v8725, %v8999
    %v9064 = vmul.f32 %v8727, %v9000
    %v9065 = vmul.f32 %v8729, %v9001
    %v9066 = vmul.f32 %v8731, %v9002
    %v9067 = vmul.f32 %v8733, %v9003
    %v9068 = vmul.f32 %v8735, %v9004
    %v9069 = vmul.f32 %v8737, %v9005
    %v9070 = vmul.f32 %v8739, %v9006
    %v9071 = vmul.f32 %v8741, %v9007
    %v9072 = vmul.f32 %v8743, %v9008
    %v9073 = vmul.f32 %v8745, %v9009
    %v9074 = vmul.f32 %v8747, %v9010
    %v9075 = vmul.f32 %v8749, %v9011
    %v9076 = vmul.f32 %v8751, %v9012
    %v9077 = vmul.f32 %v8753, %v9013
    %v9078 = vmul.f32 %v8755, %v9014
    %v9079 = vmul.f32 %v8757, %v9015
    %v9080 = vmul.f32 %v8759, %v9016
    %v9081 = vmul.f32 %v8761, %v9017
    %9082 = vst.msk [vmem:[%s8] sm:$0xff] %vm2501, %v9018
    %9083 = vst.msk [vmem:[%s8 + $0x8] sm:$0xff] %vm2501, %v9019
    %9084 = vst.msk [vmem:[%s8 + $0x10] sm:$0xff] %vm2501, %v9020
    %9085 = vst.msk [vmem:[%s8 + $0x18] sm:$0xff] %vm2501, %v9021
    %9086 = vst.msk [vmem:[%s8 + $0x20] sm:$0xff] %vm2501, %v9022
    %9087 = vst.msk [vmem:[%s8 + $0x28] sm:$0xff] %vm2501, %v9023
    %9088 = vst.msk [vmem:[%s8 + $0x30] sm:$0xff] %vm2501, %v9024
    %9089 = vst.msk [vmem:[%s8 + $0x38] sm:$0xff] %vm2501, %v9025
    %9090 = vst.msk [vmem:[%s8 + $0x40] sm:$0xff] %vm2501, %v9026
    %9091 = vst.msk [vmem:[%s8 + $0x48] sm:$0xff] %vm2501, %v9027
    %9092 = vst.msk [vmem:[%s8 + $0x50] sm:$0xff] %vm2501, %v9028
    %9093 = vst.msk [vmem:[%s8 + $0x58] sm:$0xff] %vm2501, %v9029
    %9094 = vst.msk [vmem:[%s8 + $0x60] sm:$0xff] %vm2501, %v9030
    %9095 = vst.msk [vmem:[%s8 + $0x68] sm:$0xff] %vm2501, %v9031
    %9096 = vst.msk [vmem:[%s8 + $0x70] sm:$0xff] %vm2501, %v9032
    %9097 = vst.msk [vmem:[%s8 + $0x78] sm:$0xff] %vm2501, %v9033
    %9098 = vst.msk [vmem:[%s8 + $0x80] sm:$0xff] %vm2501, %v9034
    %9099 = vst.msk [vmem:[%s8 + $0x88] sm:$0xff] %vm2501, %v9035
    %9100 = vst.msk [vmem:[%s8 + $0x90] sm:$0xff] %vm2501, %v9036
    %9101 = vst.msk [vmem:[%s8 + $0x98] sm:$0xff] %vm2501, %v9037
    %9102 = vst.msk [vmem:[%s8 + $0xa0] sm:$0xff] %vm2501, %v9038
    %9103 = vst.msk [vmem:[%s8 + $0xa8] sm:$0xff] %vm2501, %v9039
    %9104 = vst.msk [vmem:[%s8 + $0xb0] sm:$0xff] %vm2501, %v9040
    %9105 = vst.msk [vmem:[%s8 + $0xb8] sm:$0xff] %vm2501, %v9041
    %9106 = vst.msk [vmem:[%s8 + $0xc0] sm:$0xff] %vm2501, %v9042
    %9107 = vst.msk [vmem:[%s8 + $0xc8] sm:$0xff] %vm2501, %v9043
    %9108 = vst.msk [vmem:[%s8 + $0xd0] sm:$0xff] %vm2501, %v9044
    %9109 = vst.msk [vmem:[%s8 + $0xd8] sm:$0xff] %vm2501, %v9045
    %9110 = vst.msk [vmem:[%s8 + $0xe0] sm:$0xff] %vm2501, %v9046
    %9111 = vst.msk [vmem:[%s8 + $0xe8] sm:$0xff] %vm2501, %v9047
    %9112 = vst.msk [vmem:[%s8 + $0xf0] sm:$0xff] %vm2501, %v9048
    %9113 = vst.msk [vmem:[%s8 + $0xf8] sm:$0xff] %vm2501, %v9049
    %9114 = vst.msk [vmem:[%s8 + $0x100] sm:$0xff] %vm2501, %v9050
    %9115 = vst.msk [vmem:[%s8 + $0x108] sm:$0xff] %vm2501, %v9051
    %9116 = vst.msk [vmem:[%s8 + $0x110] sm:$0xff] %vm2501, %v9052
    %9117 = vst.msk [vmem:[%s8 + $0x118] sm:$0xff] %vm2501, %v9053
    %9118 = vst.msk [vmem:[%s8 + $0x120] sm:$0xff] %vm2501, %v9054
    %9119 = vst.msk [vmem:[%s8 + $0x128] sm:$0xff] %vm2501, %v9055
    %9120 = vst.msk [vmem:[%s8 + $0x130] sm:$0xff] %vm2501, %v9056
    %9121 = vst.msk [vmem:[%s8 + $0x138] sm:$0xff] %vm2501, %v9057
    %9122 = vst.msk [vmem:[%s8 + $0x140] sm:$0xff] %vm2501, %v9058
    %9123 = vst.msk [vmem:[%s8 + $0x148] sm:$0xff] %vm2501, %v9059
    %9124 = vst.msk [vmem:[%s8 + $0x150] sm:$0xff] %vm2501, %v9060
    %9125 = vst.msk [vmem:[%s8 + $0x158] sm:$0xff] %vm2501, %v9061
    %9126 = vst.msk [vmem:[%s8 + $0x160] sm:$0xff] %vm2501, %v9062
    %9127 = vst.msk [vmem:[%s8 + $0x168] sm:$0xff] %vm2501, %v9063
    %9128 = vst.msk [vmem:[%s8 + $0x170] sm:$0xff] %vm2501, %v9064
    %9129 = vst.msk [vmem:[%s8 + $0x178] sm:$0xff] %vm2501, %v9065
    %9130 = vst.msk [vmem:[%s8 + $0x180] sm:$0xff] %vm2501, %v9066
    %9131 = vst.msk [vmem:[%s8 + $0x188] sm:$0xff] %vm2501, %v9067
    %9132 = vst.msk [vmem:[%s8 + $0x190] sm:$0xff] %vm2501, %v9068
    %9133 = vst.msk [vmem:[%s8 + $0x198] sm:$0xff] %vm2501, %v9069
    %9134 = vst.msk [vmem:[%s8 + $0x1a0] sm:$0xff] %vm2501, %v9070
    %9135 = vst.msk [vmem:[%s8 + $0x1a8] sm:$0xff] %vm2501, %v9071
    %9136 = vst.msk [vmem:[%s8 + $0x1b0] sm:$0xff] %vm2501, %v9072
    %9137 = vst.msk [vmem:[%s8 + $0x1b8] sm:$0xff] %vm2501, %v9073
    %9138 = vst.msk [vmem:[%s8 + $0x1c0] sm:$0xff] %vm2501, %v9074
    %9139 = vst.msk [vmem:[%s8 + $0x1c8] sm:$0xff] %vm2501, %v9075
    %9140 = vst.msk [vmem:[%s8 + $0x1d0] sm:$0xff] %vm2501, %v9076
    %9141 = vst.msk [vmem:[%s8 + $0x1d8] sm:$0xff] %vm2501, %v9077
    %9142 = vst.msk [vmem:[%s8 + $0x1e0] sm:$0xff] %vm2501, %v9078
    %9143 = vst.msk [vmem:[%s8 + $0x1e8] sm:$0xff] %vm2501, %v9079
    %9144 = vst.msk [vmem:[%s8 + $0x1f0] sm:$0xff] %vm2501, %v9080
    %9145 = vst.msk [vmem:[%s8 + $0x1f8] sm:$0xff] %vm2501, %v9081
    // Predicated region
    $region42: #{tpu_custom_call.1} parent=1 // pred_check
      _
    $region43: #{tpu_custom_call.1} parent=1 // pred_check_branch
      %9147 = sbr.rel (0) target = $region45
    $region44: #{tpu_custom_call.1} parent=1 // pred_region
      _
    $region45: #{tpu_custom_call.1} parent=1 // pred_fallthru
      _
    // Predicated region
    $region46: #{tpu_custom_call.1} parent=1 // pred_check
      _
    $region47: #{tpu_custom_call.1} parent=1 // pred_check_branch
      %9149 = sbr.rel (0) target = $region49
    $region48: #{tpu_custom_call.1} parent=1 // pred_region
      _
    $region49: #{tpu_custom_call.1} parent=1 // pred_fallthru
      _
    %9150 = vsyncpa [#allocation4], 1
    %9151 = vsyncpa [#allocation5], 1

</llo_original>
